<compile_context>
chip_gen: v7x
topology: tpu7x:2x2x1
jax: 0.10.0
libtpu: 0.0.40
codegen_flags: <defaults>
</compile_context>

<pallas_src>
import functools

import jax
import jax.numpy as jnp
from jax.experimental import pallas as pl
from jax.experimental.pallas import tpu as pltpu

EPS = 1e-5
RATE = 1
LANE = 128
SUBLANE = 8


def _round_up(v, m):
    return (v + m - 1) // m * m


def _pad_to(a, shape):
    return jnp.pad(a, [(0, t - s) for s, t in zip(a.shape, shape)])


# ---------------------------------------------------------------------------
# Fused ASPP kernel
#   per output tile: br1 (1x1), br2/3/4 (dilated 3x3, d = d0, 2*d0, 3*d0)
#   accumulated over Cin tiles into a VMEM scratch, then
#   out = relu( sum_k relu(acc_k + shift_k) @ wcat_k + gb[b] )
# The 7 x* refs are block-indexed views of ONE halo-padded input array, one
# per vertical halo offset j*d0 (tile_h == d0, so offsets land on whole
# blocks); all column taps are slices of those views.
# ---------------------------------------------------------------------------
def _aspp_fused_kernel(x0, x1, x2, x3, x4, x5, x6,
                       w1_ref, s1_ref, w2_ref, s2_ref, w3_ref, s3_ref,
                       w4_ref, s4_ref, wc_ref, gb_ref, o_ref, acc_ref, *, d0):
    k = pl.program_id(2)
    xs = (x0, x1, x2, x3, x4, x5, x6)
    tile_h, w_c, cout = o_ref.shape[1], o_ref.shape[2], o_ref.shape[3]
    m = tile_h * w_c
    pad = 3 * d0

    @pl.when(k == 0)
    def _init():
        acc_ref[...] = jnp.zeros_like(acc_ref)

    def tap(j, col_off):
        # view j holds exactly the tile_h input rows at vertical halo offset
        # j*d0; W_c is a multiple of 8 so the reshape is layout-preserving.
        r = xs[j]
        return r[0, :, col_off:col_off + w_c, :].reshape(m, -1)

    # center tap (image-aligned rows/cols) is shared by branch 1 and the
    # ky=kx=1 taps of the three dilated branches -> compute once.
    center = tap(3, pad)

    # branch 1: 1x1 conv
    acc_ref[0] += jnp.dot(center, w1_ref[...],
                          preferred_element_type=jnp.float32)

    # branches 2..4: dilated 3x3 convs as 9 shifted matmuls each
    for bi, w9_ref in enumerate((w2_ref, w3_ref, w4_ref)):
        mlt = bi + 1                       # dilation = mlt * d0
        d = mlt * d0
        part = jnp.dot(center, w9_ref[4], preferred_element_type=jnp.float32)
        for ky in range(3):
            for kx in range(3):
                if ky == 1 and kx == 1:
                    continue
                part += jnp.dot(tap(3 + (ky - 1) * mlt, pad + (kx - 1) * d),
                                w9_ref[ky * 3 + kx],
                                preferred_element_type=jnp.float32)
        acc_ref[bi + 1] += part

    @pl.when(k == pl.num_programs(2) - 1)
    def _finalize():
        shifts = (s1_ref, s2_ref, s3_ref, s4_ref)
        y = gb_ref[0]                                    # (1, Cout_p) row bias
        for bi in range(4):
            br = jnp.maximum(acc_ref[bi] + shifts[bi][...], 0.0)
            y = y + jnp.dot(br.astype(jnp.bfloat16), wc_ref[bi],
                            preferred_element_type=jnp.float32)
        o_ref[...] = jnp.maximum(y, 0.0).reshape(o_ref.shape).astype(o_ref.dtype)


# ---------------------------------------------------------------------------
# Wrapper: BN folding, padding, tile selection, pallas_call
# ---------------------------------------------------------------------------
def _fold_bn(w, b, bn):
    scale = bn['gamma'] / jnp.sqrt(bn['var'] + EPS)
    shift = bn['beta'] - bn['mean'] * scale
    if b is not None:
        shift = shift + b * scale
    return w * scale, shift


def _vmem_need(tile_k, tile_h, wp, w_c, cout_p):
    act = 7 * 2 * tile_h * wp * tile_k * 2        # 7 halo views, dbl-buffered, bf16
    wts = 2 * 28 * tile_k * cout_p * 2            # w1 + 3x(9) 3x3 blocks, bf16
    wcat = 2 * 4 * cout_p * cout_p * 2            # concat weight, bf16
    acc = 4 * tile_h * w_c * cout_p * 4           # f32 accumulator scratch
    outb = 2 * tile_h * w_c * cout_p * 4          # output block, f32
    misc = 2 * 5 * cout_p * 4                     # shifts + gb rows
    return act + wts + wcat + acc + outb + misc


def aspp_forward(x_nchw, p, rate=RATE):
    N, Cin, H, W = x_nchw.shape
    Cout = p['w1'].shape[1]
    Cin_p = _round_up(Cin, LANE)
    Cout_p = _round_up(Cout, LANE)
    d0 = 6 * rate                        # base dilation; branches use d0, 2d0, 3d0
    pad = 3 * d0                         # maximum halo (18 * rate)
    tile_h = d0                          # must divide d0 for the 7-view halo trick
    H_pad = _round_up(H, tile_h)
    n_h = H_pad // tile_h
    W_c = _round_up(W, SUBLANE)                    # sublane-dense compute width
    Wp = _round_up(2 * pad + W_c, SUBLANE)         # sublane-dense padded width
    f32, bf16 = jnp.float32, jnp.bfloat16

    # --- per-generation VMEM budget & Cin tile selection (weights stationary
    #     whenever they fit; otherwise split Cin and rely on larger tile_h) ---
    try:
        vmem_cap = int(pltpu.get_tpu_info().vmem_capacity_bytes)
    except Exception:
        vmem_cap = 64 * 1024 * 1024                # conservative (v7x-sized)
    if vmem_cap <= 64 * 1024 * 1024:
        vmem_limit = 48 * 1024 * 1024              # v7x: 64 MiB physical
    else:
        vmem_limit = 100 * 1024 * 1024             # v5e/v6e: 128 MiB physical
    budget = vmem_limit - 8 * 1024 * 1024          # headroom for compiler scratch

    cands = [c for c in range(Cin_p, 0, -LANE) if Cin_p % c == 0]
    tile_k = cands[-1]
    for c in cands:
        if _vmem_need(c, tile_h, Wp, W_c, Cout_p) <= budget:
            tile_k = c
            break
    n_k = Cin_p // tile_k

    # --- single halo-padded, channel-padded bf16 copy of the input ---
    x = jnp.transpose(x_nchw, (0, 2, 3, 1)).astype(bf16)            # NHWC
    x_pad = jnp.pad(x, ((0, 0),
                        (pad, pad + H_pad - H),
                        (pad, Wp - pad - W),
                        (0, Cin_p - Cin)))

    # --- fold BN (+ conv bias) into weights / per-channel shifts, pad ---
    w1f, s1 = _fold_bn(p['w1'], p['b1'], p['bn1'])
    w1f = _pad_to(w1f, (Cin_p, Cout_p)).astype(bf16)
    s1 = _pad_to(s1, (Cout_p,)).reshape(1, Cout_p).astype(f32)

    def prep3x3(w, b, bn):
        wf, sh = _fold_bn(w, b, bn)                                  # (3,3,Cin,Cout)
        wf = _pad_to(wf.reshape(9, Cin, Cout), (9, Cin_p, Cout_p)).astype(bf16)
        return wf, _pad_to(sh, (Cout_p,)).reshape(1, Cout_p).astype(f32)

    w2f, s2 = prep3x3(p['w2'], p['b2'], p['bn2'])
    w3f, s3 = prep3x3(p['w3'], p['b3'], p['bn3'])
    w4f, s4 = prep3x3(p['w4'], p['b4'], p['bn4'])

    wcf, bc = _fold_bn(p['w_cat'], p['b_cat'], p['bn_cat'])          # (5*Cout, Cout)
    wc_blocks = wcf.reshape(5, Cout, Cout)
    wcat4 = _pad_to(wc_blocks[:4], (4, Cout_p, Cout_p)).astype(bf16)
    wcat5 = _pad_to(wc_blocks[4], (Cout_p, Cout_p)).astype(f32)
    bc = _pad_to(bc, (Cout_p,)).reshape(1, Cout_p).astype(f32)

    w5f, s5 = _fold_bn(p['w5'], None, p['bn5'])
    w5f = _pad_to(w5f, (Cin_p, Cout_p)).astype(f32)
    s5 = _pad_to(s5, (Cout_p,)).reshape(1, Cout_p).astype(f32)

    # --- global-average-pool branch (tiny): plain jnp, per-image row bias ---
    # exact: the bilinear 1x1 -> HxW upsample of a 1x1 map is a broadcast.
    mean = jnp.mean(x_nchw.astype(f32), axis=(2, 3))                 # (N, Cin)
    mean = _pad_to(mean, (N, Cin_p))
    g = jnp.maximum(mean @ w5f + s5, 0.0)                            # (N, Cout_p)
    gb = (g @ wcat5 + bc).reshape(N, 1, Cout_p)                      # f32 row bias

    # --- fused ASPP kernel (all branches + concat + final 1x1 conv) ---
    def _x_spec(j):
        # vertical halo offset j*d0  ==  j whole H-blocks (tile_h == d0)
        return pl.BlockSpec((1, tile_h, Wp, tile_k),
                            lambda b, h, k, j=j: (b, h + j, 0, k))

    m_tile = tile_h * W_c
    flops = 2 * N * n_h * m_tile * (28 * Cin_p + 4 * Cout_p) * Cout_p
    act_bytes = 7 * N * n_h * n_k * tile_h * Wp * tile_k * 2
    wt_stream = 1 if n_k == 1 else N * n_h        # constant block idx => fetched once
    wt_bytes = wt_stream * (28 * Cin_p * Cout_p * 2) + 4 * Cout_p * Cout_p * 2
    out_bytes = N * n_h * m_tile * Cout_p * 4
    bytes_accessed = act_bytes + wt_bytes + out_bytes + N * Cout_p * 4

    out = pl.pallas_call(
        functools.partial(_aspp_fused_kernel, d0=d0),
        # TODO(synk): emit bf16 / NHWC directly when the downstream consumer
        # accepts it (halves write bandwidth); kept f32 NCHW for module parity.
        out_shape=jax.ShapeDtypeStruct((N, H_pad, W_c, Cout_p), f32),
        grid=(N, n_h, n_k),
        in_specs=[_x_spec(j) for j in range(7)] + [
            pl.BlockSpec((tile_k, Cout_p), lambda b, h, k: (k, 0)),        # w1
            pl.BlockSpec((1, Cout_p), lambda b, h, k: (0, 0)),             # s1
            pl.BlockSpec((9, tile_k, Cout_p), lambda b, h, k: (0, k, 0)),  # w2
            pl.BlockSpec((1, Cout_p), lambda b, h, k: (0, 0)),             # s2
            pl.BlockSpec((9, tile_k, Cout_p), lambda b, h, k: (0, k, 0)),  # w3
            pl.BlockSpec((1, Cout_p), lambda b, h, k: (0, 0)),             # s3
            pl.BlockSpec((9, tile_k, Cout_p), lambda b, h, k: (0, k, 0)),  # w4
            pl.BlockSpec((1, Cout_p), lambda b, h, k: (0, 0)),             # s4
            pl.BlockSpec((4, Cout_p, Cout_p), lambda b, h, k: (0, 0, 0)),  # wcat
            pl.BlockSpec((1, 1, Cout_p), lambda b, h, k: (b, 0, 0)),       # gb
        ],
        out_specs=pl.BlockSpec((1, tile_h, W_c, Cout_p),
                               lambda b, h, k: (b, h, 0, 0)),
        scratch_shapes=[pltpu.VMEM((4, m_tile, Cout_p), f32)],
        compiler_params=pltpu.CompilerParams(
            dimension_semantics=("parallel", "parallel", "arbitrary"),
            vmem_limit_bytes=vmem_limit),
        cost_estimate=pl.CostEstimate(flops=flops, transcendentals=0,
                                      bytes_accessed=bytes_accessed),
    )(x_pad, x_pad, x_pad, x_pad, x_pad, x_pad, x_pad,
      w1f, s1, w2f, s2, w3f, s3, w4f, s4, wcat4, gb)

    out = out[:, :H, :W, :Cout]
    return jnp.transpose(out, (0, 3, 1, 2))             # back to NCHW


# ----------------------- deterministic parameter init -----------------------
def init_params(key, cin, cout):
    ks = list(jax.random.split(key, 17))

    def bn_params(k):
        k1, k2, k3, k4 = jax.random.split(k, 4)
        return dict(
            gamma=jax.random.uniform(k1, (cout,), jnp.float32, 0.5, 1.5),
            beta=0.1 * jax.random.normal(k2, (cout,), jnp.float32),
            mean=0.1 * jax.random.normal(k3, (cout,), jnp.float32),
            var=jax.random.uniform(k4, (cout,), jnp.float32, 0.5, 1.5),
        )

    return dict(
        w1=0.1 * jax.random.normal(ks[0], (cin, cout), jnp.float32),
        b1=0.1 * jax.random.normal(ks[1], (cout,), jnp.float32),
        bn1=bn_params(ks[2]),
        w2=0.1 * jax.random.normal(ks[3], (3, 3, cin, cout), jnp.float32),
        b2=0.1 * jax.random.normal(ks[4], (cout,), jnp.float32),
        bn2=bn_params(ks[5]),
        w3=0.1 * jax.random.normal(ks[6], (3, 3, cin, cout), jnp.float32),
        b3=0.1 * jax.random.normal(ks[7], (cout,), jnp.float32),
        bn3=bn_params(ks[8]),
        w4=0.1 * jax.random.normal(ks[9], (3, 3, cin, cout), jnp.float32),
        b4=0.1 * jax.random.normal(ks[10], (cout,), jnp.float32),
        bn4=bn_params(ks[11]),
        w5=0.1 * jax.random.normal(ks[12], (cin, cout), jnp.float32),  # bias=False
        bn5=bn_params(ks[13]),
        w_cat=0.1 * jax.random.normal(ks[14], (5 * cout, cout), jnp.float32),
        b_cat=0.1 * jax.random.normal(ks[15], (cout,), jnp.float32),
        bn_cat=bn_params(ks[16]),
    )


# ---------------------- pure-JAX reference (lax.conv) ------------------------
def ref_forward(x_nchw, p, rate=RATE):
    N, Cin, H, W = x_nchw.shape
    Cout = p['w1'].shape[1]
    x = jnp.transpose(x_nchw, (0, 2, 3, 1)).astype(jnp.float32)
    dn = ('NHWC', 'HWIO', 'NHWC')

    def cbr(inp, w, b, bn, dilation, padding):
        y = jax.lax.conv_general_dilated(inp, w, (1, 1),
                                         ((padding, padding), (padding, padding)),
                                         rhs_dilation=(dilation, dilation),
                                         dimension_numbers=dn)
        if b is not None:
            y = y + b
        y = (y - bn['mean']) / jnp.sqrt(bn['var'] + EPS) * bn['gamma'] + bn['beta']
        return jnp.maximum(y, 0.0)

    br1 = cbr(x, p['w1'].reshape(1, 1, Cin, Cout), p['b1'], p['bn1'], 1, 0)
    br2 = cbr(x, p['w2'], p['b2'], p['bn2'], 6 * rate, 6 * rate)
    br3 = cbr(x, p['w3'], p['b3'], p['bn3'], 12 * rate, 12 * rate)
    br4 = cbr(x, p['w4'], p['b4'], p['bn4'], 18 * rate, 18 * rate)
    gm = jnp.mean(x, axis=(1, 2), keepdims=True)
    g = cbr(gm, p['w5'].reshape(1, 1, Cin, Cout), None, p['bn5'], 1, 0)
    g = jnp.broadcast_to(g, (N, H, W, Cout))   # bilinear 1x1->HxW, align_corners=True
    cat = jnp.concatenate([br1, br2, br3, br4, g], axis=-1)
    out = cbr(cat, p['w_cat'].reshape(1, 1, 5 * Cout, Cout), p['b_cat'],
              p['bn_cat'], 1, 0)
    return jnp.transpose(out, (0, 3, 1, 2))


if __name__ == "__main__":
    key = jax.random.PRNGKey(0)
    kx, kp = jax.random.split(key)
    N, Cin, Cout, H, W = 2, 4, 8, 16, 16
    x = jax.random.normal(kx, (N, Cin, H, W), jnp.float32)
    params = init_params(kp, Cin, Cout)

    out = jax.block_until_ready(jax.jit(aspp_forward)(x, params))
    ref = jax.block_until_ready(ref_forward(x, params))

    assert out.shape == (N, Cout, H, W), out.shape
    max_err = float(jnp.max(jnp.abs(out - ref)))
    # bf16 MXU operands with f32 accumulation -> bf16-level tolerance
    assert jnp.allclose(out, ref, rtol=2e-2, atol=2e-2), max_err
    print("KERNEL_OK")
</pallas_src>

<mosaic_0001>
module attributes {stable_mosaic.version = 11 : i64} {
  func.func @_aspp_fused_kernel(%arg0: i32, %arg1: i32, %arg2: i32, %arg3: memref<1x6x56x128xbf16, #tpu.memory_space<vmem>>, %arg4: memref<1x6x56x128xbf16, #tpu.memory_space<vmem>>, %arg5: memref<1x6x56x128xbf16, #tpu.memory_space<vmem>>, %arg6: memref<1x6x56x128xbf16, #tpu.memory_space<vmem>>, %arg7: memref<1x6x56x128xbf16, #tpu.memory_space<vmem>>, %arg8: memref<1x6x56x128xbf16, #tpu.memory_space<vmem>>, %arg9: memref<1x6x56x128xbf16, #tpu.memory_space<vmem>>, %arg10: memref<128x128xbf16, #tpu.memory_space<vmem>>, %arg11: memref<1x128xf32, #tpu.memory_space<vmem>>, %arg12: memref<9x128x128xbf16, #tpu.memory_space<vmem>>, %arg13: memref<1x128xf32, #tpu.memory_space<vmem>>, %arg14: memref<9x128x128xbf16, #tpu.memory_space<vmem>>, %arg15: memref<1x128xf32, #tpu.memory_space<vmem>>, %arg16: memref<9x128x128xbf16, #tpu.memory_space<vmem>>, %arg17: memref<1x128xf32, #tpu.memory_space<vmem>>, %arg18: memref<4x128x128xbf16, #tpu.memory_space<vmem>>, %arg19: memref<1x1x128xf32, #tpu.memory_space<vmem>>, %arg20: memref<1x6x16x128xf32, #tpu.memory_space<vmem>>, %arg21: memref<4x96x128xf32, #tpu.memory_space<vmem>>) attributes {dimension_semantics = [#tpu.dimension_semantics<parallel>, #tpu.dimension_semantics<parallel>, #tpu.dimension_semantics<arbitrary>], iteration_bounds = array<i64: 2, 3, 1>, scalar_prefetch = 0 : i64, scratch_operands = 1 : i64, tpu.core_type = #tpu.core_type<tc>, window_params = [{transform_indices = @transform_0, window_bounds = array<i64: 1, 6, 56, 128>}, {transform_indices = @transform_1, window_bounds = array<i64: 1, 6, 56, 128>}, {transform_indices = @transform_2, window_bounds = array<i64: 1, 6, 56, 128>}, {transform_indices = @transform_3, window_bounds = array<i64: 1, 6, 56, 128>}, {transform_indices = @transform_4, window_bounds = array<i64: 1, 6, 56, 128>}, {transform_indices = @transform_5, window_bounds = array<i64: 1, 6, 56, 128>}, {transform_indices = @transform_6, window_bounds = array<i64: 1, 6, 56, 128>}, {transform_indices = @transform_7, window_bounds = array<i64: 128, 128>}, {pipeline_mode = #tpu.pipeline_mode<synchronous>, transform_indices = @transform_8, window_bounds = array<i64: 1, 128>}, {transform_indices = @transform_9, window_bounds = array<i64: 9, 128, 128>}, {pipeline_mode = #tpu.pipeline_mode<synchronous>, transform_indices = @transform_10, window_bounds = array<i64: 1, 128>}, {transform_indices = @transform_11, window_bounds = array<i64: 9, 128, 128>}, {pipeline_mode = #tpu.pipeline_mode<synchronous>, transform_indices = @transform_12, window_bounds = array<i64: 1, 128>}, {transform_indices = @transform_13, window_bounds = array<i64: 9, 128, 128>}, {pipeline_mode = #tpu.pipeline_mode<synchronous>, transform_indices = @transform_14, window_bounds = array<i64: 1, 128>}, {pipeline_mode = #tpu.pipeline_mode<synchronous>, transform_indices = @transform_15, window_bounds = array<i64: 4, 128, 128>}, {transform_indices = @transform_16, window_bounds = array<i64: 1, 1, 128>}, {transform_indices = @transform_17, window_bounds = array<i64: 1, 6, 16, 128>}]} {
    %c0_i32 = arith.constant 0 : i32
    %0 = arith.cmpi eq, %arg2, %c0_i32 : i32
    %1 = arith.extui %0 : i1 to i32
    %c0_i32_0 = arith.constant 0 : i32
    %2 = arith.cmpi ne, %1, %c0_i32_0 : i32
    scf.if %2 {
      %cst_223 = arith.constant 0.000000e+00 : f32
      %212 = vector.broadcast %cst_223 : f32 to vector<4x96x128xf32>
      %c0_224 = arith.constant 0 : index
      %c0_225 = arith.constant 0 : index
      %c0_226 = arith.constant 0 : index
      %213 = vector.load %arg21[%c0_224, %c0_225, %c0_226] : memref<4x96x128xf32, #tpu.memory_space<vmem>>, vector<4x96x128xf32>
      tpu.vector_store %arg21[%c0_224, %c0_225, %c0_226], %212 {strides = array<i32>} : memref<4x96x128xf32, #tpu.memory_space<vmem>>, vector<4x96x128xf32>,
    } else {
    }
    %c0 = arith.constant 0 : index
    %c0_1 = arith.constant 0 : index
    %c18 = arith.constant 18 : index
    %c0_2 = arith.constant 0 : index
    %3 = vector.load %arg6[%c0, %c0_1, %c18, %c0_2] : memref<1x6x56x128xbf16, #tpu.memory_space<vmem>>, vector<1x6x16x128xbf16>
    %4 = vector.shape_cast %3 : vector<1x6x16x128xbf16> to vector<6x16x128xbf16>
    %5 = vector.shape_cast %4 : vector<6x16x128xbf16> to vector<96x128xbf16>
    %c0_3 = arith.constant 0 : index
    %c0_4 = arith.constant 0 : index
    %c0_5 = arith.constant 0 : index
    %6 = vector.load %arg21[%c0_3, %c0_4, %c0_5] : memref<4x96x128xf32, #tpu.memory_space<vmem>>, vector<1x96x128xf32>
    %7 = vector.shape_cast %6 : vector<1x96x128xf32> to vector<96x128xf32>
    %c0_6 = arith.constant 0 : index
    %c0_7 = arith.constant 0 : index
    %8 = vector.load %arg10[%c0_6, %c0_7] : memref<128x128xbf16, #tpu.memory_space<vmem>>, vector<128x128xbf16>
    %cst = arith.constant dense<0.000000e+00> : vector<96x128xf32>
    %9 = tpu.matmul %5, %8, %cst {dimension_numbers = #tpu.dot_dimension_numbers<[1], [0], [0], [1], [0, 0, 1, 1], [], []>} : vector<96x128xbf16>, vector<128x128xbf16>, vector<96x128xf32> -> vector<96x128xf32>
    %10 = arith.addf %7, %9 : vector<96x128xf32>
    %c0_8 = arith.constant 0 : index
    %c0_9 = arith.constant 0 : index
    %c0_10 = arith.constant 0 : index
    %11 = vector.load %arg21[%c0_8, %c0_9, %c0_10] : memref<4x96x128xf32, #tpu.memory_space<vmem>>, vector<1x96x128xf32>
    %12 = vector.shape_cast %11 : vector<1x96x128xf32> to vector<96x128xf32>
    %13 = vector.shape_cast %10 : vector<96x128xf32> to vector<1x96x128xf32>
    tpu.vector_store %arg21[%c0_8, %c0_9, %c0_10], %13 {strides = array<i32>} : memref<4x96x128xf32, #tpu.memory_space<vmem>>, vector<1x96x128xf32>,
    %c4 = arith.constant 4 : index
    %c0_11 = arith.constant 0 : index
    %c0_12 = arith.constant 0 : index
    %14 = vector.load %arg12[%c4, %c0_11, %c0_12] : memref<9x128x128xbf16, #tpu.memory_space<vmem>>, vector<1x128x128xbf16>
    %15 = vector.shape_cast %14 : vector<1x128x128xbf16> to vector<128x128xbf16>
    %cst_13 = arith.constant dense<0.000000e+00> : vector<96x128xf32>
    %16 = tpu.matmul %5, %15, %cst_13 {dimension_numbers = #tpu.dot_dimension_numbers<[1], [0], [0], [1], [0, 0, 1, 1], [], []>} : vector<96x128xbf16>, vector<128x128xbf16>, vector<96x128xf32> -> vector<96x128xf32>
    %c0_14 = arith.constant 0 : index
    %c0_15 = arith.constant 0 : index
    %c12 = arith.constant 12 : index
    %c0_16 = arith.constant 0 : index
    %17 = vector.load %arg5[%c0_14, %c0_15, %c12, %c0_16] : memref<1x6x56x128xbf16, #tpu.memory_space<vmem>>, vector<1x6x16x128xbf16>
    %18 = vector.shape_cast %17 : vector<1x6x16x128xbf16> to vector<6x16x128xbf16>
    %19 = vector.shape_cast %18 : vector<6x16x128xbf16> to vector<96x128xbf16>
    %c0_17 = arith.constant 0 : index
    %c0_18 = arith.constant 0 : index
    %c0_19 = arith.constant 0 : index
    %20 = vector.load %arg12[%c0_17, %c0_18, %c0_19] : memref<9x128x128xbf16, #tpu.memory_space<vmem>>, vector<1x128x128xbf16>
    %21 = vector.shape_cast %20 : vector<1x128x128xbf16> to vector<128x128xbf16>
    %cst_20 = arith.constant dense<0.000000e+00> : vector<96x128xf32>
    %22 = tpu.matmul %19, %21, %cst_20 {dimension_numbers = #tpu.dot_dimension_numbers<[1], [0], [0], [1], [0, 0, 1, 1], [], []>} : vector<96x128xbf16>, vector<128x128xbf16>, vector<96x128xf32> -> vector<96x128xf32>
    %23 = arith.addf %16, %22 : vector<96x128xf32>
    %c0_21 = arith.constant 0 : index
    %c0_22 = arith.constant 0 : index
    %c18_23 = arith.constant 18 : index
    %c0_24 = arith.constant 0 : index
    %24 = vector.load %arg5[%c0_21, %c0_22, %c18_23, %c0_24] : memref<1x6x56x128xbf16, #tpu.memory_space<vmem>>, vector<1x6x16x128xbf16>
    %25 = vector.shape_cast %24 : vector<1x6x16x128xbf16> to vector<6x16x128xbf16>
    %26 = vector.shape_cast %25 : vector<6x16x128xbf16> to vector<96x128xbf16>
    %c1 = arith.constant 1 : index
    %c0_25 = arith.constant 0 : index
    %c0_26 = arith.constant 0 : index
    %27 = vector.load %arg12[%c1, %c0_25, %c0_26] : memref<9x128x128xbf16, #tpu.memory_space<vmem>>, vector<1x128x128xbf16>
    %28 = vector.shape_cast %27 : vector<1x128x128xbf16> to vector<128x128xbf16>
    %cst_27 = arith.constant dense<0.000000e+00> : vector<96x128xf32>
    %29 = tpu.matmul %26, %28, %cst_27 {dimension_numbers = #tpu.dot_dimension_numbers<[1], [0], [0], [1], [0, 0, 1, 1], [], []>} : vector<96x128xbf16>, vector<128x128xbf16>, vector<96x128xf32> -> vector<96x128xf32>
    %30 = arith.addf %23, %29 : vector<96x128xf32>
    %c0_28 = arith.constant 0 : index
    %c0_29 = arith.constant 0 : index
    %c24 = arith.constant 24 : index
    %c0_30 = arith.constant 0 : index
    %31 = vector.load %arg5[%c0_28, %c0_29, %c24, %c0_30] : memref<1x6x56x128xbf16, #tpu.memory_space<vmem>>, vector<1x6x16x128xbf16>
    %32 = vector.shape_cast %31 : vector<1x6x16x128xbf16> to vector<6x16x128xbf16>
    %33 = vector.shape_cast %32 : vector<6x16x128xbf16> to vector<96x128xbf16>
    %c2 = arith.constant 2 : index
    %c0_31 = arith.constant 0 : index
    %c0_32 = arith.constant 0 : index
    %34 = vector.load %arg12[%c2, %c0_31, %c0_32] : memref<9x128x128xbf16, #tpu.memory_space<vmem>>, vector<1x128x128xbf16>
    %35 = vector.shape_cast %34 : vector<1x128x128xbf16> to vector<128x128xbf16>
    %cst_33 = arith.constant dense<0.000000e+00> : vector<96x128xf32>
    %36 = tpu.matmul %33, %35, %cst_33 {dimension_numbers = #tpu.dot_dimension_numbers<[1], [0], [0], [1], [0, 0, 1, 1], [], []>} : vector<96x128xbf16>, vector<128x128xbf16>, vector<96x128xf32> -> vector<96x128xf32>
    %37 = arith.addf %30, %36 : vector<96x128xf32>
    %c0_34 = arith.constant 0 : index
    %c0_35 = arith.constant 0 : index
    %c12_36 = arith.constant 12 : index
    %c0_37 = arith.constant 0 : index
    %38 = vector.load %arg6[%c0_34, %c0_35, %c12_36, %c0_37] : memref<1x6x56x128xbf16, #tpu.memory_space<vmem>>, vector<1x6x16x128xbf16>
    %39 = vector.shape_cast %38 : vector<1x6x16x128xbf16> to vector<6x16x128xbf16>
    %40 = vector.shape_cast %39 : vector<6x16x128xbf16> to vector<96x128xbf16>
    %c3 = arith.constant 3 : index
    %c0_38 = arith.constant 0 : index
    %c0_39 = arith.constant 0 : index
    %41 = vector.load %arg12[%c3, %c0_38, %c0_39] : memref<9x128x128xbf16, #tpu.memory_space<vmem>>, vector<1x128x128xbf16>
    %42 = vector.shape_cast %41 : vector<1x128x128xbf16> to vector<128x128xbf16>
    %cst_40 = arith.constant dense<0.000000e+00> : vector<96x128xf32>
    %43 = tpu.matmul %40, %42, %cst_40 {dimension_numbers = #tpu.dot_dimension_numbers<[1], [0], [0], [1], [0, 0, 1, 1], [], []>} : vector<96x128xbf16>, vector<128x128xbf16>, vector<96x128xf32> -> vector<96x128xf32>
    %44 = arith.addf %37, %43 : vector<96x128xf32>
    %c0_41 = arith.constant 0 : index
    %c0_42 = arith.constant 0 : index
    %c24_43 = arith.constant 24 : index
    %c0_44 = arith.constant 0 : index
    %45 = vector.load %arg6[%c0_41, %c0_42, %c24_43, %c0_44] : memref<1x6x56x128xbf16, #tpu.memory_space<vmem>>, vector<1x6x16x128xbf16>
    %46 = vector.shape_cast %45 : vector<1x6x16x128xbf16> to vector<6x16x128xbf16>
    %47 = vector.shape_cast %46 : vector<6x16x128xbf16> to vector<96x128xbf16>
    %c5 = arith.constant 5 : index
    %c0_45 = arith.constant 0 : index
    %c0_46 = arith.constant 0 : index
    %48 = vector.load %arg12[%c5, %c0_45, %c0_46] : memref<9x128x128xbf16, #tpu.memory_space<vmem>>, vector<1x128x128xbf16>
    %49 = vector.shape_cast %48 : vector<1x128x128xbf16> to vector<128x128xbf16>
    %cst_47 = arith.constant dense<0.000000e+00> : vector<96x128xf32>
    %50 = tpu.matmul %47, %49, %cst_47 {dimension_numbers = #tpu.dot_dimension_numbers<[1], [0], [0], [1], [0, 0, 1, 1], [], []>} : vector<96x128xbf16>, vector<128x128xbf16>, vector<96x128xf32> -> vector<96x128xf32>
    %51 = arith.addf %44, %50 : vector<96x128xf32>
    %c0_48 = arith.constant 0 : index
    %c0_49 = arith.constant 0 : index
    %c12_50 = arith.constant 12 : index
    %c0_51 = arith.constant 0 : index
    %52 = vector.load %arg7[%c0_48, %c0_49, %c12_50, %c0_51] : memref<1x6x56x128xbf16, #tpu.memory_space<vmem>>, vector<1x6x16x128xbf16>
    %53 = vector.shape_cast %52 : vector<1x6x16x128xbf16> to vector<6x16x128xbf16>
    %54 = vector.shape_cast %53 : vector<6x16x128xbf16> to vector<96x128xbf16>
    %c6 = arith.constant 6 : index
    %c0_52 = arith.constant 0 : index
    %c0_53 = arith.constant 0 : index
    %55 = vector.load %arg12[%c6, %c0_52, %c0_53] : memref<9x128x128xbf16, #tpu.memory_space<vmem>>, vector<1x128x128xbf16>
    %56 = vector.shape_cast %55 : vector<1x128x128xbf16> to vector<128x128xbf16>
    %cst_54 = arith.constant dense<0.000000e+00> : vector<96x128xf32>
    %57 = tpu.matmul %54, %56, %cst_54 {dimension_numbers = #tpu.dot_dimension_numbers<[1], [0], [0], [1], [0, 0, 1, 1], [], []>} : vector<96x128xbf16>, vector<128x128xbf16>, vector<96x128xf32> -> vector<96x128xf32>
    %58 = arith.addf %51, %57 : vector<96x128xf32>
    %c0_55 = arith.constant 0 : index
    %c0_56 = arith.constant 0 : index
    %c18_57 = arith.constant 18 : index
    %c0_58 = arith.constant 0 : index
    %59 = vector.load %arg7[%c0_55, %c0_56, %c18_57, %c0_58] : memref<1x6x56x128xbf16, #tpu.memory_space<vmem>>, vector<1x6x16x128xbf16>
    %60 = vector.shape_cast %59 : vector<1x6x16x128xbf16> to vector<6x16x128xbf16>
    %61 = vector.shape_cast %60 : vector<6x16x128xbf16> to vector<96x128xbf16>
    %c7 = arith.constant 7 : index
    %c0_59 = arith.constant 0 : index
    %c0_60 = arith.constant 0 : index
    %62 = vector.load %arg12[%c7, %c0_59, %c0_60] : memref<9x128x128xbf16, #tpu.memory_space<vmem>>, vector<1x128x128xbf16>
    %63 = vector.shape_cast %62 : vector<1x128x128xbf16> to vector<128x128xbf16>
    %cst_61 = arith.constant dense<0.000000e+00> : vector<96x128xf32>
    %64 = tpu.matmul %61, %63, %cst_61 {dimension_numbers = #tpu.dot_dimension_numbers<[1], [0], [0], [1], [0, 0, 1, 1], [], []>} : vector<96x128xbf16>, vector<128x128xbf16>, vector<96x128xf32> -> vector<96x128xf32>
    %65 = arith.addf %58, %64 : vector<96x128xf32>
    %c0_62 = arith.constant 0 : index
    %c0_63 = arith.constant 0 : index
    %c24_64 = arith.constant 24 : index
    %c0_65 = arith.constant 0 : index
    %66 = vector.load %arg7[%c0_62, %c0_63, %c24_64, %c0_65] : memref<1x6x56x128xbf16, #tpu.memory_space<vmem>>, vector<1x6x16x128xbf16>
    %67 = vector.shape_cast %66 : vector<1x6x16x128xbf16> to vector<6x16x128xbf16>
    %68 = vector.shape_cast %67 : vector<6x16x128xbf16> to vector<96x128xbf16>
    %c8 = arith.constant 8 : index
    %c0_66 = arith.constant 0 : index
    %c0_67 = arith.constant 0 : index
    %69 = vector.load %arg12[%c8, %c0_66, %c0_67] : memref<9x128x128xbf16, #tpu.memory_space<vmem>>, vector<1x128x128xbf16>
    %70 = vector.shape_cast %69 : vector<1x128x128xbf16> to vector<128x128xbf16>
    %cst_68 = arith.constant dense<0.000000e+00> : vector<96x128xf32>
    %71 = tpu.matmul %68, %70, %cst_68 {dimension_numbers = #tpu.dot_dimension_numbers<[1], [0], [0], [1], [0, 0, 1, 1], [], []>} : vector<96x128xbf16>, vector<128x128xbf16>, vector<96x128xf32> -> vector<96x128xf32>
    %72 = arith.addf %65, %71 : vector<96x128xf32>
    %c1_69 = arith.constant 1 : index
    %c0_70 = arith.constant 0 : index
    %c0_71 = arith.constant 0 : index
    %73 = vector.load %arg21[%c1_69, %c0_70, %c0_71] : memref<4x96x128xf32, #tpu.memory_space<vmem>>, vector<1x96x128xf32>
    %74 = vector.shape_cast %73 : vector<1x96x128xf32> to vector<96x128xf32>
    %75 = arith.addf %74, %72 : vector<96x128xf32>
    %c1_72 = arith.constant 1 : index
    %c0_73 = arith.constant 0 : index
    %c0_74 = arith.constant 0 : index
    %76 = vector.load %arg21[%c1_72, %c0_73, %c0_74] : memref<4x96x128xf32, #tpu.memory_space<vmem>>, vector<1x96x128xf32>
    %77 = vector.shape_cast %76 : vector<1x96x128xf32> to vector<96x128xf32>
    %78 = vector.shape_cast %75 : vector<96x128xf32> to vector<1x96x128xf32>
    tpu.vector_store %arg21[%c1_72, %c0_73, %c0_74], %78 {strides = array<i32>} : memref<4x96x128xf32, #tpu.memory_space<vmem>>, vector<1x96x128xf32>,
    %c4_75 = arith.constant 4 : index
    %c0_76 = arith.constant 0 : index
    %c0_77 = arith.constant 0 : index
    %79 = vector.load %arg14[%c4_75, %c0_76, %c0_77] : memref<9x128x128xbf16, #tpu.memory_space<vmem>>, vector<1x128x128xbf16>
    %80 = vector.shape_cast %79 : vector<1x128x128xbf16> to vector<128x128xbf16>
    %cst_78 = arith.constant dense<0.000000e+00> : vector<96x128xf32>
    %81 = tpu.matmul %5, %80, %cst_78 {dimension_numbers = #tpu.dot_dimension_numbers<[1], [0], [0], [1], [0, 0, 1, 1], [], []>} : vector<96x128xbf16>, vector<128x128xbf16>, vector<96x128xf32> -> vector<96x128xf32>
    %c0_79 = arith.constant 0 : index
    %c0_80 = arith.constant 0 : index
    %c6_81 = arith.constant 6 : index
    %c0_82 = arith.constant 0 : index
    %82 = vector.load %arg4[%c0_79, %c0_80, %c6_81, %c0_82] : memref<1x6x56x128xbf16, #tpu.memory_space<vmem>>, vector<1x6x16x128xbf16>
    %83 = vector.shape_cast %82 : vector<1x6x16x128xbf16> to vector<6x16x128xbf16>
    %84 = vector.shape_cast %83 : vector<6x16x128xbf16> to vector<96x128xbf16>
    %c0_83 = arith.constant 0 : index
    %c0_84 = arith.constant 0 : index
    %c0_85 = arith.constant 0 : index
    %85 = vector.load %arg14[%c0_83, %c0_84, %c0_85] : memref<9x128x128xbf16, #tpu.memory_space<vmem>>, vector<1x128x128xbf16>
    %86 = vector.shape_cast %85 : vector<1x128x128xbf16> to vector<128x128xbf16>
    %cst_86 = arith.constant dense<0.000000e+00> : vector<96x128xf32>
    %87 = tpu.matmul %84, %86, %cst_86 {dimension_numbers = #tpu.dot_dimension_numbers<[1], [0], [0], [1], [0, 0, 1, 1], [], []>} : vector<96x128xbf16>, vector<128x128xbf16>, vector<96x128xf32> -> vector<96x128xf32>
    %88 = arith.addf %81, %87 : vector<96x128xf32>
    %c0_87 = arith.constant 0 : index
    %c0_88 = arith.constant 0 : index
    %c18_89 = arith.constant 18 : index
    %c0_90 = arith.constant 0 : index
    %89 = vector.load %arg4[%c0_87, %c0_88, %c18_89, %c0_90] : memref<1x6x56x128xbf16, #tpu.memory_space<vmem>>, vector<1x6x16x128xbf16>
    %90 = vector.shape_cast %89 : vector<1x6x16x128xbf16> to vector<6x16x128xbf16>
    %91 = vector.shape_cast %90 : vector<6x16x128xbf16> to vector<96x128xbf16>
    %c1_91 = arith.constant 1 : index
    %c0_92 = arith.constant 0 : index
    %c0_93 = arith.constant 0 : index
    %92 = vector.load %arg14[%c1_91, %c0_92, %c0_93] : memref<9x128x128xbf16, #tpu.memory_space<vmem>>, vector<1x128x128xbf16>
    %93 = vector.shape_cast %92 : vector<1x128x128xbf16> to vector<128x128xbf16>
    %cst_94 = arith.constant dense<0.000000e+00> : vector<96x128xf32>
    %94 = tpu.matmul %91, %93, %cst_94 {dimension_numbers = #tpu.dot_dimension_numbers<[1], [0], [0], [1], [0, 0, 1, 1], [], []>} : vector<96x128xbf16>, vector<128x128xbf16>, vector<96x128xf32> -> vector<96x128xf32>
    %95 = arith.addf %88, %94 : vector<96x128xf32>
    %c0_95 = arith.constant 0 : index
    %c0_96 = arith.constant 0 : index
    %c30 = arith.constant 30 : index
    %c0_97 = arith.constant 0 : index
    %96 = vector.load %arg4[%c0_95, %c0_96, %c30, %c0_97] : memref<1x6x56x128xbf16, #tpu.memory_space<vmem>>, vector<1x6x16x128xbf16>
    %97 = vector.shape_cast %96 : vector<1x6x16x128xbf16> to vector<6x16x128xbf16>
    %98 = vector.shape_cast %97 : vector<6x16x128xbf16> to vector<96x128xbf16>
    %c2_98 = arith.constant 2 : index
    %c0_99 = arith.constant 0 : index
    %c0_100 = arith.constant 0 : index
    %99 = vector.load %arg14[%c2_98, %c0_99, %c0_100] : memref<9x128x128xbf16, #tpu.memory_space<vmem>>, vector<1x128x128xbf16>
    %100 = vector.shape_cast %99 : vector<1x128x128xbf16> to vector<128x128xbf16>
    %cst_101 = arith.constant dense<0.000000e+00> : vector<96x128xf32>
    %101 = tpu.matmul %98, %100, %cst_101 {dimension_numbers = #tpu.dot_dimension_numbers<[1], [0], [0], [1], [0, 0, 1, 1], [], []>} : vector<96x128xbf16>, vector<128x128xbf16>, vector<96x128xf32> -> vector<96x128xf32>
    %102 = arith.addf %95, %101 : vector<96x128xf32>
    %c0_102 = arith.constant 0 : index
    %c0_103 = arith.constant 0 : index
    %c6_104 = arith.constant 6 : index
    %c0_105 = arith.constant 0 : index
    %103 = vector.load %arg6[%c0_102, %c0_103, %c6_104, %c0_105] : memref<1x6x56x128xbf16, #tpu.memory_space<vmem>>, vector<1x6x16x128xbf16>
    %104 = vector.shape_cast %103 : vector<1x6x16x128xbf16> to vector<6x16x128xbf16>
    %105 = vector.shape_cast %104 : vector<6x16x128xbf16> to vector<96x128xbf16>
    %c3_106 = arith.constant 3 : index
    %c0_107 = arith.constant 0 : index
    %c0_108 = arith.constant 0 : index
    %106 = vector.load %arg14[%c3_106, %c0_107, %c0_108] : memref<9x128x128xbf16, #tpu.memory_space<vmem>>, vector<1x128x128xbf16>
    %107 = vector.shape_cast %106 : vector<1x128x128xbf16> to vector<128x128xbf16>
    %cst_109 = arith.constant dense<0.000000e+00> : vector<96x128xf32>
    %108 = tpu.matmul %105, %107, %cst_109 {dimension_numbers = #tpu.dot_dimension_numbers<[1], [0], [0], [1], [0, 0, 1, 1], [], []>} : vector<96x128xbf16>, vector<128x128xbf16>, vector<96x128xf32> -> vector<96x128xf32>
    %109 = arith.addf %102, %108 : vector<96x128xf32>
    %c0_110 = arith.constant 0 : index
    %c0_111 = arith.constant 0 : index
    %c30_112 = arith.constant 30 : index
    %c0_113 = arith.constant 0 : index
    %110 = vector.load %arg6[%c0_110, %c0_111, %c30_112, %c0_113] : memref<1x6x56x128xbf16, #tpu.memory_space<vmem>>, vector<1x6x16x128xbf16>
    %111 = vector.shape_cast %110 : vector<1x6x16x128xbf16> to vector<6x16x128xbf16>
    %112 = vector.shape_cast %111 : vector<6x16x128xbf16> to vector<96x128xbf16>
    %c5_114 = arith.constant 5 : index
    %c0_115 = arith.constant 0 : index
    %c0_116 = arith.constant 0 : index
    %113 = vector.load %arg14[%c5_114, %c0_115, %c0_116] : memref<9x128x128xbf16, #tpu.memory_space<vmem>>, vector<1x128x128xbf16>
    %114 = vector.shape_cast %113 : vector<1x128x128xbf16> to vector<128x128xbf16>
    %cst_117 = arith.constant dense<0.000000e+00> : vector<96x128xf32>
    %115 = tpu.matmul %112, %114, %cst_117 {dimension_numbers = #tpu.dot_dimension_numbers<[1], [0], [0], [1], [0, 0, 1, 1], [], []>} : vector<96x128xbf16>, vector<128x128xbf16>, vector<96x128xf32> -> vector<96x128xf32>
    %116 = arith.addf %109, %115 : vector<96x128xf32>
    %c0_118 = arith.constant 0 : index
    %c0_119 = arith.constant 0 : index
    %c6_120 = arith.constant 6 : index
    %c0_121 = arith.constant 0 : index
    %117 = vector.load %arg8[%c0_118, %c0_119, %c6_120, %c0_121] : memref<1x6x56x128xbf16, #tpu.memory_space<vmem>>, vector<1x6x16x128xbf16>
    %118 = vector.shape_cast %117 : vector<1x6x16x128xbf16> to vector<6x16x128xbf16>
    %119 = vector.shape_cast %118 : vector<6x16x128xbf16> to vector<96x128xbf16>
    %c6_122 = arith.constant 6 : index
    %c0_123 = arith.constant 0 : index
    %c0_124 = arith.constant 0 : index
    %120 = vector.load %arg14[%c6_122, %c0_123, %c0_124] : memref<9x128x128xbf16, #tpu.memory_space<vmem>>, vector<1x128x128xbf16>
    %121 = vector.shape_cast %120 : vector<1x128x128xbf16> to vector<128x128xbf16>
    %cst_125 = arith.constant dense<0.000000e+00> : vector<96x128xf32>
    %122 = tpu.matmul %119, %121, %cst_125 {dimension_numbers = #tpu.dot_dimension_numbers<[1], [0], [0], [1], [0, 0, 1, 1], [], []>} : vector<96x128xbf16>, vector<128x128xbf16>, vector<96x128xf32> -> vector<96x128xf32>
    %123 = arith.addf %116, %122 : vector<96x128xf32>
    %c0_126 = arith.constant 0 : index
    %c0_127 = arith.constant 0 : index
    %c18_128 = arith.constant 18 : index
    %c0_129 = arith.constant 0 : index
    %124 = vector.load %arg8[%c0_126, %c0_127, %c18_128, %c0_129] : memref<1x6x56x128xbf16, #tpu.memory_space<vmem>>, vector<1x6x16x128xbf16>
    %125 = vector.shape_cast %124 : vector<1x6x16x128xbf16> to vector<6x16x128xbf16>
    %126 = vector.shape_cast %125 : vector<6x16x128xbf16> to vector<96x128xbf16>
    %c7_130 = arith.constant 7 : index
    %c0_131 = arith.constant 0 : index
    %c0_132 = arith.constant 0 : index
    %127 = vector.load %arg14[%c7_130, %c0_131, %c0_132] : memref<9x128x128xbf16, #tpu.memory_space<vmem>>, vector<1x128x128xbf16>
    %128 = vector.shape_cast %127 : vector<1x128x128xbf16> to vector<128x128xbf16>
    %cst_133 = arith.constant dense<0.000000e+00> : vector<96x128xf32>
    %129 = tpu.matmul %126, %128, %cst_133 {dimension_numbers = #tpu.dot_dimension_numbers<[1], [0], [0], [1], [0, 0, 1, 1], [], []>} : vector<96x128xbf16>, vector<128x128xbf16>, vector<96x128xf32> -> vector<96x128xf32>
    %130 = arith.addf %123, %129 : vector<96x128xf32>
    %c0_134 = arith.constant 0 : index
    %c0_135 = arith.constant 0 : index
    %c30_136 = arith.constant 30 : index
    %c0_137 = arith.constant 0 : index
    %131 = vector.load %arg8[%c0_134, %c0_135, %c30_136, %c0_137] : memref<1x6x56x128xbf16, #tpu.memory_space<vmem>>, vector<1x6x16x128xbf16>
    %132 = vector.shape_cast %131 : vector<1x6x16x128xbf16> to vector<6x16x128xbf16>
    %133 = vector.shape_cast %132 : vector<6x16x128xbf16> to vector<96x128xbf16>
    %c8_138 = arith.constant 8 : index
    %c0_139 = arith.constant 0 : index
    %c0_140 = arith.constant 0 : index
    %134 = vector.load %arg14[%c8_138, %c0_139, %c0_140] : memref<9x128x128xbf16, #tpu.memory_space<vmem>>, vector<1x128x128xbf16>
    %135 = vector.shape_cast %134 : vector<1x128x128xbf16> to vector<128x128xbf16>
    %cst_141 = arith.constant dense<0.000000e+00> : vector<96x128xf32>
    %136 = tpu.matmul %133, %135, %cst_141 {dimension_numbers = #tpu.dot_dimension_numbers<[1], [0], [0], [1], [0, 0, 1, 1], [], []>} : vector<96x128xbf16>, vector<128x128xbf16>, vector<96x128xf32> -> vector<96x128xf32>
    %137 = arith.addf %130, %136 : vector<96x128xf32>
    %c2_142 = arith.constant 2 : index
    %c0_143 = arith.constant 0 : index
    %c0_144 = arith.constant 0 : index
    %138 = vector.load %arg21[%c2_142, %c0_143, %c0_144] : memref<4x96x128xf32, #tpu.memory_space<vmem>>, vector<1x96x128xf32>
    %139 = vector.shape_cast %138 : vector<1x96x128xf32> to vector<96x128xf32>
    %140 = arith.addf %139, %137 : vector<96x128xf32>
    %c2_145 = arith.constant 2 : index
    %c0_146 = arith.constant 0 : index
    %c0_147 = arith.constant 0 : index
    %141 = vector.load %arg21[%c2_145, %c0_146, %c0_147] : memref<4x96x128xf32, #tpu.memory_space<vmem>>, vector<1x96x128xf32>
    %142 = vector.shape_cast %141 : vector<1x96x128xf32> to vector<96x128xf32>
    %143 = vector.shape_cast %140 : vector<96x128xf32> to vector<1x96x128xf32>
    tpu.vector_store %arg21[%c2_145, %c0_146, %c0_147], %143 {strides = array<i32>} : memref<4x96x128xf32, #tpu.memory_space<vmem>>, vector<1x96x128xf32>,
    %c4_148 = arith.constant 4 : index
    %c0_149 = arith.constant 0 : index
    %c0_150 = arith.constant 0 : index
    %144 = vector.load %arg16[%c4_148, %c0_149, %c0_150] : memref<9x128x128xbf16, #tpu.memory_space<vmem>>, vector<1x128x128xbf16>
    %145 = vector.shape_cast %144 : vector<1x128x128xbf16> to vector<128x128xbf16>
    %cst_151 = arith.constant dense<0.000000e+00> : vector<96x128xf32>
    %146 = tpu.matmul %5, %145, %cst_151 {dimension_numbers = #tpu.dot_dimension_numbers<[1], [0], [0], [1], [0, 0, 1, 1], [], []>} : vector<96x128xbf16>, vector<128x128xbf16>, vector<96x128xf32> -> vector<96x128xf32>
    %c0_152 = arith.constant 0 : index
    %c0_153 = arith.constant 0 : index
    %c0_154 = arith.constant 0 : index
    %c0_155 = arith.constant 0 : index
    %147 = vector.load %arg3[%c0_152, %c0_153, %c0_154, %c0_155] : memref<1x6x56x128xbf16, #tpu.memory_space<vmem>>, vector<1x6x16x128xbf16>
    %148 = vector.shape_cast %147 : vector<1x6x16x128xbf16> to vector<6x16x128xbf16>
    %149 = vector.shape_cast %148 : vector<6x16x128xbf16> to vector<96x128xbf16>
    %c0_156 = arith.constant 0 : index
    %c0_157 = arith.constant 0 : index
    %c0_158 = arith.constant 0 : index
    %150 = vector.load %arg16[%c0_156, %c0_157, %c0_158] : memref<9x128x128xbf16, #tpu.memory_space<vmem>>, vector<1x128x128xbf16>
    %151 = vector.shape_cast %150 : vector<1x128x128xbf16> to vector<128x128xbf16>
    %cst_159 = arith.constant dense<0.000000e+00> : vector<96x128xf32>
    %152 = tpu.matmul %149, %151, %cst_159 {dimension_numbers = #tpu.dot_dimension_numbers<[1], [0], [0], [1], [0, 0, 1, 1], [], []>} : vector<96x128xbf16>, vector<128x128xbf16>, vector<96x128xf32> -> vector<96x128xf32>
    %153 = arith.addf %146, %152 : vector<96x128xf32>
    %c0_160 = arith.constant 0 : index
    %c0_161 = arith.constant 0 : index
    %c18_162 = arith.constant 18 : index
    %c0_163 = arith.constant 0 : index
    %154 = vector.load %arg3[%c0_160, %c0_161, %c18_162, %c0_163] : memref<1x6x56x128xbf16, #tpu.memory_space<vmem>>, vector<1x6x16x128xbf16>
    %155 = vector.shape_cast %154 : vector<1x6x16x128xbf16> to vector<6x16x128xbf16>
    %156 = vector.shape_cast %155 : vector<6x16x128xbf16> to vector<96x128xbf16>
    %c1_164 = arith.constant 1 : index
    %c0_165 = arith.constant 0 : index
    %c0_166 = arith.constant 0 : index
    %157 = vector.load %arg16[%c1_164, %c0_165, %c0_166] : memref<9x128x128xbf16, #tpu.memory_space<vmem>>, vector<1x128x128xbf16>
    %158 = vector.shape_cast %157 : vector<1x128x128xbf16> to vector<128x128xbf16>
    %cst_167 = arith.constant dense<0.000000e+00> : vector<96x128xf32>
    %159 = tpu.matmul %156, %158, %cst_167 {dimension_numbers = #tpu.dot_dimension_numbers<[1], [0], [0], [1], [0, 0, 1, 1], [], []>} : vector<96x128xbf16>, vector<128x128xbf16>, vector<96x128xf32> -> vector<96x128xf32>
    %160 = arith.addf %153, %159 : vector<96x128xf32>
    %c0_168 = arith.constant 0 : index
    %c0_169 = arith.constant 0 : index
    %c36 = arith.constant 36 : index
    %c0_170 = arith.constant 0 : index
    %161 = vector.load %arg3[%c0_168, %c0_169, %c36, %c0_170] : memref<1x6x56x128xbf16, #tpu.memory_space<vmem>>, vector<1x6x16x128xbf16>
    %162 = vector.shape_cast %161 : vector<1x6x16x128xbf16> to vector<6x16x128xbf16>
    %163 = vector.shape_cast %162 : vector<6x16x128xbf16> to vector<96x128xbf16>
    %c2_171 = arith.constant 2 : index
    %c0_172 = arith.constant 0 : index
    %c0_173 = arith.constant 0 : index
    %164 = vector.load %arg16[%c2_171, %c0_172, %c0_173] : memref<9x128x128xbf16, #tpu.memory_space<vmem>>, vector<1x128x128xbf16>
    %165 = vector.shape_cast %164 : vector<1x128x128xbf16> to vector<128x128xbf16>
    %cst_174 = arith.constant dense<0.000000e+00> : vector<96x128xf32>
    %166 = tpu.matmul %163, %165, %cst_174 {dimension_numbers = #tpu.dot_dimension_numbers<[1], [0], [0], [1], [0, 0, 1, 1], [], []>} : vector<96x128xbf16>, vector<128x128xbf16>, vector<96x128xf32> -> vector<96x128xf32>
    %167 = arith.addf %160, %166 : vector<96x128xf32>
    %c0_175 = arith.constant 0 : index
    %c0_176 = arith.constant 0 : index
    %c0_177 = arith.constant 0 : index
    %c0_178 = arith.constant 0 : index
    %168 = vector.load %arg6[%c0_175, %c0_176, %c0_177, %c0_178] : memref<1x6x56x128xbf16, #tpu.memory_space<vmem>>, vector<1x6x16x128xbf16>
    %169 = vector.shape_cast %168 : vector<1x6x16x128xbf16> to vector<6x16x128xbf16>
    %170 = vector.shape_cast %169 : vector<6x16x128xbf16> to vector<96x128xbf16>
    %c3_179 = arith.constant 3 : index
    %c0_180 = arith.constant 0 : index
    %c0_181 = arith.constant 0 : index
    %171 = vector.load %arg16[%c3_179, %c0_180, %c0_181] : memref<9x128x128xbf16, #tpu.memory_space<vmem>>, vector<1x128x128xbf16>
    %172 = vector.shape_cast %171 : vector<1x128x128xbf16> to vector<128x128xbf16>
    %cst_182 = arith.constant dense<0.000000e+00> : vector<96x128xf32>
    %173 = tpu.matmul %170, %172, %cst_182 {dimension_numbers = #tpu.dot_dimension_numbers<[1], [0], [0], [1], [0, 0, 1, 1], [], []>} : vector<96x128xbf16>, vector<128x128xbf16>, vector<96x128xf32> -> vector<96x128xf32>
    %174 = arith.addf %167, %173 : vector<96x128xf32>
    %c0_183 = arith.constant 0 : index
    %c0_184 = arith.constant 0 : index
    %c36_185 = arith.constant 36 : index
    %c0_186 = arith.constant 0 : index
    %175 = vector.load %arg6[%c0_183, %c0_184, %c36_185, %c0_186] : memref<1x6x56x128xbf16, #tpu.memory_space<vmem>>, vector<1x6x16x128xbf16>
    %176 = vector.shape_cast %175 : vector<1x6x16x128xbf16> to vector<6x16x128xbf16>
    %177 = vector.shape_cast %176 : vector<6x16x128xbf16> to vector<96x128xbf16>
    %c5_187 = arith.constant 5 : index
    %c0_188 = arith.constant 0 : index
    %c0_189 = arith.constant 0 : index
    %178 = vector.load %arg16[%c5_187, %c0_188, %c0_189] : memref<9x128x128xbf16, #tpu.memory_space<vmem>>, vector<1x128x128xbf16>
    %179 = vector.shape_cast %178 : vector<1x128x128xbf16> to vector<128x128xbf16>
    %cst_190 = arith.constant dense<0.000000e+00> : vector<96x128xf32>
    %180 = tpu.matmul %177, %179, %cst_190 {dimension_numbers = #tpu.dot_dimension_numbers<[1], [0], [0], [1], [0, 0, 1, 1], [], []>} : vector<96x128xbf16>, vector<128x128xbf16>, vector<96x128xf32> -> vector<96x128xf32>
    %181 = arith.addf %174, %180 : vector<96x128xf32>
    %c0_191 = arith.constant 0 : index
    %c0_192 = arith.constant 0 : index
    %c0_193 = arith.constant 0 : index
    %c0_194 = arith.constant 0 : index
    %182 = vector.load %arg9[%c0_191, %c0_192, %c0_193, %c0_194] : memref<1x6x56x128xbf16, #tpu.memory_space<vmem>>, vector<1x6x16x128xbf16>
    %183 = vector.shape_cast %182 : vector<1x6x16x128xbf16> to vector<6x16x128xbf16>
    %184 = vector.shape_cast %183 : vector<6x16x128xbf16> to vector<96x128xbf16>
    %c6_195 = arith.constant 6 : index
    %c0_196 = arith.constant 0 : index
    %c0_197 = arith.constant 0 : index
    %185 = vector.load %arg16[%c6_195, %c0_196, %c0_197] : memref<9x128x128xbf16, #tpu.memory_space<vmem>>, vector<1x128x128xbf16>
    %186 = vector.shape_cast %185 : vector<1x128x128xbf16> to vector<128x128xbf16>
    %cst_198 = arith.constant dense<0.000000e+00> : vector<96x128xf32>
    %187 = tpu.matmul %184, %186, %cst_198 {dimension_numbers = #tpu.dot_dimension_numbers<[1], [0], [0], [1], [0, 0, 1, 1], [], []>} : vector<96x128xbf16>, vector<128x128xbf16>, vector<96x128xf32> -> vector<96x128xf32>
    %188 = arith.addf %181, %187 : vector<96x128xf32>
    %c0_199 = arith.constant 0 : index
    %c0_200 = arith.constant 0 : index
    %c18_201 = arith.constant 18 : index
    %c0_202 = arith.constant 0 : index
    %189 = vector.load %arg9[%c0_199, %c0_200, %c18_201, %c0_202] : memref<1x6x56x128xbf16, #tpu.memory_space<vmem>>, vector<1x6x16x128xbf16>
    %190 = vector.shape_cast %189 : vector<1x6x16x128xbf16> to vector<6x16x128xbf16>
    %191 = vector.shape_cast %190 : vector<6x16x128xbf16> to vector<96x128xbf16>
    %c7_203 = arith.constant 7 : index
    %c0_204 = arith.constant 0 : index
    %c0_205 = arith.constant 0 : index
    %192 = vector.load %arg16[%c7_203, %c0_204, %c0_205] : memref<9x128x128xbf16, #tpu.memory_space<vmem>>, vector<1x128x128xbf16>
    %193 = vector.shape_cast %192 : vector<1x128x128xbf16> to vector<128x128xbf16>
    %cst_206 = arith.constant dense<0.000000e+00> : vector<96x128xf32>
    %194 = tpu.matmul %191, %193, %cst_206 {dimension_numbers = #tpu.dot_dimension_numbers<[1], [0], [0], [1], [0, 0, 1, 1], [], []>} : vector<96x128xbf16>, vector<128x128xbf16>, vector<96x128xf32> -> vector<96x128xf32>
    %195 = arith.addf %188, %194 : vector<96x128xf32>
    %c0_207 = arith.constant 0 : index
    %c0_208 = arith.constant 0 : index
    %c36_209 = arith.constant 36 : index
    %c0_210 = arith.constant 0 : index
    %196 = vector.load %arg9[%c0_207, %c0_208, %c36_209, %c0_210] : memref<1x6x56x128xbf16, #tpu.memory_space<vmem>>, vector<1x6x16x128xbf16>
    %197 = vector.shape_cast %196 : vector<1x6x16x128xbf16> to vector<6x16x128xbf16>
    %198 = vector.shape_cast %197 : vector<6x16x128xbf16> to vector<96x128xbf16>
    %c8_211 = arith.constant 8 : index
    %c0_212 = arith.constant 0 : index
    %c0_213 = arith.constant 0 : index
    %199 = vector.load %arg16[%c8_211, %c0_212, %c0_213] : memref<9x128x128xbf16, #tpu.memory_space<vmem>>, vector<1x128x128xbf16>
    %200 = vector.shape_cast %199 : vector<1x128x128xbf16> to vector<128x128xbf16>
    %cst_214 = arith.constant dense<0.000000e+00> : vector<96x128xf32>
    %201 = tpu.matmul %198, %200, %cst_214 {dimension_numbers = #tpu.dot_dimension_numbers<[1], [0], [0], [1], [0, 0, 1, 1], [], []>} : vector<96x128xbf16>, vector<128x128xbf16>, vector<96x128xf32> -> vector<96x128xf32>
    %202 = arith.addf %195, %201 : vector<96x128xf32>
    %c3_215 = arith.constant 3 : index
    %c0_216 = arith.constant 0 : index
    %c0_217 = arith.constant 0 : index
    %203 = vector.load %arg21[%c3_215, %c0_216, %c0_217] : memref<4x96x128xf32, #tpu.memory_space<vmem>>, vector<1x96x128xf32>
    %204 = vector.shape_cast %203 : vector<1x96x128xf32> to vector<96x128xf32>
    %205 = arith.addf %204, %202 : vector<96x128xf32>
    %c3_218 = arith.constant 3 : index
    %c0_219 = arith.constant 0 : index
    %c0_220 = arith.constant 0 : index
    %206 = vector.load %arg21[%c3_218, %c0_219, %c0_220] : memref<4x96x128xf32, #tpu.memory_space<vmem>>, vector<1x96x128xf32>
    %207 = vector.shape_cast %206 : vector<1x96x128xf32> to vector<96x128xf32>
    %208 = vector.shape_cast %205 : vector<96x128xf32> to vector<1x96x128xf32>
    tpu.vector_store %arg21[%c3_218, %c0_219, %c0_220], %208 {strides = array<i32>} : memref<4x96x128xf32, #tpu.memory_space<vmem>>, vector<1x96x128xf32>,
    %c0_i32_221 = arith.constant 0 : i32
    %209 = arith.cmpi eq, %arg2, %c0_i32_221 : i32
    %210 = arith.extui %209 : i1 to i32
    %c0_i32_222 = arith.constant 0 : i32
    %211 = arith.cmpi ne, %210, %c0_i32_222 : i32
    scf.if %211 {
      %c0_223 = arith.constant 0 : index
      %c0_224 = arith.constant 0 : index
      %c0_225 = arith.constant 0 : index
      %212 = vector.load %arg19[%c0_223, %c0_224, %c0_225] : memref<1x1x128xf32, #tpu.memory_space<vmem>>, vector<1x1x128xf32>
      %213 = vector.shape_cast %212 : vector<1x1x128xf32> to vector<1x128xf32>
      %c0_226 = arith.constant 0 : index
      %c0_227 = arith.constant 0 : index
      %c0_228 = arith.constant 0 : index
      %214 = vector.load %arg21[%c0_226, %c0_227, %c0_228] : memref<4x96x128xf32, #tpu.memory_space<vmem>>, vector<1x96x128xf32>
      %215 = vector.shape_cast %214 : vector<1x96x128xf32> to vector<96x128xf32>
      %c0_229 = arith.constant 0 : index
      %c0_230 = arith.constant 0 : index
      %216 = vector.load %arg11[%c0_229, %c0_230] : memref<1x128xf32, #tpu.memory_space<vmem>>, vector<1x128xf32>
      %217 = vector.broadcast %216 : vector<1x128xf32> to vector<96x128xf32>
      %218 = arith.addf %215, %217 : vector<96x128xf32>
      %cst_231 = arith.constant 0.000000e+00 : f32
      %219 = vector.broadcast %cst_231 : f32 to vector<96x128xf32>
      %220 = arith.maximumf %218, %219 : vector<96x128xf32>
      %221 = arith.truncf %220 : vector<96x128xf32> to vector<96x128xbf16>
      %c0_232 = arith.constant 0 : index
      %c0_233 = arith.constant 0 : index
      %c0_234 = arith.constant 0 : index
      %222 = vector.load %arg18[%c0_232, %c0_233, %c0_234] : memref<4x128x128xbf16, #tpu.memory_space<vmem>>, vector<1x128x128xbf16>
      %223 = vector.shape_cast %222 : vector<1x128x128xbf16> to vector<128x128xbf16>
      %cst_235 = arith.constant dense<0.000000e+00> : vector<96x128xf32>
      %224 = tpu.matmul %221, %223, %cst_235 {dimension_numbers = #tpu.dot_dimension_numbers<[1], [0], [0], [1], [0, 0, 1, 1], [], []>} : vector<96x128xbf16>, vector<128x128xbf16>, vector<96x128xf32> -> vector<96x128xf32>
      %225 = vector.broadcast %213 : vector<1x128xf32> to vector<96x128xf32>
      %226 = arith.addf %225, %224 : vector<96x128xf32>
      %c1_236 = arith.constant 1 : index
      %c0_237 = arith.constant 0 : index
      %c0_238 = arith.constant 0 : index
      %227 = vector.load %arg21[%c1_236, %c0_237, %c0_238] : memref<4x96x128xf32, #tpu.memory_space<vmem>>, vector<1x96x128xf32>
      %228 = vector.shape_cast %227 : vector<1x96x128xf32> to vector<96x128xf32>
      %c0_239 = arith.constant 0 : index
      %c0_240 = arith.constant 0 : index
      %229 = vector.load %arg13[%c0_239, %c0_240] : memref<1x128xf32, #tpu.memory_space<vmem>>, vector<1x128xf32>
      %230 = vector.broadcast %229 : vector<1x128xf32> to vector<96x128xf32>
      %231 = arith.addf %228, %230 : vector<96x128xf32>
      %cst_241 = arith.constant 0.000000e+00 : f32
      %232 = vector.broadcast %cst_241 : f32 to vector<96x128xf32>
      %233 = arith.maximumf %231, %232 : vector<96x128xf32>
      %234 = arith.truncf %233 : vector<96x128xf32> to vector<96x128xbf16>
      %c1_242 = arith.constant 1 : index
      %c0_243 = arith.constant 0 : index
      %c0_244 = arith.constant 0 : index
      %235 = vector.load %arg18[%c1_242, %c0_243, %c0_244] : memref<4x128x128xbf16, #tpu.memory_space<vmem>>, vector<1x128x128xbf16>
      %236 = vector.shape_cast %235 : vector<1x128x128xbf16> to vector<128x128xbf16>
      %cst_245 = arith.constant dense<0.000000e+00> : vector<96x128xf32>
      %237 = tpu.matmul %234, %236, %cst_245 {dimension_numbers = #tpu.dot_dimension_numbers<[1], [0], [0], [1], [0, 0, 1, 1], [], []>} : vector<96x128xbf16>, vector<128x128xbf16>, vector<96x128xf32> -> vector<96x128xf32>
      %238 = arith.addf %226, %237 : vector<96x128xf32>
      %c2_246 = arith.constant 2 : index
      %c0_247 = arith.constant 0 : index
      %c0_248 = arith.constant 0 : index
      %239 = vector.load %arg21[%c2_246, %c0_247, %c0_248] : memref<4x96x128xf32, #tpu.memory_space<vmem>>, vector<1x96x128xf32>
      %240 = vector.shape_cast %239 : vector<1x96x128xf32> to vector<96x128xf32>
      %c0_249 = arith.constant 0 : index
      %c0_250 = arith.constant 0 : index
      %241 = vector.load %arg15[%c0_249, %c0_250] : memref<1x128xf32, #tpu.memory_space<vmem>>, vector<1x128xf32>
      %242 = vector.broadcast %241 : vector<1x128xf32> to vector<96x128xf32>
      %243 = arith.addf %240, %242 : vector<96x128xf32>
      %cst_251 = arith.constant 0.000000e+00 : f32
      %244 = vector.broadcast %cst_251 : f32 to vector<96x128xf32>
      %245 = arith.maximumf %243, %244 : vector<96x128xf32>
      %246 = arith.truncf %245 : vector<96x128xf32> to vector<96x128xbf16>
      %c2_252 = arith.constant 2 : index
      %c0_253 = arith.constant 0 : index
      %c0_254 = arith.constant 0 : index
      %247 = vector.load %arg18[%c2_252, %c0_253, %c0_254] : memref<4x128x128xbf16, #tpu.memory_space<vmem>>, vector<1x128x128xbf16>
      %248 = vector.shape_cast %247 : vector<1x128x128xbf16> to vector<128x128xbf16>
      %cst_255 = arith.constant dense<0.000000e+00> : vector<96x128xf32>
      %249 = tpu.matmul %246, %248, %cst_255 {dimension_numbers = #tpu.dot_dimension_numbers<[1], [0], [0], [1], [0, 0, 1, 1], [], []>} : vector<96x128xbf16>, vector<128x128xbf16>, vector<96x128xf32> -> vector<96x128xf32>
      %250 = arith.addf %238, %249 : vector<96x128xf32>
      %c3_256 = arith.constant 3 : index
      %c0_257 = arith.constant 0 : index
      %c0_258 = arith.constant 0 : index
      %251 = vector.load %arg21[%c3_256, %c0_257, %c0_258] : memref<4x96x128xf32, #tpu.memory_space<vmem>>, vector<1x96x128xf32>
      %252 = vector.shape_cast %251 : vector<1x96x128xf32> to vector<96x128xf32>
      %c0_259 = arith.constant 0 : index
      %c0_260 = arith.constant 0 : index
      %253 = vector.load %arg17[%c0_259, %c0_260] : memref<1x128xf32, #tpu.memory_space<vmem>>, vector<1x128xf32>
      %254 = vector.broadcast %253 : vector<1x128xf32> to vector<96x128xf32>
      %255 = arith.addf %252, %254 : vector<96x128xf32>
      %cst_261 = arith.constant 0.000000e+00 : f32
      %256 = vector.broadcast %cst_261 : f32 to vector<96x128xf32>
      %257 = arith.maximumf %255, %256 : vector<96x128xf32>
      %258 = arith.truncf %257 : vector<96x128xf32> to vector<96x128xbf16>
      %c3_262 = arith.constant 3 : index
      %c0_263 = arith.constant 0 : index
      %c0_264 = arith.constant 0 : index
      %259 = vector.load %arg18[%c3_262, %c0_263, %c0_264] : memref<4x128x128xbf16, #tpu.memory_space<vmem>>, vector<1x128x128xbf16>
      %260 = vector.shape_cast %259 : vector<1x128x128xbf16> to vector<128x128xbf16>
      %cst_265 = arith.constant dense<0.000000e+00> : vector<96x128xf32>
      %261 = tpu.matmul %258, %260, %cst_265 {dimension_numbers = #tpu.dot_dimension_numbers<[1], [0], [0], [1], [0, 0, 1, 1], [], []>} : vector<96x128xbf16>, vector<128x128xbf16>, vector<96x128xf32> -> vector<96x128xf32>
      %262 = arith.addf %250, %261 : vector<96x128xf32>
      %cst_266 = arith.constant 0.000000e+00 : f32
      %263 = vector.broadcast %cst_266 : f32 to vector<96x128xf32>
      %264 = arith.maximumf %262, %263 : vector<96x128xf32>
      %265 = vector.shape_cast %264 : vector<96x128xf32> to vector<1x6x16x128xf32>
      %c0_267 = arith.constant 0 : index
      %c0_268 = arith.constant 0 : index
      %c0_269 = arith.constant 0 : index
      %c0_270 = arith.constant 0 : index
      %266 = vector.load %arg20[%c0_267, %c0_268, %c0_269, %c0_270] : memref<1x6x16x128xf32, #tpu.memory_space<vmem>>, vector<1x6x16x128xf32>
      tpu.vector_store %arg20[%c0_267, %c0_268, %c0_269, %c0_270], %265 {strides = array<i32>} : memref<1x6x16x128xf32, #tpu.memory_space<vmem>>, vector<1x6x16x128xf32>,
    } else {
    }
    return
  }
  func.func @transform_0(%arg0: i32, %arg1: i32, %arg2: i32) -> (i32, i32, i32, i32) {
    %c0_i32 = arith.constant 0 : i32
    %0 = arith.addi %arg1, %c0_i32 : i32
    %c0_i32_0 = arith.constant 0 : i32
    %c0_i32_1 = arith.constant 0 : i32
    return %arg0, %0, %c0_i32_0, %arg2 : i32, i32, i32, i32
  }
  func.func @transform_1(%arg0: i32, %arg1: i32, %arg2: i32) -> (i32, i32, i32, i32) {
    %c1_i32 = arith.constant 1 : i32
    %0 = arith.addi %arg1, %c1_i32 : i32
    %c0_i32 = arith.constant 0 : i32
    %c0_i32_0 = arith.constant 0 : i32
    return %arg0, %0, %c0_i32, %arg2 : i32, i32, i32, i32
  }
  func.func @transform_2(%arg0: i32, %arg1: i32, %arg2: i32) -> (i32, i32, i32, i32) {
    %c2_i32 = arith.constant 2 : i32
    %0 = arith.addi %arg1, %c2_i32 : i32
    %c0_i32 = arith.constant 0 : i32
    %c0_i32_0 = arith.constant 0 : i32
    return %arg0, %0, %c0_i32, %arg2 : i32, i32, i32, i32
  }
  func.func @transform_3(%arg0: i32, %arg1: i32, %arg2: i32) -> (i32, i32, i32, i32) {
    %c3_i32 = arith.constant 3 : i32
    %0 = arith.addi %arg1, %c3_i32 : i32
    %c0_i32 = arith.constant 0 : i32
    %c0_i32_0 = arith.constant 0 : i32
    return %arg0, %0, %c0_i32, %arg2 : i32, i32, i32, i32
  }
  func.func @transform_4(%arg0: i32, %arg1: i32, %arg2: i32) -> (i32, i32, i32, i32) {
    %c4_i32 = arith.constant 4 : i32
    %0 = arith.addi %arg1, %c4_i32 : i32
    %c0_i32 = arith.constant 0 : i32
    %c0_i32_0 = arith.constant 0 : i32
    return %arg0, %0, %c0_i32, %arg2 : i32, i32, i32, i32
  }
  func.func @transform_5(%arg0: i32, %arg1: i32, %arg2: i32) -> (i32, i32, i32, i32) {
    %c5_i32 = arith.constant 5 : i32
    %0 = arith.addi %arg1, %c5_i32 : i32
    %c0_i32 = arith.constant 0 : i32
    %c0_i32_0 = arith.constant 0 : i32
    return %arg0, %0, %c0_i32, %arg2 : i32, i32, i32, i32
  }
  func.func @transform_6(%arg0: i32, %arg1: i32, %arg2: i32) -> (i32, i32, i32, i32) {
    %c6_i32 = arith.constant 6 : i32
    %0 = arith.addi %arg1, %c6_i32 : i32
    %c0_i32 = arith.constant 0 : i32
    %c0_i32_0 = arith.constant 0 : i32
    return %arg0, %0, %c0_i32, %arg2 : i32, i32, i32, i32
  }
  func.func @transform_7(%arg0: i32, %arg1: i32, %arg2: i32) -> (i32, i32) {
    %c0_i32 = arith.constant 0 : i32
    %c0_i32_0 = arith.constant 0 : i32
    return %arg2, %c0_i32 : i32, i32
  }
  func.func @transform_8(%arg0: i32, %arg1: i32, %arg2: i32) -> (i32, i32) {
    %c0_i32 = arith.constant 0 : i32
    %c0_i32_0 = arith.constant 0 : i32
    %c0_i32_1 = arith.constant 0 : i32
    return %c0_i32, %c0_i32_0 : i32, i32
  }
  func.func @transform_9(%arg0: i32, %arg1: i32, %arg2: i32) -> (i32, i32, i32) {
    %c0_i32 = arith.constant 0 : i32
    %c0_i32_0 = arith.constant 0 : i32
    %c0_i32_1 = arith.constant 0 : i32
    return %c0_i32, %arg2, %c0_i32_0 : i32, i32, i32
  }
  func.func @transform_10(%arg0: i32, %arg1: i32, %arg2: i32) -> (i32, i32) {
    %c0_i32 = arith.constant 0 : i32
    %c0_i32_0 = arith.constant 0 : i32
    %c0_i32_1 = arith.constant 0 : i32
    return %c0_i32, %c0_i32_0 : i32, i32
  }
  func.func @transform_11(%arg0: i32, %arg1: i32, %arg2: i32) -> (i32, i32, i32) {
    %c0_i32 = arith.constant 0 : i32
    %c0_i32_0 = arith.constant 0 : i32
    %c0_i32_1 = arith.constant 0 : i32
    return %c0_i32, %arg2, %c0_i32_0 : i32, i32, i32
  }
  func.func @transform_12(%arg0: i32, %arg1: i32, %arg2: i32) -> (i32, i32) {
    %c0_i32 = arith.constant 0 : i32
    %c0_i32_0 = arith.constant 0 : i32
    %c0_i32_1 = arith.constant 0 : i32
    return %c0_i32, %c0_i32_0 : i32, i32
  }
  func.func @transform_13(%arg0: i32, %arg1: i32, %arg2: i32) -> (i32, i32, i32) {
    %c0_i32 = arith.constant 0 : i32
    %c0_i32_0 = arith.constant 0 : i32
    %c0_i32_1 = arith.constant 0 : i32
    return %c0_i32, %arg2, %c0_i32_0 : i32, i32, i32
  }
  func.func @transform_14(%arg0: i32, %arg1: i32, %arg2: i32) -> (i32, i32) {
    %c0_i32 = arith.constant 0 : i32
    %c0_i32_0 = arith.constant 0 : i32
    %c0_i32_1 = arith.constant 0 : i32
    return %c0_i32, %c0_i32_0 : i32, i32
  }
  func.func @transform_15(%arg0: i32, %arg1: i32, %arg2: i32) -> (i32, i32, i32) {
    %c0_i32 = arith.constant 0 : i32
    %c0_i32_0 = arith.constant 0 : i32
    %c0_i32_1 = arith.constant 0 : i32
    %c0_i32_2 = arith.constant 0 : i32
    return %c0_i32, %c0_i32_0, %c0_i32_1 : i32, i32, i32
  }
  func.func @transform_16(%arg0: i32, %arg1: i32, %arg2: i32) -> (i32, i32, i32) {
    %c0_i32 = arith.constant 0 : i32
    %c0_i32_0 = arith.constant 0 : i32
    %c0_i32_1 = arith.constant 0 : i32
    return %arg0, %c0_i32, %c0_i32_0 : i32, i32, i32
  }
  func.func @transform_17(%arg0: i32, %arg1: i32, %arg2: i32) -> (i32, i32, i32, i32) {
    %c0_i32 = arith.constant 0 : i32
    %c0_i32_0 = arith.constant 0 : i32
    %c0_i32_1 = arith.constant 0 : i32
    return %arg0, %arg1, %c0_i32, %c0_i32_0 : i32, i32, i32, i32
  }
}

</mosaic_0001>

<llo_original>
// kernel: aspp_forward.1
$region0: #{aspp_forward.1}
  #allocation0 [shape = 'u32[]', space=smem, size = 0x4, offset = 0x4, fixed_abs, tag = 'smem constant byte address 0x4 - core index']
  #allocation1 [shape = 'u32[144,128]{1,0:T(1,128)}', space=vmem, size = 0x12000, scoped, tag = 'internal scratch']
  #allocation2 [shape = 'f32[4,96,128]{2,1,0:T(8,128)}', space=vmem, size = 0x30000, scoped, tag = 'scratch operand']
  %s0 = inlined_call_operand.vmem [shape: bf16[2,54,56,128], index: 0, kind: input, shape index: {}, may-alias: {0,1,2,3,4,5,6}]
  %s1 = inlined_call_operand.vmem [shape: bf16[2,54,56,128], index: 1, kind: input, shape index: {}, may-alias: {0,1,2,3,4,5,6}]
  %s2 = inlined_call_operand.vmem [shape: bf16[2,54,56,128], index: 2, kind: input, shape index: {}, may-alias: {0,1,2,3,4,5,6}]
  %s3 = inlined_call_operand.vmem [shape: bf16[2,54,56,128], index: 3, kind: input, shape index: {}, may-alias: {0,1,2,3,4,5,6}]
  %s4 = inlined_call_operand.vmem [shape: bf16[2,54,56,128], index: 4, kind: input, shape index: {}, may-alias: {0,1,2,3,4,5,6}]
  %s5 = inlined_call_operand.vmem [shape: bf16[2,54,56,128], index: 5, kind: input, shape index: {}, may-alias: {0,1,2,3,4,5,6}]
  %s6 = inlined_call_operand.vmem [shape: bf16[2,54,56,128], index: 6, kind: input, shape index: {}, may-alias: {0,1,2,3,4,5,6}]
  %s7 = inlined_call_operand.vmem [shape: bf16[128,128], index: 7, kind: input, shape index: {}]
  %s8 = inlined_call_operand.vmem [shape: f32[1,128], index: 8, kind: input, shape index: {}]
  %s9 = inlined_call_operand.vmem [shape: bf16[9,128,128], index: 9, kind: input, shape index: {}]
  %s10 = inlined_call_operand.vmem [shape: f32[1,128], index: 10, kind: input, shape index: {}]
  %s11 = inlined_call_operand.vmem [shape: bf16[9,128,128], index: 11, kind: input, shape index: {}]
  %s12 = inlined_call_operand.vmem [shape: f32[1,128], index: 12, kind: input, shape index: {}]
  %s13 = inlined_call_operand.vmem [shape: bf16[9,128,128], index: 13, kind: input, shape index: {}]
  %s14 = inlined_call_operand.vmem [shape: f32[1,128], index: 14, kind: input, shape index: {}]
  %s15 = inlined_call_operand.vmem [shape: bf16[4,128,128], index: 15, kind: input, shape index: {}]
  %s16 = inlined_call_operand.vmem [shape: f32[2,1,128], index: 16, kind: input, shape index: {}]
  %s17 = inlined_call_operand.vmem [shape: f32[2,18,16,128], index: 17, kind: output, shape index: {}]
  %s18 = sld [smem:[#allocation0]]
  $region109: #{aspp_forward.1} parent=0
    _
  %s20 = ssub.s32 1, %s18
  %s21 = scalar_select 0, %s20, %s18
  loop: start=0, step=1, limit=8
  $region2: #{aspp_forward.1} parent=0 // loop_pre_header
    _
  $region3: #{aspp_forward.1} parent=0 // loop_header
    %s23 = sphi 0, %s27
    %p24 = scmp.ge.s32.totalorder %s23, 8
    %s30 = sphi 0, %s49
    %s31 = sphi 0, %s45
    %s32 = sphi 0, %s41
    %s33 = sphi 0, %s30
    %s34 = sphi 0, %s31
    %s35 = sphi 0, %s32
    %s36 = sphi 0, %s33
    %s37 = sphi 0, %s34
    %s38 = sphi 0, %s35
    %s56 = sphi 0, %s58
    %s59 = sphi 0, %s56
    %s60 = sphi 0, %s59
    %s76 = sphi 0, %s60
    %s88 = sphi 0, %s90
    %s91 = sphi 0, %s88
    %s92 = sphi 0, %s91
    %s108 = sphi 0, %s92
    %s120 = sphi 0, %s122
    %s123 = sphi 0, %s120
    %s124 = sphi 0, %s123
    %s140 = sphi 0, %s124
    %s152 = sphi 0, %s154
    %s155 = sphi 0, %s152
    %s156 = sphi 0, %s155
    %s172 = sphi 0, %s156
    %s184 = sphi 0, %s186
    %s187 = sphi 0, %s184
    %s188 = sphi 0, %s187
    %s204 = sphi 0, %s188
    %s216 = sphi 0, %s218
    %s219 = sphi 0, %s216
    %s220 = sphi 0, %s219
    %s236 = sphi 0, %s220
    %s248 = sphi 0, %s250
    %s251 = sphi 0, %s248
    %s252 = sphi 0, %s251
    %s268 = sphi 0, %s252
    %s274 = sphi 0, %s276
    %s277 = sphi 0, %s274
    %s278 = sphi 0, %s277
    %s294 = sphi 0, %s278
    %s298 = sphi 0, %s298
    %s300 = sphi 0, %s298
    %s301 = sphi 0, %s300
    %s315 = sphi 0, %s301
    %s321 = sphi 0, %s323
    %s324 = sphi 0, %s321
    %s325 = sphi 0, %s324
    %s341 = sphi 0, %s325
    %s345 = sphi 0, %s345
    %s347 = sphi 0, %s345
    %s348 = sphi 0, %s347
    %s362 = sphi 0, %s348
    %s368 = sphi 0, %s370
    %s371 = sphi 0, %s368
    %s372 = sphi 0, %s371
    %s388 = sphi 0, %s372
    %s392 = sphi 0, %s392
    %s394 = sphi 0, %s392
    %s395 = sphi 0, %s394
    %s409 = sphi 0, %s395
    %s415 = sphi 0, %s417
    %s418 = sphi 0, %s415
    %s419 = sphi 0, %s418
    %s435 = sphi 0, %s419
    %s439 = sphi 0, %s439
    %s441 = sphi 0, %s439
    %s442 = sphi 0, %s441
    %s456 = sphi 0, %s442
    %s460 = sphi 0, %s460
    %s462 = sphi 0, %s460
    %s463 = sphi 0, %s462
    %s477 = sphi 0, %s463
    %s483 = sphi 0, %s485
    %s486 = sphi 0, %s483
    %s487 = sphi 0, %s486
    %s503 = sphi 0, %s487
    %s511 = sphi 0, %s513
    %s514 = sphi 0, %s511
    %s515 = sphi 0, %s514
    %s531 = sphi 0, %s515
  $region4: #{aspp_forward.1} parent=0 // loop_header_branch
    %26 = sbr.rel (%p24) target = $region8
  $region5: #{aspp_forward.1} parent=0 // loop_body
    %s28 = ssub.s32 %s23, 1
    %s29 = ssub.s32 %s23, 2
    %s39 = sadd.s32 1, %s32
    %p40 = scmp.ge.s32.totalorder %s39, 1
    %s41 = scalar_select %p40, 0, %s39
    %s42 = sadd.s32 1, %s31
    %s43 = scalar_select %p40, %s42, %s31
    %p44 = scmp.ge.s32.totalorder %s43, 3
    %s45 = scalar_select %p44, 0, %s43
    %s46 = sadd.s32 1, %s30
    %s47 = scalar_select %p44, %s46, %s30
    %p48 = scmp.ge.s32.totalorder %s47, 2
    %s49 = scalar_select %p48, 0, %s47
    %s50 = ssub.s32 %s30, %s49
    %s51 = ssub.s32 %s31, %s45
    %s52 = sor.u32 %s50, %s51
    %s53 = ssub.s32 %s32, %s41
    %s54 = sor.u32 %s52, %s53
    %p55 = scmp.eq.s32.totalorder %s54, 0
    %s57 = sadd.s32 %s56, 1
    %s58 = scalar_select %p55, %s56, %s57
    %p61 = pneg %p55
    %p62 = scmp.eq.s32.totalorder %s23, 5
    %p63 = por %p61, %p62
    %p64 = scmp.ne.s32.totalorder %s56, %s59
    %p65 = scmp.eq.s32.totalorder %s23, 0
    %p66 = por %p64, %p65
    %p67 = scmp.ne.s32.totalorder %s56, %s59
    %p68 = scmp.eq.s32.totalorder %s28, 5
    %p69 = por %p67, %p68
    %p70 = scmp.ne.s32.totalorder %s59, %s60
    %p71 = scmp.eq.s32.totalorder %s28, 0
    %p72 = por %p70, %p71
    %p73 = scmp.ne.s32.totalorder %s59, %s60
    %p74 = scmp.eq.s32.totalorder %s29, 5
    %p75 = por %p73, %p74
    %p77 = scmp.ne.s32.totalorder %s60, %s76
    %p78 = scmp.eq.s32.totalorder %s29, 0
    %p79 = por %p77, %p78
    %s80 = sadd.s32 %s31, 1
    %s81 = sadd.s32 %s45, 1
    %s82 = ssub.s32 %s30, %s49
    %s83 = ssub.s32 %s80, %s81
    %s84 = sor.u32 %s82, %s83
    %s85 = ssub.s32 %s32, %s41
    %s86 = sor.u32 %s84, %s85
    %p87 = scmp.eq.s32.totalorder %s86, 0
    %s89 = sadd.s32 %s88, 1
    %s90 = scalar_select %p87, %s88, %s89
    %p93 = pneg %p87
    %p94 = scmp.eq.s32.totalorder %s23, 5
    %p95 = por %p93, %p94
    %p96 = scmp.ne.s32.totalorder %s88, %s91
    %p97 = scmp.eq.s32.totalorder %s23, 0
    %p98 = por %p96, %p97
    %p99 = scmp.ne.s32.totalorder %s88, %s91
    %p100 = scmp.eq.s32.totalorder %s28, 5
    %p101 = por %p99, %p100
    %p102 = scmp.ne.s32.totalorder %s91, %s92
    %p103 = scmp.eq.s32.totalorder %s28, 0
    %p104 = por %p102, %p103
    %p105 = scmp.ne.s32.totalorder %s91, %s92
    %p106 = scmp.eq.s32.totalorder %s29, 5
    %p107 = por %p105, %p106
    %p109 = scmp.ne.s32.totalorder %s92, %s108
    %p110 = scmp.eq.s32.totalorder %s29, 0
    %p111 = por %p109, %p110
    %s112 = sadd.s32 %s31, 2
    %s113 = sadd.s32 %s45, 2
    %s114 = ssub.s32 %s30, %s49
    %s115 = ssub.s32 %s112, %s113
    %s116 = sor.u32 %s114, %s115
    %s117 = ssub.s32 %s32, %s41
    %s118 = sor.u32 %s116, %s117
    %p119 = scmp.eq.s32.totalorder %s118, 0
    %s121 = sadd.s32 %s120, 1
    %s122 = scalar_select %p119, %s120, %s121
    %p125 = pneg %p119
    %p126 = scmp.eq.s32.totalorder %s23, 5
    %p127 = por %p125, %p126
    %p128 = scmp.ne.s32.totalorder %s120, %s123
    %p129 = scmp.eq.s32.totalorder %s23, 0
    %p130 = por %p128, %p129
    %p131 = scmp.ne.s32.totalorder %s120, %s123
    %p132 = scmp.eq.s32.totalorder %s28, 5
    %p133 = por %p131, %p132
    %p134 = scmp.ne.s32.totalorder %s123, %s124
    %p135 = scmp.eq.s32.totalorder %s28, 0
    %p136 = por %p134, %p135
    %p137 = scmp.ne.s32.totalorder %s123, %s124
    %p138 = scmp.eq.s32.totalorder %s29, 5
    %p139 = por %p137, %p138
    %p141 = scmp.ne.s32.totalorder %s124, %s140
    %p142 = scmp.eq.s32.totalorder %s29, 0
    %p143 = por %p141, %p142
    %s144 = sadd.s32 %s31, 3
    %s145 = sadd.s32 %s45, 3
    %s146 = ssub.s32 %s30, %s49
    %s147 = ssub.s32 %s144, %s145
    %s148 = sor.u32 %s146, %s147
    %s149 = ssub.s32 %s32, %s41
    %s150 = sor.u32 %s148, %s149
    %p151 = scmp.eq.s32.totalorder %s150, 0
    %s153 = sadd.s32 %s152, 1
    %s154 = scalar_select %p151, %s152, %s153
    %p157 = pneg %p151
    %p158 = scmp.eq.s32.totalorder %s23, 5
    %p159 = por %p157, %p158
    %p160 = scmp.ne.s32.totalorder %s152, %s155
    %p161 = scmp.eq.s32.totalorder %s23, 0
    %p162 = por %p160, %p161
    %p163 = scmp.ne.s32.totalorder %s152, %s155
    %p164 = scmp.eq.s32.totalorder %s28, 5
    %p165 = por %p163, %p164
    %p166 = scmp.ne.s32.totalorder %s155, %s156
    %p167 = scmp.eq.s32.totalorder %s28, 0
    %p168 = por %p166, %p167
    %p169 = scmp.ne.s32.totalorder %s155, %s156
    %p170 = scmp.eq.s32.totalorder %s29, 5
    %p171 = por %p169, %p170
    %p173 = scmp.ne.s32.totalorder %s156, %s172
    %p174 = scmp.eq.s32.totalorder %s29, 0
    %p175 = por %p173, %p174
    %s176 = sadd.s32 %s31, 4
    %s177 = sadd.s32 %s45, 4
    %s178 = ssub.s32 %s30, %s49
    %s179 = ssub.s32 %s176, %s177
    %s180 = sor.u32 %s178, %s179
    %s181 = ssub.s32 %s32, %s41
    %s182 = sor.u32 %s180, %s181
    %p183 = scmp.eq.s32.totalorder %s182, 0
    %s185 = sadd.s32 %s184, 1
    %s186 = scalar_select %p183, %s184, %s185
    %p189 = pneg %p183
    %p190 = scmp.eq.s32.totalorder %s23, 5
    %p191 = por %p189, %p190
    %p192 = scmp.ne.s32.totalorder %s184, %s187
    %p193 = scmp.eq.s32.totalorder %s23, 0
    %p194 = por %p192, %p193
    %p195 = scmp.ne.s32.totalorder %s184, %s187
    %p196 = scmp.eq.s32.totalorder %s28, 5
    %p197 = por %p195, %p196
    %p198 = scmp.ne.s32.totalorder %s187, %s188
    %p199 = scmp.eq.s32.totalorder %s28, 0
    %p200 = por %p198, %p199
    %p201 = scmp.ne.s32.totalorder %s187, %s188
    %p202 = scmp.eq.s32.totalorder %s29, 5
    %p203 = por %p201, %p202
    %p205 = scmp.ne.s32.totalorder %s188, %s204
    %p206 = scmp.eq.s32.totalorder %s29, 0
    %p207 = por %p205, %p206
    %s208 = sadd.s32 %s31, 5
    %s209 = sadd.s32 %s45, 5
    %s210 = ssub.s32 %s30, %s49
    %s211 = ssub.s32 %s208, %s209
    %s212 = sor.u32 %s210, %s211
    %s213 = ssub.s32 %s32, %s41
    %s214 = sor.u32 %s212, %s213
    %p215 = scmp.eq.s32.totalorder %s214, 0
    %s217 = sadd.s32 %s216, 1
    %s218 = scalar_select %p215, %s216, %s217
    %p221 = pneg %p215
    %p222 = scmp.eq.s32.totalorder %s23, 5
    %p223 = por %p221, %p222
    %p224 = scmp.ne.s32.totalorder %s216, %s219
    %p225 = scmp.eq.s32.totalorder %s23, 0
    %p226 = por %p224, %p225
    %p227 = scmp.ne.s32.totalorder %s216, %s219
    %p228 = scmp.eq.s32.totalorder %s28, 5
    %p229 = por %p227, %p228
    %p230 = scmp.ne.s32.totalorder %s219, %s220
    %p231 = scmp.eq.s32.totalorder %s28, 0
    %p232 = por %p230, %p231
    %p233 = scmp.ne.s32.totalorder %s219, %s220
    %p234 = scmp.eq.s32.totalorder %s29, 5
    %p235 = por %p233, %p234
    %p237 = scmp.ne.s32.totalorder %s220, %s236
    %p238 = scmp.eq.s32.totalorder %s29, 0
    %p239 = por %p237, %p238
    %s240 = sadd.s32 %s31, 6
    %s241 = sadd.s32 %s45, 6
    %s242 = ssub.s32 %s30, %s49
    %s243 = ssub.s32 %s240, %s241
    %s244 = sor.u32 %s242, %s243
    %s245 = ssub.s32 %s32, %s41
    %s246 = sor.u32 %s244, %s245
    %p247 = scmp.eq.s32.totalorder %s246, 0
    %s249 = sadd.s32 %s248, 1
    %s250 = scalar_select %p247, %s248, %s249
    %p253 = pneg %p247
    %p254 = scmp.eq.s32.totalorder %s23, 5
    %p255 = por %p253, %p254
    %p256 = scmp.ne.s32.totalorder %s248, %s251
    %p257 = scmp.eq.s32.totalorder %s23, 0
    %p258 = por %p256, %p257
    %p259 = scmp.ne.s32.totalorder %s248, %s251
    %p260 = scmp.eq.s32.totalorder %s28, 5
    %p261 = por %p259, %p260
    %p262 = scmp.ne.s32.totalorder %s251, %s252
    %p263 = scmp.eq.s32.totalorder %s28, 0
    %p264 = por %p262, %p263
    %p265 = scmp.ne.s32.totalorder %s251, %s252
    %p266 = scmp.eq.s32.totalorder %s29, 5
    %p267 = por %p265, %p266
    %p269 = scmp.ne.s32.totalorder %s252, %s268
    %p270 = scmp.eq.s32.totalorder %s29, 0
    %p271 = por %p269, %p270
    %s272 = ssub.s32 %s32, %s41
    %p273 = scmp.eq.s32.totalorder %s272, 0
    %s275 = sadd.s32 %s274, 1
    %s276 = scalar_select %p273, %s274, %s275
    %p279 = pneg %p273
    %p280 = scmp.eq.s32.totalorder %s23, 5
    %p281 = por %p279, %p280
    %p282 = scmp.ne.s32.totalorder %s274, %s277
    %p283 = scmp.eq.s32.totalorder %s23, 0
    %p284 = por %p282, %p283
    %p285 = scmp.ne.s32.totalorder %s274, %s277
    %p286 = scmp.eq.s32.totalorder %s28, 5
    %p287 = por %p285, %p286
    %p288 = scmp.ne.s32.totalorder %s277, %s278
    %p289 = scmp.eq.s32.totalorder %s28, 0
    %p290 = por %p288, %p289
    %p291 = scmp.ne.s32.totalorder %s277, %s278
    %p292 = scmp.eq.s32.totalorder %s29, 5
    %p293 = por %p291, %p292
    %p295 = scmp.ne.s32.totalorder %s278, %s294
    %p296 = scmp.eq.s32.totalorder %s29, 0
    %p297 = por %p295, %p296
    %s299 = sadd.s32 %s298, 1
    %p302 = scmp.eq.s32.totalorder %s23, 5
    %p303 = scmp.ne.s32.totalorder %s298, %s300
    %p304 = scmp.eq.s32.totalorder %s23, 0
    %p305 = por %p303, %p304
    %p306 = scmp.ne.s32.totalorder %s298, %s300
    %p307 = scmp.eq.s32.totalorder %s28, 5
    %p308 = por %p306, %p307
    %p309 = scmp.ne.s32.totalorder %s300, %s301
    %p310 = scmp.eq.s32.totalorder %s28, 0
    %p311 = por %p309, %p310
    %p312 = scmp.ne.s32.totalorder %s300, %s301
    %p313 = scmp.eq.s32.totalorder %s29, 5
    %p314 = por %p312, %p313
    %p316 = scmp.ne.s32.totalorder %s301, %s315
    %p317 = scmp.eq.s32.totalorder %s29, 0
    %p318 = por %p316, %p317
    %s319 = ssub.s32 %s32, %s41
    %p320 = scmp.eq.s32.totalorder %s319, 0
    %s322 = sadd.s32 %s321, 1
    %s323 = scalar_select %p320, %s321, %s322
    %p326 = pneg %p320
    %p327 = scmp.eq.s32.totalorder %s23, 5
    %p328 = por %p326, %p327
    %p329 = scmp.ne.s32.totalorder %s321, %s324
    %p330 = scmp.eq.s32.totalorder %s23, 0
    %p331 = por %p329, %p330
    %p332 = scmp.ne.s32.totalorder %s321, %s324
    %p333 = scmp.eq.s32.totalorder %s28, 5
    %p334 = por %p332, %p333
    %p335 = scmp.ne.s32.totalorder %s324, %s325
    %p336 = scmp.eq.s32.totalorder %s28, 0
    %p337 = por %p335, %p336
    %p338 = scmp.ne.s32.totalorder %s324, %s325
    %p339 = scmp.eq.s32.totalorder %s29, 5
    %p340 = por %p338, %p339
    %p342 = scmp.ne.s32.totalorder %s325, %s341
    %p343 = scmp.eq.s32.totalorder %s29, 0
    %p344 = por %p342, %p343
    %s346 = sadd.s32 %s345, 1
    %p349 = scmp.eq.s32.totalorder %s23, 5
    %p350 = scmp.ne.s32.totalorder %s345, %s347
    %p351 = scmp.eq.s32.totalorder %s23, 0
    %p352 = por %p350, %p351
    %p353 = scmp.ne.s32.totalorder %s345, %s347
    %p354 = scmp.eq.s32.totalorder %s28, 5
    %p355 = por %p353, %p354
    %p356 = scmp.ne.s32.totalorder %s347, %s348
    %p357 = scmp.eq.s32.totalorder %s28, 0
    %p358 = por %p356, %p357
    %p359 = scmp.ne.s32.totalorder %s347, %s348
    %p360 = scmp.eq.s32.totalorder %s29, 5
    %p361 = por %p359, %p360
    %p363 = scmp.ne.s32.totalorder %s348, %s362
    %p364 = scmp.eq.s32.totalorder %s29, 0
    %p365 = por %p363, %p364
    %s366 = ssub.s32 %s32, %s41
    %p367 = scmp.eq.s32.totalorder %s366, 0
    %s369 = sadd.s32 %s368, 1
    %s370 = scalar_select %p367, %s368, %s369
    %p373 = pneg %p367
    %p374 = scmp.eq.s32.totalorder %s23, 5
    %p375 = por %p373, %p374
    %p376 = scmp.ne.s32.totalorder %s368, %s371
    %p377 = scmp.eq.s32.totalorder %s23, 0
    %p378 = por %p376, %p377
    %p379 = scmp.ne.s32.totalorder %s368, %s371
    %p380 = scmp.eq.s32.totalorder %s28, 5
    %p381 = por %p379, %p380
    %p382 = scmp.ne.s32.totalorder %s371, %s372
    %p383 = scmp.eq.s32.totalorder %s28, 0
    %p384 = por %p382, %p383
    %p385 = scmp.ne.s32.totalorder %s371, %s372
    %p386 = scmp.eq.s32.totalorder %s29, 5
    %p387 = por %p385, %p386
    %p389 = scmp.ne.s32.totalorder %s372, %s388
    %p390 = scmp.eq.s32.totalorder %s29, 0
    %p391 = por %p389, %p390
    %s393 = sadd.s32 %s392, 1
    %p396 = scmp.eq.s32.totalorder %s23, 5
    %p397 = scmp.ne.s32.totalorder %s392, %s394
    %p398 = scmp.eq.s32.totalorder %s23, 0
    %p399 = por %p397, %p398
    %p400 = scmp.ne.s32.totalorder %s392, %s394
    %p401 = scmp.eq.s32.totalorder %s28, 5
    %p402 = por %p400, %p401
    %p403 = scmp.ne.s32.totalorder %s394, %s395
    %p404 = scmp.eq.s32.totalorder %s28, 0
    %p405 = por %p403, %p404
    %p406 = scmp.ne.s32.totalorder %s394, %s395
    %p407 = scmp.eq.s32.totalorder %s29, 5
    %p408 = por %p406, %p407
    %p410 = scmp.ne.s32.totalorder %s395, %s409
    %p411 = scmp.eq.s32.totalorder %s29, 0
    %p412 = por %p410, %p411
    %s413 = ssub.s32 %s32, %s41
    %p414 = scmp.eq.s32.totalorder %s413, 0
    %s416 = sadd.s32 %s415, 1
    %s417 = scalar_select %p414, %s415, %s416
    %p420 = pneg %p414
    %p421 = scmp.eq.s32.totalorder %s23, 5
    %p422 = por %p420, %p421
    %p423 = scmp.ne.s32.totalorder %s415, %s418
    %p424 = scmp.eq.s32.totalorder %s23, 0
    %p425 = por %p423, %p424
    %p426 = scmp.ne.s32.totalorder %s415, %s418
    %p427 = scmp.eq.s32.totalorder %s28, 5
    %p428 = por %p426, %p427
    %p429 = scmp.ne.s32.totalorder %s418, %s419
    %p430 = scmp.eq.s32.totalorder %s28, 0
    %p431 = por %p429, %p430
    %p432 = scmp.ne.s32.totalorder %s418, %s419
    %p433 = scmp.eq.s32.totalorder %s29, 5
    %p434 = por %p432, %p433
    %p436 = scmp.ne.s32.totalorder %s419, %s435
    %p437 = scmp.eq.s32.totalorder %s29, 0
    %p438 = por %p436, %p437
    %s440 = sadd.s32 %s439, 1
    %p443 = scmp.eq.s32.totalorder %s23, 5
    %p444 = scmp.ne.s32.totalorder %s439, %s441
    %p445 = scmp.eq.s32.totalorder %s23, 0
    %p446 = por %p444, %p445
    %p447 = scmp.ne.s32.totalorder %s439, %s441
    %p448 = scmp.eq.s32.totalorder %s28, 5
    %p449 = por %p447, %p448
    %p450 = scmp.ne.s32.totalorder %s441, %s442
    %p451 = scmp.eq.s32.totalorder %s28, 0
    %p452 = por %p450, %p451
    %p453 = scmp.ne.s32.totalorder %s441, %s442
    %p454 = scmp.eq.s32.totalorder %s29, 5
    %p455 = por %p453, %p454
    %p457 = scmp.ne.s32.totalorder %s442, %s456
    %p458 = scmp.eq.s32.totalorder %s29, 0
    %p459 = por %p457, %p458
    %s461 = sadd.s32 %s460, 1
    %p464 = scmp.eq.s32.totalorder %s23, 5
    %p465 = scmp.ne.s32.totalorder %s460, %s462
    %p466 = scmp.eq.s32.totalorder %s23, 0
    %p467 = por %p465, %p466
    %p468 = scmp.ne.s32.totalorder %s460, %s462
    %p469 = scmp.eq.s32.totalorder %s28, 5
    %p470 = por %p468, %p469
    %p471 = scmp.ne.s32.totalorder %s462, %s463
    %p472 = scmp.eq.s32.totalorder %s28, 0
    %p473 = por %p471, %p472
    %p474 = scmp.ne.s32.totalorder %s462, %s463
    %p475 = scmp.eq.s32.totalorder %s29, 5
    %p476 = por %p474, %p475
    %p478 = scmp.ne.s32.totalorder %s463, %s477
    %p479 = scmp.eq.s32.totalorder %s29, 0
    %p480 = por %p478, %p479
    %s481 = ssub.s32 %s30, %s49
    %p482 = scmp.eq.s32.totalorder %s481, 0
    %s484 = sadd.s32 %s483, 1
    %s485 = scalar_select %p482, %s483, %s484
    %p488 = pneg %p482
    %p489 = scmp.eq.s32.totalorder %s23, 5
    %p490 = por %p488, %p489
    %p491 = scmp.ne.s32.totalorder %s483, %s486
    %p492 = scmp.eq.s32.totalorder %s23, 0
    %p493 = por %p491, %p492
    %p494 = scmp.ne.s32.totalorder %s483, %s486
    %p495 = scmp.eq.s32.totalorder %s28, 5
    %p496 = por %p494, %p495
    %p497 = scmp.ne.s32.totalorder %s486, %s487
    %p498 = scmp.eq.s32.totalorder %s28, 0
    %p499 = por %p497, %p498
    %p500 = scmp.ne.s32.totalorder %s486, %s487
    %p501 = scmp.eq.s32.totalorder %s29, 5
    %p502 = por %p500, %p501
    %p504 = scmp.ne.s32.totalorder %s487, %s503
    %p505 = scmp.eq.s32.totalorder %s29, 0
    %p506 = por %p504, %p505
    %s507 = ssub.s32 %s30, %s49
    %s508 = ssub.s32 %s31, %s45
    %s509 = sor.u32 %s507, %s508
    %p510 = scmp.eq.s32.totalorder %s509, 0
    %s512 = sadd.s32 %s511, 1
    %s513 = scalar_select %p510, %s511, %s512
    %p516 = pneg %p510
    %p517 = scmp.eq.s32.totalorder %s23, 5
    %p518 = por %p516, %p517
    %p519 = scmp.ne.s32.totalorder %s511, %s514
    %p520 = scmp.eq.s32.totalorder %s23, 0
    %p521 = por %p519, %p520
    %p522 = scmp.ne.s32.totalorder %s511, %s514
    %p523 = scmp.eq.s32.totalorder %s28, 5
    %p524 = por %p522, %p523
    %p525 = scmp.ne.s32.totalorder %s514, %s515
    %p526 = scmp.eq.s32.totalorder %s28, 0
    %p527 = por %p525, %p526
    %p528 = scmp.ne.s32.totalorder %s514, %s515
    %p529 = scmp.eq.s32.totalorder %s29, 5
    %p530 = por %p528, %p529
    %p532 = scmp.ne.s32.totalorder %s515, %s531
    %p533 = scmp.eq.s32.totalorder %s29, 0
    %p534 = por %p532, %p533
    %p535 = scmp.le.s32.totalorder 1, %s23
    %p536 = scmp.lt.s32.totalorder %s23, 7
    %p537 = pnand %p535, %p536
    %p538 = pneg %p537
    // Predicated region
    $region9: #{aspp_forward.1} parent=5 // pred_check
      _
    $region10: #{aspp_forward.1} parent=5 // pred_check_branch
      %540 = sbr.rel (%p537) target = $region12
    $region11: #{aspp_forward.1} parent=5 // pred_region
      %s541 = ssub.s32 %s23, 1
      // Predicated region
      $region13: #{aspp_forward.1} parent=11 // pred_check
        %p542 = pneg %p290
      $region14: #{aspp_forward.1} parent=11 // pred_check_branch
        %544 = sbr.rel (%p542) target = $region16
      $region15: #{aspp_forward.1} parent=11 // pred_region
        %s545 = smul.u32 16, %s35
        %p546 = scmp.lt.s32.totalorder %s545, 15
        %s547 = scalar_select %p546, %s545, 15
        %s548 = smul.addr %s547, 4
        %s549 = scalar_lea.vmem %s7, %s548
        %s550 = smul.u32 16, %s35
      $region16: #{aspp_forward.1} parent=11 // pred_fallthru
        _
      // Predicated region
      $region17: #{aspp_forward.1} parent=11 // pred_check
        %p551 = pneg %p311
      $region18: #{aspp_forward.1} parent=11 // pred_check_branch
        %553 = sbr.rel (%p551) target = $region20
      $region19: #{aspp_forward.1} parent=11 // pred_region
        _
      $region20: #{aspp_forward.1} parent=11 // pred_fallthru
        _
      // Predicated region
      $region21: #{aspp_forward.1} parent=11 // pred_check
        %p554 = pneg %p337
      $region22: #{aspp_forward.1} parent=11 // pred_check_branch
        %556 = sbr.rel (%p554) target = $region24
      $region23: #{aspp_forward.1} parent=11 // pred_region
        %s557 = smul.u32 16, %s35
        %p558 = scmp.lt.s32.totalorder %s557, 15
        %s559 = scalar_select %p558, %s557, 15
        %s560 = smul.addr %s559, 4
        %s561 = scalar_lea.vmem %s9, %s560
        %s562 = smul.u32 16, %s35
      $region24: #{aspp_forward.1} parent=11 // pred_fallthru
        _
      // Predicated region
      $region25: #{aspp_forward.1} parent=11 // pred_check
        %p563 = pneg %p358
      $region26: #{aspp_forward.1} parent=11 // pred_check_branch
        %565 = sbr.rel (%p563) target = $region28
      $region27: #{aspp_forward.1} parent=11 // pred_region
        _
      $region28: #{aspp_forward.1} parent=11 // pred_fallthru
        _
      // Predicated region
      $region29: #{aspp_forward.1} parent=11 // pred_check
        %p566 = pneg %p384
      $region30: #{aspp_forward.1} parent=11 // pred_check_branch
        %568 = sbr.rel (%p566) target = $region32
      $region31: #{aspp_forward.1} parent=11 // pred_region
        %s569 = smul.u32 16, %s35
        %p570 = scmp.lt.s32.totalorder %s569, 15
        %s571 = scalar_select %p570, %s569, 15
        %s572 = smul.addr %s571, 4
        %s573 = scalar_lea.vmem %s11, %s572
        %s574 = smul.u32 16, %s35
      $region32: #{aspp_forward.1} parent=11 // pred_fallthru
        _
      // Predicated region
      $region33: #{aspp_forward.1} parent=11 // pred_check
        %p575 = pneg %p405
      $region34: #{aspp_forward.1} parent=11 // pred_check_branch
        %577 = sbr.rel (%p575) target = $region36
      $region35: #{aspp_forward.1} parent=11 // pred_region
        _
      $region36: #{aspp_forward.1} parent=11 // pred_fallthru
        _
      // Predicated region
      $region37: #{aspp_forward.1} parent=11 // pred_check
        %p578 = pneg %p431
      $region38: #{aspp_forward.1} parent=11 // pred_check_branch
        %580 = sbr.rel (%p578) target = $region40
      $region39: #{aspp_forward.1} parent=11 // pred_region
        %s581 = smul.u32 16, %s35
        %p582 = scmp.lt.s32.totalorder %s581, 15
        %s583 = scalar_select %p582, %s581, 15
        %s584 = smul.addr %s583, 4
        %s585 = scalar_lea.vmem %s13, %s584
        %s586 = smul.u32 16, %s35
      $region40: #{aspp_forward.1} parent=11 // pred_fallthru
        _
      // Predicated region
      $region41: #{aspp_forward.1} parent=11 // pred_check
        %p587 = pneg %p452
      $region42: #{aspp_forward.1} parent=11 // pred_check_branch
        %589 = sbr.rel (%p587) target = $region44
      $region43: #{aspp_forward.1} parent=11 // pred_region
        _
      $region44: #{aspp_forward.1} parent=11 // pred_fallthru
        _
      // Predicated region
      $region45: #{aspp_forward.1} parent=11 // pred_check
        %p590 = pneg %p473
      $region46: #{aspp_forward.1} parent=11 // pred_check_branch
        %592 = sbr.rel (%p590) target = $region48
      $region47: #{aspp_forward.1} parent=11 // pred_region
        _
      $region48: #{aspp_forward.1} parent=11 // pred_fallthru
        _
    $region12: #{aspp_forward.1} parent=5 // pred_fallthru
      _
    %p593 = scmp.lt.s32.totalorder %s23, 6
    // Predicated region
    $region49: #{aspp_forward.1} parent=5 // pred_check
      %p594 = pneg %p593
    $region50: #{aspp_forward.1} parent=5 // pred_check_branch
      %596 = sbr.rel (%p594) target = $region52
    $region51: #{aspp_forward.1} parent=5 // pred_region
      // Predicated region
      $region53: #{aspp_forward.1} parent=51 // pred_check
        %p597 = pneg %p66
      $region54: #{aspp_forward.1} parent=51 // pred_check_branch
        %599 = sbr.rel (%p597) target = $region56
      $region55: #{aspp_forward.1} parent=51 // pred_region
        %s600 = smul.u32 6, %s31
        %p601 = scmp.lt.s32.totalorder %s30, 1
        %s602 = scalar_select %p601, %s30, 1
        %p603 = scmp.lt.s32.totalorder %s600, 53
        %s604 = scalar_select %p603, %s600, 53
        %p605 = scmp.lt.s32.totalorder %s32, 0
        %s606 = scalar_select %p605, %s32, 0
        %s607 = smul.addr %s604, 7
        %s608 = sadd.s32 %s606, %s607
        %s609 = smul.addr %s602, 378
        %s610 = sadd.s32 %s608, %s609
        %s611 = smul.addr %s610, 4
        %s612 = scalar_lea.vmem %s0, %s611
        %s613 = smul.u32 6, %s31
      $region56: #{aspp_forward.1} parent=51 // pred_fallthru
        _
      // Predicated region
      $region57: #{aspp_forward.1} parent=51 // pred_check
        %p614 = pneg %p98
      $region58: #{aspp_forward.1} parent=51 // pred_check_branch
        %616 = sbr.rel (%p614) target = $region60
      $region59: #{aspp_forward.1} parent=51 // pred_region
        %s617 = sadd.s32 %s31, 1
        %s618 = smul.u32 6, %s617
        %p619 = scmp.lt.s32.totalorder %s30, 1
        %s620 = scalar_select %p619, %s30, 1
        %p621 = scmp.lt.s32.totalorder %s618, 53
        %s622 = scalar_select %p621, %s618, 53
        %p623 = scmp.lt.s32.totalorder %s32, 0
        %s624 = scalar_select %p623, %s32, 0
        %s625 = smul.addr %s622, 7
        %s626 = sadd.s32 %s624, %s625
        %s627 = smul.addr %s620, 378
        %s628 = sadd.s32 %s626, %s627
        %s629 = smul.addr %s628, 4
        %s630 = scalar_lea.vmem %s1, %s629
        %s631 = sadd.s32 %s31, 1
        %s632 = smul.u32 6, %s631
      $region60: #{aspp_forward.1} parent=51 // pred_fallthru
        _
      // Predicated region
      $region61: #{aspp_forward.1} parent=51 // pred_check
        %p633 = pneg %p130
      $region62: #{aspp_forward.1} parent=51 // pred_check_branch
        %635 = sbr.rel (%p633) target = $region64
      $region63: #{aspp_forward.1} parent=51 // pred_region
        %s636 = sadd.s32 %s31, 2
        %s637 = smul.u32 6, %s636
        %p638 = scmp.lt.s32.totalorder %s30, 1
        %s639 = scalar_select %p638, %s30, 1
        %p640 = scmp.lt.s32.totalorder %s637, 53
        %s641 = scalar_select %p640, %s637, 53
        %p642 = scmp.lt.s32.totalorder %s32, 0
        %s643 = scalar_select %p642, %s32, 0
        %s644 = smul.addr %s641, 7
        %s645 = sadd.s32 %s643, %s644
        %s646 = smul.addr %s639, 378
        %s647 = sadd.s32 %s645, %s646
        %s648 = smul.addr %s647, 4
        %s649 = scalar_lea.vmem %s2, %s648
        %s650 = sadd.s32 %s31, 2
        %s651 = smul.u32 6, %s650
      $region64: #{aspp_forward.1} parent=51 // pred_fallthru
        _
      // Predicated region
      $region65: #{aspp_forward.1} parent=51 // pred_check
        %p652 = pneg %p162
      $region66: #{aspp_forward.1} parent=51 // pred_check_branch
        %654 = sbr.rel (%p652) target = $region68
      $region67: #{aspp_forward.1} parent=51 // pred_region
        %s655 = sadd.s32 %s31, 3
        %s656 = smul.u32 6, %s655
        %p657 = scmp.lt.s32.totalorder %s30, 1
        %s658 = scalar_select %p657, %s30, 1
        %p659 = scmp.lt.s32.totalorder %s656, 53
        %s660 = scalar_select %p659, %s656, 53
        %p661 = scmp.lt.s32.totalorder %s32, 0
        %s662 = scalar_select %p661, %s32, 0
        %s663 = smul.addr %s660, 7
        %s664 = sadd.s32 %s662, %s663
        %s665 = smul.addr %s658, 378
        %s666 = sadd.s32 %s664, %s665
        %s667 = smul.addr %s666, 4
        %s668 = scalar_lea.vmem %s3, %s667
        %s669 = sadd.s32 %s31, 3
        %s670 = smul.u32 6, %s669
      $region68: #{aspp_forward.1} parent=51 // pred_fallthru
        _
      // Predicated region
      $region69: #{aspp_forward.1} parent=51 // pred_check
        %p671 = pneg %p194
      $region70: #{aspp_forward.1} parent=51 // pred_check_branch
        %673 = sbr.rel (%p671) target = $region72
      $region71: #{aspp_forward.1} parent=51 // pred_region
        %s674 = sadd.s32 %s31, 4
        %s675 = smul.u32 6, %s674
        %p676 = scmp.lt.s32.totalorder %s30, 1
        %s677 = scalar_select %p676, %s30, 1
        %p678 = scmp.lt.s32.totalorder %s675, 53
        %s679 = scalar_select %p678, %s675, 53
        %p680 = scmp.lt.s32.totalorder %s32, 0
        %s681 = scalar_select %p680, %s32, 0
        %s682 = smul.addr %s679, 7
        %s683 = sadd.s32 %s681, %s682
        %s684 = smul.addr %s677, 378
        %s685 = sadd.s32 %s683, %s684
        %s686 = smul.addr %s685, 4
        %s687 = scalar_lea.vmem %s4, %s686
        %s688 = sadd.s32 %s31, 4
        %s689 = smul.u32 6, %s688
      $region72: #{aspp_forward.1} parent=51 // pred_fallthru
        _
      // Predicated region
      $region73: #{aspp_forward.1} parent=51 // pred_check
        %p690 = pneg %p226
      $region74: #{aspp_forward.1} parent=51 // pred_check_branch
        %692 = sbr.rel (%p690) target = $region76
      $region75: #{aspp_forward.1} parent=51 // pred_region
        %s693 = sadd.s32 %s31, 5
        %s694 = smul.u32 6, %s693
        %p695 = scmp.lt.s32.totalorder %s30, 1
        %s696 = scalar_select %p695, %s30, 1
        %p697 = scmp.lt.s32.totalorder %s694, 53
        %s698 = scalar_select %p697, %s694, 53
        %p699 = scmp.lt.s32.totalorder %s32, 0
        %s700 = scalar_select %p699, %s32, 0
        %s701 = smul.addr %s698, 7
        %s702 = sadd.s32 %s700, %s701
        %s703 = smul.addr %s696, 378
        %s704 = sadd.s32 %s702, %s703
        %s705 = smul.addr %s704, 4
        %s706 = scalar_lea.vmem %s5, %s705
        %s707 = sadd.s32 %s31, 5
        %s708 = smul.u32 6, %s707
      $region76: #{aspp_forward.1} parent=51 // pred_fallthru
        _
      // Predicated region
      $region77: #{aspp_forward.1} parent=51 // pred_check
        %p709 = pneg %p258
      $region78: #{aspp_forward.1} parent=51 // pred_check_branch
        %711 = sbr.rel (%p709) target = $region80
      $region79: #{aspp_forward.1} parent=51 // pred_region
        %s712 = sadd.s32 %s31, 6
        %s713 = smul.u32 6, %s712
        %p714 = scmp.lt.s32.totalorder %s30, 1
        %s715 = scalar_select %p714, %s30, 1
        %p716 = scmp.lt.s32.totalorder %s713, 53
        %s717 = scalar_select %p716, %s713, 53
        %p718 = scmp.lt.s32.totalorder %s32, 0
        %s719 = scalar_select %p718, %s32, 0
        %s720 = smul.addr %s717, 7
        %s721 = sadd.s32 %s719, %s720
        %s722 = smul.addr %s715, 378
        %s723 = sadd.s32 %s721, %s722
        %s724 = smul.addr %s723, 4
        %s725 = scalar_lea.vmem %s6, %s724
        %s726 = sadd.s32 %s31, 6
        %s727 = smul.u32 6, %s726
      $region80: #{aspp_forward.1} parent=51 // pred_fallthru
        _
      // Predicated region
      $region81: #{aspp_forward.1} parent=51 // pred_check
        %p728 = pneg %p493
      $region82: #{aspp_forward.1} parent=51 // pred_check_branch
        %730 = sbr.rel (%p728) target = $region84
      $region83: #{aspp_forward.1} parent=51 // pred_region
        %p731 = scmp.lt.s32.totalorder %s30, 1
        %s732 = scalar_select %p731, %s30, 1
        %s733 = scalar_lea.vmem %s16, %s732
      $region84: #{aspp_forward.1} parent=51 // pred_fallthru
        _
    $region52: #{aspp_forward.1} parent=5 // pred_fallthru
      _
    %p734 = scmp.le.s32.totalorder 1, %s23
    %p735 = scmp.lt.s32.totalorder %s23, 7
    %p736 = pnand %p734, %p735
    %p737 = pneg %p736
    // Predicated region
    $region85: #{aspp_forward.1} parent=5 // pred_check
      _
    $region86: #{aspp_forward.1} parent=5 // pred_check_branch
      %739 = sbr.rel (%p736) target = $region88
    $region87: #{aspp_forward.1} parent=5 // pred_region
      %s740 = ssub.s32 %s23, 1
      %s741 = smul.u32 6, %s34
      %p742 = scmp.lt.s32.totalorder %s33, 1
      %s743 = scalar_select %p742, %s33, 1
      %p744 = scmp.lt.s32.totalorder %s741, 53
      %s745 = scalar_select %p744, %s741, 53
      %p746 = scmp.lt.s32.totalorder %s35, 0
      %s747 = scalar_select %p746, %s35, 0
      %s748 = smul.addr %s745, 7
      %s749 = sadd.s32 %s747, %s748
      %s750 = smul.addr %s743, 378
      %s751 = sadd.s32 %s749, %s750
      %s752 = smul.addr %s751, 4
      %s753 = scalar_lea.vmem %s0, %s752
      %p754 = pneg %p72
      %p755 = pneg %p69
      %s756 = sadd.s32 %s34, 1
      %s757 = smul.u32 6, %s756
      %p758 = scmp.lt.s32.totalorder %s33, 1
      %s759 = scalar_select %p758, %s33, 1
      %p760 = scmp.lt.s32.totalorder %s757, 53
      %s761 = scalar_select %p760, %s757, 53
      %p762 = scmp.lt.s32.totalorder %s35, 0
      %s763 = scalar_select %p762, %s35, 0
      %s764 = smul.addr %s761, 7
      %s765 = sadd.s32 %s763, %s764
      %s766 = smul.addr %s759, 378
      %s767 = sadd.s32 %s765, %s766
      %s768 = smul.addr %s767, 4
      %s769 = scalar_lea.vmem %s1, %s768
      %p770 = pneg %p104
      %p771 = pneg %p101
      %s772 = sadd.s32 %s34, 2
      %s773 = smul.u32 6, %s772
      %p774 = scmp.lt.s32.totalorder %s33, 1
      %s775 = scalar_select %p774, %s33, 1
      %p776 = scmp.lt.s32.totalorder %s773, 53
      %s777 = scalar_select %p776, %s773, 53
      %p778 = scmp.lt.s32.totalorder %s35, 0
      %s779 = scalar_select %p778, %s35, 0
      %s780 = smul.addr %s777, 7
      %s781 = sadd.s32 %s779, %s780
      %s782 = smul.addr %s775, 378
      %s783 = sadd.s32 %s781, %s782
      %s784 = smul.addr %s783, 4
      %s785 = scalar_lea.vmem %s2, %s784
      %p786 = pneg %p136
      %p787 = pneg %p133
      %s788 = sadd.s32 %s34, 3
      %s789 = smul.u32 6, %s788
      %p790 = scmp.lt.s32.totalorder %s33, 1
      %s791 = scalar_select %p790, %s33, 1
      %p792 = scmp.lt.s32.totalorder %s789, 53
      %s793 = scalar_select %p792, %s789, 53
      %p794 = scmp.lt.s32.totalorder %s35, 0
      %s795 = scalar_select %p794, %s35, 0
      %s796 = smul.addr %s793, 7
      %s797 = sadd.s32 %s795, %s796
      %s798 = smul.addr %s791, 378
      %s799 = sadd.s32 %s797, %s798
      %s800 = smul.addr %s799, 4
      %s801 = scalar_lea.vmem %s3, %s800
      %p802 = pneg %p168
      %p803 = pneg %p165
      %s804 = sadd.s32 %s34, 4
      %s805 = smul.u32 6, %s804
      %p806 = scmp.lt.s32.totalorder %s33, 1
      %s807 = scalar_select %p806, %s33, 1
      %p808 = scmp.lt.s32.totalorder %s805, 53
      %s809 = scalar_select %p808, %s805, 53
      %p810 = scmp.lt.s32.totalorder %s35, 0
      %s811 = scalar_select %p810, %s35, 0
      %s812 = smul.addr %s809, 7
      %s813 = sadd.s32 %s811, %s812
      %s814 = smul.addr %s807, 378
      %s815 = sadd.s32 %s813, %s814
      %s816 = smul.addr %s815, 4
      %s817 = scalar_lea.vmem %s4, %s816
      %p818 = pneg %p200
      %p819 = pneg %p197
      %s820 = sadd.s32 %s34, 5
      %s821 = smul.u32 6, %s820
      %p822 = scmp.lt.s32.totalorder %s33, 1
      %s823 = scalar_select %p822, %s33, 1
      %p824 = scmp.lt.s32.totalorder %s821, 53
      %s825 = scalar_select %p824, %s821, 53
      %p826 = scmp.lt.s32.totalorder %s35, 0
      %s827 = scalar_select %p826, %s35, 0
      %s828 = smul.addr %s825, 7
      %s829 = sadd.s32 %s827, %s828
      %s830 = smul.addr %s823, 378
      %s831 = sadd.s32 %s829, %s830
      %s832 = smul.addr %s831, 4
      %s833 = scalar_lea.vmem %s5, %s832
      %p834 = pneg %p232
      %p835 = pneg %p229
      %s836 = sadd.s32 %s34, 6
      %s837 = smul.u32 6, %s836
      %p838 = scmp.lt.s32.totalorder %s33, 1
      %s839 = scalar_select %p838, %s33, 1
      %p840 = scmp.lt.s32.totalorder %s837, 53
      %s841 = scalar_select %p840, %s837, 53
      %p842 = scmp.lt.s32.totalorder %s35, 0
      %s843 = scalar_select %p842, %s35, 0
      %s844 = smul.addr %s841, 7
      %s845 = sadd.s32 %s843, %s844
      %s846 = smul.addr %s839, 378
      %s847 = sadd.s32 %s845, %s846
      %s848 = smul.addr %s847, 4
      %s849 = scalar_lea.vmem %s6, %s848
      %p850 = pneg %p264
      %p851 = pneg %p261
      %s852 = smul.u32 16, %s35
      %p853 = scmp.lt.s32.totalorder %s852, 15
      %s854 = scalar_select %p853, %s852, 15
      %s855 = smul.addr %s854, 4
      %s856 = scalar_lea.vmem %s7, %s855
      %p857 = pneg %p290
      %p858 = pneg %p287
      %p859 = pneg %p311
      %p860 = pneg %p308
      %s861 = smul.u32 16, %s35
      %p862 = scmp.lt.s32.totalorder %s861, 15
      %s863 = scalar_select %p862, %s861, 15
      %s864 = smul.addr %s863, 4
      %s865 = scalar_lea.vmem %s9, %s864
      %p866 = pneg %p337
      %p867 = pneg %p334
      %p868 = pneg %p358
      %p869 = pneg %p355
      %s870 = smul.u32 16, %s35
      %p871 = scmp.lt.s32.totalorder %s870, 15
      %s872 = scalar_select %p871, %s870, 15
      %s873 = smul.addr %s872, 4
      %s874 = scalar_lea.vmem %s11, %s873
      %p875 = pneg %p384
      %p876 = pneg %p381
      %p877 = pneg %p405
      %p878 = pneg %p402
      %s879 = smul.u32 16, %s35
      %p880 = scmp.lt.s32.totalorder %s879, 15
      %s881 = scalar_select %p880, %s879, 15
      %s882 = smul.addr %s881, 4
      %s883 = scalar_lea.vmem %s13, %s882
      %p884 = pneg %p431
      %p885 = pneg %p428
      %p886 = pneg %p452
      %p887 = pneg %p449
      %p888 = pneg %p473
      %p889 = pneg %p470
      %p890 = scmp.lt.s32.totalorder %s33, 1
      %s891 = scalar_select %p890, %s33, 1
      %s892 = scalar_lea.vmem %s16, %s891
      %p893 = pneg %p499
      %p894 = pneg %p496
      %p895 = pneg %p527
      %p896 = pneg %p524
      %s897 = smul.u32 6, %s34
      %p898 = scmp.lt.s32.totalorder %s33, 1
      %s899 = scalar_select %p898, %s33, 1
      %p900 = scmp.lt.s32.totalorder %s897, 17
      %s901 = scalar_select %p900, %s897, 17
      %s902 = smul.addr %s901, 2
      %s903 = smul.addr %s899, 36
      %s904 = sadd.s32 %s902, %s903
      %s905 = smul.addr %s904, 8
      %s906 = scalar_lea.vmem %s17, %s905
      %s907 = smul.u32 6, %s34
      %p908 = scmp.lt.s32.totalorder %s33, 1
      %s909 = scalar_select %p908, %s33, 1
      %p910 = scmp.lt.s32.totalorder %s907, 53
      %s911 = scalar_select %p910, %s907, 53
      %p912 = scmp.lt.s32.totalorder %s35, 0
      %s913 = scalar_select %p912, %s35, 0
      %s914 = smul.addr %s911, 7
      %s915 = sadd.s32 %s913, %s914
      %s916 = smul.addr %s909, 378
      %s917 = sadd.s32 %s915, %s916
      %s918 = smul.addr %s917, 4
      %s919 = scalar_lea.vmem %s0, %s918
      %s920 = smul.u32 6, %s34
      %s921 = sadd.s32 %s34, 1
      %s922 = smul.u32 6, %s921
      %p923 = scmp.lt.s32.totalorder %s33, 1
      %s924 = scalar_select %p923, %s33, 1
      %p925 = scmp.lt.s32.totalorder %s922, 53
      %s926 = scalar_select %p925, %s922, 53
      %p927 = scmp.lt.s32.totalorder %s35, 0
      %s928 = scalar_select %p927, %s35, 0
      %s929 = smul.addr %s926, 7
      %s930 = sadd.s32 %s928, %s929
      %s931 = smul.addr %s924, 378
      %s932 = sadd.s32 %s930, %s931
      %s933 = smul.addr %s932, 4
      %s934 = scalar_lea.vmem %s1, %s933
      %s935 = sadd.s32 %s34, 1
      %s936 = smul.u32 6, %s935
      %s937 = sadd.s32 %s34, 2
      %s938 = smul.u32 6, %s937
      %p939 = scmp.lt.s32.totalorder %s33, 1
      %s940 = scalar_select %p939, %s33, 1
      %p941 = scmp.lt.s32.totalorder %s938, 53
      %s942 = scalar_select %p941, %s938, 53
      %p943 = scmp.lt.s32.totalorder %s35, 0
      %s944 = scalar_select %p943, %s35, 0
      %s945 = smul.addr %s942, 7
      %s946 = sadd.s32 %s944, %s945
      %s947 = smul.addr %s940, 378
      %s948 = sadd.s32 %s946, %s947
      %s949 = smul.addr %s948, 4
      %s950 = scalar_lea.vmem %s2, %s949
      %s951 = sadd.s32 %s34, 2
      %s952 = smul.u32 6, %s951
      %s953 = sadd.s32 %s34, 3
      %s954 = smul.u32 6, %s953
      %p955 = scmp.lt.s32.totalorder %s33, 1
      %s956 = scalar_select %p955, %s33, 1
      %p957 = scmp.lt.s32.totalorder %s954, 53
      %s958 = scalar_select %p957, %s954, 53
      %p959 = scmp.lt.s32.totalorder %s35, 0
      %s960 = scalar_select %p959, %s35, 0
      %s961 = smul.addr %s958, 7
      %s962 = sadd.s32 %s960, %s961
      %s963 = smul.addr %s956, 378
      %s964 = sadd.s32 %s962, %s963
      %s965 = smul.addr %s964, 4
      %s966 = scalar_lea.vmem %s3, %s965
      %s967 = sadd.s32 %s34, 3
      %s968 = smul.u32 6, %s967
      %s969 = sadd.s32 %s34, 4
      %s970 = smul.u32 6, %s969
      %p971 = scmp.lt.s32.totalorder %s33, 1
      %s972 = scalar_select %p971, %s33, 1
      %p973 = scmp.lt.s32.totalorder %s970, 53
      %s974 = scalar_select %p973, %s970, 53
      %p975 = scmp.lt.s32.totalorder %s35, 0
      %s976 = scalar_select %p975, %s35, 0
      %s977 = smul.addr %s974, 7
      %s978 = sadd.s32 %s976, %s977
      %s979 = smul.addr %s972, 378
      %s980 = sadd.s32 %s978, %s979
      %s981 = smul.addr %s980, 4
      %s982 = scalar_lea.vmem %s4, %s981
      %s983 = sadd.s32 %s34, 4
      %s984 = smul.u32 6, %s983
      %s985 = sadd.s32 %s34, 5
      %s986 = smul.u32 6, %s985
      %p987 = scmp.lt.s32.totalorder %s33, 1
      %s988 = scalar_select %p987, %s33, 1
      %p989 = scmp.lt.s32.totalorder %s986, 53
      %s990 = scalar_select %p989, %s986, 53
      %p991 = scmp.lt.s32.totalorder %s35, 0
      %s992 = scalar_select %p991, %s35, 0
      %s993 = smul.addr %s990, 7
      %s994 = sadd.s32 %s992, %s993
      %s995 = smul.addr %s988, 378
      %s996 = sadd.s32 %s994, %s995
      %s997 = smul.addr %s996, 4
      %s998 = scalar_lea.vmem %s5, %s997
      %s999 = sadd.s32 %s34, 5
      %s1000 = smul.u32 6, %s999
      %s1001 = sadd.s32 %s34, 6
      %s1002 = smul.u32 6, %s1001
      %p1003 = scmp.lt.s32.totalorder %s33, 1
      %s1004 = scalar_select %p1003, %s33, 1
      %p1005 = scmp.lt.s32.totalorder %s1002, 53
      %s1006 = scalar_select %p1005, %s1002, 53
      %p1007 = scmp.lt.s32.totalorder %s35, 0
      %s1008 = scalar_select %p1007, %s35, 0
      %s1009 = smul.addr %s1006, 7
      %s1010 = sadd.s32 %s1008, %s1009
      %s1011 = smul.addr %s1004, 378
      %s1012 = sadd.s32 %s1010, %s1011
      %s1013 = smul.addr %s1012, 4
      %s1014 = scalar_lea.vmem %s6, %s1013
      %s1015 = sadd.s32 %s34, 6
      %s1016 = smul.u32 6, %s1015
      %s1017 = smul.u32 16, %s35
      %p1018 = scmp.lt.s32.totalorder %s1017, 15
      %s1019 = scalar_select %p1018, %s1017, 15
      %s1020 = smul.addr %s1019, 4
      %s1021 = scalar_lea.vmem %s7, %s1020
      %s1022 = smul.u32 16, %s35
      %s1023 = smul.u32 16, %s35
      %p1024 = scmp.lt.s32.totalorder %s1023, 15
      %s1025 = scalar_select %p1024, %s1023, 15
      %s1026 = smul.addr %s1025, 4
      %s1027 = scalar_lea.vmem %s9, %s1026
      %s1028 = smul.u32 16, %s35
      %s1029 = smul.u32 16, %s35
      %p1030 = scmp.lt.s32.totalorder %s1029, 15
      %s1031 = scalar_select %p1030, %s1029, 15
      %s1032 = smul.addr %s1031, 4
      %s1033 = scalar_lea.vmem %s11, %s1032
      %s1034 = smul.u32 16, %s35
      %s1035 = smul.u32 16, %s35
      %p1036 = scmp.lt.s32.totalorder %s1035, 15
      %s1037 = scalar_select %p1036, %s1035, 15
      %s1038 = smul.addr %s1037, 4
      %s1039 = scalar_lea.vmem %s13, %s1038
      %s1040 = smul.u32 16, %s35
      %p1041 = scmp.lt.s32.totalorder %s33, 1
      %s1042 = scalar_select %p1041, %s33, 1
      %s1043 = scalar_lea.vmem %s16, %s1042
      %s1044 = smul.u32 6, %s34
      %p1045 = scmp.lt.s32.totalorder %s33, 1
      %s1046 = scalar_select %p1045, %s33, 1
      %p1047 = scmp.lt.s32.totalorder %s1044, 17
      %s1048 = scalar_select %p1047, %s1044, 17
      %s1049 = smul.addr %s1048, 2
      %s1050 = smul.addr %s1046, 36
      %s1051 = sadd.s32 %s1049, %s1050
      %s1052 = smul.addr %s1051, 8
      %s1053 = scalar_lea.vmem %s17, %s1052
      %s1054 = smul.u32 6, %s34
      %p1056 = scmp.eq.s32.totalorder %s35, 0
      // Predicated region
      $region89: #{aspp_forward.1} parent=87 // pred_check
        %p1057 = pneg %p1056
      $region90: #{aspp_forward.1} parent=87 // pred_check_branch
        %1059 = sbr.rel (%p1057) target = $region92
      $region91: #{aspp_forward.1} parent=87 // pred_region
        %1060 = vst [vmem:[#allocation2] sm:$0xff] 0.0
        %1061 = vst [vmem:[#allocation2 + $0x8] sm:$0xff] 0.0
        %1062 = vst [vmem:[#allocation2 + $0x10] sm:$0xff] 0.0
        %1063 = vst [vmem:[#allocation2 + $0x18] sm:$0xff] 0.0
        %1064 = vst [vmem:[#allocation2 + $0x20] sm:$0xff] 0.0
        %1065 = vst [vmem:[#allocation2 + $0x28] sm:$0xff] 0.0
        %1066 = vst [vmem:[#allocation2 + $0x30] sm:$0xff] 0.0
        %1067 = vst [vmem:[#allocation2 + $0x38] sm:$0xff] 0.0
        %1068 = vst [vmem:[#allocation2 + $0x40] sm:$0xff] 0.0
        %1069 = vst [vmem:[#allocation2 + $0x48] sm:$0xff] 0.0
        %1070 = vst [vmem:[#allocation2 + $0x50] sm:$0xff] 0.0
        %1071 = vst [vmem:[#allocation2 + $0x58] sm:$0xff] 0.0
        %1072 = vst [vmem:[#allocation2 + $0x60] sm:$0xff] 0.0
        %1073 = vst [vmem:[#allocation2 + $0x68] sm:$0xff] 0.0
        %1074 = vst [vmem:[#allocation2 + $0x70] sm:$0xff] 0.0
        %1075 = vst [vmem:[#allocation2 + $0x78] sm:$0xff] 0.0
        %1076 = vst [vmem:[#allocation2 + $0x80] sm:$0xff] 0.0
        %1077 = vst [vmem:[#allocation2 + $0x88] sm:$0xff] 0.0
        %1078 = vst [vmem:[#allocation2 + $0x90] sm:$0xff] 0.0
        %1079 = vst [vmem:[#allocation2 + $0x98] sm:$0xff] 0.0
        %1080 = vst [vmem:[#allocation2 + $0xa0] sm:$0xff] 0.0
        %1081 = vst [vmem:[#allocation2 + $0xa8] sm:$0xff] 0.0
        %1082 = vst [vmem:[#allocation2 + $0xb0] sm:$0xff] 0.0
        %1083 = vst [vmem:[#allocation2 + $0xb8] sm:$0xff] 0.0
        %1084 = vst [vmem:[#allocation2 + $0xc0] sm:$0xff] 0.0
        %1085 = vst [vmem:[#allocation2 + $0xc8] sm:$0xff] 0.0
        %1086 = vst [vmem:[#allocation2 + $0xd0] sm:$0xff] 0.0
        %1087 = vst [vmem:[#allocation2 + $0xd8] sm:$0xff] 0.0
        %1088 = vst [vmem:[#allocation2 + $0xe0] sm:$0xff] 0.0
        %1089 = vst [vmem:[#allocation2 + $0xe8] sm:$0xff] 0.0
        %1090 = vst [vmem:[#allocation2 + $0xf0] sm:$0xff] 0.0
        %1091 = vst [vmem:[#allocation2 + $0xf8] sm:$0xff] 0.0
        %1092 = vst [vmem:[#allocation2 + $0x100] sm:$0xff] 0.0
        %1093 = vst [vmem:[#allocation2 + $0x108] sm:$0xff] 0.0
        %1094 = vst [vmem:[#allocation2 + $0x110] sm:$0xff] 0.0
        %1095 = vst [vmem:[#allocation2 + $0x118] sm:$0xff] 0.0
        %1096 = vst [vmem:[#allocation2 + $0x120] sm:$0xff] 0.0
        %1097 = vst [vmem:[#allocation2 + $0x128] sm:$0xff] 0.0
        %1098 = vst [vmem:[#allocation2 + $0x130] sm:$0xff] 0.0
        %1099 = vst [vmem:[#allocation2 + $0x138] sm:$0xff] 0.0
        %1100 = vst [vmem:[#allocation2 + $0x140] sm:$0xff] 0.0
        %1101 = vst [vmem:[#allocation2 + $0x148] sm:$0xff] 0.0
        %1102 = vst [vmem:[#allocation2 + $0x150] sm:$0xff] 0.0
        %1103 = vst [vmem:[#allocation2 + $0x158] sm:$0xff] 0.0
        %1104 = vst [vmem:[#allocation2 + $0x160] sm:$0xff] 0.0
        %1105 = vst [vmem:[#allocation2 + $0x168] sm:$0xff] 0.0
        %1106 = vst [vmem:[#allocation2 + $0x170] sm:$0xff] 0.0
        %1107 = vst [vmem:[#allocation2 + $0x178] sm:$0xff] 0.0
      $region92: #{aspp_forward.1} parent=87 // pred_fallthru
        _
      %v1108 = vld [vmem:[%s966 + $0x8] sm:$0xe]
      %v1109 = vld [vmem:[%s966 + $0xc] sm:$0xf]
      %v1110 = vld [vmem:[%s966 + $0x10] sm:$0x1]
      %v1111 = vld [vmem:[%s966 + $0x24] sm:$0xe]
      %v1112 = vld [vmem:[%s966 + $0x28] sm:$0xf]
      %v1113 = vld [vmem:[%s966 + $0x2c] sm:$0x1]
      %v1114 = vld [vmem:[%s966 + $0x40] sm:$0xe]
      %v1115 = vld [vmem:[%s966 + $0x44] sm:$0xf]
      %v1116 = vld [vmem:[%s966 + $0x48] sm:$0x1]
      %v1117 = vld [vmem:[%s966 + $0x5c] sm:$0xe]
      %v1118 = vld [vmem:[%s966 + $0x60] sm:$0xf]
      %v1119 = vld [vmem:[%s966 + $0x64] sm:$0x1]
      %v1120 = vld [vmem:[%s966 + $0x78] sm:$0xe]
      %v1121 = vld [vmem:[%s966 + $0x7c] sm:$0xf]
      %v1122 = vld [vmem:[%s966 + $0x80] sm:$0x1]
      %v1123 = vld [vmem:[%s966 + $0x94] sm:$0xe]
      %v1124 = vld [vmem:[%s966 + $0x98] sm:$0xf]
      %v1125 = vld [vmem:[%s966 + $0x9c] sm:$0x1]
      %vm1144 = vcmask 1042432
      %vm1145 = vcmask 1046532
      %vm1146 = vmor %vm1144, %vm1145
      %v1147 = vrot.slane %v1108, 5
      %v1148 = vrot.slane %v1147, 4
      %v1149 = vrot.slane %v1109, 5
      %v1150 = vsel %vm1146, %v1148, %v1149
      %v1151 = vrot.slane %v1149, 4
      %v1152 = vrot.slane %v1110, 5
      %v1153 = vsel %vm1146, %v1151, %v1152
      %v1154 = vrot.slane %v1111, 5
      %v1155 = vrot.slane %v1154, 4
      %v1156 = vrot.slane %v1112, 5
      %v1157 = vsel %vm1146, %v1155, %v1156
      %v1158 = vrot.slane %v1156, 4
      %v1159 = vrot.slane %v1113, 5
      %v1160 = vsel %vm1146, %v1158, %v1159
      %v1161 = vrot.slane %v1114, 5
      %v1162 = vrot.slane %v1161, 4
      %v1163 = vrot.slane %v1115, 5
      %v1164 = vsel %vm1146, %v1162, %v1163
      %v1165 = vrot.slane %v1163, 4
      %v1166 = vrot.slane %v1116, 5
      %v1167 = vsel %vm1146, %v1165, %v1166
      %v1168 = vrot.slane %v1117, 5
      %v1169 = vrot.slane %v1168, 4
      %v1170 = vrot.slane %v1118, 5
      %v1171 = vsel %vm1146, %v1169, %v1170
      %v1172 = vrot.slane %v1170, 4
      %v1173 = vrot.slane %v1119, 5
      %v1174 = vsel %vm1146, %v1172, %v1173
      %v1175 = vrot.slane %v1120, 5
      %v1176 = vrot.slane %v1175, 4
      %v1177 = vrot.slane %v1121, 5
      %v1178 = vsel %vm1146, %v1176, %v1177
      %v1179 = vrot.slane %v1177, 4
      %v1180 = vrot.slane %v1122, 5
      %v1181 = vsel %vm1146, %v1179, %v1180
      %v1182 = vrot.slane %v1123, 5
      %v1183 = vrot.slane %v1182, 4
      %v1184 = vrot.slane %v1124, 5
      %v1185 = vsel %vm1146, %v1183, %v1184
      %v1186 = vrot.slane %v1184, 4
      %v1187 = vrot.slane %v1125, 5
      %v1188 = vsel %vm1146, %v1186, %v1187
      %v1189 = vld [vmem:[#allocation2] sm:$0xff]
      %v1190 = vld [vmem:[#allocation2 + $0x8] sm:$0xff]
      %v1191 = vld [vmem:[#allocation2 + $0x10] sm:$0xff]
      %v1192 = vld [vmem:[#allocation2 + $0x18] sm:$0xff]
      %v1193 = vld [vmem:[#allocation2 + $0x20] sm:$0xff]
      %v1194 = vld [vmem:[#allocation2 + $0x28] sm:$0xff]
      %v1195 = vld [vmem:[#allocation2 + $0x30] sm:$0xff]
      %v1196 = vld [vmem:[#allocation2 + $0x38] sm:$0xff]
      %v1197 = vld [vmem:[#allocation2 + $0x40] sm:$0xff]
      %v1198 = vld [vmem:[#allocation2 + $0x48] sm:$0xff]
      %v1199 = vld [vmem:[#allocation2 + $0x50] sm:$0xff]
      %v1200 = vld [vmem:[#allocation2 + $0x58] sm:$0xff]
      %v1201 = vld [vmem:[%s1021] sm:$0xf]
      %v1202 = vld [vmem:[%s1021 + $0x4] sm:$0xf]
      %v1203 = vld [vmem:[%s1021 + $0x8] sm:$0xf]
      %v1204 = vld [vmem:[%s1021 + $0xc] sm:$0xf]
      %v1205 = vld [vmem:[%s1021 + $0x10] sm:$0xf]
      %v1206 = vld [vmem:[%s1021 + $0x14] sm:$0xf]
      %v1207 = vld [vmem:[%s1021 + $0x18] sm:$0xf]
      %v1208 = vld [vmem:[%s1021 + $0x1c] sm:$0xf]
      %v1209 = vld [vmem:[%s1021 + $0x20] sm:$0xf]
      %v1210 = vld [vmem:[%s1021 + $0x24] sm:$0xf]
      %v1211 = vld [vmem:[%s1021 + $0x28] sm:$0xf]
      %v1212 = vld [vmem:[%s1021 + $0x2c] sm:$0xf]
      %v1213 = vld [vmem:[%s1021 + $0x30] sm:$0xf]
      %v1214 = vld [vmem:[%s1021 + $0x34] sm:$0xf]
      %v1215 = vld [vmem:[%s1021 + $0x38] sm:$0xf]
      %v1216 = vld [vmem:[%s1021 + $0x3c] sm:$0xf]
      %v1217 = vunpack.c.l.b16 %v1150
      %v1218 = vunpack.c.l.b16 %v1153
      %v1219 = vunpack.c.l.b16 %v1157
      %v1220 = vunpack.c.l.b16 %v1160
      %v1221 = vunpack.c.l.b16 %v1164
      %v1222 = vunpack.c.l.b16 %v1167
      %v1223 = vunpack.c.l.b16 %v1171
      %v1224 = vunpack.c.l.b16 %v1174
      %v1225 = vunpack.c.l.b16 %v1178
      %v1226 = vunpack.c.l.b16 %v1181
      %v1227 = vunpack.c.l.b16 %v1185
      %v1228 = vunpack.c.l.b16 %v1188
      %v1229 = vpack.c.b16 %v1218, %v1217
      %v1230 = vpack.c.b16 %v1220, %v1219
      %v1231 = vpack.c.b16 %v1222, %v1221
      %v1232 = vpack.c.b16 %v1224, %v1223
      %v1233 = vpack.c.b16 %v1226, %v1225
      %v1234 = vpack.c.b16 %v1228, %v1227
      %v1257 = vunpack.c.l.b16 %v1201
      %v1258 = vunpack.c.l.b16 %v1202
      %v1259 = vunpack.c.l.b16 %v1203
      %v1260 = vunpack.c.l.b16 %v1204
      %v1261 = vunpack.c.l.b16 %v1205
      %v1262 = vunpack.c.l.b16 %v1206
      %v1263 = vunpack.c.l.b16 %v1207
      %v1264 = vunpack.c.l.b16 %v1208
      %v1265 = vunpack.c.l.b16 %v1209
      %v1266 = vunpack.c.l.b16 %v1210
      %v1267 = vunpack.c.l.b16 %v1211
      %v1268 = vunpack.c.l.b16 %v1212
      %v1269 = vunpack.c.l.b16 %v1213
      %v1270 = vunpack.c.l.b16 %v1214
      %v1271 = vunpack.c.l.b16 %v1215
      %v1272 = vunpack.c.l.b16 %v1216
      %v1273 = vpack.c.b16 %v1258, %v1257
      %v1274 = vpack.c.b16 %v1260, %v1259
      %v1275 = vpack.c.b16 %v1262, %v1261
      %v1276 = vpack.c.b16 %v1264, %v1263
      %v1277 = vpack.c.b16 %v1266, %v1265
      %v1278 = vpack.c.b16 %v1268, %v1267
      %v1279 = vpack.c.b16 %v1270, %v1269
      %v1280 = vpack.c.b16 %v1272, %v1271
      %1289 = vmatprep.subr.bf16.mxu0 0
      %1290 = vmatpush1.bf16.msra.mxu0 %v1273
      %1291 = vmatprep.subr.bf16.mxu0 0
      %1292 = vmatpush1.bf16.msra.mxu0 %v1274
      %1293 = vmatprep.subr.bf16.mxu0 0
      %1294 = vmatpush1.bf16.msra.mxu0 %v1275
      %1295 = vmatprep.subr.bf16.mxu0 0
      %1296 = vmatpush1.bf16.msra.mxu0 %v1276
      %1297 = vmatprep.subr.bf16.mxu0 0
      %1298 = vmatpush1.bf16.msra.mxu0 %v1277
      %1299 = vmatprep.subr.bf16.mxu0 0
      %1300 = vmatpush1.bf16.msra.mxu0 %v1278
      %1301 = vmatprep.subr.bf16.mxu0 0
      %1302 = vmatpush1.bf16.msra.mxu0 %v1279
      %1303 = vmatprep.subr.bf16.mxu0 0
      %1304 = vmatpush1.bf16.msra.mxu0 %v1280
      %1305 = vmatprep.subr.bf16.mxu0 0
      %1306 = vmatpush1.bf16.msra.mxu0 0
      %1307 = vmatprep.subr.bf16.mxu0 0
      %1308 = vmatpush1.bf16.msra.mxu0 0
      %1309 = vmatprep.subr.bf16.mxu0 0
      %1310 = vmatpush1.bf16.msra.mxu0 0
      %1311 = vmatprep.subr.bf16.mxu0 0
      %1312 = vmatpush1.bf16.msra.mxu0 0
      %1313 = vmatprep.subr.bf16.mxu0 0
      %1314 = vmatpush1.bf16.msra.mxu0 0
      %1315 = vmatprep.subr.bf16.mxu0 0
      %1316 = vmatpush1.bf16.msra.mxu0 0
      %1317 = vmatprep.subr.bf16.mxu0 0
      %1318 = vmatpush1.bf16.msra.mxu0 0
      %1319 = vmatprep.subr.bf16.mxu0 0
      %1320 = vmatpush1.bf16.msra.mxu0 0
      %1321 = vmatprep.mubr.bf16.mxu0 0
      %1322 = vmatmul.mubr.bf16.gmra.mrb[0].mxu0 %v1229
      %v1323 = vpop.f32.mrb[0].mxu0
      %v1324 = vadd.f32 0.0, %v1323
      %v1325 = vpop.f32.mrb[0].mxu0
      %v1326 = vpop.f32.mrb[0].mxu0
      %v1327 = vadd.f32 0.0, %v1326
      %v1328 = vpop.f32.mrb[0].mxu0
      %1329 = vmatprep.mubr.bf16.mxu0 0
      %1330 = vmatmul.mubr.bf16.gmra.mrb[0].mxu0 %v1230
      %v1331 = vpop.f32.mrb[0].mxu0
      %v1332 = vadd.f32 0.0, %v1331
      %v1333 = vpop.f32.mrb[0].mxu0
      %v1334 = vpop.f32.mrb[0].mxu0
      %v1335 = vadd.f32 0.0, %v1334
      %v1336 = vpop.f32.mrb[0].mxu0
      %1337 = vmatprep.mubr.bf16.mxu0 0
      %1338 = vmatmul.mubr.bf16.gmra.mrb[0].mxu0 %v1231
      %v1339 = vpop.f32.mrb[0].mxu0
      %v1340 = vadd.f32 0.0, %v1339
      %v1341 = vpop.f32.mrb[0].mxu0
      %v1342 = vpop.f32.mrb[0].mxu0
      %v1343 = vadd.f32 0.0, %v1342
      %v1344 = vpop.f32.mrb[0].mxu0
      %1345 = vmatprep.mubr.bf16.mxu0 0
      %1346 = vmatmul.mubr.bf16.gmra.mrb[0].mxu0 %v1232
      %v1347 = vpop.f32.mrb[0].mxu0
      %v1348 = vadd.f32 0.0, %v1347
      %v1349 = vpop.f32.mrb[0].mxu0
      %v1350 = vpop.f32.mrb[0].mxu0
      %v1351 = vadd.f32 0.0, %v1350
      %v1352 = vpop.f32.mrb[0].mxu0
      %1353 = vmatprep.mubr.bf16.mxu0 0
      %1354 = vmatmul.mubr.bf16.gmra.mrb[0].mxu0 %v1233
      %v1355 = vpop.f32.mrb[0].mxu0
      %v1356 = vadd.f32 0.0, %v1355
      %v1357 = vpop.f32.mrb[0].mxu0
      %v1358 = vpop.f32.mrb[0].mxu0
      %v1359 = vadd.f32 0.0, %v1358
      %v1360 = vpop.f32.mrb[0].mxu0
      %1361 = vmatprep.mubr.bf16.mxu0 0
      %1362 = vmatmul.mubr.bf16.gmra.mrb[0].mxu0 %v1234
      %v1363 = vpop.f32.mrb[0].mxu0
      %v1364 = vadd.f32 0.0, %v1363
      %v1365 = vpop.f32.mrb[0].mxu0
      %v1366 = vpop.f32.mrb[0].mxu0
      %v1367 = vadd.f32 0.0, %v1366
      %v1368 = vpop.f32.mrb[0].mxu0
      %1369 = vdwg.mxu0
      %v1370 = vadd.f32 %v1189, %v1324
      %v1371 = vadd.f32 %v1190, %v1327
      %v1372 = vadd.f32 %v1191, %v1332
      %v1373 = vadd.f32 %v1192, %v1335
      %v1374 = vadd.f32 %v1193, %v1340
      %v1375 = vadd.f32 %v1194, %v1343
      %v1376 = vadd.f32 %v1195, %v1348
      %v1377 = vadd.f32 %v1196, %v1351
      %v1378 = vadd.f32 %v1197, %v1356
      %v1379 = vadd.f32 %v1198, %v1359
      %v1380 = vadd.f32 %v1199, %v1364
      %v1381 = vadd.f32 %v1200, %v1367
      %1382 = vst [vmem:[#allocation2] sm:$0xff] %v1370
      %1383 = vst [vmem:[#allocation2 + $0x8] sm:$0xff] %v1371
      %1384 = vst [vmem:[#allocation2 + $0x10] sm:$0xff] %v1372
      %1385 = vst [vmem:[#allocation2 + $0x18] sm:$0xff] %v1373
      %1386 = vst [vmem:[#allocation2 + $0x20] sm:$0xff] %v1374
      %1387 = vst [vmem:[#allocation2 + $0x28] sm:$0xff] %v1375
      %1388 = vst [vmem:[#allocation2 + $0x30] sm:$0xff] %v1376
      %1389 = vst [vmem:[#allocation2 + $0x38] sm:$0xff] %v1377
      %1390 = vst [vmem:[#allocation2 + $0x40] sm:$0xff] %v1378
      %1391 = vst [vmem:[#allocation2 + $0x48] sm:$0xff] %v1379
      %1392 = vst [vmem:[#allocation2 + $0x50] sm:$0xff] %v1380
      %1393 = vst [vmem:[#allocation2 + $0x58] sm:$0xff] %v1381
      %s1394 = scalar_lea.vmem %s1027, 256
      %v1395 = vld [vmem:[%s1394] sm:$0xf]
      %v1396 = vld [vmem:[%s1394 + $0x4] sm:$0xf]
      %v1397 = vld [vmem:[%s1394 + $0x8] sm:$0xf]
      %v1398 = vld [vmem:[%s1394 + $0xc] sm:$0xf]
      %v1399 = vld [vmem:[%s1394 + $0x10] sm:$0xf]
      %v1400 = vld [vmem:[%s1394 + $0x14] sm:$0xf]
      %v1401 = vld [vmem:[%s1394 + $0x18] sm:$0xf]
      %v1402 = vld [vmem:[%s1394 + $0x1c] sm:$0xf]
      %v1403 = vld [vmem:[%s1394 + $0x20] sm:$0xf]
      %v1404 = vld [vmem:[%s1394 + $0x24] sm:$0xf]
      %v1405 = vld [vmem:[%s1394 + $0x28] sm:$0xf]
      %v1406 = vld [vmem:[%s1394 + $0x2c] sm:$0xf]
      %v1407 = vld [vmem:[%s1394 + $0x30] sm:$0xf]
      %v1408 = vld [vmem:[%s1394 + $0x34] sm:$0xf]
      %v1409 = vld [vmem:[%s1394 + $0x38] sm:$0xf]
      %v1410 = vld [vmem:[%s1394 + $0x3c] sm:$0xf]
      %v1411 = vld [vmem:[%s950 + $0x4] sm:$0xc]
      %v1412 = vld [vmem:[%s950 + $0x8] sm:$0xf]
      %v1413 = vld [vmem:[%s950 + $0xc] sm:$0x3]
      %v1414 = vld [vmem:[%s950 + $0x20] sm:$0xc]
      %v1415 = vld [vmem:[%s950 + $0x24] sm:$0xf]
      %v1416 = vld [vmem:[%s950 + $0x28] sm:$0x3]
      %v1417 = vld [vmem:[%s950 + $0x3c] sm:$0xc]
      %v1418 = vld [vmem:[%s950 + $0x40] sm:$0xf]
      %v1419 = vld [vmem:[%s950 + $0x44] sm:$0x3]
      %v1420 = vld [vmem:[%s950 + $0x58] sm:$0xc]
      %v1421 = vld [vmem:[%s950 + $0x5c] sm:$0xf]
      %v1422 = vld [vmem:[%s950 + $0x60] sm:$0x3]
      %v1423 = vld [vmem:[%s950 + $0x74] sm:$0xc]
      %v1424 = vld [vmem:[%s950 + $0x78] sm:$0xf]
      %v1425 = vld [vmem:[%s950 + $0x7c] sm:$0x3]
      %v1426 = vld [vmem:[%s950 + $0x90] sm:$0xc]
      %v1427 = vld [vmem:[%s950 + $0x94] sm:$0xf]
      %v1428 = vld [vmem:[%s950 + $0x98] sm:$0x3]
      %vm1447 = vcmask 1041408
      %vm1448 = vcmask 1045508
      %vm1449 = vmor %vm1447, %vm1448
      %v1450 = vrot.slane %v1411, 6
      %v1451 = vrot.slane %v1450, 4
      %v1452 = vrot.slane %v1412, 6
      %v1453 = vsel %vm1449, %v1451, %v1452
      %v1454 = vrot.slane %v1452, 4
      %v1455 = vrot.slane %v1413, 6
      %v1456 = vsel %vm1449, %v1454, %v1455
      %v1457 = vrot.slane %v1414, 6
      %v1458 = vrot.slane %v1457, 4
      %v1459 = vrot.slane %v1415, 6
      %v1460 = vsel %vm1449, %v1458, %v1459
      %v1461 = vrot.slane %v1459, 4
      %v1462 = vrot.slane %v1416, 6
      %v1463 = vsel %vm1449, %v1461, %v1462
      %v1464 = vrot.slane %v1417, 6
      %v1465 = vrot.slane %v1464, 4
      %v1466 = vrot.slane %v1418, 6
      %v1467 = vsel %vm1449, %v1465, %v1466
      %v1468 = vrot.slane %v1466, 4
      %v1469 = vrot.slane %v1419, 6
      %v1470 = vsel %vm1449, %v1468, %v1469
      %v1471 = vrot.slane %v1420, 6
      %v1472 = vrot.slane %v1471, 4
      %v1473 = vrot.slane %v1421, 6
      %v1474 = vsel %vm1449, %v1472, %v1473
      %v1475 = vrot.slane %v1473, 4
      %v1476 = vrot.slane %v1422, 6
      %v1477 = vsel %vm1449, %v1475, %v1476
      %v1478 = vrot.slane %v1423, 6
      %v1479 = vrot.slane %v1478, 4
      %v1480 = vrot.slane %v1424, 6
      %v1481 = vsel %vm1449, %v1479, %v1480
      %v1482 = vrot.slane %v1480, 4
      %v1483 = vrot.slane %v1425, 6
      %v1484 = vsel %vm1449, %v1482, %v1483
      %v1485 = vrot.slane %v1426, 6
      %v1486 = vrot.slane %v1485, 4
      %v1487 = vrot.slane %v1427, 6
      %v1488 = vsel %vm1449, %v1486, %v1487
      %v1489 = vrot.slane %v1487, 4
      %v1490 = vrot.slane %v1428, 6
      %v1491 = vsel %vm1449, %v1489, %v1490
      %v1492 = vld [vmem:[%s1027] sm:$0xf]
      %v1493 = vld [vmem:[%s1027 + $0x4] sm:$0xf]
      %v1494 = vld [vmem:[%s1027 + $0x8] sm:$0xf]
      %v1495 = vld [vmem:[%s1027 + $0xc] sm:$0xf]
      %v1496 = vld [vmem:[%s1027 + $0x10] sm:$0xf]
      %v1497 = vld [vmem:[%s1027 + $0x14] sm:$0xf]
      %v1498 = vld [vmem:[%s1027 + $0x18] sm:$0xf]
      %v1499 = vld [vmem:[%s1027 + $0x1c] sm:$0xf]
      %v1500 = vld [vmem:[%s1027 + $0x20] sm:$0xf]
      %v1501 = vld [vmem:[%s1027 + $0x24] sm:$0xf]
      %v1502 = vld [vmem:[%s1027 + $0x28] sm:$0xf]
      %v1503 = vld [vmem:[%s1027 + $0x2c] sm:$0xf]
      %v1504 = vld [vmem:[%s1027 + $0x30] sm:$0xf]
      %v1505 = vld [vmem:[%s1027 + $0x34] sm:$0xf]
      %v1506 = vld [vmem:[%s1027 + $0x38] sm:$0xf]
      %v1507 = vld [vmem:[%s1027 + $0x3c] sm:$0xf]
      %v1508 = vunpack.c.l.b16 %v1453
      %v1509 = vunpack.c.l.b16 %v1456
      %v1510 = vunpack.c.l.b16 %v1460
      %v1511 = vunpack.c.l.b16 %v1463
      %v1512 = vunpack.c.l.b16 %v1467
      %v1513 = vunpack.c.l.b16 %v1470
      %v1514 = vunpack.c.l.b16 %v1474
      %v1515 = vunpack.c.l.b16 %v1477
      %v1516 = vunpack.c.l.b16 %v1481
      %v1517 = vunpack.c.l.b16 %v1484
      %v1518 = vunpack.c.l.b16 %v1488
      %v1519 = vunpack.c.l.b16 %v1491
      %v1520 = vpack.c.b16 %v1509, %v1508
      %v1521 = vpack.c.b16 %v1511, %v1510
      %v1522 = vpack.c.b16 %v1513, %v1512
      %v1523 = vpack.c.b16 %v1515, %v1514
      %v1524 = vpack.c.b16 %v1517, %v1516
      %v1525 = vpack.c.b16 %v1519, %v1518
      %v1548 = vunpack.c.l.b16 %v1492
      %v1549 = vunpack.c.l.b16 %v1493
      %v1550 = vunpack.c.l.b16 %v1494
      %v1551 = vunpack.c.l.b16 %v1495
      %v1552 = vunpack.c.l.b16 %v1496
      %v1553 = vunpack.c.l.b16 %v1497
      %v1554 = vunpack.c.l.b16 %v1498
      %v1555 = vunpack.c.l.b16 %v1499
      %v1556 = vunpack.c.l.b16 %v1500
      %v1557 = vunpack.c.l.b16 %v1501
      %v1558 = vunpack.c.l.b16 %v1502
      %v1559 = vunpack.c.l.b16 %v1503
      %v1560 = vunpack.c.l.b16 %v1504
      %v1561 = vunpack.c.l.b16 %v1505
      %v1562 = vunpack.c.l.b16 %v1506
      %v1563 = vunpack.c.l.b16 %v1507
      %v1564 = vpack.c.b16 %v1549, %v1548
      %v1565 = vpack.c.b16 %v1551, %v1550
      %v1566 = vpack.c.b16 %v1553, %v1552
      %v1567 = vpack.c.b16 %v1555, %v1554
      %v1568 = vpack.c.b16 %v1557, %v1556
      %v1569 = vpack.c.b16 %v1559, %v1558
      %v1570 = vpack.c.b16 %v1561, %v1560
      %v1571 = vpack.c.b16 %v1563, %v1562
      %1580 = vmatprep.subr.bf16.mxu0 0
      %1581 = vmatpush1.bf16.msra.mxu0 %v1564
      %1582 = vmatprep.subr.bf16.mxu0 0
      %1583 = vmatpush1.bf16.msra.mxu0 %v1565
      %1584 = vmatprep.subr.bf16.mxu0 0
      %1585 = vmatpush1.bf16.msra.mxu0 %v1566
      %1586 = vmatprep.subr.bf16.mxu0 0
      %1587 = vmatpush1.bf16.msra.mxu0 %v1567
      %1588 = vmatprep.subr.bf16.mxu0 0
      %1589 = vmatpush1.bf16.msra.mxu0 %v1568
      %1590 = vmatprep.subr.bf16.mxu0 0
      %1591 = vmatpush1.bf16.msra.mxu0 %v1569
      %1592 = vmatprep.subr.bf16.mxu0 0
      %1593 = vmatpush1.bf16.msra.mxu0 %v1570
      %1594 = vmatprep.subr.bf16.mxu0 0
      %1595 = vmatpush1.bf16.msra.mxu0 %v1571
      %1596 = vmatprep.subr.bf16.mxu0 0
      %1597 = vmatpush1.bf16.msra.mxu0 0
      %1598 = vmatprep.subr.bf16.mxu0 0
      %1599 = vmatpush1.bf16.msra.mxu0 0
      %1600 = vmatprep.subr.bf16.mxu0 0
      %1601 = vmatpush1.bf16.msra.mxu0 0
      %1602 = vmatprep.subr.bf16.mxu0 0
      %1603 = vmatpush1.bf16.msra.mxu0 0
      %1604 = vmatprep.subr.bf16.mxu0 0
      %1605 = vmatpush1.bf16.msra.mxu0 0
      %1606 = vmatprep.subr.bf16.mxu0 0
      %1607 = vmatpush1.bf16.msra.mxu0 0
      %1608 = vmatprep.subr.bf16.mxu0 0
      %1609 = vmatpush1.bf16.msra.mxu0 0
      %1610 = vmatprep.subr.bf16.mxu0 0
      %1611 = vmatpush1.bf16.msra.mxu0 0
      %1612 = vmatprep.mubr.bf16.mxu0 0
      %1613 = vmatmul.mubr.bf16.gmra.mrb[0].mxu0 %v1520
      %v1614 = vpop.f32.mrb[0].mxu0
      %v1615 = vadd.f32 0.0, %v1614
      %v1616 = vpop.f32.mrb[0].mxu0
      %v1617 = vpop.f32.mrb[0].mxu0
      %v1618 = vadd.f32 0.0, %v1617
      %v1619 = vpop.f32.mrb[0].mxu0
      %1620 = vmatprep.mubr.bf16.mxu0 0
      %1621 = vmatmul.mubr.bf16.gmra.mrb[0].mxu0 %v1521
      %v1622 = vpop.f32.mrb[0].mxu0
      %v1623 = vadd.f32 0.0, %v1622
      %v1624 = vpop.f32.mrb[0].mxu0
      %v1625 = vpop.f32.mrb[0].mxu0
      %v1626 = vadd.f32 0.0, %v1625
      %v1627 = vpop.f32.mrb[0].mxu0
      %1628 = vmatprep.mubr.bf16.mxu0 0
      %1629 = vmatmul.mubr.bf16.gmra.mrb[0].mxu0 %v1522
      %v1630 = vpop.f32.mrb[0].mxu0
      %v1631 = vadd.f32 0.0, %v1630
      %v1632 = vpop.f32.mrb[0].mxu0
      %v1633 = vpop.f32.mrb[0].mxu0
      %v1634 = vadd.f32 0.0, %v1633
      %v1635 = vpop.f32.mrb[0].mxu0
      %1636 = vmatprep.mubr.bf16.mxu0 0
      %1637 = vmatmul.mubr.bf16.gmra.mrb[0].mxu0 %v1523
      %v1638 = vpop.f32.mrb[0].mxu0
      %v1639 = vadd.f32 0.0, %v1638
      %v1640 = vpop.f32.mrb[0].mxu0
      %v1641 = vpop.f32.mrb[0].mxu0
      %v1642 = vadd.f32 0.0, %v1641
      %v1643 = vpop.f32.mrb[0].mxu0
      %1644 = vmatprep.mubr.bf16.mxu0 0
      %1645 = vmatmul.mubr.bf16.gmra.mrb[0].mxu0 %v1524
      %v1646 = vpop.f32.mrb[0].mxu0
      %v1647 = vadd.f32 0.0, %v1646
      %v1648 = vpop.f32.mrb[0].mxu0
      %v1649 = vpop.f32.mrb[0].mxu0
      %v1650 = vadd.f32 0.0, %v1649
      %v1651 = vpop.f32.mrb[0].mxu0
      %1652 = vmatprep.mubr.bf16.mxu0 0
      %1653 = vmatmul.mubr.bf16.gmra.mrb[0].mxu0 %v1525
      %v1654 = vpop.f32.mrb[0].mxu0
      %v1655 = vadd.f32 0.0, %v1654
      %v1656 = vpop.f32.mrb[0].mxu0
      %v1657 = vpop.f32.mrb[0].mxu0
      %v1658 = vadd.f32 0.0, %v1657
      %v1659 = vpop.f32.mrb[0].mxu0
      %1660 = vdwg.mxu0
      %v1677 = vunpack.c.l.b16 %v1395
      %v1678 = vunpack.c.l.b16 %v1396
      %v1679 = vunpack.c.l.b16 %v1397
      %v1680 = vunpack.c.l.b16 %v1398
      %v1681 = vunpack.c.l.b16 %v1399
      %v1682 = vunpack.c.l.b16 %v1400
      %v1683 = vunpack.c.l.b16 %v1401
      %v1684 = vunpack.c.l.b16 %v1402
      %v1685 = vunpack.c.l.b16 %v1403
      %v1686 = vunpack.c.l.b16 %v1404
      %v1687 = vunpack.c.l.b16 %v1405
      %v1688 = vunpack.c.l.b16 %v1406
      %v1689 = vunpack.c.l.b16 %v1407
      %v1690 = vunpack.c.l.b16 %v1408
      %v1691 = vunpack.c.l.b16 %v1409
      %v1692 = vunpack.c.l.b16 %v1410
      %v1693 = vpack.c.b16 %v1678, %v1677
      %v1694 = vpack.c.b16 %v1680, %v1679
      %v1695 = vpack.c.b16 %v1682, %v1681
      %v1696 = vpack.c.b16 %v1684, %v1683
      %v1697 = vpack.c.b16 %v1686, %v1685
      %v1698 = vpack.c.b16 %v1688, %v1687
      %v1699 = vpack.c.b16 %v1690, %v1689
      %v1700 = vpack.c.b16 %v1692, %v1691
      %1709 = vmatprep.subr.bf16.mxu0 0
      %1710 = vmatpush1.bf16.msra.mxu0 %v1693
      %1711 = vmatprep.subr.bf16.mxu0 0
      %1712 = vmatpush1.bf16.msra.mxu0 %v1694
      %1713 = vmatprep.subr.bf16.mxu0 0
      %1714 = vmatpush1.bf16.msra.mxu0 %v1695
      %1715 = vmatprep.subr.bf16.mxu0 0
      %1716 = vmatpush1.bf16.msra.mxu0 %v1696
      %1717 = vmatprep.subr.bf16.mxu0 0
      %1718 = vmatpush1.bf16.msra.mxu0 %v1697
      %1719 = vmatprep.subr.bf16.mxu0 0
      %1720 = vmatpush1.bf16.msra.mxu0 %v1698
      %1721 = vmatprep.subr.bf16.mxu0 0
      %1722 = vmatpush1.bf16.msra.mxu0 %v1699
      %1723 = vmatprep.subr.bf16.mxu0 0
      %1724 = vmatpush1.bf16.msra.mxu0 %v1700
      %1725 = vmatprep.subr.bf16.mxu0 0
      %1726 = vmatpush1.bf16.msra.mxu0 0
      %1727 = vmatprep.subr.bf16.mxu0 0
      %1728 = vmatpush1.bf16.msra.mxu0 0
      %1729 = vmatprep.subr.bf16.mxu0 0
      %1730 = vmatpush1.bf16.msra.mxu0 0
      %1731 = vmatprep.subr.bf16.mxu0 0
      %1732 = vmatpush1.bf16.msra.mxu0 0
      %1733 = vmatprep.subr.bf16.mxu0 0
      %1734 = vmatpush1.bf16.msra.mxu0 0
      %1735 = vmatprep.subr.bf16.mxu0 0
      %1736 = vmatpush1.bf16.msra.mxu0 0
      %1737 = vmatprep.subr.bf16.mxu0 0
      %1738 = vmatpush1.bf16.msra.mxu0 0
      %1739 = vmatprep.subr.bf16.mxu0 0
      %1740 = vmatpush1.bf16.msra.mxu0 0
      %1741 = vmatprep.mubr.bf16.mxu0 0
      %1742 = vmatmul.mubr.bf16.gmra.mrb[0].mxu0 %v1229
      %v1743 = vpop.f32.mrb[0].mxu0
      %v1744 = vadd.f32 %v1615, %v1743
      %v1745 = vpop.f32.mrb[0].mxu0
      %v1746 = vpop.f32.mrb[0].mxu0
      %v1747 = vadd.f32 %v1618, %v1746
      %v1748 = vpop.f32.mrb[0].mxu0
      %1749 = vmatprep.mubr.bf16.mxu0 0
      %1750 = vmatmul.mubr.bf16.gmra.mrb[0].mxu0 %v1230
      %v1751 = vpop.f32.mrb[0].mxu0
      %v1752 = vadd.f32 %v1623, %v1751
      %v1753 = vpop.f32.mrb[0].mxu0
      %v1754 = vpop.f32.mrb[0].mxu0
      %v1755 = vadd.f32 %v1626, %v1754
      %v1756 = vpop.f32.mrb[0].mxu0
      %1757 = vmatprep.mubr.bf16.mxu0 0
      %1758 = vmatmul.mubr.bf16.gmra.mrb[0].mxu0 %v1231
      %v1759 = vpop.f32.mrb[0].mxu0
      %v1760 = vadd.f32 %v1631, %v1759
      %v1761 = vpop.f32.mrb[0].mxu0
      %v1762 = vpop.f32.mrb[0].mxu0
      %v1763 = vadd.f32 %v1634, %v1762
      %v1764 = vpop.f32.mrb[0].mxu0
      %1765 = vmatprep.mubr.bf16.mxu0 0
      %1766 = vmatmul.mubr.bf16.gmra.mrb[0].mxu0 %v1232
      %v1767 = vpop.f32.mrb[0].mxu0
      %v1768 = vadd.f32 %v1639, %v1767
      %v1769 = vpop.f32.mrb[0].mxu0
      %v1770 = vpop.f32.mrb[0].mxu0
      %v1771 = vadd.f32 %v1642, %v1770
      %v1772 = vpop.f32.mrb[0].mxu0
      %1773 = vmatprep.mubr.bf16.mxu0 0
      %1774 = vmatmul.mubr.bf16.gmra.mrb[0].mxu0 %v1233
      %v1775 = vpop.f32.mrb[0].mxu0
      %v1776 = vadd.f32 %v1647, %v1775
      %v1777 = vpop.f32.mrb[0].mxu0
      %v1778 = vpop.f32.mrb[0].mxu0
      %v1779 = vadd.f32 %v1650, %v1778
      %v1780 = vpop.f32.mrb[0].mxu0
      %1781 = vmatprep.mubr.bf16.mxu0 0
      %1782 = vmatmul.mubr.bf16.gmra.mrb[0].mxu0 %v1234
      %v1783 = vpop.f32.mrb[0].mxu0
      %v1784 = vadd.f32 %v1655, %v1783
      %v1785 = vpop.f32.mrb[0].mxu0
      %v1786 = vpop.f32.mrb[0].mxu0
      %v1787 = vadd.f32 %v1658, %v1786
      %v1788 = vpop.f32.mrb[0].mxu0
      %1789 = vdwg.mxu0
      %v1790 = vld [vmem:[%s950 + $0x8] sm:$0xe]
      %v1791 = vld [vmem:[%s950 + $0xc] sm:$0xf]
      %v1792 = vld [vmem:[%s950 + $0x10] sm:$0x1]
      %v1793 = vld [vmem:[%s950 + $0x24] sm:$0xe]
      %v1794 = vld [vmem:[%s950 + $0x28] sm:$0xf]
      %v1795 = vld [vmem:[%s950 + $0x2c] sm:$0x1]
      %v1796 = vld [vmem:[%s950 + $0x40] sm:$0xe]
      %v1797 = vld [vmem:[%s950 + $0x44] sm:$0xf]
      %v1798 = vld [vmem:[%s950 + $0x48] sm:$0x1]
      %v1799 = vld [vmem:[%s950 + $0x5c] sm:$0xe]
      %v1800 = vld [vmem:[%s950 + $0x60] sm:$0xf]
      %v1801 = vld [vmem:[%s950 + $0x64] sm:$0x1]
      %v1802 = vld [vmem:[%s950 + $0x78] sm:$0xe]
      %v1803 = vld [vmem:[%s950 + $0x7c] sm:$0xf]
      %v1804 = vld [vmem:[%s950 + $0x80] sm:$0x1]
      %v1805 = vld [vmem:[%s950 + $0x94] sm:$0xe]
      %v1806 = vld [vmem:[%s950 + $0x98] sm:$0xf]
      %v1807 = vld [vmem:[%s950 + $0x9c] sm:$0x1]
      %v1826 = vrot.slane %v1790, 5
      %v1827 = vrot.slane %v1826, 4
      %v1828 = vrot.slane %v1791, 5
      %v1829 = vsel %vm1146, %v1827, %v1828
      %v1830 = vrot.slane %v1828, 4
      %v1831 = vrot.slane %v1792, 5
      %v1832 = vsel %vm1146, %v1830, %v1831
      %v1833 = vrot.slane %v1793, 5
      %v1834 = vrot.slane %v1833, 4
      %v1835 = vrot.slane %v1794, 5
      %v1836 = vsel %vm1146, %v1834, %v1835
      %v1837 = vrot.slane %v1835, 4
      %v1838 = vrot.slane %v1795, 5
      %v1839 = vsel %vm1146, %v1837, %v1838
      %v1840 = vrot.slane %v1796, 5
      %v1841 = vrot.slane %v1840, 4
      %v1842 = vrot.slane %v1797, 5
      %v1843 = vsel %vm1146, %v1841, %v1842
      %v1844 = vrot.slane %v1842, 4
      %v1845 = vrot.slane %v1798, 5
      %v1846 = vsel %vm1146, %v1844, %v1845
      %v1847 = vrot.slane %v1799, 5
      %v1848 = vrot.slane %v1847, 4
      %v1849 = vrot.slane %v1800, 5
      %v1850 = vsel %vm1146, %v1848, %v1849
      %v1851 = vrot.slane %v1849, 4
      %v1852 = vrot.slane %v1801, 5
      %v1853 = vsel %vm1146, %v1851, %v1852
      %v1854 = vrot.slane %v1802, 5
      %v1855 = vrot.slane %v1854, 4
      %v1856 = vrot.slane %v1803, 5
      %v1857 = vsel %vm1146, %v1855, %v1856
      %v1858 = vrot.slane %v1856, 4
      %v1859 = vrot.slane %v1804, 5
      %v1860 = vsel %vm1146, %v1858, %v1859
      %v1861 = vrot.slane %v1805, 5
      %v1862 = vrot.slane %v1861, 4
      %v1863 = vrot.slane %v1806, 5
      %v1864 = vsel %vm1146, %v1862, %v1863
      %v1865 = vrot.slane %v1863, 4
      %v1866 = vrot.slane %v1807, 5
      %v1867 = vsel %vm1146, %v1865, %v1866
      %s1868 = scalar_lea.vmem %s1027, 64
      %v1869 = vld [vmem:[%s1868] sm:$0xf]
      %v1870 = vld [vmem:[%s1868 + $0x4] sm:$0xf]
      %v1871 = vld [vmem:[%s1868 + $0x8] sm:$0xf]
      %v1872 = vld [vmem:[%s1868 + $0xc] sm:$0xf]
      %v1873 = vld [vmem:[%s1868 + $0x10] sm:$0xf]
      %v1874 = vld [vmem:[%s1868 + $0x14] sm:$0xf]
      %v1875 = vld [vmem:[%s1868 + $0x18] sm:$0xf]
      %v1876 = vld [vmem:[%s1868 + $0x1c] sm:$0xf]
      %v1877 = vld [vmem:[%s1868 + $0x20] sm:$0xf]
      %v1878 = vld [vmem:[%s1868 + $0x24] sm:$0xf]
      %v1879 = vld [vmem:[%s1868 + $0x28] sm:$0xf]
      %v1880 = vld [vmem:[%s1868 + $0x2c] sm:$0xf]
      %v1881 = vld [vmem:[%s1868 + $0x30] sm:$0xf]
      %v1882 = vld [vmem:[%s1868 + $0x34] sm:$0xf]
      %v1883 = vld [vmem:[%s1868 + $0x38] sm:$0xf]
      %v1884 = vld [vmem:[%s1868 + $0x3c] sm:$0xf]
      %v1885 = vunpack.c.l.b16 %v1829
      %v1886 = vunpack.c.l.b16 %v1832
      %v1887 = vunpack.c.l.b16 %v1836
      %v1888 = vunpack.c.l.b16 %v1839
      %v1889 = vunpack.c.l.b16 %v1843
      %v1890 = vunpack.c.l.b16 %v1846
      %v1891 = vunpack.c.l.b16 %v1850
      %v1892 = vunpack.c.l.b16 %v1853
      %v1893 = vunpack.c.l.b16 %v1857
      %v1894 = vunpack.c.l.b16 %v1860
      %v1895 = vunpack.c.l.b16 %v1864
      %v1896 = vunpack.c.l.b16 %v1867
      %v1897 = vpack.c.b16 %v1886, %v1885
      %v1898 = vpack.c.b16 %v1888, %v1887
      %v1899 = vpack.c.b16 %v1890, %v1889
      %v1900 = vpack.c.b16 %v1892, %v1891
      %v1901 = vpack.c.b16 %v1894, %v1893
      %v1902 = vpack.c.b16 %v1896, %v1895
      %v1925 = vunpack.c.l.b16 %v1869
      %v1926 = vunpack.c.l.b16 %v1870
      %v1927 = vunpack.c.l.b16 %v1871
      %v1928 = vunpack.c.l.b16 %v1872
      %v1929 = vunpack.c.l.b16 %v1873
      %v1930 = vunpack.c.l.b16 %v1874
      %v1931 = vunpack.c.l.b16 %v1875
      %v1932 = vunpack.c.l.b16 %v1876
      %v1933 = vunpack.c.l.b16 %v1877
      %v1934 = vunpack.c.l.b16 %v1878
      %v1935 = vunpack.c.l.b16 %v1879
      %v1936 = vunpack.c.l.b16 %v1880
      %v1937 = vunpack.c.l.b16 %v1881
      %v1938 = vunpack.c.l.b16 %v1882
      %v1939 = vunpack.c.l.b16 %v1883
      %v1940 = vunpack.c.l.b16 %v1884
      %v1941 = vpack.c.b16 %v1926, %v1925
      %v1942 = vpack.c.b16 %v1928, %v1927
      %v1943 = vpack.c.b16 %v1930, %v1929
      %v1944 = vpack.c.b16 %v1932, %v1931
      %v1945 = vpack.c.b16 %v1934, %v1933
      %v1946 = vpack.c.b16 %v1936, %v1935
      %v1947 = vpack.c.b16 %v1938, %v1937
      %v1948 = vpack.c.b16 %v1940, %v1939
      %1957 = vmatprep.subr.bf16.mxu0 0
      %1958 = vmatpush1.bf16.msra.mxu0 %v1941
      %1959 = vmatprep.subr.bf16.mxu0 0
      %1960 = vmatpush1.bf16.msra.mxu0 %v1942
      %1961 = vmatprep.subr.bf16.mxu0 0
      %1962 = vmatpush1.bf16.msra.mxu0 %v1943
      %1963 = vmatprep.subr.bf16.mxu0 0
      %1964 = vmatpush1.bf16.msra.mxu0 %v1944
      %1965 = vmatprep.subr.bf16.mxu0 0
      %1966 = vmatpush1.bf16.msra.mxu0 %v1945
      %1967 = vmatprep.subr.bf16.mxu0 0
      %1968 = vmatpush1.bf16.msra.mxu0 %v1946
      %1969 = vmatprep.subr.bf16.mxu0 0
      %1970 = vmatpush1.bf16.msra.mxu0 %v1947
      %1971 = vmatprep.subr.bf16.mxu0 0
      %1972 = vmatpush1.bf16.msra.mxu0 %v1948
      %1973 = vmatprep.subr.bf16.mxu0 0
      %1974 = vmatpush1.bf16.msra.mxu0 0
      %1975 = vmatprep.subr.bf16.mxu0 0
      %1976 = vmatpush1.bf16.msra.mxu0 0
      %1977 = vmatprep.subr.bf16.mxu0 0
      %1978 = vmatpush1.bf16.msra.mxu0 0
      %1979 = vmatprep.subr.bf16.mxu0 0
      %1980 = vmatpush1.bf16.msra.mxu0 0
      %1981 = vmatprep.subr.bf16.mxu0 0
      %1982 = vmatpush1.bf16.msra.mxu0 0
      %1983 = vmatprep.subr.bf16.mxu0 0
      %1984 = vmatpush1.bf16.msra.mxu0 0
      %1985 = vmatprep.subr.bf16.mxu0 0
      %1986 = vmatpush1.bf16.msra.mxu0 0
      %1987 = vmatprep.subr.bf16.mxu0 0
      %1988 = vmatpush1.bf16.msra.mxu0 0
      %1989 = vmatprep.mubr.bf16.mxu0 0
      %1990 = vmatmul.mubr.bf16.gmra.mrb[0].mxu0 %v1897
      %v1991 = vpop.f32.mrb[0].mxu0
      %v1992 = vadd.f32 0.0, %v1991
      %v1993 = vpop.f32.mrb[0].mxu0
      %v1994 = vpop.f32.mrb[0].mxu0
      %v1995 = vadd.f32 0.0, %v1994
      %v1996 = vpop.f32.mrb[0].mxu0
      %1997 = vmatprep.mubr.bf16.mxu0 0
      %1998 = vmatmul.mubr.bf16.gmra.mrb[0].mxu0 %v1898
      %v1999 = vpop.f32.mrb[0].mxu0
      %v2000 = vadd.f32 0.0, %v1999
      %v2001 = vpop.f32.mrb[0].mxu0
      %v2002 = vpop.f32.mrb[0].mxu0
      %v2003 = vadd.f32 0.0, %v2002
      %v2004 = vpop.f32.mrb[0].mxu0
      %2005 = vmatprep.mubr.bf16.mxu0 0
      %2006 = vmatmul.mubr.bf16.gmra.mrb[0].mxu0 %v1899
      %v2007 = vpop.f32.mrb[0].mxu0
      %v2008 = vadd.f32 0.0, %v2007
      %v2009 = vpop.f32.mrb[0].mxu0
      %v2010 = vpop.f32.mrb[0].mxu0
      %v2011 = vadd.f32 0.0, %v2010
      %v2012 = vpop.f32.mrb[0].mxu0
      %2013 = vmatprep.mubr.bf16.mxu0 0
      %2014 = vmatmul.mubr.bf16.gmra.mrb[0].mxu0 %v1900
      %v2015 = vpop.f32.mrb[0].mxu0
      %v2016 = vadd.f32 0.0, %v2015
      %v2017 = vpop.f32.mrb[0].mxu0
      %v2018 = vpop.f32.mrb[0].mxu0
      %v2019 = vadd.f32 0.0, %v2018
      %v2020 = vpop.f32.mrb[0].mxu0
      %2021 = vmatprep.mubr.bf16.mxu0 0
      %2022 = vmatmul.mubr.bf16.gmra.mrb[0].mxu0 %v1901
      %v2023 = vpop.f32.mrb[0].mxu0
      %v2024 = vadd.f32 0.0, %v2023
      %v2025 = vpop.f32.mrb[0].mxu0
      %v2026 = vpop.f32.mrb[0].mxu0
      %v2027 = vadd.f32 0.0, %v2026
      %v2028 = vpop.f32.mrb[0].mxu0
      %2029 = vmatprep.mubr.bf16.mxu0 0
      %2030 = vmatmul.mubr.bf16.gmra.mrb[0].mxu0 %v1902
      %v2031 = vpop.f32.mrb[0].mxu0
      %v2032 = vadd.f32 0.0, %v2031
      %v2033 = vpop.f32.mrb[0].mxu0
      %v2034 = vpop.f32.mrb[0].mxu0
      %v2035 = vadd.f32 0.0, %v2034
      %v2036 = vpop.f32.mrb[0].mxu0
      %2037 = vdwg.mxu0
      %v2038 = vadd.f32 %v1744, %v1992
      %v2039 = vadd.f32 %v1747, %v1995
      %v2040 = vadd.f32 %v1752, %v2000
      %v2041 = vadd.f32 %v1755, %v2003
      %v2042 = vadd.f32 %v1760, %v2008
      %v2043 = vadd.f32 %v1763, %v2011
      %v2044 = vadd.f32 %v1768, %v2016
      %v2045 = vadd.f32 %v1771, %v2019
      %v2046 = vadd.f32 %v1776, %v2024
      %v2047 = vadd.f32 %v1779, %v2027
      %v2048 = vadd.f32 %v1784, %v2032
      %v2049 = vadd.f32 %v1787, %v2035
      %v2050 = vld [vmem:[%s950 + $0x10] sm:$0xf]
      %v2051 = vld [vmem:[%s950 + $0x2c] sm:$0xf]
      %v2052 = vld [vmem:[%s950 + $0x48] sm:$0xf]
      %v2053 = vld [vmem:[%s950 + $0x64] sm:$0xf]
      %v2054 = vld [vmem:[%s950 + $0x80] sm:$0xf]
      %v2055 = vld [vmem:[%s950 + $0x9c] sm:$0xf]
      %s2056 = scalar_lea.vmem %s1027, 128
      %v2057 = vld [vmem:[%s2056] sm:$0xf]
      %v2058 = vld [vmem:[%s2056 + $0x4] sm:$0xf]
      %v2059 = vld [vmem:[%s2056 + $0x8] sm:$0xf]
      %v2060 = vld [vmem:[%s2056 + $0xc] sm:$0xf]
      %v2061 = vld [vmem:[%s2056 + $0x10] sm:$0xf]
      %v2062 = vld [vmem:[%s2056 + $0x14] sm:$0xf]
      %v2063 = vld [vmem:[%s2056 + $0x18] sm:$0xf]
      %v2064 = vld [vmem:[%s2056 + $0x1c] sm:$0xf]
      %v2065 = vld [vmem:[%s2056 + $0x20] sm:$0xf]
      %v2066 = vld [vmem:[%s2056 + $0x24] sm:$0xf]
      %v2067 = vld [vmem:[%s2056 + $0x28] sm:$0xf]
      %v2068 = vld [vmem:[%s2056 + $0x2c] sm:$0xf]
      %v2069 = vld [vmem:[%s2056 + $0x30] sm:$0xf]
      %v2070 = vld [vmem:[%s2056 + $0x34] sm:$0xf]
      %v2071 = vld [vmem:[%s2056 + $0x38] sm:$0xf]
      %v2072 = vld [vmem:[%s2056 + $0x3c] sm:$0xf]
      %v2079 = vunpack.c.l.b16 %v1791
      %v2080 = vunpack.c.l.b16 %v2050
      %v2081 = vunpack.c.l.b16 %v1794
      %v2082 = vunpack.c.l.b16 %v2051
      %v2083 = vunpack.c.l.b16 %v1797
      %v2084 = vunpack.c.l.b16 %v2052
      %v2085 = vunpack.c.l.b16 %v1800
      %v2086 = vunpack.c.l.b16 %v2053
      %v2087 = vunpack.c.l.b16 %v1803
      %v2088 = vunpack.c.l.b16 %v2054
      %v2089 = vunpack.c.l.b16 %v1806
      %v2090 = vunpack.c.l.b16 %v2055
      %v2091 = vpack.c.b16 %v2080, %v2079
      %v2092 = vpack.c.b16 %v2082, %v2081
      %v2093 = vpack.c.b16 %v2084, %v2083
      %v2094 = vpack.c.b16 %v2086, %v2085
      %v2095 = vpack.c.b16 %v2088, %v2087
      %v2096 = vpack.c.b16 %v2090, %v2089
      %v2119 = vunpack.c.l.b16 %v2057
      %v2120 = vunpack.c.l.b16 %v2058
      %v2121 = vunpack.c.l.b16 %v2059
      %v2122 = vunpack.c.l.b16 %v2060
      %v2123 = vunpack.c.l.b16 %v2061
      %v2124 = vunpack.c.l.b16 %v2062
      %v2125 = vunpack.c.l.b16 %v2063
      %v2126 = vunpack.c.l.b16 %v2064
      %v2127 = vunpack.c.l.b16 %v2065
      %v2128 = vunpack.c.l.b16 %v2066
      %v2129 = vunpack.c.l.b16 %v2067
      %v2130 = vunpack.c.l.b16 %v2068
      %v2131 = vunpack.c.l.b16 %v2069
      %v2132 = vunpack.c.l.b16 %v2070
      %v2133 = vunpack.c.l.b16 %v2071
      %v2134 = vunpack.c.l.b16 %v2072
      %v2135 = vpack.c.b16 %v2120, %v2119
      %v2136 = vpack.c.b16 %v2122, %v2121
      %v2137 = vpack.c.b16 %v2124, %v2123
      %v2138 = vpack.c.b16 %v2126, %v2125
      %v2139 = vpack.c.b16 %v2128, %v2127
      %v2140 = vpack.c.b16 %v2130, %v2129
      %v2141 = vpack.c.b16 %v2132, %v2131
      %v2142 = vpack.c.b16 %v2134, %v2133
      %2151 = vmatprep.subr.bf16.mxu0 0
      %2152 = vmatpush1.bf16.msra.mxu0 %v2135
      %2153 = vmatprep.subr.bf16.mxu0 0
      %2154 = vmatpush1.bf16.msra.mxu0 %v2136
      %2155 = vmatprep.subr.bf16.mxu0 0
      %2156 = vmatpush1.bf16.msra.mxu0 %v2137
      %2157 = vmatprep.subr.bf16.mxu0 0
      %2158 = vmatpush1.bf16.msra.mxu0 %v2138
      %2159 = vmatprep.subr.bf16.mxu0 0
      %2160 = vmatpush1.bf16.msra.mxu0 %v2139
      %2161 = vmatprep.subr.bf16.mxu0 0
      %2162 = vmatpush1.bf16.msra.mxu0 %v2140
      %2163 = vmatprep.subr.bf16.mxu0 0
      %2164 = vmatpush1.bf16.msra.mxu0 %v2141
      %2165 = vmatprep.subr.bf16.mxu0 0
      %2166 = vmatpush1.bf16.msra.mxu0 %v2142
      %2167 = vmatprep.subr.bf16.mxu0 0
      %2168 = vmatpush1.bf16.msra.mxu0 0
      %2169 = vmatprep.subr.bf16.mxu0 0
      %2170 = vmatpush1.bf16.msra.mxu0 0
      %2171 = vmatprep.subr.bf16.mxu0 0
      %2172 = vmatpush1.bf16.msra.mxu0 0
      %2173 = vmatprep.subr.bf16.mxu0 0
      %2174 = vmatpush1.bf16.msra.mxu0 0
      %2175 = vmatprep.subr.bf16.mxu0 0
      %2176 = vmatpush1.bf16.msra.mxu0 0
      %2177 = vmatprep.subr.bf16.mxu0 0
      %2178 = vmatpush1.bf16.msra.mxu0 0
      %2179 = vmatprep.subr.bf16.mxu0 0
      %2180 = vmatpush1.bf16.msra.mxu0 0
      %2181 = vmatprep.subr.bf16.mxu0 0
      %2182 = vmatpush1.bf16.msra.mxu0 0
      %2183 = vmatprep.mubr.bf16.mxu0 0
      %2184 = vmatmul.mubr.bf16.gmra.mrb[0].mxu0 %v2091
      %v2185 = vpop.f32.mrb[0].mxu0
      %v2186 = vadd.f32 0.0, %v2185
      %v2187 = vpop.f32.mrb[0].mxu0
      %v2188 = vpop.f32.mrb[0].mxu0
      %v2189 = vadd.f32 0.0, %v2188
      %v2190 = vpop.f32.mrb[0].mxu0
      %2191 = vmatprep.mubr.bf16.mxu0 0
      %2192 = vmatmul.mubr.bf16.gmra.mrb[0].mxu0 %v2092
      %v2193 = vpop.f32.mrb[0].mxu0
      %v2194 = vadd.f32 0.0, %v2193
      %v2195 = vpop.f32.mrb[0].mxu0
      %v2196 = vpop.f32.mrb[0].mxu0
      %v2197 = vadd.f32 0.0, %v2196
      %v2198 = vpop.f32.mrb[0].mxu0
      %2199 = vmatprep.mubr.bf16.mxu0 0
      %2200 = vmatmul.mubr.bf16.gmra.mrb[0].mxu0 %v2093
      %v2201 = vpop.f32.mrb[0].mxu0
      %v2202 = vadd.f32 0.0, %v2201
      %v2203 = vpop.f32.mrb[0].mxu0
      %v2204 = vpop.f32.mrb[0].mxu0
      %v2205 = vadd.f32 0.0, %v2204
      %v2206 = vpop.f32.mrb[0].mxu0
      %2207 = vmatprep.mubr.bf16.mxu0 0
      %2208 = vmatmul.mubr.bf16.gmra.mrb[0].mxu0 %v2094
      %v2209 = vpop.f32.mrb[0].mxu0
      %v2210 = vadd.f32 0.0, %v2209
      %v2211 = vpop.f32.mrb[0].mxu0
      %v2212 = vpop.f32.mrb[0].mxu0
      %v2213 = vadd.f32 0.0, %v2212
      %v2214 = vpop.f32.mrb[0].mxu0
      %2215 = vmatprep.mubr.bf16.mxu0 0
      %2216 = vmatmul.mubr.bf16.gmra.mrb[0].mxu0 %v2095
      %v2217 = vpop.f32.mrb[0].mxu0
      %v2218 = vadd.f32 0.0, %v2217
      %v2219 = vpop.f32.mrb[0].mxu0
      %v2220 = vpop.f32.mrb[0].mxu0
      %v2221 = vadd.f32 0.0, %v2220
      %v2222 = vpop.f32.mrb[0].mxu0
      %2223 = vmatprep.mubr.bf16.mxu0 0
      %2224 = vmatmul.mubr.bf16.gmra.mrb[0].mxu0 %v2096
      %v2225 = vpop.f32.mrb[0].mxu0
      %v2226 = vadd.f32 0.0, %v2225
      %v2227 = vpop.f32.mrb[0].mxu0
      %v2228 = vpop.f32.mrb[0].mxu0
      %v2229 = vadd.f32 0.0, %v2228
      %v2230 = vpop.f32.mrb[0].mxu0
      %2231 = vdwg.mxu0
      %v2232 = vadd.f32 %v2038, %v2186
      %v2233 = vadd.f32 %v2039, %v2189
      %v2234 = vadd.f32 %v2040, %v2194
      %v2235 = vadd.f32 %v2041, %v2197
      %v2236 = vadd.f32 %v2042, %v2202
      %v2237 = vadd.f32 %v2043, %v2205
      %v2238 = vadd.f32 %v2044, %v2210
      %v2239 = vadd.f32 %v2045, %v2213
      %v2240 = vadd.f32 %v2046, %v2218
      %v2241 = vadd.f32 %v2047, %v2221
      %v2242 = vadd.f32 %v2048, %v2226
      %v2243 = vadd.f32 %v2049, %v2229
      %v2244 = vld [vmem:[%s966 + $0x4] sm:$0xc]
      %v2245 = vld [vmem:[%s966 + $0x8] sm:$0xf]
      %v2246 = vld [vmem:[%s966 + $0xc] sm:$0x3]
      %v2247 = vld [vmem:[%s966 + $0x20] sm:$0xc]
      %v2248 = vld [vmem:[%s966 + $0x24] sm:$0xf]
      %v2249 = vld [vmem:[%s966 + $0x28] sm:$0x3]
      %v2250 = vld [vmem:[%s966 + $0x3c] sm:$0xc]
      %v2251 = vld [vmem:[%s966 + $0x40] sm:$0xf]
      %v2252 = vld [vmem:[%s966 + $0x44] sm:$0x3]
      %v2253 = vld [vmem:[%s966 + $0x58] sm:$0xc]
      %v2254 = vld [vmem:[%s966 + $0x5c] sm:$0xf]
      %v2255 = vld [vmem:[%s966 + $0x60] sm:$0x3]
      %v2256 = vld [vmem:[%s966 + $0x74] sm:$0xc]
      %v2257 = vld [vmem:[%s966 + $0x78] sm:$0xf]
      %v2258 = vld [vmem:[%s966 + $0x7c] sm:$0x3]
      %v2259 = vld [vmem:[%s966 + $0x90] sm:$0xc]
      %v2260 = vld [vmem:[%s966 + $0x94] sm:$0xf]
      %v2261 = vld [vmem:[%s966 + $0x98] sm:$0x3]
      %v2280 = vrot.slane %v2244, 6
      %v2281 = vrot.slane %v2280, 4
      %v2282 = vrot.slane %v2245, 6
      %v2283 = vsel %vm1449, %v2281, %v2282
      %v2284 = vrot.slane %v2282, 4
      %v2285 = vrot.slane %v2246, 6
      %v2286 = vsel %vm1449, %v2284, %v2285
      %v2287 = vrot.slane %v2247, 6
      %v2288 = vrot.slane %v2287, 4
      %v2289 = vrot.slane %v2248, 6
      %v2290 = vsel %vm1449, %v2288, %v2289
      %v2291 = vrot.slane %v2289, 4
      %v2292 = vrot.slane %v2249, 6
      %v2293 = vsel %vm1449, %v2291, %v2292
      %v2294 = vrot.slane %v2250, 6
      %v2295 = vrot.slane %v2294, 4
      %v2296 = vrot.slane %v2251, 6
      %v2297 = vsel %vm1449, %v2295, %v2296
      %v2298 = vrot.slane %v2296, 4
      %v2299 = vrot.slane %v2252, 6
      %v2300 = vsel %vm1449, %v2298, %v2299
      %v2301 = vrot.slane %v2253, 6
      %v2302 = vrot.slane %v2301, 4
      %v2303 = vrot.slane %v2254, 6
      %v2304 = vsel %vm1449, %v2302, %v2303
      %v2305 = vrot.slane %v2303, 4
      %v2306 = vrot.slane %v2255, 6
      %v2307 = vsel %vm1449, %v2305, %v2306
      %v2308 = vrot.slane %v2256, 6
      %v2309 = vrot.slane %v2308, 4
      %v2310 = vrot.slane %v2257, 6
      %v2311 = vsel %vm1449, %v2309, %v2310
      %v2312 = vrot.slane %v2310, 4
      %v2313 = vrot.slane %v2258, 6
      %v2314 = vsel %vm1449, %v2312, %v2313
      %v2315 = vrot.slane %v2259, 6
      %v2316 = vrot.slane %v2315, 4
      %v2317 = vrot.slane %v2260, 6
      %v2318 = vsel %vm1449, %v2316, %v2317
      %v2319 = vrot.slane %v2317, 4
      %v2320 = vrot.slane %v2261, 6
      %v2321 = vsel %vm1449, %v2319, %v2320
      %s2322 = scalar_lea.vmem %s1027, 192
      %v2323 = vld [vmem:[%s2322] sm:$0xf]
      %v2324 = vld [vmem:[%s2322 + $0x4] sm:$0xf]
      %v2325 = vld [vmem:[%s2322 + $0x8] sm:$0xf]
      %v2326 = vld [vmem:[%s2322 + $0xc] sm:$0xf]
      %v2327 = vld [vmem:[%s2322 + $0x10] sm:$0xf]
      %v2328 = vld [vmem:[%s2322 + $0x14] sm:$0xf]
      %v2329 = vld [vmem:[%s2322 + $0x18] sm:$0xf]
      %v2330 = vld [vmem:[%s2322 + $0x1c] sm:$0xf]
      %v2331 = vld [vmem:[%s2322 + $0x20] sm:$0xf]
      %v2332 = vld [vmem:[%s2322 + $0x24] sm:$0xf]
      %v2333 = vld [vmem:[%s2322 + $0x28] sm:$0xf]
      %v2334 = vld [vmem:[%s2322 + $0x2c] sm:$0xf]
      %v2335 = vld [vmem:[%s2322 + $0x30] sm:$0xf]
      %v2336 = vld [vmem:[%s2322 + $0x34] sm:$0xf]
      %v2337 = vld [vmem:[%s2322 + $0x38] sm:$0xf]
      %v2338 = vld [vmem:[%s2322 + $0x3c] sm:$0xf]
      %v2339 = vunpack.c.l.b16 %v2283
      %v2340 = vunpack.c.l.b16 %v2286
      %v2341 = vunpack.c.l.b16 %v2290
      %v2342 = vunpack.c.l.b16 %v2293
      %v2343 = vunpack.c.l.b16 %v2297
      %v2344 = vunpack.c.l.b16 %v2300
      %v2345 = vunpack.c.l.b16 %v2304
      %v2346 = vunpack.c.l.b16 %v2307
      %v2347 = vunpack.c.l.b16 %v2311
      %v2348 = vunpack.c.l.b16 %v2314
      %v2349 = vunpack.c.l.b16 %v2318
      %v2350 = vunpack.c.l.b16 %v2321
      %v2351 = vpack.c.b16 %v2340, %v2339
      %v2352 = vpack.c.b16 %v2342, %v2341
      %v2353 = vpack.c.b16 %v2344, %v2343
      %v2354 = vpack.c.b16 %v2346, %v2345
      %v2355 = vpack.c.b16 %v2348, %v2347
      %v2356 = vpack.c.b16 %v2350, %v2349
      %v2379 = vunpack.c.l.b16 %v2323
      %v2380 = vunpack.c.l.b16 %v2324
      %v2381 = vunpack.c.l.b16 %v2325
      %v2382 = vunpack.c.l.b16 %v2326
      %v2383 = vunpack.c.l.b16 %v2327
      %v2384 = vunpack.c.l.b16 %v2328
      %v2385 = vunpack.c.l.b16 %v2329
      %v2386 = vunpack.c.l.b16 %v2330
      %v2387 = vunpack.c.l.b16 %v2331
      %v2388 = vunpack.c.l.b16 %v2332
      %v2389 = vunpack.c.l.b16 %v2333
      %v2390 = vunpack.c.l.b16 %v2334
      %v2391 = vunpack.c.l.b16 %v2335
      %v2392 = vunpack.c.l.b16 %v2336
      %v2393 = vunpack.c.l.b16 %v2337
      %v2394 = vunpack.c.l.b16 %v2338
      %v2395 = vpack.c.b16 %v2380, %v2379
      %v2396 = vpack.c.b16 %v2382, %v2381
      %v2397 = vpack.c.b16 %v2384, %v2383
      %v2398 = vpack.c.b16 %v2386, %v2385
      %v2399 = vpack.c.b16 %v2388, %v2387
      %v2400 = vpack.c.b16 %v2390, %v2389
      %v2401 = vpack.c.b16 %v2392, %v2391
      %v2402 = vpack.c.b16 %v2394, %v2393
      %2411 = vmatprep.subr.bf16.mxu0 0
      %2412 = vmatpush1.bf16.msra.mxu0 %v2395
      %2413 = vmatprep.subr.bf16.mxu0 0
      %2414 = vmatpush1.bf16.msra.mxu0 %v2396
      %2415 = vmatprep.subr.bf16.mxu0 0
      %2416 = vmatpush1.bf16.msra.mxu0 %v2397
      %2417 = vmatprep.subr.bf16.mxu0 0
      %2418 = vmatpush1.bf16.msra.mxu0 %v2398
      %2419 = vmatprep.subr.bf16.mxu0 0
      %2420 = vmatpush1.bf16.msra.mxu0 %v2399
      %2421 = vmatprep.subr.bf16.mxu0 0
      %2422 = vmatpush1.bf16.msra.mxu0 %v2400
      %2423 = vmatprep.subr.bf16.mxu0 0
      %2424 = vmatpush1.bf16.msra.mxu0 %v2401
      %2425 = vmatprep.subr.bf16.mxu0 0
      %2426 = vmatpush1.bf16.msra.mxu0 %v2402
      %2427 = vmatprep.subr.bf16.mxu0 0
      %2428 = vmatpush1.bf16.msra.mxu0 0
      %2429 = vmatprep.subr.bf16.mxu0 0
      %2430 = vmatpush1.bf16.msra.mxu0 0
      %2431 = vmatprep.subr.bf16.mxu0 0
      %2432 = vmatpush1.bf16.msra.mxu0 0
      %2433 = vmatprep.subr.bf16.mxu0 0
      %2434 = vmatpush1.bf16.msra.mxu0 0
      %2435 = vmatprep.subr.bf16.mxu0 0
      %2436 = vmatpush1.bf16.msra.mxu0 0
      %2437 = vmatprep.subr.bf16.mxu0 0
      %2438 = vmatpush1.bf16.msra.mxu0 0
      %2439 = vmatprep.subr.bf16.mxu0 0
      %2440 = vmatpush1.bf16.msra.mxu0 0
      %2441 = vmatprep.subr.bf16.mxu0 0
      %2442 = vmatpush1.bf16.msra.mxu0 0
      %2443 = vmatprep.mubr.bf16.mxu0 0
      %2444 = vmatmul.mubr.bf16.gmra.mrb[0].mxu0 %v2351
      %v2445 = vpop.f32.mrb[0].mxu0
      %v2446 = vadd.f32 0.0, %v2445
      %v2447 = vpop.f32.mrb[0].mxu0
      %v2448 = vpop.f32.mrb[0].mxu0
      %v2449 = vadd.f32 0.0, %v2448
      %v2450 = vpop.f32.mrb[0].mxu0
      %2451 = vmatprep.mubr.bf16.mxu0 0
      %2452 = vmatmul.mubr.bf16.gmra.mrb[0].mxu0 %v2352
      %v2453 = vpop.f32.mrb[0].mxu0
      %v2454 = vadd.f32 0.0, %v2453
      %v2455 = vpop.f32.mrb[0].mxu0
      %v2456 = vpop.f32.mrb[0].mxu0
      %v2457 = vadd.f32 0.0, %v2456
      %v2458 = vpop.f32.mrb[0].mxu0
      %2459 = vmatprep.mubr.bf16.mxu0 0
      %2460 = vmatmul.mubr.bf16.gmra.mrb[0].mxu0 %v2353
      %v2461 = vpop.f32.mrb[0].mxu0
      %v2462 = vadd.f32 0.0, %v2461
      %v2463 = vpop.f32.mrb[0].mxu0
      %v2464 = vpop.f32.mrb[0].mxu0
      %v2465 = vadd.f32 0.0, %v2464
      %v2466 = vpop.f32.mrb[0].mxu0
      %2467 = vmatprep.mubr.bf16.mxu0 0
      %2468 = vmatmul.mubr.bf16.gmra.mrb[0].mxu0 %v2354
      %v2469 = vpop.f32.mrb[0].mxu0
      %v2470 = vadd.f32 0.0, %v2469
      %v2471 = vpop.f32.mrb[0].mxu0
      %v2472 = vpop.f32.mrb[0].mxu0
      %v2473 = vadd.f32 0.0, %v2472
      %v2474 = vpop.f32.mrb[0].mxu0
      %2475 = vmatprep.mubr.bf16.mxu0 0
      %2476 = vmatmul.mubr.bf16.gmra.mrb[0].mxu0 %v2355
      %v2477 = vpop.f32.mrb[0].mxu0
      %v2478 = vadd.f32 0.0, %v2477
      %v2479 = vpop.f32.mrb[0].mxu0
      %v2480 = vpop.f32.mrb[0].mxu0
      %v2481 = vadd.f32 0.0, %v2480
      %v2482 = vpop.f32.mrb[0].mxu0
      %2483 = vmatprep.mubr.bf16.mxu0 0
      %2484 = vmatmul.mubr.bf16.gmra.mrb[0].mxu0 %v2356
      %v2485 = vpop.f32.mrb[0].mxu0
      %v2486 = vadd.f32 0.0, %v2485
      %v2487 = vpop.f32.mrb[0].mxu0
      %v2488 = vpop.f32.mrb[0].mxu0
      %v2489 = vadd.f32 0.0, %v2488
      %v2490 = vpop.f32.mrb[0].mxu0
      %2491 = vdwg.mxu0
      %v2492 = vadd.f32 %v2232, %v2446
      %v2493 = vadd.f32 %v2233, %v2449
      %v2494 = vadd.f32 %v2234, %v2454
      %v2495 = vadd.f32 %v2235, %v2457
      %v2496 = vadd.f32 %v2236, %v2462
      %v2497 = vadd.f32 %v2237, %v2465
      %v2498 = vadd.f32 %v2238, %v2470
      %v2499 = vadd.f32 %v2239, %v2473
      %v2500 = vadd.f32 %v2240, %v2478
      %v2501 = vadd.f32 %v2241, %v2481
      %v2502 = vadd.f32 %v2242, %v2486
      %v2503 = vadd.f32 %v2243, %v2489
      %v2504 = vld [vmem:[%s966 + $0xc] sm:$0xf]
      %v2505 = vld [vmem:[%s966 + $0x10] sm:$0xf]
      %v2506 = vld [vmem:[%s966 + $0x28] sm:$0xf]
      %v2507 = vld [vmem:[%s966 + $0x2c] sm:$0xf]
      %v2508 = vld [vmem:[%s966 + $0x44] sm:$0xf]
      %v2509 = vld [vmem:[%s966 + $0x48] sm:$0xf]
      %v2510 = vld [vmem:[%s966 + $0x60] sm:$0xf]
      %v2511 = vld [vmem:[%s966 + $0x64] sm:$0xf]
      %v2512 = vld [vmem:[%s966 + $0x7c] sm:$0xf]
      %v2513 = vld [vmem:[%s966 + $0x80] sm:$0xf]
      %v2514 = vld [vmem:[%s966 + $0x98] sm:$0xf]
      %v2515 = vld [vmem:[%s966 + $0x9c] sm:$0xf]
      %s2516 = scalar_lea.vmem %s1027, 320
      %v2517 = vld [vmem:[%s2516] sm:$0xf]
      %v2518 = vld [vmem:[%s2516 + $0x4] sm:$0xf]
      %v2519 = vld [vmem:[%s2516 + $0x8] sm:$0xf]
      %v2520 = vld [vmem:[%s2516 + $0xc] sm:$0xf]
      %v2521 = vld [vmem:[%s2516 + $0x10] sm:$0xf]
      %v2522 = vld [vmem:[%s2516 + $0x14] sm:$0xf]
      %v2523 = vld [vmem:[%s2516 + $0x18] sm:$0xf]
      %v2524 = vld [vmem:[%s2516 + $0x1c] sm:$0xf]
      %v2525 = vld [vmem:[%s2516 + $0x20] sm:$0xf]
      %v2526 = vld [vmem:[%s2516 + $0x24] sm:$0xf]
      %v2527 = vld [vmem:[%s2516 + $0x28] sm:$0xf]
      %v2528 = vld [vmem:[%s2516 + $0x2c] sm:$0xf]
      %v2529 = vld [vmem:[%s2516 + $0x30] sm:$0xf]
      %v2530 = vld [vmem:[%s2516 + $0x34] sm:$0xf]
      %v2531 = vld [vmem:[%s2516 + $0x38] sm:$0xf]
      %v2532 = vld [vmem:[%s2516 + $0x3c] sm:$0xf]
      %v2545 = vunpack.c.l.b16 %v2504
      %v2546 = vunpack.c.l.b16 %v2505
      %v2547 = vunpack.c.l.b16 %v2506
      %v2548 = vunpack.c.l.b16 %v2507
      %v2549 = vunpack.c.l.b16 %v2508
      %v2550 = vunpack.c.l.b16 %v2509
      %v2551 = vunpack.c.l.b16 %v2510
      %v2552 = vunpack.c.l.b16 %v2511
      %v2553 = vunpack.c.l.b16 %v2512
      %v2554 = vunpack.c.l.b16 %v2513
      %v2555 = vunpack.c.l.b16 %v2514
      %v2556 = vunpack.c.l.b16 %v2515
      %v2557 = vpack.c.b16 %v2546, %v2545
      %v2558 = vpack.c.b16 %v2548, %v2547
      %v2559 = vpack.c.b16 %v2550, %v2549
      %v2560 = vpack.c.b16 %v2552, %v2551
      %v2561 = vpack.c.b16 %v2554, %v2553
      %v2562 = vpack.c.b16 %v2556, %v2555
      %v2585 = vunpack.c.l.b16 %v2517
      %v2586 = vunpack.c.l.b16 %v2518
      %v2587 = vunpack.c.l.b16 %v2519
      %v2588 = vunpack.c.l.b16 %v2520
      %v2589 = vunpack.c.l.b16 %v2521
      %v2590 = vunpack.c.l.b16 %v2522
      %v2591 = vunpack.c.l.b16 %v2523
      %v2592 = vunpack.c.l.b16 %v2524
      %v2593 = vunpack.c.l.b16 %v2525
      %v2594 = vunpack.c.l.b16 %v2526
      %v2595 = vunpack.c.l.b16 %v2527
      %v2596 = vunpack.c.l.b16 %v2528
      %v2597 = vunpack.c.l.b16 %v2529
      %v2598 = vunpack.c.l.b16 %v2530
      %v2599 = vunpack.c.l.b16 %v2531
      %v2600 = vunpack.c.l.b16 %v2532
      %v2601 = vpack.c.b16 %v2586, %v2585
      %v2602 = vpack.c.b16 %v2588, %v2587
      %v2603 = vpack.c.b16 %v2590, %v2589
      %v2604 = vpack.c.b16 %v2592, %v2591
      %v2605 = vpack.c.b16 %v2594, %v2593
      %v2606 = vpack.c.b16 %v2596, %v2595
      %v2607 = vpack.c.b16 %v2598, %v2597
      %v2608 = vpack.c.b16 %v2600, %v2599
      %2617 = vmatprep.subr.bf16.mxu0 0
      %2618 = vmatpush1.bf16.msra.mxu0 %v2601
      %2619 = vmatprep.subr.bf16.mxu0 0
      %2620 = vmatpush1.bf16.msra.mxu0 %v2602
      %2621 = vmatprep.subr.bf16.mxu0 0
      %2622 = vmatpush1.bf16.msra.mxu0 %v2603
      %2623 = vmatprep.subr.bf16.mxu0 0
      %2624 = vmatpush1.bf16.msra.mxu0 %v2604
      %2625 = vmatprep.subr.bf16.mxu0 0
      %2626 = vmatpush1.bf16.msra.mxu0 %v2605
      %2627 = vmatprep.subr.bf16.mxu0 0
      %2628 = vmatpush1.bf16.msra.mxu0 %v2606
      %2629 = vmatprep.subr.bf16.mxu0 0
      %2630 = vmatpush1.bf16.msra.mxu0 %v2607
      %2631 = vmatprep.subr.bf16.mxu0 0
      %2632 = vmatpush1.bf16.msra.mxu0 %v2608
      %2633 = vmatprep.subr.bf16.mxu0 0
      %2634 = vmatpush1.bf16.msra.mxu0 0
      %2635 = vmatprep.subr.bf16.mxu0 0
      %2636 = vmatpush1.bf16.msra.mxu0 0
      %2637 = vmatprep.subr.bf16.mxu0 0
      %2638 = vmatpush1.bf16.msra.mxu0 0
      %2639 = vmatprep.subr.bf16.mxu0 0
      %2640 = vmatpush1.bf16.msra.mxu0 0
      %2641 = vmatprep.subr.bf16.mxu0 0
      %2642 = vmatpush1.bf16.msra.mxu0 0
      %2643 = vmatprep.subr.bf16.mxu0 0
      %2644 = vmatpush1.bf16.msra.mxu0 0
      %2645 = vmatprep.subr.bf16.mxu0 0
      %2646 = vmatpush1.bf16.msra.mxu0 0
      %2647 = vmatprep.subr.bf16.mxu0 0
      %2648 = vmatpush1.bf16.msra.mxu0 0
      %2649 = vmatprep.mubr.bf16.mxu0 0
      %2650 = vmatmul.mubr.bf16.gmra.mrb[0].mxu0 %v2557
      %v2651 = vpop.f32.mrb[0].mxu0
      %v2652 = vadd.f32 0.0, %v2651
      %v2653 = vpop.f32.mrb[0].mxu0
      %v2654 = vpop.f32.mrb[0].mxu0
      %v2655 = vadd.f32 0.0, %v2654
      %v2656 = vpop.f32.mrb[0].mxu0
      %2657 = vmatprep.mubr.bf16.mxu0 0
      %2658 = vmatmul.mubr.bf16.gmra.mrb[0].mxu0 %v2558
      %v2659 = vpop.f32.mrb[0].mxu0
      %v2660 = vadd.f32 0.0, %v2659
      %v2661 = vpop.f32.mrb[0].mxu0
      %v2662 = vpop.f32.mrb[0].mxu0
      %v2663 = vadd.f32 0.0, %v2662
      %v2664 = vpop.f32.mrb[0].mxu0
      %2665 = vmatprep.mubr.bf16.mxu0 0
      %2666 = vmatmul.mubr.bf16.gmra.mrb[0].mxu0 %v2559
      %v2667 = vpop.f32.mrb[0].mxu0
      %v2668 = vadd.f32 0.0, %v2667
      %v2669 = vpop.f32.mrb[0].mxu0
      %v2670 = vpop.f32.mrb[0].mxu0
      %v2671 = vadd.f32 0.0, %v2670
      %v2672 = vpop.f32.mrb[0].mxu0
      %2673 = vmatprep.mubr.bf16.mxu0 0
      %2674 = vmatmul.mubr.bf16.gmra.mrb[0].mxu0 %v2560
      %v2675 = vpop.f32.mrb[0].mxu0
      %v2676 = vadd.f32 0.0, %v2675
      %v2677 = vpop.f32.mrb[0].mxu0
      %v2678 = vpop.f32.mrb[0].mxu0
      %v2679 = vadd.f32 0.0, %v2678
      %v2680 = vpop.f32.mrb[0].mxu0
      %2681 = vmatprep.mubr.bf16.mxu0 0
      %2682 = vmatmul.mubr.bf16.gmra.mrb[0].mxu0 %v2561
      %v2683 = vpop.f32.mrb[0].mxu0
      %v2684 = vadd.f32 0.0, %v2683
      %v2685 = vpop.f32.mrb[0].mxu0
      %v2686 = vpop.f32.mrb[0].mxu0
      %v2687 = vadd.f32 0.0, %v2686
      %v2688 = vpop.f32.mrb[0].mxu0
      %2689 = vmatprep.mubr.bf16.mxu0 0
      %2690 = vmatmul.mubr.bf16.gmra.mrb[0].mxu0 %v2562
      %v2691 = vpop.f32.mrb[0].mxu0
      %v2692 = vadd.f32 0.0, %v2691
      %v2693 = vpop.f32.mrb[0].mxu0
      %v2694 = vpop.f32.mrb[0].mxu0
      %v2695 = vadd.f32 0.0, %v2694
      %v2696 = vpop.f32.mrb[0].mxu0
      %2697 = vdwg.mxu0
      %v2698 = vadd.f32 %v2492, %v2652
      %v2699 = vadd.f32 %v2493, %v2655
      %v2700 = vadd.f32 %v2494, %v2660
      %v2701 = vadd.f32 %v2495, %v2663
      %v2702 = vadd.f32 %v2496, %v2668
      %v2703 = vadd.f32 %v2497, %v2671
      %v2704 = vadd.f32 %v2498, %v2676
      %v2705 = vadd.f32 %v2499, %v2679
      %v2706 = vadd.f32 %v2500, %v2684
      %v2707 = vadd.f32 %v2501, %v2687
      %v2708 = vadd.f32 %v2502, %v2692
      %v2709 = vadd.f32 %v2503, %v2695
      %v2710 = vld [vmem:[%s982 + $0x4] sm:$0xc]
      %v2711 = vld [vmem:[%s982 + $0x8] sm:$0xf]
      %v2712 = vld [vmem:[%s982 + $0xc] sm:$0x3]
      %v2713 = vld [vmem:[%s982 + $0x20] sm:$0xc]
      %v2714 = vld [vmem:[%s982 + $0x24] sm:$0xf]
      %v2715 = vld [vmem:[%s982 + $0x28] sm:$0x3]
      %v2716 = vld [vmem:[%s982 + $0x3c] sm:$0xc]
      %v2717 = vld [vmem:[%s982 + $0x40] sm:$0xf]
      %v2718 = vld [vmem:[%s982 + $0x44] sm:$0x3]
      %v2719 = vld [vmem:[%s982 + $0x58] sm:$0xc]
      %v2720 = vld [vmem:[%s982 + $0x5c] sm:$0xf]
      %v2721 = vld [vmem:[%s982 + $0x60] sm:$0x3]
      %v2722 = vld [vmem:[%s982 + $0x74] sm:$0xc]
      %v2723 = vld [vmem:[%s982 + $0x78] sm:$0xf]
      %v2724 = vld [vmem:[%s982 + $0x7c] sm:$0x3]
      %v2725 = vld [vmem:[%s982 + $0x90] sm:$0xc]
      %v2726 = vld [vmem:[%s982 + $0x94] sm:$0xf]
      %v2727 = vld [vmem:[%s982 + $0x98] sm:$0x3]
      %v2746 = vrot.slane %v2710, 6
      %v2747 = vrot.slane %v2746, 4
      %v2748 = vrot.slane %v2711, 6
      %v2749 = vsel %vm1449, %v2747, %v2748
      %v2750 = vrot.slane %v2748, 4
      %v2751 = vrot.slane %v2712, 6
      %v2752 = vsel %vm1449, %v2750, %v2751
      %v2753 = vrot.slane %v2713, 6
      %v2754 = vrot.slane %v2753, 4
      %v2755 = vrot.slane %v2714, 6
      %v2756 = vsel %vm1449, %v2754, %v2755
      %v2757 = vrot.slane %v2755, 4
      %v2758 = vrot.slane %v2715, 6
      %v2759 = vsel %vm1449, %v2757, %v2758
      %v2760 = vrot.slane %v2716, 6
      %v2761 = vrot.slane %v2760, 4
      %v2762 = vrot.slane %v2717, 6
      %v2763 = vsel %vm1449, %v2761, %v2762
      %v2764 = vrot.slane %v2762, 4
      %v2765 = vrot.slane %v2718, 6
      %v2766 = vsel %vm1449, %v2764, %v2765
      %v2767 = vrot.slane %v2719, 6
      %v2768 = vrot.slane %v2767, 4
      %v2769 = vrot.slane %v2720, 6
      %v2770 = vsel %vm1449, %v2768, %v2769
      %v2771 = vrot.slane %v2769, 4
      %v2772 = vrot.slane %v2721, 6
      %v2773 = vsel %vm1449, %v2771, %v2772
      %v2774 = vrot.slane %v2722, 6
      %v2775 = vrot.slane %v2774, 4
      %v2776 = vrot.slane %v2723, 6
      %v2777 = vsel %vm1449, %v2775, %v2776
      %v2778 = vrot.slane %v2776, 4
      %v2779 = vrot.slane %v2724, 6
      %v2780 = vsel %vm1449, %v2778, %v2779
      %v2781 = vrot.slane %v2725, 6
      %v2782 = vrot.slane %v2781, 4
      %v2783 = vrot.slane %v2726, 6
      %v2784 = vsel %vm1449, %v2782, %v2783
      %v2785 = vrot.slane %v2783, 4
      %v2786 = vrot.slane %v2727, 6
      %v2787 = vsel %vm1449, %v2785, %v2786
      %s2788 = scalar_lea.vmem %s1027, 384
      %v2789 = vld [vmem:[%s2788] sm:$0xf]
      %v2790 = vld [vmem:[%s2788 + $0x4] sm:$0xf]
      %v2791 = vld [vmem:[%s2788 + $0x8] sm:$0xf]
      %v2792 = vld [vmem:[%s2788 + $0xc] sm:$0xf]
      %v2793 = vld [vmem:[%s2788 + $0x10] sm:$0xf]
      %v2794 = vld [vmem:[%s2788 + $0x14] sm:$0xf]
      %v2795 = vld [vmem:[%s2788 + $0x18] sm:$0xf]
      %v2796 = vld [vmem:[%s2788 + $0x1c] sm:$0xf]
      %v2797 = vld [vmem:[%s2788 + $0x20] sm:$0xf]
      %v2798 = vld [vmem:[%s2788 + $0x24] sm:$0xf]
      %v2799 = vld [vmem:[%s2788 + $0x28] sm:$0xf]
      %v2800 = vld [vmem:[%s2788 + $0x2c] sm:$0xf]
      %v2801 = vld [vmem:[%s2788 + $0x30] sm:$0xf]
      %v2802 = vld [vmem:[%s2788 + $0x34] sm:$0xf]
      %v2803 = vld [vmem:[%s2788 + $0x38] sm:$0xf]
      %v2804 = vld [vmem:[%s2788 + $0x3c] sm:$0xf]
      %v2805 = vunpack.c.l.b16 %v2749
      %v2806 = vunpack.c.l.b16 %v2752
      %v2807 = vunpack.c.l.b16 %v2756
      %v2808 = vunpack.c.l.b16 %v2759
      %v2809 = vunpack.c.l.b16 %v2763
      %v2810 = vunpack.c.l.b16 %v2766
      %v2811 = vunpack.c.l.b16 %v2770
      %v2812 = vunpack.c.l.b16 %v2773
      %v2813 = vunpack.c.l.b16 %v2777
      %v2814 = vunpack.c.l.b16 %v2780
      %v2815 = vunpack.c.l.b16 %v2784
      %v2816 = vunpack.c.l.b16 %v2787
      %v2817 = vpack.c.b16 %v2806, %v2805
      %v2818 = vpack.c.b16 %v2808, %v2807
      %v2819 = vpack.c.b16 %v2810, %v2809
      %v2820 = vpack.c.b16 %v2812, %v2811
      %v2821 = vpack.c.b16 %v2814, %v2813
      %v2822 = vpack.c.b16 %v2816, %v2815
      %v2845 = vunpack.c.l.b16 %v2789
      %v2846 = vunpack.c.l.b16 %v2790
      %v2847 = vunpack.c.l.b16 %v2791
      %v2848 = vunpack.c.l.b16 %v2792
      %v2849 = vunpack.c.l.b16 %v2793
      %v2850 = vunpack.c.l.b16 %v2794
      %v2851 = vunpack.c.l.b16 %v2795
      %v2852 = vunpack.c.l.b16 %v2796
      %v2853 = vunpack.c.l.b16 %v2797
      %v2854 = vunpack.c.l.b16 %v2798
      %v2855 = vunpack.c.l.b16 %v2799
      %v2856 = vunpack.c.l.b16 %v2800
      %v2857 = vunpack.c.l.b16 %v2801
      %v2858 = vunpack.c.l.b16 %v2802
      %v2859 = vunpack.c.l.b16 %v2803
      %v2860 = vunpack.c.l.b16 %v2804
      %v2861 = vpack.c.b16 %v2846, %v2845
      %v2862 = vpack.c.b16 %v2848, %v2847
      %v2863 = vpack.c.b16 %v2850, %v2849
      %v2864 = vpack.c.b16 %v2852, %v2851
      %v2865 = vpack.c.b16 %v2854, %v2853
      %v2866 = vpack.c.b16 %v2856, %v2855
      %v2867 = vpack.c.b16 %v2858, %v2857
      %v2868 = vpack.c.b16 %v2860, %v2859
      %2877 = vmatprep.subr.bf16.mxu0 0
      %2878 = vmatpush1.bf16.msra.mxu0 %v2861
      %2879 = vmatprep.subr.bf16.mxu0 0
      %2880 = vmatpush1.bf16.msra.mxu0 %v2862
      %2881 = vmatprep.subr.bf16.mxu0 0
      %2882 = vmatpush1.bf16.msra.mxu0 %v2863
      %2883 = vmatprep.subr.bf16.mxu0 0
      %2884 = vmatpush1.bf16.msra.mxu0 %v2864
      %2885 = vmatprep.subr.bf16.mxu0 0
      %2886 = vmatpush1.bf16.msra.mxu0 %v2865
      %2887 = vmatprep.subr.bf16.mxu0 0
      %2888 = vmatpush1.bf16.msra.mxu0 %v2866
      %2889 = vmatprep.subr.bf16.mxu0 0
      %2890 = vmatpush1.bf16.msra.mxu0 %v2867
      %2891 = vmatprep.subr.bf16.mxu0 0
      %2892 = vmatpush1.bf16.msra.mxu0 %v2868
      %2893 = vmatprep.subr.bf16.mxu0 0
      %2894 = vmatpush1.bf16.msra.mxu0 0
      %2895 = vmatprep.subr.bf16.mxu0 0
      %2896 = vmatpush1.bf16.msra.mxu0 0
      %2897 = vmatprep.subr.bf16.mxu0 0
      %2898 = vmatpush1.bf16.msra.mxu0 0
      %2899 = vmatprep.subr.bf16.mxu0 0
      %2900 = vmatpush1.bf16.msra.mxu0 0
      %2901 = vmatprep.subr.bf16.mxu0 0
      %2902 = vmatpush1.bf16.msra.mxu0 0
      %2903 = vmatprep.subr.bf16.mxu0 0
      %2904 = vmatpush1.bf16.msra.mxu0 0
      %2905 = vmatprep.subr.bf16.mxu0 0
      %2906 = vmatpush1.bf16.msra.mxu0 0
      %2907 = vmatprep.subr.bf16.mxu0 0
      %2908 = vmatpush1.bf16.msra.mxu0 0
      %2909 = vmatprep.mubr.bf16.mxu0 0
      %2910 = vmatmul.mubr.bf16.gmra.mrb[0].mxu0 %v2817
      %v2911 = vpop.f32.mrb[0].mxu0
      %v2912 = vadd.f32 0.0, %v2911
      %v2913 = vpop.f32.mrb[0].mxu0
      %v2914 = vpop.f32.mrb[0].mxu0
      %v2915 = vadd.f32 0.0, %v2914
      %v2916 = vpop.f32.mrb[0].mxu0
      %2917 = vmatprep.mubr.bf16.mxu0 0
      %2918 = vmatmul.mubr.bf16.gmra.mrb[0].mxu0 %v2818
      %v2919 = vpop.f32.mrb[0].mxu0
      %v2920 = vadd.f32 0.0, %v2919
      %v2921 = vpop.f32.mrb[0].mxu0
      %v2922 = vpop.f32.mrb[0].mxu0
      %v2923 = vadd.f32 0.0, %v2922
      %v2924 = vpop.f32.mrb[0].mxu0
      %2925 = vmatprep.mubr.bf16.mxu0 0
      %2926 = vmatmul.mubr.bf16.gmra.mrb[0].mxu0 %v2819
      %v2927 = vpop.f32.mrb[0].mxu0
      %v2928 = vadd.f32 0.0, %v2927
      %v2929 = vpop.f32.mrb[0].mxu0
      %v2930 = vpop.f32.mrb[0].mxu0
      %v2931 = vadd.f32 0.0, %v2930
      %v2932 = vpop.f32.mrb[0].mxu0
      %2933 = vmatprep.mubr.bf16.mxu0 0
      %2934 = vmatmul.mubr.bf16.gmra.mrb[0].mxu0 %v2820
      %v2935 = vpop.f32.mrb[0].mxu0
      %v2936 = vadd.f32 0.0, %v2935
      %v2937 = vpop.f32.mrb[0].mxu0
      %v2938 = vpop.f32.mrb[0].mxu0
      %v2939 = vadd.f32 0.0, %v2938
      %v2940 = vpop.f32.mrb[0].mxu0
      %2941 = vmatprep.mubr.bf16.mxu0 0
      %2942 = vmatmul.mubr.bf16.gmra.mrb[0].mxu0 %v2821
      %v2943 = vpop.f32.mrb[0].mxu0
      %v2944 = vadd.f32 0.0, %v2943
      %v2945 = vpop.f32.mrb[0].mxu0
      %v2946 = vpop.f32.mrb[0].mxu0
      %v2947 = vadd.f32 0.0, %v2946
      %v2948 = vpop.f32.mrb[0].mxu0
      %2949 = vmatprep.mubr.bf16.mxu0 0
      %2950 = vmatmul.mubr.bf16.gmra.mrb[0].mxu0 %v2822
      %v2951 = vpop.f32.mrb[0].mxu0
      %v2952 = vadd.f32 0.0, %v2951
      %v2953 = vpop.f32.mrb[0].mxu0
      %v2954 = vpop.f32.mrb[0].mxu0
      %v2955 = vadd.f32 0.0, %v2954
      %v2956 = vpop.f32.mrb[0].mxu0
      %2957 = vdwg.mxu0
      %v2958 = vadd.f32 %v2698, %v2912
      %v2959 = vadd.f32 %v2699, %v2915
      %v2960 = vadd.f32 %v2700, %v2920
      %v2961 = vadd.f32 %v2701, %v2923
      %v2962 = vadd.f32 %v2702, %v2928
      %v2963 = vadd.f32 %v2703, %v2931
      %v2964 = vadd.f32 %v2704, %v2936
      %v2965 = vadd.f32 %v2705, %v2939
      %v2966 = vadd.f32 %v2706, %v2944
      %v2967 = vadd.f32 %v2707, %v2947
      %v2968 = vadd.f32 %v2708, %v2952
      %v2969 = vadd.f32 %v2709, %v2955
      %v2970 = vld [vmem:[%s982 + $0x8] sm:$0xe]
      %v2971 = vld [vmem:[%s982 + $0xc] sm:$0xf]
      %v2972 = vld [vmem:[%s982 + $0x10] sm:$0x1]
      %v2973 = vld [vmem:[%s982 + $0x24] sm:$0xe]
      %v2974 = vld [vmem:[%s982 + $0x28] sm:$0xf]
      %v2975 = vld [vmem:[%s982 + $0x2c] sm:$0x1]
      %v2976 = vld [vmem:[%s982 + $0x40] sm:$0xe]
      %v2977 = vld [vmem:[%s982 + $0x44] sm:$0xf]
      %v2978 = vld [vmem:[%s982 + $0x48] sm:$0x1]
      %v2979 = vld [vmem:[%s982 + $0x5c] sm:$0xe]
      %v2980 = vld [vmem:[%s982 + $0x60] sm:$0xf]
      %v2981 = vld [vmem:[%s982 + $0x64] sm:$0x1]
      %v2982 = vld [vmem:[%s982 + $0x78] sm:$0xe]
      %v2983 = vld [vmem:[%s982 + $0x7c] sm:$0xf]
      %v2984 = vld [vmem:[%s982 + $0x80] sm:$0x1]
      %v2985 = vld [vmem:[%s982 + $0x94] sm:$0xe]
      %v2986 = vld [vmem:[%s982 + $0x98] sm:$0xf]
      %v2987 = vld [vmem:[%s982 + $0x9c] sm:$0x1]
      %v3006 = vrot.slane %v2970, 5
      %v3007 = vrot.slane %v3006, 4
      %v3008 = vrot.slane %v2971, 5
      %v3009 = vsel %vm1146, %v3007, %v3008
      %v3010 = vrot.slane %v3008, 4
      %v3011 = vrot.slane %v2972, 5
      %v3012 = vsel %vm1146, %v3010, %v3011
      %v3013 = vrot.slane %v2973, 5
      %v3014 = vrot.slane %v3013, 4
      %v3015 = vrot.slane %v2974, 5
      %v3016 = vsel %vm1146, %v3014, %v3015
      %v3017 = vrot.slane %v3015, 4
      %v3018 = vrot.slane %v2975, 5
      %v3019 = vsel %vm1146, %v3017, %v3018
      %v3020 = vrot.slane %v2976, 5
      %v3021 = vrot.slane %v3020, 4
      %v3022 = vrot.slane %v2977, 5
      %v3023 = vsel %vm1146, %v3021, %v3022
      %v3024 = vrot.slane %v3022, 4
      %v3025 = vrot.slane %v2978, 5
      %v3026 = vsel %vm1146, %v3024, %v3025
      %v3027 = vrot.slane %v2979, 5
      %v3028 = vrot.slane %v3027, 4
      %v3029 = vrot.slane %v2980, 5
      %v3030 = vsel %vm1146, %v3028, %v3029
      %v3031 = vrot.slane %v3029, 4
      %v3032 = vrot.slane %v2981, 5
      %v3033 = vsel %vm1146, %v3031, %v3032
      %v3034 = vrot.slane %v2982, 5
      %v3035 = vrot.slane %v3034, 4
      %v3036 = vrot.slane %v2983, 5
      %v3037 = vsel %vm1146, %v3035, %v3036
      %v3038 = vrot.slane %v3036, 4
      %v3039 = vrot.slane %v2984, 5
      %v3040 = vsel %vm1146, %v3038, %v3039
      %v3041 = vrot.slane %v2985, 5
      %v3042 = vrot.slane %v3041, 4
      %v3043 = vrot.slane %v2986, 5
      %v3044 = vsel %vm1146, %v3042, %v3043
      %v3045 = vrot.slane %v3043, 4
      %v3046 = vrot.slane %v2987, 5
      %v3047 = vsel %vm1146, %v3045, %v3046
      %s3048 = scalar_lea.vmem %s1027, 448
      %v3049 = vld [vmem:[%s3048] sm:$0xf]
      %v3050 = vld [vmem:[%s3048 + $0x4] sm:$0xf]
      %v3051 = vld [vmem:[%s3048 + $0x8] sm:$0xf]
      %v3052 = vld [vmem:[%s3048 + $0xc] sm:$0xf]
      %v3053 = vld [vmem:[%s3048 + $0x10] sm:$0xf]
      %v3054 = vld [vmem:[%s3048 + $0x14] sm:$0xf]
      %v3055 = vld [vmem:[%s3048 + $0x18] sm:$0xf]
      %v3056 = vld [vmem:[%s3048 + $0x1c] sm:$0xf]
      %v3057 = vld [vmem:[%s3048 + $0x20] sm:$0xf]
      %v3058 = vld [vmem:[%s3048 + $0x24] sm:$0xf]
      %v3059 = vld [vmem:[%s3048 + $0x28] sm:$0xf]
      %v3060 = vld [vmem:[%s3048 + $0x2c] sm:$0xf]
      %v3061 = vld [vmem:[%s3048 + $0x30] sm:$0xf]
      %v3062 = vld [vmem:[%s3048 + $0x34] sm:$0xf]
      %v3063 = vld [vmem:[%s3048 + $0x38] sm:$0xf]
      %v3064 = vld [vmem:[%s3048 + $0x3c] sm:$0xf]
      %v3065 = vunpack.c.l.b16 %v3009
      %v3066 = vunpack.c.l.b16 %v3012
      %v3067 = vunpack.c.l.b16 %v3016
      %v3068 = vunpack.c.l.b16 %v3019
      %v3069 = vunpack.c.l.b16 %v3023
      %v3070 = vunpack.c.l.b16 %v3026
      %v3071 = vunpack.c.l.b16 %v3030
      %v3072 = vunpack.c.l.b16 %v3033
      %v3073 = vunpack.c.l.b16 %v3037
      %v3074 = vunpack.c.l.b16 %v3040
      %v3075 = vunpack.c.l.b16 %v3044
      %v3076 = vunpack.c.l.b16 %v3047
      %v3077 = vpack.c.b16 %v3066, %v3065
      %v3078 = vpack.c.b16 %v3068, %v3067
      %v3079 = vpack.c.b16 %v3070, %v3069
      %v3080 = vpack.c.b16 %v3072, %v3071
      %v3081 = vpack.c.b16 %v3074, %v3073
      %v3082 = vpack.c.b16 %v3076, %v3075
      %v3105 = vunpack.c.l.b16 %v3049
      %v3106 = vunpack.c.l.b16 %v3050
      %v3107 = vunpack.c.l.b16 %v3051
      %v3108 = vunpack.c.l.b16 %v3052
      %v3109 = vunpack.c.l.b16 %v3053
      %v3110 = vunpack.c.l.b16 %v3054
      %v3111 = vunpack.c.l.b16 %v3055
      %v3112 = vunpack.c.l.b16 %v3056
      %v3113 = vunpack.c.l.b16 %v3057
      %v3114 = vunpack.c.l.b16 %v3058
      %v3115 = vunpack.c.l.b16 %v3059
      %v3116 = vunpack.c.l.b16 %v3060
      %v3117 = vunpack.c.l.b16 %v3061
      %v3118 = vunpack.c.l.b16 %v3062
      %v3119 = vunpack.c.l.b16 %v3063
      %v3120 = vunpack.c.l.b16 %v3064
      %v3121 = vpack.c.b16 %v3106, %v3105
      %v3122 = vpack.c.b16 %v3108, %v3107
      %v3123 = vpack.c.b16 %v3110, %v3109
      %v3124 = vpack.c.b16 %v3112, %v3111
      %v3125 = vpack.c.b16 %v3114, %v3113
      %v3126 = vpack.c.b16 %v3116, %v3115
      %v3127 = vpack.c.b16 %v3118, %v3117
      %v3128 = vpack.c.b16 %v3120, %v3119
      %3137 = vmatprep.subr.bf16.mxu0 0
      %3138 = vmatpush1.bf16.msra.mxu0 %v3121
      %3139 = vmatprep.subr.bf16.mxu0 0
      %3140 = vmatpush1.bf16.msra.mxu0 %v3122
      %3141 = vmatprep.subr.bf16.mxu0 0
      %3142 = vmatpush1.bf16.msra.mxu0 %v3123
      %3143 = vmatprep.subr.bf16.mxu0 0
      %3144 = vmatpush1.bf16.msra.mxu0 %v3124
      %3145 = vmatprep.subr.bf16.mxu0 0
      %3146 = vmatpush1.bf16.msra.mxu0 %v3125
      %3147 = vmatprep.subr.bf16.mxu0 0
      %3148 = vmatpush1.bf16.msra.mxu0 %v3126
      %3149 = vmatprep.subr.bf16.mxu0 0
      %3150 = vmatpush1.bf16.msra.mxu0 %v3127
      %3151 = vmatprep.subr.bf16.mxu0 0
      %3152 = vmatpush1.bf16.msra.mxu0 %v3128
      %3153 = vmatprep.subr.bf16.mxu0 0
      %3154 = vmatpush1.bf16.msra.mxu0 0
      %3155 = vmatprep.subr.bf16.mxu0 0
      %3156 = vmatpush1.bf16.msra.mxu0 0
      %3157 = vmatprep.subr.bf16.mxu0 0
      %3158 = vmatpush1.bf16.msra.mxu0 0
      %3159 = vmatprep.subr.bf16.mxu0 0
      %3160 = vmatpush1.bf16.msra.mxu0 0
      %3161 = vmatprep.subr.bf16.mxu0 0
      %3162 = vmatpush1.bf16.msra.mxu0 0
      %3163 = vmatprep.subr.bf16.mxu0 0
      %3164 = vmatpush1.bf16.msra.mxu0 0
      %3165 = vmatprep.subr.bf16.mxu0 0
      %3166 = vmatpush1.bf16.msra.mxu0 0
      %3167 = vmatprep.subr.bf16.mxu0 0
      %3168 = vmatpush1.bf16.msra.mxu0 0
      %3169 = vmatprep.mubr.bf16.mxu0 0
      %3170 = vmatmul.mubr.bf16.gmra.mrb[0].mxu0 %v3077
      %v3171 = vpop.f32.mrb[0].mxu0
      %v3172 = vadd.f32 0.0, %v3171
      %v3173 = vpop.f32.mrb[0].mxu0
      %v3174 = vpop.f32.mrb[0].mxu0
      %v3175 = vadd.f32 0.0, %v3174
      %v3176 = vpop.f32.mrb[0].mxu0
      %3177 = vmatprep.mubr.bf16.mxu0 0
      %3178 = vmatmul.mubr.bf16.gmra.mrb[0].mxu0 %v3078
      %v3179 = vpop.f32.mrb[0].mxu0
      %v3180 = vadd.f32 0.0, %v3179
      %v3181 = vpop.f32.mrb[0].mxu0
      %v3182 = vpop.f32.mrb[0].mxu0
      %v3183 = vadd.f32 0.0, %v3182
      %v3184 = vpop.f32.mrb[0].mxu0
      %3185 = vmatprep.mubr.bf16.mxu0 0
      %3186 = vmatmul.mubr.bf16.gmra.mrb[0].mxu0 %v3079
      %v3187 = vpop.f32.mrb[0].mxu0
      %v3188 = vadd.f32 0.0, %v3187
      %v3189 = vpop.f32.mrb[0].mxu0
      %v3190 = vpop.f32.mrb[0].mxu0
      %v3191 = vadd.f32 0.0, %v3190
      %v3192 = vpop.f32.mrb[0].mxu0
      %3193 = vmatprep.mubr.bf16.mxu0 0
      %3194 = vmatmul.mubr.bf16.gmra.mrb[0].mxu0 %v3080
      %v3195 = vpop.f32.mrb[0].mxu0
      %v3196 = vadd.f32 0.0, %v3195
      %v3197 = vpop.f32.mrb[0].mxu0
      %v3198 = vpop.f32.mrb[0].mxu0
      %v3199 = vadd.f32 0.0, %v3198
      %v3200 = vpop.f32.mrb[0].mxu0
      %3201 = vmatprep.mubr.bf16.mxu0 0
      %3202 = vmatmul.mubr.bf16.gmra.mrb[0].mxu0 %v3081
      %v3203 = vpop.f32.mrb[0].mxu0
      %v3204 = vadd.f32 0.0, %v3203
      %v3205 = vpop.f32.mrb[0].mxu0
      %v3206 = vpop.f32.mrb[0].mxu0
      %v3207 = vadd.f32 0.0, %v3206
      %v3208 = vpop.f32.mrb[0].mxu0
      %3209 = vmatprep.mubr.bf16.mxu0 0
      %3210 = vmatmul.mubr.bf16.gmra.mrb[0].mxu0 %v3082
      %v3211 = vpop.f32.mrb[0].mxu0
      %v3212 = vadd.f32 0.0, %v3211
      %v3213 = vpop.f32.mrb[0].mxu0
      %v3214 = vpop.f32.mrb[0].mxu0
      %v3215 = vadd.f32 0.0, %v3214
      %v3216 = vpop.f32.mrb[0].mxu0
      %3217 = vdwg.mxu0
      %v3218 = vadd.f32 %v2958, %v3172
      %v3219 = vadd.f32 %v2959, %v3175
      %v3220 = vadd.f32 %v2960, %v3180
      %v3221 = vadd.f32 %v2961, %v3183
      %v3222 = vadd.f32 %v2962, %v3188
      %v3223 = vadd.f32 %v2963, %v3191
      %v3224 = vadd.f32 %v2964, %v3196
      %v3225 = vadd.f32 %v2965, %v3199
      %v3226 = vadd.f32 %v2966, %v3204
      %v3227 = vadd.f32 %v2967, %v3207
      %v3228 = vadd.f32 %v2968, %v3212
      %v3229 = vadd.f32 %v2969, %v3215
      %v3230 = vld [vmem:[%s982 + $0x10] sm:$0xf]
      %v3231 = vld [vmem:[%s982 + $0x2c] sm:$0xf]
      %v3232 = vld [vmem:[%s982 + $0x48] sm:$0xf]
      %v3233 = vld [vmem:[%s982 + $0x64] sm:$0xf]
      %v3234 = vld [vmem:[%s982 + $0x80] sm:$0xf]
      %v3235 = vld [vmem:[%s982 + $0x9c] sm:$0xf]
      %s3236 = scalar_lea.vmem %s1027, 512
      %v3237 = vld [vmem:[%s3236] sm:$0xf]
      %v3238 = vld [vmem:[%s3236 + $0x4] sm:$0xf]
      %v3239 = vld [vmem:[%s3236 + $0x8] sm:$0xf]
      %v3240 = vld [vmem:[%s3236 + $0xc] sm:$0xf]
      %v3241 = vld [vmem:[%s3236 + $0x10] sm:$0xf]
      %v3242 = vld [vmem:[%s3236 + $0x14] sm:$0xf]
      %v3243 = vld [vmem:[%s3236 + $0x18] sm:$0xf]
      %v3244 = vld [vmem:[%s3236 + $0x1c] sm:$0xf]
      %v3245 = vld [vmem:[%s3236 + $0x20] sm:$0xf]
      %v3246 = vld [vmem:[%s3236 + $0x24] sm:$0xf]
      %v3247 = vld [vmem:[%s3236 + $0x28] sm:$0xf]
      %v3248 = vld [vmem:[%s3236 + $0x2c] sm:$0xf]
      %v3249 = vld [vmem:[%s3236 + $0x30] sm:$0xf]
      %v3250 = vld [vmem:[%s3236 + $0x34] sm:$0xf]
      %v3251 = vld [vmem:[%s3236 + $0x38] sm:$0xf]
      %v3252 = vld [vmem:[%s3236 + $0x3c] sm:$0xf]
      %v3259 = vunpack.c.l.b16 %v2971
      %v3260 = vunpack.c.l.b16 %v3230
      %v3261 = vunpack.c.l.b16 %v2974
      %v3262 = vunpack.c.l.b16 %v3231
      %v3263 = vunpack.c.l.b16 %v2977
      %v3264 = vunpack.c.l.b16 %v3232
      %v3265 = vunpack.c.l.b16 %v2980
      %v3266 = vunpack.c.l.b16 %v3233
      %v3267 = vunpack.c.l.b16 %v2983
      %v3268 = vunpack.c.l.b16 %v3234
      %v3269 = vunpack.c.l.b16 %v2986
      %v3270 = vunpack.c.l.b16 %v3235
      %v3271 = vpack.c.b16 %v3260, %v3259
      %v3272 = vpack.c.b16 %v3262, %v3261
      %v3273 = vpack.c.b16 %v3264, %v3263
      %v3274 = vpack.c.b16 %v3266, %v3265
      %v3275 = vpack.c.b16 %v3268, %v3267
      %v3276 = vpack.c.b16 %v3270, %v3269
      %v3299 = vunpack.c.l.b16 %v3237
      %v3300 = vunpack.c.l.b16 %v3238
      %v3301 = vunpack.c.l.b16 %v3239
      %v3302 = vunpack.c.l.b16 %v3240
      %v3303 = vunpack.c.l.b16 %v3241
      %v3304 = vunpack.c.l.b16 %v3242
      %v3305 = vunpack.c.l.b16 %v3243
      %v3306 = vunpack.c.l.b16 %v3244
      %v3307 = vunpack.c.l.b16 %v3245
      %v3308 = vunpack.c.l.b16 %v3246
      %v3309 = vunpack.c.l.b16 %v3247
      %v3310 = vunpack.c.l.b16 %v3248
      %v3311 = vunpack.c.l.b16 %v3249
      %v3312 = vunpack.c.l.b16 %v3250
      %v3313 = vunpack.c.l.b16 %v3251
      %v3314 = vunpack.c.l.b16 %v3252
      %v3315 = vpack.c.b16 %v3300, %v3299
      %v3316 = vpack.c.b16 %v3302, %v3301
      %v3317 = vpack.c.b16 %v3304, %v3303
      %v3318 = vpack.c.b16 %v3306, %v3305
      %v3319 = vpack.c.b16 %v3308, %v3307
      %v3320 = vpack.c.b16 %v3310, %v3309
      %v3321 = vpack.c.b16 %v3312, %v3311
      %v3322 = vpack.c.b16 %v3314, %v3313
      %3331 = vmatprep.subr.bf16.mxu0 0
      %3332 = vmatpush1.bf16.msra.mxu0 %v3315
      %3333 = vmatprep.subr.bf16.mxu0 0
      %3334 = vmatpush1.bf16.msra.mxu0 %v3316
      %3335 = vmatprep.subr.bf16.mxu0 0
      %3336 = vmatpush1.bf16.msra.mxu0 %v3317
      %3337 = vmatprep.subr.bf16.mxu0 0
      %3338 = vmatpush1.bf16.msra.mxu0 %v3318
      %3339 = vmatprep.subr.bf16.mxu0 0
      %3340 = vmatpush1.bf16.msra.mxu0 %v3319
      %3341 = vmatprep.subr.bf16.mxu0 0
      %3342 = vmatpush1.bf16.msra.mxu0 %v3320
      %3343 = vmatprep.subr.bf16.mxu0 0
      %3344 = vmatpush1.bf16.msra.mxu0 %v3321
      %3345 = vmatprep.subr.bf16.mxu0 0
      %3346 = vmatpush1.bf16.msra.mxu0 %v3322
      %3347 = vmatprep.subr.bf16.mxu0 0
      %3348 = vmatpush1.bf16.msra.mxu0 0
      %3349 = vmatprep.subr.bf16.mxu0 0
      %3350 = vmatpush1.bf16.msra.mxu0 0
      %3351 = vmatprep.subr.bf16.mxu0 0
      %3352 = vmatpush1.bf16.msra.mxu0 0
      %3353 = vmatprep.subr.bf16.mxu0 0
      %3354 = vmatpush1.bf16.msra.mxu0 0
      %3355 = vmatprep.subr.bf16.mxu0 0
      %3356 = vmatpush1.bf16.msra.mxu0 0
      %3357 = vmatprep.subr.bf16.mxu0 0
      %3358 = vmatpush1.bf16.msra.mxu0 0
      %3359 = vmatprep.subr.bf16.mxu0 0
      %3360 = vmatpush1.bf16.msra.mxu0 0
      %3361 = vmatprep.subr.bf16.mxu0 0
      %3362 = vmatpush1.bf16.msra.mxu0 0
      %3363 = vmatprep.mubr.bf16.mxu0 0
      %3364 = vmatmul.mubr.bf16.gmra.mrb[0].mxu0 %v3271
      %v3365 = vpop.f32.mrb[0].mxu0
      %v3366 = vadd.f32 0.0, %v3365
      %v3367 = vpop.f32.mrb[0].mxu0
      %v3368 = vpop.f32.mrb[0].mxu0
      %v3369 = vadd.f32 0.0, %v3368
      %v3370 = vpop.f32.mrb[0].mxu0
      %3371 = vmatprep.mubr.bf16.mxu0 0
      %3372 = vmatmul.mubr.bf16.gmra.mrb[0].mxu0 %v3272
      %v3373 = vpop.f32.mrb[0].mxu0
      %v3374 = vadd.f32 0.0, %v3373
      %v3375 = vpop.f32.mrb[0].mxu0
      %v3376 = vpop.f32.mrb[0].mxu0
      %v3377 = vadd.f32 0.0, %v3376
      %v3378 = vpop.f32.mrb[0].mxu0
      %3379 = vmatprep.mubr.bf16.mxu0 0
      %3380 = vmatmul.mubr.bf16.gmra.mrb[0].mxu0 %v3273
      %v3381 = vpop.f32.mrb[0].mxu0
      %v3382 = vadd.f32 0.0, %v3381
      %v3383 = vpop.f32.mrb[0].mxu0
      %v3384 = vpop.f32.mrb[0].mxu0
      %v3385 = vadd.f32 0.0, %v3384
      %v3386 = vpop.f32.mrb[0].mxu0
      %3387 = vmatprep.mubr.bf16.mxu0 0
      %3388 = vmatmul.mubr.bf16.gmra.mrb[0].mxu0 %v3274
      %v3389 = vpop.f32.mrb[0].mxu0
      %v3390 = vadd.f32 0.0, %v3389
      %v3391 = vpop.f32.mrb[0].mxu0
      %v3392 = vpop.f32.mrb[0].mxu0
      %v3393 = vadd.f32 0.0, %v3392
      %v3394 = vpop.f32.mrb[0].mxu0
      %3395 = vmatprep.mubr.bf16.mxu0 0
      %3396 = vmatmul.mubr.bf16.gmra.mrb[0].mxu0 %v3275
      %v3397 = vpop.f32.mrb[0].mxu0
      %v3398 = vadd.f32 0.0, %v3397
      %v3399 = vpop.f32.mrb[0].mxu0
      %v3400 = vpop.f32.mrb[0].mxu0
      %v3401 = vadd.f32 0.0, %v3400
      %v3402 = vpop.f32.mrb[0].mxu0
      %3403 = vmatprep.mubr.bf16.mxu0 0
      %3404 = vmatmul.mubr.bf16.gmra.mrb[0].mxu0 %v3276
      %v3405 = vpop.f32.mrb[0].mxu0
      %v3406 = vadd.f32 0.0, %v3405
      %v3407 = vpop.f32.mrb[0].mxu0
      %v3408 = vpop.f32.mrb[0].mxu0
      %v3409 = vadd.f32 0.0, %v3408
      %v3410 = vpop.f32.mrb[0].mxu0
      %3411 = vdwg.mxu0
      %v3412 = vadd.f32 %v3218, %v3366
      %v3413 = vadd.f32 %v3219, %v3369
      %v3414 = vadd.f32 %v3220, %v3374
      %v3415 = vadd.f32 %v3221, %v3377
      %v3416 = vadd.f32 %v3222, %v3382
      %v3417 = vadd.f32 %v3223, %v3385
      %v3418 = vadd.f32 %v3224, %v3390
      %v3419 = vadd.f32 %v3225, %v3393
      %v3420 = vadd.f32 %v3226, %v3398
      %v3421 = vadd.f32 %v3227, %v3401
      %v3422 = vadd.f32 %v3228, %v3406
      %v3423 = vadd.f32 %v3229, %v3409
      %s3424 = scalar_lea.vmem [#allocation2], 96
      %v3425 = vld [vmem:[%s3424] sm:$0xff]
      %v3426 = vld [vmem:[%s3424 + $0x8] sm:$0xff]
      %v3427 = vld [vmem:[%s3424 + $0x10] sm:$0xff]
      %v3428 = vld [vmem:[%s3424 + $0x18] sm:$0xff]
      %v3429 = vld [vmem:[%s3424 + $0x20] sm:$0xff]
      %v3430 = vld [vmem:[%s3424 + $0x28] sm:$0xff]
      %v3431 = vld [vmem:[%s3424 + $0x30] sm:$0xff]
      %v3432 = vld [vmem:[%s3424 + $0x38] sm:$0xff]
      %v3433 = vld [vmem:[%s3424 + $0x40] sm:$0xff]
      %v3434 = vld [vmem:[%s3424 + $0x48] sm:$0xff]
      %v3435 = vld [vmem:[%s3424 + $0x50] sm:$0xff]
      %v3436 = vld [vmem:[%s3424 + $0x58] sm:$0xff]
      %v3437 = vadd.f32 %v3425, %v3412
      %v3438 = vadd.f32 %v3426, %v3413
      %v3439 = vadd.f32 %v3427, %v3414
      %v3440 = vadd.f32 %v3428, %v3415
      %v3441 = vadd.f32 %v3429, %v3416
      %v3442 = vadd.f32 %v3430, %v3417
      %v3443 = vadd.f32 %v3431, %v3418
      %v3444 = vadd.f32 %v3432, %v3419
      %v3445 = vadd.f32 %v3433, %v3420
      %v3446 = vadd.f32 %v3434, %v3421
      %v3447 = vadd.f32 %v3435, %v3422
      %v3448 = vadd.f32 %v3436, %v3423
      %3449 = vst [vmem:[%s3424] sm:$0xff] %v3437
      %3450 = vst [vmem:[%s3424 + $0x8] sm:$0xff] %v3438
      %3451 = vst [vmem:[%s3424 + $0x10] sm:$0xff] %v3439
      %3452 = vst [vmem:[%s3424 + $0x18] sm:$0xff] %v3440
      %3453 = vst [vmem:[%s3424 + $0x20] sm:$0xff] %v3441
      %3454 = vst [vmem:[%s3424 + $0x28] sm:$0xff] %v3442
      %3455 = vst [vmem:[%s3424 + $0x30] sm:$0xff] %v3443
      %3456 = vst [vmem:[%s3424 + $0x38] sm:$0xff] %v3444
      %3457 = vst [vmem:[%s3424 + $0x40] sm:$0xff] %v3445
      %3458 = vst [vmem:[%s3424 + $0x48] sm:$0xff] %v3446
      %3459 = vst [vmem:[%s3424 + $0x50] sm:$0xff] %v3447
      %3460 = vst [vmem:[%s3424 + $0x58] sm:$0xff] %v3448
      %s3461 = scalar_lea.vmem %s1033, 256
      %v3462 = vld [vmem:[%s3461] sm:$0xf]
      %v3463 = vld [vmem:[%s3461 + $0x4] sm:$0xf]
      %v3464 = vld [vmem:[%s3461 + $0x8] sm:$0xf]
      %v3465 = vld [vmem:[%s3461 + $0xc] sm:$0xf]
      %v3466 = vld [vmem:[%s3461 + $0x10] sm:$0xf]
      %v3467 = vld [vmem:[%s3461 + $0x14] sm:$0xf]
      %v3468 = vld [vmem:[%s3461 + $0x18] sm:$0xf]
      %v3469 = vld [vmem:[%s3461 + $0x1c] sm:$0xf]
      %v3470 = vld [vmem:[%s3461 + $0x20] sm:$0xf]
      %v3471 = vld [vmem:[%s3461 + $0x24] sm:$0xf]
      %v3472 = vld [vmem:[%s3461 + $0x28] sm:$0xf]
      %v3473 = vld [vmem:[%s3461 + $0x2c] sm:$0xf]
      %v3474 = vld [vmem:[%s3461 + $0x30] sm:$0xf]
      %v3475 = vld [vmem:[%s3461 + $0x34] sm:$0xf]
      %v3476 = vld [vmem:[%s3461 + $0x38] sm:$0xf]
      %v3477 = vld [vmem:[%s3461 + $0x3c] sm:$0xf]
      %v3478 = vld [vmem:[%s934] sm:$0x8]
      %v3479 = vld [vmem:[%s934 + $0x4] sm:$0xf]
      %v3480 = vld [vmem:[%s934 + $0x8] sm:$0x7]
      %v3481 = vld [vmem:[%s934 + $0x1c] sm:$0x8]
      %v3482 = vld [vmem:[%s934 + $0x20] sm:$0xf]
      %v3483 = vld [vmem:[%s934 + $0x24] sm:$0x7]
      %v3484 = vld [vmem:[%s934 + $0x38] sm:$0x8]
      %v3485 = vld [vmem:[%s934 + $0x3c] sm:$0xf]
      %v3486 = vld [vmem:[%s934 + $0x40] sm:$0x7]
      %v3487 = vld [vmem:[%s934 + $0x54] sm:$0x8]
      %v3488 = vld [vmem:[%s934 + $0x58] sm:$0xf]
      %v3489 = vld [vmem:[%s934 + $0x5c] sm:$0x7]
      %v3490 = vld [vmem:[%s934 + $0x70] sm:$0x8]
      %v3491 = vld [vmem:[%s934 + $0x74] sm:$0xf]
      %v3492 = vld [vmem:[%s934 + $0x78] sm:$0x7]
      %v3493 = vld [vmem:[%s934 + $0x8c] sm:$0x8]
      %v3494 = vld [vmem:[%s934 + $0x90] sm:$0xf]
      %v3495 = vld [vmem:[%s934 + $0x94] sm:$0x7]
      %vm3514 = vcmask 1040384
      %vm3515 = vcmask 1044484
      %vm3516 = vmor %vm3514, %vm3515
      %v3517 = vrot.slane %v3478, 7
      %v3518 = vrot.slane %v3517, 4
      %v3519 = vrot.slane %v3479, 7
      %v3520 = vsel %vm3516, %v3518, %v3519
      %v3521 = vrot.slane %v3519, 4
      %v3522 = vrot.slane %v3480, 7
      %v3523 = vsel %vm3516, %v3521, %v3522
      %v3524 = vrot.slane %v3481, 7
      %v3525 = vrot.slane %v3524, 4
      %v3526 = vrot.slane %v3482, 7
      %v3527 = vsel %vm3516, %v3525, %v3526
      %v3528 = vrot.slane %v3526, 4
      %v3529 = vrot.slane %v3483, 7
      %v3530 = vsel %vm3516, %v3528, %v3529
      %v3531 = vrot.slane %v3484, 7
      %v3532 = vrot.slane %v3531, 4
      %v3533 = vrot.slane %v3485, 7
      %v3534 = vsel %vm3516, %v3532, %v3533
      %v3535 = vrot.slane %v3533, 4
      %v3536 = vrot.slane %v3486, 7
      %v3537 = vsel %vm3516, %v3535, %v3536
      %v3538 = vrot.slane %v3487, 7
      %v3539 = vrot.slane %v3538, 4
      %v3540 = vrot.slane %v3488, 7
      %v3541 = vsel %vm3516, %v3539, %v3540
      %v3542 = vrot.slane %v3540, 4
      %v3543 = vrot.slane %v3489, 7
      %v3544 = vsel %vm3516, %v3542, %v3543
      %v3545 = vrot.slane %v3490, 7
      %v3546 = vrot.slane %v3545, 4
      %v3547 = vrot.slane %v3491, 7
      %v3548 = vsel %vm3516, %v3546, %v3547
      %v3549 = vrot.slane %v3547, 4
      %v3550 = vrot.slane %v3492, 7
      %v3551 = vsel %vm3516, %v3549, %v3550
      %v3552 = vrot.slane %v3493, 7
      %v3553 = vrot.slane %v3552, 4
      %v3554 = vrot.slane %v3494, 7
      %v3555 = vsel %vm3516, %v3553, %v3554
      %v3556 = vrot.slane %v3554, 4
      %v3557 = vrot.slane %v3495, 7
      %v3558 = vsel %vm3516, %v3556, %v3557
      %v3559 = vld [vmem:[%s1033] sm:$0xf]
      %v3560 = vld [vmem:[%s1033 + $0x4] sm:$0xf]
      %v3561 = vld [vmem:[%s1033 + $0x8] sm:$0xf]
      %v3562 = vld [vmem:[%s1033 + $0xc] sm:$0xf]
      %v3563 = vld [vmem:[%s1033 + $0x10] sm:$0xf]
      %v3564 = vld [vmem:[%s1033 + $0x14] sm:$0xf]
      %v3565 = vld [vmem:[%s1033 + $0x18] sm:$0xf]
      %v3566 = vld [vmem:[%s1033 + $0x1c] sm:$0xf]
      %v3567 = vld [vmem:[%s1033 + $0x20] sm:$0xf]
      %v3568 = vld [vmem:[%s1033 + $0x24] sm:$0xf]
      %v3569 = vld [vmem:[%s1033 + $0x28] sm:$0xf]
      %v3570 = vld [vmem:[%s1033 + $0x2c] sm:$0xf]
      %v3571 = vld [vmem:[%s1033 + $0x30] sm:$0xf]
      %v3572 = vld [vmem:[%s1033 + $0x34] sm:$0xf]
      %v3573 = vld [vmem:[%s1033 + $0x38] sm:$0xf]
      %v3574 = vld [vmem:[%s1033 + $0x3c] sm:$0xf]
      %v3575 = vunpack.c.l.b16 %v3520
      %v3576 = vunpack.c.l.b16 %v3523
      %v3577 = vunpack.c.l.b16 %v3527
      %v3578 = vunpack.c.l.b16 %v3530
      %v3579 = vunpack.c.l.b16 %v3534
      %v3580 = vunpack.c.l.b16 %v3537
      %v3581 = vunpack.c.l.b16 %v3541
      %v3582 = vunpack.c.l.b16 %v3544
      %v3583 = vunpack.c.l.b16 %v3548
      %v3584 = vunpack.c.l.b16 %v3551
      %v3585 = vunpack.c.l.b16 %v3555
      %v3586 = vunpack.c.l.b16 %v3558
      %v3587 = vpack.c.b16 %v3576, %v3575
      %v3588 = vpack.c.b16 %v3578, %v3577
      %v3589 = vpack.c.b16 %v3580, %v3579
      %v3590 = vpack.c.b16 %v3582, %v3581
      %v3591 = vpack.c.b16 %v3584, %v3583
      %v3592 = vpack.c.b16 %v3586, %v3585
      %v3615 = vunpack.c.l.b16 %v3559
      %v3616 = vunpack.c.l.b16 %v3560
      %v3617 = vunpack.c.l.b16 %v3561
      %v3618 = vunpack.c.l.b16 %v3562
      %v3619 = vunpack.c.l.b16 %v3563
      %v3620 = vunpack.c.l.b16 %v3564
      %v3621 = vunpack.c.l.b16 %v3565
      %v3622 = vunpack.c.l.b16 %v3566
      %v3623 = vunpack.c.l.b16 %v3567
      %v3624 = vunpack.c.l.b16 %v3568
      %v3625 = vunpack.c.l.b16 %v3569
      %v3626 = vunpack.c.l.b16 %v3570
      %v3627 = vunpack.c.l.b16 %v3571
      %v3628 = vunpack.c.l.b16 %v3572
      %v3629 = vunpack.c.l.b16 %v3573
      %v3630 = vunpack.c.l.b16 %v3574
      %v3631 = vpack.c.b16 %v3616, %v3615
      %v3632 = vpack.c.b16 %v3618, %v3617
      %v3633 = vpack.c.b16 %v3620, %v3619
      %v3634 = vpack.c.b16 %v3622, %v3621
      %v3635 = vpack.c.b16 %v3624, %v3623
      %v3636 = vpack.c.b16 %v3626, %v3625
      %v3637 = vpack.c.b16 %v3628, %v3627
      %v3638 = vpack.c.b16 %v3630, %v3629
      %3647 = vmatprep.subr.bf16.mxu0 0
      %3648 = vmatpush1.bf16.msra.mxu0 %v3631
      %3649 = vmatprep.subr.bf16.mxu0 0
      %3650 = vmatpush1.bf16.msra.mxu0 %v3632
      %3651 = vmatprep.subr.bf16.mxu0 0
      %3652 = vmatpush1.bf16.msra.mxu0 %v3633
      %3653 = vmatprep.subr.bf16.mxu0 0
      %3654 = vmatpush1.bf16.msra.mxu0 %v3634
      %3655 = vmatprep.subr.bf16.mxu0 0
      %3656 = vmatpush1.bf16.msra.mxu0 %v3635
      %3657 = vmatprep.subr.bf16.mxu0 0
      %3658 = vmatpush1.bf16.msra.mxu0 %v3636
      %3659 = vmatprep.subr.bf16.mxu0 0
      %3660 = vmatpush1.bf16.msra.mxu0 %v3637
      %3661 = vmatprep.subr.bf16.mxu0 0
      %3662 = vmatpush1.bf16.msra.mxu0 %v3638
      %3663 = vmatprep.subr.bf16.mxu0 0
      %3664 = vmatpush1.bf16.msra.mxu0 0
      %3665 = vmatprep.subr.bf16.mxu0 0
      %3666 = vmatpush1.bf16.msra.mxu0 0
      %3667 = vmatprep.subr.bf16.mxu0 0
      %3668 = vmatpush1.bf16.msra.mxu0 0
      %3669 = vmatprep.subr.bf16.mxu0 0
      %3670 = vmatpush1.bf16.msra.mxu0 0
      %3671 = vmatprep.subr.bf16.mxu0 0
      %3672 = vmatpush1.bf16.msra.mxu0 0
      %3673 = vmatprep.subr.bf16.mxu0 0
      %3674 = vmatpush1.bf16.msra.mxu0 0
      %3675 = vmatprep.subr.bf16.mxu0 0
      %3676 = vmatpush1.bf16.msra.mxu0 0
      %3677 = vmatprep.subr.bf16.mxu0 0
      %3678 = vmatpush1.bf16.msra.mxu0 0
      %3679 = vmatprep.mubr.bf16.mxu0 0
      %3680 = vmatmul.mubr.bf16.gmra.mrb[0].mxu0 %v3587
      %v3681 = vpop.f32.mrb[0].mxu0
      %v3682 = vadd.f32 0.0, %v3681
      %v3683 = vpop.f32.mrb[0].mxu0
      %v3684 = vpop.f32.mrb[0].mxu0
      %v3685 = vadd.f32 0.0, %v3684
      %v3686 = vpop.f32.mrb[0].mxu0
      %3687 = vmatprep.mubr.bf16.mxu0 0
      %3688 = vmatmul.mubr.bf16.gmra.mrb[0].mxu0 %v3588
      %v3689 = vpop.f32.mrb[0].mxu0
      %v3690 = vadd.f32 0.0, %v3689
      %v3691 = vpop.f32.mrb[0].mxu0
      %v3692 = vpop.f32.mrb[0].mxu0
      %v3693 = vadd.f32 0.0, %v3692
      %v3694 = vpop.f32.mrb[0].mxu0
      %3695 = vmatprep.mubr.bf16.mxu0 0
      %3696 = vmatmul.mubr.bf16.gmra.mrb[0].mxu0 %v3589
      %v3697 = vpop.f32.mrb[0].mxu0
      %v3698 = vadd.f32 0.0, %v3697
      %v3699 = vpop.f32.mrb[0].mxu0
      %v3700 = vpop.f32.mrb[0].mxu0
      %v3701 = vadd.f32 0.0, %v3700
      %v3702 = vpop.f32.mrb[0].mxu0
      %3703 = vmatprep.mubr.bf16.mxu0 0
      %3704 = vmatmul.mubr.bf16.gmra.mrb[0].mxu0 %v3590
      %v3705 = vpop.f32.mrb[0].mxu0
      %v3706 = vadd.f32 0.0, %v3705
      %v3707 = vpop.f32.mrb[0].mxu0
      %v3708 = vpop.f32.mrb[0].mxu0
      %v3709 = vadd.f32 0.0, %v3708
      %v3710 = vpop.f32.mrb[0].mxu0
      %3711 = vmatprep.mubr.bf16.mxu0 0
      %3712 = vmatmul.mubr.bf16.gmra.mrb[0].mxu0 %v3591
      %v3713 = vpop.f32.mrb[0].mxu0
      %v3714 = vadd.f32 0.0, %v3713
      %v3715 = vpop.f32.mrb[0].mxu0
      %v3716 = vpop.f32.mrb[0].mxu0
      %v3717 = vadd.f32 0.0, %v3716
      %v3718 = vpop.f32.mrb[0].mxu0
      %3719 = vmatprep.mubr.bf16.mxu0 0
      %3720 = vmatmul.mubr.bf16.gmra.mrb[0].mxu0 %v3592
      %v3721 = vpop.f32.mrb[0].mxu0
      %v3722 = vadd.f32 0.0, %v3721
      %v3723 = vpop.f32.mrb[0].mxu0
      %v3724 = vpop.f32.mrb[0].mxu0
      %v3725 = vadd.f32 0.0, %v3724
      %v3726 = vpop.f32.mrb[0].mxu0
      %3727 = vdwg.mxu0
      %v3744 = vunpack.c.l.b16 %v3462
      %v3745 = vunpack.c.l.b16 %v3463
      %v3746 = vunpack.c.l.b16 %v3464
      %v3747 = vunpack.c.l.b16 %v3465
      %v3748 = vunpack.c.l.b16 %v3466
      %v3749 = vunpack.c.l.b16 %v3467
      %v3750 = vunpack.c.l.b16 %v3468
      %v3751 = vunpack.c.l.b16 %v3469
      %v3752 = vunpack.c.l.b16 %v3470
      %v3753 = vunpack.c.l.b16 %v3471
      %v3754 = vunpack.c.l.b16 %v3472
      %v3755 = vunpack.c.l.b16 %v3473
      %v3756 = vunpack.c.l.b16 %v3474
      %v3757 = vunpack.c.l.b16 %v3475
      %v3758 = vunpack.c.l.b16 %v3476
      %v3759 = vunpack.c.l.b16 %v3477
      %v3760 = vpack.c.b16 %v3745, %v3744
      %v3761 = vpack.c.b16 %v3747, %v3746
      %v3762 = vpack.c.b16 %v3749, %v3748
      %v3763 = vpack.c.b16 %v3751, %v3750
      %v3764 = vpack.c.b16 %v3753, %v3752
      %v3765 = vpack.c.b16 %v3755, %v3754
      %v3766 = vpack.c.b16 %v3757, %v3756
      %v3767 = vpack.c.b16 %v3759, %v3758
      %3776 = vmatprep.subr.bf16.mxu0 0
      %3777 = vmatpush1.bf16.msra.mxu0 %v3760
      %3778 = vmatprep.subr.bf16.mxu0 0
      %3779 = vmatpush1.bf16.msra.mxu0 %v3761
      %3780 = vmatprep.subr.bf16.mxu0 0
      %3781 = vmatpush1.bf16.msra.mxu0 %v3762
      %3782 = vmatprep.subr.bf16.mxu0 0
      %3783 = vmatpush1.bf16.msra.mxu0 %v3763
      %3784 = vmatprep.subr.bf16.mxu0 0
      %3785 = vmatpush1.bf16.msra.mxu0 %v3764
      %3786 = vmatprep.subr.bf16.mxu0 0
      %3787 = vmatpush1.bf16.msra.mxu0 %v3765
      %3788 = vmatprep.subr.bf16.mxu0 0
      %3789 = vmatpush1.bf16.msra.mxu0 %v3766
      %3790 = vmatprep.subr.bf16.mxu0 0
      %3791 = vmatpush1.bf16.msra.mxu0 %v3767
      %3792 = vmatprep.subr.bf16.mxu0 0
      %3793 = vmatpush1.bf16.msra.mxu0 0
      %3794 = vmatprep.subr.bf16.mxu0 0
      %3795 = vmatpush1.bf16.msra.mxu0 0
      %3796 = vmatprep.subr.bf16.mxu0 0
      %3797 = vmatpush1.bf16.msra.mxu0 0
      %3798 = vmatprep.subr.bf16.mxu0 0
      %3799 = vmatpush1.bf16.msra.mxu0 0
      %3800 = vmatprep.subr.bf16.mxu0 0
      %3801 = vmatpush1.bf16.msra.mxu0 0
      %3802 = vmatprep.subr.bf16.mxu0 0
      %3803 = vmatpush1.bf16.msra.mxu0 0
      %3804 = vmatprep.subr.bf16.mxu0 0
      %3805 = vmatpush1.bf16.msra.mxu0 0
      %3806 = vmatprep.subr.bf16.mxu0 0
      %3807 = vmatpush1.bf16.msra.mxu0 0
      %3808 = vmatprep.mubr.bf16.mxu0 0
      %3809 = vmatmul.mubr.bf16.gmra.mrb[0].mxu0 %v1229
      %v3810 = vpop.f32.mrb[0].mxu0
      %v3811 = vadd.f32 %v3682, %v3810
      %v3812 = vpop.f32.mrb[0].mxu0
      %v3813 = vpop.f32.mrb[0].mxu0
      %v3814 = vadd.f32 %v3685, %v3813
      %v3815 = vpop.f32.mrb[0].mxu0
      %3816 = vmatprep.mubr.bf16.mxu0 0
      %3817 = vmatmul.mubr.bf16.gmra.mrb[0].mxu0 %v1230
      %v3818 = vpop.f32.mrb[0].mxu0
      %v3819 = vadd.f32 %v3690, %v3818
      %v3820 = vpop.f32.mrb[0].mxu0
      %v3821 = vpop.f32.mrb[0].mxu0
      %v3822 = vadd.f32 %v3693, %v3821
      %v3823 = vpop.f32.mrb[0].mxu0
      %3824 = vmatprep.mubr.bf16.mxu0 0
      %3825 = vmatmul.mubr.bf16.gmra.mrb[0].mxu0 %v1231
      %v3826 = vpop.f32.mrb[0].mxu0
      %v3827 = vadd.f32 %v3698, %v3826
      %v3828 = vpop.f32.mrb[0].mxu0
      %v3829 = vpop.f32.mrb[0].mxu0
      %v3830 = vadd.f32 %v3701, %v3829
      %v3831 = vpop.f32.mrb[0].mxu0
      %3832 = vmatprep.mubr.bf16.mxu0 0
      %3833 = vmatmul.mubr.bf16.gmra.mrb[0].mxu0 %v1232
      %v3834 = vpop.f32.mrb[0].mxu0
      %v3835 = vadd.f32 %v3706, %v3834
      %v3836 = vpop.f32.mrb[0].mxu0
      %v3837 = vpop.f32.mrb[0].mxu0
      %v3838 = vadd.f32 %v3709, %v3837
      %v3839 = vpop.f32.mrb[0].mxu0
      %3840 = vmatprep.mubr.bf16.mxu0 0
      %3841 = vmatmul.mubr.bf16.gmra.mrb[0].mxu0 %v1233
      %v3842 = vpop.f32.mrb[0].mxu0
      %v3843 = vadd.f32 %v3714, %v3842
      %v3844 = vpop.f32.mrb[0].mxu0
      %v3845 = vpop.f32.mrb[0].mxu0
      %v3846 = vadd.f32 %v3717, %v3845
      %v3847 = vpop.f32.mrb[0].mxu0
      %3848 = vmatprep.mubr.bf16.mxu0 0
      %3849 = vmatmul.mubr.bf16.gmra.mrb[0].mxu0 %v1234
      %v3850 = vpop.f32.mrb[0].mxu0
      %v3851 = vadd.f32 %v3722, %v3850
      %v3852 = vpop.f32.mrb[0].mxu0
      %v3853 = vpop.f32.mrb[0].mxu0
      %v3854 = vadd.f32 %v3725, %v3853
      %v3855 = vpop.f32.mrb[0].mxu0
      %3856 = vdwg.mxu0
      %v3857 = vld [vmem:[%s934 + $0x8] sm:$0xe]
      %v3858 = vld [vmem:[%s934 + $0xc] sm:$0xf]
      %v3859 = vld [vmem:[%s934 + $0x10] sm:$0x1]
      %v3860 = vld [vmem:[%s934 + $0x24] sm:$0xe]
      %v3861 = vld [vmem:[%s934 + $0x28] sm:$0xf]
      %v3862 = vld [vmem:[%s934 + $0x2c] sm:$0x1]
      %v3863 = vld [vmem:[%s934 + $0x40] sm:$0xe]
      %v3864 = vld [vmem:[%s934 + $0x44] sm:$0xf]
      %v3865 = vld [vmem:[%s934 + $0x48] sm:$0x1]
      %v3866 = vld [vmem:[%s934 + $0x5c] sm:$0xe]
      %v3867 = vld [vmem:[%s934 + $0x60] sm:$0xf]
      %v3868 = vld [vmem:[%s934 + $0x64] sm:$0x1]
      %v3869 = vld [vmem:[%s934 + $0x78] sm:$0xe]
      %v3870 = vld [vmem:[%s934 + $0x7c] sm:$0xf]
      %v3871 = vld [vmem:[%s934 + $0x80] sm:$0x1]
      %v3872 = vld [vmem:[%s934 + $0x94] sm:$0xe]
      %v3873 = vld [vmem:[%s934 + $0x98] sm:$0xf]
      %v3874 = vld [vmem:[%s934 + $0x9c] sm:$0x1]
      %v3893 = vrot.slane %v3857, 5
      %v3894 = vrot.slane %v3893, 4
      %v3895 = vrot.slane %v3858, 5
      %v3896 = vsel %vm1146, %v3894, %v3895
      %v3897 = vrot.slane %v3895, 4
      %v3898 = vrot.slane %v3859, 5
      %v3899 = vsel %vm1146, %v3897, %v3898
      %v3900 = vrot.slane %v3860, 5
      %v3901 = vrot.slane %v3900, 4
      %v3902 = vrot.slane %v3861, 5
      %v3903 = vsel %vm1146, %v3901, %v3902
      %v3904 = vrot.slane %v3902, 4
      %v3905 = vrot.slane %v3862, 5
      %v3906 = vsel %vm1146, %v3904, %v3905
      %v3907 = vrot.slane %v3863, 5
      %v3908 = vrot.slane %v3907, 4
      %v3909 = vrot.slane %v3864, 5
      %v3910 = vsel %vm1146, %v3908, %v3909
      %v3911 = vrot.slane %v3909, 4
      %v3912 = vrot.slane %v3865, 5
      %v3913 = vsel %vm1146, %v3911, %v3912
      %v3914 = vrot.slane %v3866, 5
      %v3915 = vrot.slane %v3914, 4
      %v3916 = vrot.slane %v3867, 5
      %v3917 = vsel %vm1146, %v3915, %v3916
      %v3918 = vrot.slane %v3916, 4
      %v3919 = vrot.slane %v3868, 5
      %v3920 = vsel %vm1146, %v3918, %v3919
      %v3921 = vrot.slane %v3869, 5
      %v3922 = vrot.slane %v3921, 4
      %v3923 = vrot.slane %v3870, 5
      %v3924 = vsel %vm1146, %v3922, %v3923
      %v3925 = vrot.slane %v3923, 4
      %v3926 = vrot.slane %v3871, 5
      %v3927 = vsel %vm1146, %v3925, %v3926
      %v3928 = vrot.slane %v3872, 5
      %v3929 = vrot.slane %v3928, 4
      %v3930 = vrot.slane %v3873, 5
      %v3931 = vsel %vm1146, %v3929, %v3930
      %v3932 = vrot.slane %v3930, 4
      %v3933 = vrot.slane %v3874, 5
      %v3934 = vsel %vm1146, %v3932, %v3933
      %s3935 = scalar_lea.vmem %s1033, 64
      %v3936 = vld [vmem:[%s3935] sm:$0xf]
      %v3937 = vld [vmem:[%s3935 + $0x4] sm:$0xf]
      %v3938 = vld [vmem:[%s3935 + $0x8] sm:$0xf]
      %v3939 = vld [vmem:[%s3935 + $0xc] sm:$0xf]
      %v3940 = vld [vmem:[%s3935 + $0x10] sm:$0xf]
      %v3941 = vld [vmem:[%s3935 + $0x14] sm:$0xf]
      %v3942 = vld [vmem:[%s3935 + $0x18] sm:$0xf]
      %v3943 = vld [vmem:[%s3935 + $0x1c] sm:$0xf]
      %v3944 = vld [vmem:[%s3935 + $0x20] sm:$0xf]
      %v3945 = vld [vmem:[%s3935 + $0x24] sm:$0xf]
      %v3946 = vld [vmem:[%s3935 + $0x28] sm:$0xf]
      %v3947 = vld [vmem:[%s3935 + $0x2c] sm:$0xf]
      %v3948 = vld [vmem:[%s3935 + $0x30] sm:$0xf]
      %v3949 = vld [vmem:[%s3935 + $0x34] sm:$0xf]
      %v3950 = vld [vmem:[%s3935 + $0x38] sm:$0xf]
      %v3951 = vld [vmem:[%s3935 + $0x3c] sm:$0xf]
      %v3952 = vunpack.c.l.b16 %v3896
      %v3953 = vunpack.c.l.b16 %v3899
      %v3954 = vunpack.c.l.b16 %v3903
      %v3955 = vunpack.c.l.b16 %v3906
      %v3956 = vunpack.c.l.b16 %v3910
      %v3957 = vunpack.c.l.b16 %v3913
      %v3958 = vunpack.c.l.b16 %v3917
      %v3959 = vunpack.c.l.b16 %v3920
      %v3960 = vunpack.c.l.b16 %v3924
      %v3961 = vunpack.c.l.b16 %v3927
      %v3962 = vunpack.c.l.b16 %v3931
      %v3963 = vunpack.c.l.b16 %v3934
      %v3964 = vpack.c.b16 %v3953, %v3952
      %v3965 = vpack.c.b16 %v3955, %v3954
      %v3966 = vpack.c.b16 %v3957, %v3956
      %v3967 = vpack.c.b16 %v3959, %v3958
      %v3968 = vpack.c.b16 %v3961, %v3960
      %v3969 = vpack.c.b16 %v3963, %v3962
      %v3992 = vunpack.c.l.b16 %v3936
      %v3993 = vunpack.c.l.b16 %v3937
      %v3994 = vunpack.c.l.b16 %v3938
      %v3995 = vunpack.c.l.b16 %v3939
      %v3996 = vunpack.c.l.b16 %v3940
      %v3997 = vunpack.c.l.b16 %v3941
      %v3998 = vunpack.c.l.b16 %v3942
      %v3999 = vunpack.c.l.b16 %v3943
      %v4000 = vunpack.c.l.b16 %v3944
      %v4001 = vunpack.c.l.b16 %v3945
      %v4002 = vunpack.c.l.b16 %v3946
      %v4003 = vunpack.c.l.b16 %v3947
      %v4004 = vunpack.c.l.b16 %v3948
      %v4005 = vunpack.c.l.b16 %v3949
      %v4006 = vunpack.c.l.b16 %v3950
      %v4007 = vunpack.c.l.b16 %v3951
      %v4008 = vpack.c.b16 %v3993, %v3992
      %v4009 = vpack.c.b16 %v3995, %v3994
      %v4010 = vpack.c.b16 %v3997, %v3996
      %v4011 = vpack.c.b16 %v3999, %v3998
      %v4012 = vpack.c.b16 %v4001, %v4000
      %v4013 = vpack.c.b16 %v4003, %v4002
      %v4014 = vpack.c.b16 %v4005, %v4004
      %v4015 = vpack.c.b16 %v4007, %v4006
      %4024 = vmatprep.subr.bf16.mxu0 0
      %4025 = vmatpush1.bf16.msra.mxu0 %v4008
      %4026 = vmatprep.subr.bf16.mxu0 0
      %4027 = vmatpush1.bf16.msra.mxu0 %v4009
      %4028 = vmatprep.subr.bf16.mxu0 0
      %4029 = vmatpush1.bf16.msra.mxu0 %v4010
      %4030 = vmatprep.subr.bf16.mxu0 0
      %4031 = vmatpush1.bf16.msra.mxu0 %v4011
      %4032 = vmatprep.subr.bf16.mxu0 0
      %4033 = vmatpush1.bf16.msra.mxu0 %v4012
      %4034 = vmatprep.subr.bf16.mxu0 0
      %4035 = vmatpush1.bf16.msra.mxu0 %v4013
      %4036 = vmatprep.subr.bf16.mxu0 0
      %4037 = vmatpush1.bf16.msra.mxu0 %v4014
      %4038 = vmatprep.subr.bf16.mxu0 0
      %4039 = vmatpush1.bf16.msra.mxu0 %v4015
      %4040 = vmatprep.subr.bf16.mxu0 0
      %4041 = vmatpush1.bf16.msra.mxu0 0
      %4042 = vmatprep.subr.bf16.mxu0 0
      %4043 = vmatpush1.bf16.msra.mxu0 0
      %4044 = vmatprep.subr.bf16.mxu0 0
      %4045 = vmatpush1.bf16.msra.mxu0 0
      %4046 = vmatprep.subr.bf16.mxu0 0
      %4047 = vmatpush1.bf16.msra.mxu0 0
      %4048 = vmatprep.subr.bf16.mxu0 0
      %4049 = vmatpush1.bf16.msra.mxu0 0
      %4050 = vmatprep.subr.bf16.mxu0 0
      %4051 = vmatpush1.bf16.msra.mxu0 0
      %4052 = vmatprep.subr.bf16.mxu0 0
      %4053 = vmatpush1.bf16.msra.mxu0 0
      %4054 = vmatprep.subr.bf16.mxu0 0
      %4055 = vmatpush1.bf16.msra.mxu0 0
      %4056 = vmatprep.mubr.bf16.mxu0 0
      %4057 = vmatmul.mubr.bf16.gmra.mrb[0].mxu0 %v3964
      %v4058 = vpop.f32.mrb[0].mxu0
      %v4059 = vadd.f32 0.0, %v4058
      %v4060 = vpop.f32.mrb[0].mxu0
      %v4061 = vpop.f32.mrb[0].mxu0
      %v4062 = vadd.f32 0.0, %v4061
      %v4063 = vpop.f32.mrb[0].mxu0
      %4064 = vmatprep.mubr.bf16.mxu0 0
      %4065 = vmatmul.mubr.bf16.gmra.mrb[0].mxu0 %v3965
      %v4066 = vpop.f32.mrb[0].mxu0
      %v4067 = vadd.f32 0.0, %v4066
      %v4068 = vpop.f32.mrb[0].mxu0
      %v4069 = vpop.f32.mrb[0].mxu0
      %v4070 = vadd.f32 0.0, %v4069
      %v4071 = vpop.f32.mrb[0].mxu0
      %4072 = vmatprep.mubr.bf16.mxu0 0
      %4073 = vmatmul.mubr.bf16.gmra.mrb[0].mxu0 %v3966
      %v4074 = vpop.f32.mrb[0].mxu0
      %v4075 = vadd.f32 0.0, %v4074
      %v4076 = vpop.f32.mrb[0].mxu0
      %v4077 = vpop.f32.mrb[0].mxu0
      %v4078 = vadd.f32 0.0, %v4077
      %v4079 = vpop.f32.mrb[0].mxu0
      %4080 = vmatprep.mubr.bf16.mxu0 0
      %4081 = vmatmul.mubr.bf16.gmra.mrb[0].mxu0 %v3967
      %v4082 = vpop.f32.mrb[0].mxu0
      %v4083 = vadd.f32 0.0, %v4082
      %v4084 = vpop.f32.mrb[0].mxu0
      %v4085 = vpop.f32.mrb[0].mxu0
      %v4086 = vadd.f32 0.0, %v4085
      %v4087 = vpop.f32.mrb[0].mxu0
      %4088 = vmatprep.mubr.bf16.mxu0 0
      %4089 = vmatmul.mubr.bf16.gmra.mrb[0].mxu0 %v3968
      %v4090 = vpop.f32.mrb[0].mxu0
      %v4091 = vadd.f32 0.0, %v4090
      %v4092 = vpop.f32.mrb[0].mxu0
      %v4093 = vpop.f32.mrb[0].mxu0
      %v4094 = vadd.f32 0.0, %v4093
      %v4095 = vpop.f32.mrb[0].mxu0
      %4096 = vmatprep.mubr.bf16.mxu0 0
      %4097 = vmatmul.mubr.bf16.gmra.mrb[0].mxu0 %v3969
      %v4098 = vpop.f32.mrb[0].mxu0
      %v4099 = vadd.f32 0.0, %v4098
      %v4100 = vpop.f32.mrb[0].mxu0
      %v4101 = vpop.f32.mrb[0].mxu0
      %v4102 = vadd.f32 0.0, %v4101
      %v4103 = vpop.f32.mrb[0].mxu0
      %4104 = vdwg.mxu0
      %v4105 = vadd.f32 %v3811, %v4059
      %v4106 = vadd.f32 %v3814, %v4062
      %v4107 = vadd.f32 %v3819, %v4067
      %v4108 = vadd.f32 %v3822, %v4070
      %v4109 = vadd.f32 %v3827, %v4075
      %v4110 = vadd.f32 %v3830, %v4078
      %v4111 = vadd.f32 %v3835, %v4083
      %v4112 = vadd.f32 %v3838, %v4086
      %v4113 = vadd.f32 %v3843, %v4091
      %v4114 = vadd.f32 %v3846, %v4094
      %v4115 = vadd.f32 %v3851, %v4099
      %v4116 = vadd.f32 %v3854, %v4102
      %v4117 = vld [vmem:[%s934 + $0xc] sm:$0x8]
      %v4118 = vld [vmem:[%s934 + $0x10] sm:$0xf]
      %v4119 = vld [vmem:[%s934 + $0x14] sm:$0x7]
      %v4120 = vld [vmem:[%s934 + $0x28] sm:$0x8]
      %v4121 = vld [vmem:[%s934 + $0x2c] sm:$0xf]
      %v4122 = vld [vmem:[%s934 + $0x30] sm:$0x7]
      %v4123 = vld [vmem:[%s934 + $0x44] sm:$0x8]
      %v4124 = vld [vmem:[%s934 + $0x48] sm:$0xf]
      %v4125 = vld [vmem:[%s934 + $0x4c] sm:$0x7]
      %v4126 = vld [vmem:[%s934 + $0x60] sm:$0x8]
      %v4127 = vld [vmem:[%s934 + $0x64] sm:$0xf]
      %v4128 = vld [vmem:[%s934 + $0x68] sm:$0x7]
      %v4129 = vld [vmem:[%s934 + $0x7c] sm:$0x8]
      %v4130 = vld [vmem:[%s934 + $0x80] sm:$0xf]
      %v4131 = vld [vmem:[%s934 + $0x84] sm:$0x7]
      %v4132 = vld [vmem:[%s934 + $0x98] sm:$0x8]
      %v4133 = vld [vmem:[%s934 + $0x9c] sm:$0xf]
      %v4134 = vld [vmem:[%s934 + $0xa0] sm:$0x7]
      %v4153 = vrot.slane %v4117, 7
      %v4154 = vrot.slane %v4153, 4
      %v4155 = vrot.slane %v4118, 7
      %v4156 = vsel %vm3516, %v4154, %v4155
      %v4157 = vrot.slane %v4155, 4
      %v4158 = vrot.slane %v4119, 7
      %v4159 = vsel %vm3516, %v4157, %v4158
      %v4160 = vrot.slane %v4120, 7
      %v4161 = vrot.slane %v4160, 4
      %v4162 = vrot.slane %v4121, 7
      %v4163 = vsel %vm3516, %v4161, %v4162
      %v4164 = vrot.slane %v4162, 4
      %v4165 = vrot.slane %v4122, 7
      %v4166 = vsel %vm3516, %v4164, %v4165
      %v4167 = vrot.slane %v4123, 7
      %v4168 = vrot.slane %v4167, 4
      %v4169 = vrot.slane %v4124, 7
      %v4170 = vsel %vm3516, %v4168, %v4169
      %v4171 = vrot.slane %v4169, 4
      %v4172 = vrot.slane %v4125, 7
      %v4173 = vsel %vm3516, %v4171, %v4172
      %v4174 = vrot.slane %v4126, 7
      %v4175 = vrot.slane %v4174, 4
      %v4176 = vrot.slane %v4127, 7
      %v4177 = vsel %vm3516, %v4175, %v4176
      %v4178 = vrot.slane %v4176, 4
      %v4179 = vrot.slane %v4128, 7
      %v4180 = vsel %vm3516, %v4178, %v4179
      %v4181 = vrot.slane %v4129, 7
      %v4182 = vrot.slane %v4181, 4
      %v4183 = vrot.slane %v4130, 7
      %v4184 = vsel %vm3516, %v4182, %v4183
      %v4185 = vrot.slane %v4183, 4
      %v4186 = vrot.slane %v4131, 7
      %v4187 = vsel %vm3516, %v4185, %v4186
      %v4188 = vrot.slane %v4132, 7
      %v4189 = vrot.slane %v4188, 4
      %v4190 = vrot.slane %v4133, 7
      %v4191 = vsel %vm3516, %v4189, %v4190
      %v4192 = vrot.slane %v4190, 4
      %v4193 = vrot.slane %v4134, 7
      %v4194 = vsel %vm3516, %v4192, %v4193
      %s4195 = scalar_lea.vmem %s1033, 128
      %v4196 = vld [vmem:[%s4195] sm:$0xf]
      %v4197 = vld [vmem:[%s4195 + $0x4] sm:$0xf]
      %v4198 = vld [vmem:[%s4195 + $0x8] sm:$0xf]
      %v4199 = vld [vmem:[%s4195 + $0xc] sm:$0xf]
      %v4200 = vld [vmem:[%s4195 + $0x10] sm:$0xf]
      %v4201 = vld [vmem:[%s4195 + $0x14] sm:$0xf]
      %v4202 = vld [vmem:[%s4195 + $0x18] sm:$0xf]
      %v4203 = vld [vmem:[%s4195 + $0x1c] sm:$0xf]
      %v4204 = vld [vmem:[%s4195 + $0x20] sm:$0xf]
      %v4205 = vld [vmem:[%s4195 + $0x24] sm:$0xf]
      %v4206 = vld [vmem:[%s4195 + $0x28] sm:$0xf]
      %v4207 = vld [vmem:[%s4195 + $0x2c] sm:$0xf]
      %v4208 = vld [vmem:[%s4195 + $0x30] sm:$0xf]
      %v4209 = vld [vmem:[%s4195 + $0x34] sm:$0xf]
      %v4210 = vld [vmem:[%s4195 + $0x38] sm:$0xf]
      %v4211 = vld [vmem:[%s4195 + $0x3c] sm:$0xf]
      %v4212 = vunpack.c.l.b16 %v4156
      %v4213 = vunpack.c.l.b16 %v4159
      %v4214 = vunpack.c.l.b16 %v4163
      %v4215 = vunpack.c.l.b16 %v4166
      %v4216 = vunpack.c.l.b16 %v4170
      %v4217 = vunpack.c.l.b16 %v4173
      %v4218 = vunpack.c.l.b16 %v4177
      %v4219 = vunpack.c.l.b16 %v4180
      %v4220 = vunpack.c.l.b16 %v4184
      %v4221 = vunpack.c.l.b16 %v4187
      %v4222 = vunpack.c.l.b16 %v4191
      %v4223 = vunpack.c.l.b16 %v4194
      %v4224 = vpack.c.b16 %v4213, %v4212
      %v4225 = vpack.c.b16 %v4215, %v4214
      %v4226 = vpack.c.b16 %v4217, %v4216
      %v4227 = vpack.c.b16 %v4219, %v4218
      %v4228 = vpack.c.b16 %v4221, %v4220
      %v4229 = vpack.c.b16 %v4223, %v4222
      %v4252 = vunpack.c.l.b16 %v4196
      %v4253 = vunpack.c.l.b16 %v4197
      %v4254 = vunpack.c.l.b16 %v4198
      %v4255 = vunpack.c.l.b16 %v4199
      %v4256 = vunpack.c.l.b16 %v4200
      %v4257 = vunpack.c.l.b16 %v4201
      %v4258 = vunpack.c.l.b16 %v4202
      %v4259 = vunpack.c.l.b16 %v4203
      %v4260 = vunpack.c.l.b16 %v4204
      %v4261 = vunpack.c.l.b16 %v4205
      %v4262 = vunpack.c.l.b16 %v4206
      %v4263 = vunpack.c.l.b16 %v4207
      %v4264 = vunpack.c.l.b16 %v4208
      %v4265 = vunpack.c.l.b16 %v4209
      %v4266 = vunpack.c.l.b16 %v4210
      %v4267 = vunpack.c.l.b16 %v4211
      %v4268 = vpack.c.b16 %v4253, %v4252
      %v4269 = vpack.c.b16 %v4255, %v4254
      %v4270 = vpack.c.b16 %v4257, %v4256
      %v4271 = vpack.c.b16 %v4259, %v4258
      %v4272 = vpack.c.b16 %v4261, %v4260
      %v4273 = vpack.c.b16 %v4263, %v4262
      %v4274 = vpack.c.b16 %v4265, %v4264
      %v4275 = vpack.c.b16 %v4267, %v4266
      %4284 = vmatprep.subr.bf16.mxu0 0
      %4285 = vmatpush1.bf16.msra.mxu0 %v4268
      %4286 = vmatprep.subr.bf16.mxu0 0
      %4287 = vmatpush1.bf16.msra.mxu0 %v4269
      %4288 = vmatprep.subr.bf16.mxu0 0
      %4289 = vmatpush1.bf16.msra.mxu0 %v4270
      %4290 = vmatprep.subr.bf16.mxu0 0
      %4291 = vmatpush1.bf16.msra.mxu0 %v4271
      %4292 = vmatprep.subr.bf16.mxu0 0
      %4293 = vmatpush1.bf16.msra.mxu0 %v4272
      %4294 = vmatprep.subr.bf16.mxu0 0
      %4295 = vmatpush1.bf16.msra.mxu0 %v4273
      %4296 = vmatprep.subr.bf16.mxu0 0
      %4297 = vmatpush1.bf16.msra.mxu0 %v4274
      %4298 = vmatprep.subr.bf16.mxu0 0
      %4299 = vmatpush1.bf16.msra.mxu0 %v4275
      %4300 = vmatprep.subr.bf16.mxu0 0
      %4301 = vmatpush1.bf16.msra.mxu0 0
      %4302 = vmatprep.subr.bf16.mxu0 0
      %4303 = vmatpush1.bf16.msra.mxu0 0
      %4304 = vmatprep.subr.bf16.mxu0 0
      %4305 = vmatpush1.bf16.msra.mxu0 0
      %4306 = vmatprep.subr.bf16.mxu0 0
      %4307 = vmatpush1.bf16.msra.mxu0 0
      %4308 = vmatprep.subr.bf16.mxu0 0
      %4309 = vmatpush1.bf16.msra.mxu0 0
      %4310 = vmatprep.subr.bf16.mxu0 0
      %4311 = vmatpush1.bf16.msra.mxu0 0
      %4312 = vmatprep.subr.bf16.mxu0 0
      %4313 = vmatpush1.bf16.msra.mxu0 0
      %4314 = vmatprep.subr.bf16.mxu0 0
      %4315 = vmatpush1.bf16.msra.mxu0 0
      %4316 = vmatprep.mubr.bf16.mxu0 0
      %4317 = vmatmul.mubr.bf16.gmra.mrb[0].mxu0 %v4224
      %v4318 = vpop.f32.mrb[0].mxu0
      %v4319 = vadd.f32 0.0, %v4318
      %v4320 = vpop.f32.mrb[0].mxu0
      %v4321 = vpop.f32.mrb[0].mxu0
      %v4322 = vadd.f32 0.0, %v4321
      %v4323 = vpop.f32.mrb[0].mxu0
      %4324 = vmatprep.mubr.bf16.mxu0 0
      %4325 = vmatmul.mubr.bf16.gmra.mrb[0].mxu0 %v4225
      %v4326 = vpop.f32.mrb[0].mxu0
      %v4327 = vadd.f32 0.0, %v4326
      %v4328 = vpop.f32.mrb[0].mxu0
      %v4329 = vpop.f32.mrb[0].mxu0
      %v4330 = vadd.f32 0.0, %v4329
      %v4331 = vpop.f32.mrb[0].mxu0
      %4332 = vmatprep.mubr.bf16.mxu0 0
      %4333 = vmatmul.mubr.bf16.gmra.mrb[0].mxu0 %v4226
      %v4334 = vpop.f32.mrb[0].mxu0
      %v4335 = vadd.f32 0.0, %v4334
      %v4336 = vpop.f32.mrb[0].mxu0
      %v4337 = vpop.f32.mrb[0].mxu0
      %v4338 = vadd.f32 0.0, %v4337
      %v4339 = vpop.f32.mrb[0].mxu0
      %4340 = vmatprep.mubr.bf16.mxu0 0
      %4341 = vmatmul.mubr.bf16.gmra.mrb[0].mxu0 %v4227
      %v4342 = vpop.f32.mrb[0].mxu0
      %v4343 = vadd.f32 0.0, %v4342
      %v4344 = vpop.f32.mrb[0].mxu0
      %v4345 = vpop.f32.mrb[0].mxu0
      %v4346 = vadd.f32 0.0, %v4345
      %v4347 = vpop.f32.mrb[0].mxu0
      %4348 = vmatprep.mubr.bf16.mxu0 0
      %4349 = vmatmul.mubr.bf16.gmra.mrb[0].mxu0 %v4228
      %v4350 = vpop.f32.mrb[0].mxu0
      %v4351 = vadd.f32 0.0, %v4350
      %v4352 = vpop.f32.mrb[0].mxu0
      %v4353 = vpop.f32.mrb[0].mxu0
      %v4354 = vadd.f32 0.0, %v4353
      %v4355 = vpop.f32.mrb[0].mxu0
      %4356 = vmatprep.mubr.bf16.mxu0 0
      %4357 = vmatmul.mubr.bf16.gmra.mrb[0].mxu0 %v4229
      %v4358 = vpop.f32.mrb[0].mxu0
      %v4359 = vadd.f32 0.0, %v4358
      %v4360 = vpop.f32.mrb[0].mxu0
      %v4361 = vpop.f32.mrb[0].mxu0
      %v4362 = vadd.f32 0.0, %v4361
      %v4363 = vpop.f32.mrb[0].mxu0
      %4364 = vdwg.mxu0
      %v4365 = vadd.f32 %v4105, %v4319
      %v4366 = vadd.f32 %v4106, %v4322
      %v4367 = vadd.f32 %v4107, %v4327
      %v4368 = vadd.f32 %v4108, %v4330
      %v4369 = vadd.f32 %v4109, %v4335
      %v4370 = vadd.f32 %v4110, %v4338
      %v4371 = vadd.f32 %v4111, %v4343
      %v4372 = vadd.f32 %v4112, %v4346
      %v4373 = vadd.f32 %v4113, %v4351
      %v4374 = vadd.f32 %v4114, %v4354
      %v4375 = vadd.f32 %v4115, %v4359
      %v4376 = vadd.f32 %v4116, %v4362
      %v4377 = vld [vmem:[%s966] sm:$0x8]
      %v4378 = vld [vmem:[%s966 + $0x4] sm:$0xf]
      %v4379 = vld [vmem:[%s966 + $0x8] sm:$0x7]
      %v4380 = vld [vmem:[%s966 + $0x1c] sm:$0x8]
      %v4381 = vld [vmem:[%s966 + $0x20] sm:$0xf]
      %v4382 = vld [vmem:[%s966 + $0x24] sm:$0x7]
      %v4383 = vld [vmem:[%s966 + $0x38] sm:$0x8]
      %v4384 = vld [vmem:[%s966 + $0x3c] sm:$0xf]
      %v4385 = vld [vmem:[%s966 + $0x40] sm:$0x7]
      %v4386 = vld [vmem:[%s966 + $0x54] sm:$0x8]
      %v4387 = vld [vmem:[%s966 + $0x58] sm:$0xf]
      %v4388 = vld [vmem:[%s966 + $0x5c] sm:$0x7]
      %v4389 = vld [vmem:[%s966 + $0x70] sm:$0x8]
      %v4390 = vld [vmem:[%s966 + $0x74] sm:$0xf]
      %v4391 = vld [vmem:[%s966 + $0x78] sm:$0x7]
      %v4392 = vld [vmem:[%s966 + $0x8c] sm:$0x8]
      %v4393 = vld [vmem:[%s966 + $0x90] sm:$0xf]
      %v4394 = vld [vmem:[%s966 + $0x94] sm:$0x7]
      %v4413 = vrot.slane %v4377, 7
      %v4414 = vrot.slane %v4413, 4
      %v4415 = vrot.slane %v4378, 7
      %v4416 = vsel %vm3516, %v4414, %v4415
      %v4417 = vrot.slane %v4415, 4
      %v4418 = vrot.slane %v4379, 7
      %v4419 = vsel %vm3516, %v4417, %v4418
      %v4420 = vrot.slane %v4380, 7
      %v4421 = vrot.slane %v4420, 4
      %v4422 = vrot.slane %v4381, 7
      %v4423 = vsel %vm3516, %v4421, %v4422
      %v4424 = vrot.slane %v4422, 4
      %v4425 = vrot.slane %v4382, 7
      %v4426 = vsel %vm3516, %v4424, %v4425
      %v4427 = vrot.slane %v4383, 7
      %v4428 = vrot.slane %v4427, 4
      %v4429 = vrot.slane %v4384, 7
      %v4430 = vsel %vm3516, %v4428, %v4429
      %v4431 = vrot.slane %v4429, 4
      %v4432 = vrot.slane %v4385, 7
      %v4433 = vsel %vm3516, %v4431, %v4432
      %v4434 = vrot.slane %v4386, 7
      %v4435 = vrot.slane %v4434, 4
      %v4436 = vrot.slane %v4387, 7
      %v4437 = vsel %vm3516, %v4435, %v4436
      %v4438 = vrot.slane %v4436, 4
      %v4439 = vrot.slane %v4388, 7
      %v4440 = vsel %vm3516, %v4438, %v4439
      %v4441 = vrot.slane %v4389, 7
      %v4442 = vrot.slane %v4441, 4
      %v4443 = vrot.slane %v4390, 7
      %v4444 = vsel %vm3516, %v4442, %v4443
      %v4445 = vrot.slane %v4443, 4
      %v4446 = vrot.slane %v4391, 7
      %v4447 = vsel %vm3516, %v4445, %v4446
      %v4448 = vrot.slane %v4392, 7
      %v4449 = vrot.slane %v4448, 4
      %v4450 = vrot.slane %v4393, 7
      %v4451 = vsel %vm3516, %v4449, %v4450
      %v4452 = vrot.slane %v4450, 4
      %v4453 = vrot.slane %v4394, 7
      %v4454 = vsel %vm3516, %v4452, %v4453
      %s4455 = scalar_lea.vmem %s1033, 192
      %v4456 = vld [vmem:[%s4455] sm:$0xf]
      %v4457 = vld [vmem:[%s4455 + $0x4] sm:$0xf]
      %v4458 = vld [vmem:[%s4455 + $0x8] sm:$0xf]
      %v4459 = vld [vmem:[%s4455 + $0xc] sm:$0xf]
      %v4460 = vld [vmem:[%s4455 + $0x10] sm:$0xf]
      %v4461 = vld [vmem:[%s4455 + $0x14] sm:$0xf]
      %v4462 = vld [vmem:[%s4455 + $0x18] sm:$0xf]
      %v4463 = vld [vmem:[%s4455 + $0x1c] sm:$0xf]
      %v4464 = vld [vmem:[%s4455 + $0x20] sm:$0xf]
      %v4465 = vld [vmem:[%s4455 + $0x24] sm:$0xf]
      %v4466 = vld [vmem:[%s4455 + $0x28] sm:$0xf]
      %v4467 = vld [vmem:[%s4455 + $0x2c] sm:$0xf]
      %v4468 = vld [vmem:[%s4455 + $0x30] sm:$0xf]
      %v4469 = vld [vmem:[%s4455 + $0x34] sm:$0xf]
      %v4470 = vld [vmem:[%s4455 + $0x38] sm:$0xf]
      %v4471 = vld [vmem:[%s4455 + $0x3c] sm:$0xf]
      %v4472 = vunpack.c.l.b16 %v4416
      %v4473 = vunpack.c.l.b16 %v4419
      %v4474 = vunpack.c.l.b16 %v4423
      %v4475 = vunpack.c.l.b16 %v4426
      %v4476 = vunpack.c.l.b16 %v4430
      %v4477 = vunpack.c.l.b16 %v4433
      %v4478 = vunpack.c.l.b16 %v4437
      %v4479 = vunpack.c.l.b16 %v4440
      %v4480 = vunpack.c.l.b16 %v4444
      %v4481 = vunpack.c.l.b16 %v4447
      %v4482 = vunpack.c.l.b16 %v4451
      %v4483 = vunpack.c.l.b16 %v4454
      %v4484 = vpack.c.b16 %v4473, %v4472
      %v4485 = vpack.c.b16 %v4475, %v4474
      %v4486 = vpack.c.b16 %v4477, %v4476
      %v4487 = vpack.c.b16 %v4479, %v4478
      %v4488 = vpack.c.b16 %v4481, %v4480
      %v4489 = vpack.c.b16 %v4483, %v4482
      %v4512 = vunpack.c.l.b16 %v4456
      %v4513 = vunpack.c.l.b16 %v4457
      %v4514 = vunpack.c.l.b16 %v4458
      %v4515 = vunpack.c.l.b16 %v4459
      %v4516 = vunpack.c.l.b16 %v4460
      %v4517 = vunpack.c.l.b16 %v4461
      %v4518 = vunpack.c.l.b16 %v4462
      %v4519 = vunpack.c.l.b16 %v4463
      %v4520 = vunpack.c.l.b16 %v4464
      %v4521 = vunpack.c.l.b16 %v4465
      %v4522 = vunpack.c.l.b16 %v4466
      %v4523 = vunpack.c.l.b16 %v4467
      %v4524 = vunpack.c.l.b16 %v4468
      %v4525 = vunpack.c.l.b16 %v4469
      %v4526 = vunpack.c.l.b16 %v4470
      %v4527 = vunpack.c.l.b16 %v4471
      %v4528 = vpack.c.b16 %v4513, %v4512
      %v4529 = vpack.c.b16 %v4515, %v4514
      %v4530 = vpack.c.b16 %v4517, %v4516
      %v4531 = vpack.c.b16 %v4519, %v4518
      %v4532 = vpack.c.b16 %v4521, %v4520
      %v4533 = vpack.c.b16 %v4523, %v4522
      %v4534 = vpack.c.b16 %v4525, %v4524
      %v4535 = vpack.c.b16 %v4527, %v4526
      %4544 = vmatprep.subr.bf16.mxu0 0
      %4545 = vmatpush1.bf16.msra.mxu0 %v4528
      %4546 = vmatprep.subr.bf16.mxu0 0
      %4547 = vmatpush1.bf16.msra.mxu0 %v4529
      %4548 = vmatprep.subr.bf16.mxu0 0
      %4549 = vmatpush1.bf16.msra.mxu0 %v4530
      %4550 = vmatprep.subr.bf16.mxu0 0
      %4551 = vmatpush1.bf16.msra.mxu0 %v4531
      %4552 = vmatprep.subr.bf16.mxu0 0
      %4553 = vmatpush1.bf16.msra.mxu0 %v4532
      %4554 = vmatprep.subr.bf16.mxu0 0
      %4555 = vmatpush1.bf16.msra.mxu0 %v4533
      %4556 = vmatprep.subr.bf16.mxu0 0
      %4557 = vmatpush1.bf16.msra.mxu0 %v4534
      %4558 = vmatprep.subr.bf16.mxu0 0
      %4559 = vmatpush1.bf16.msra.mxu0 %v4535
      %4560 = vmatprep.subr.bf16.mxu0 0
      %4561 = vmatpush1.bf16.msra.mxu0 0
      %4562 = vmatprep.subr.bf16.mxu0 0
      %4563 = vmatpush1.bf16.msra.mxu0 0
      %4564 = vmatprep.subr.bf16.mxu0 0
      %4565 = vmatpush1.bf16.msra.mxu0 0
      %4566 = vmatprep.subr.bf16.mxu0 0
      %4567 = vmatpush1.bf16.msra.mxu0 0
      %4568 = vmatprep.subr.bf16.mxu0 0
      %4569 = vmatpush1.bf16.msra.mxu0 0
      %4570 = vmatprep.subr.bf16.mxu0 0
      %4571 = vmatpush1.bf16.msra.mxu0 0
      %4572 = vmatprep.subr.bf16.mxu0 0
      %4573 = vmatpush1.bf16.msra.mxu0 0
      %4574 = vmatprep.subr.bf16.mxu0 0
      %4575 = vmatpush1.bf16.msra.mxu0 0
      %4576 = vmatprep.mubr.bf16.mxu0 0
      %4577 = vmatmul.mubr.bf16.gmra.mrb[0].mxu0 %v4484
      %v4578 = vpop.f32.mrb[0].mxu0
      %v4579 = vadd.f32 0.0, %v4578
      %v4580 = vpop.f32.mrb[0].mxu0
      %v4581 = vpop.f32.mrb[0].mxu0
      %v4582 = vadd.f32 0.0, %v4581
      %v4583 = vpop.f32.mrb[0].mxu0
      %4584 = vmatprep.mubr.bf16.mxu0 0
      %4585 = vmatmul.mubr.bf16.gmra.mrb[0].mxu0 %v4485
      %v4586 = vpop.f32.mrb[0].mxu0
      %v4587 = vadd.f32 0.0, %v4586
      %v4588 = vpop.f32.mrb[0].mxu0
      %v4589 = vpop.f32.mrb[0].mxu0
      %v4590 = vadd.f32 0.0, %v4589
      %v4591 = vpop.f32.mrb[0].mxu0
      %4592 = vmatprep.mubr.bf16.mxu0 0
      %4593 = vmatmul.mubr.bf16.gmra.mrb[0].mxu0 %v4486
      %v4594 = vpop.f32.mrb[0].mxu0
      %v4595 = vadd.f32 0.0, %v4594
      %v4596 = vpop.f32.mrb[0].mxu0
      %v4597 = vpop.f32.mrb[0].mxu0
      %v4598 = vadd.f32 0.0, %v4597
      %v4599 = vpop.f32.mrb[0].mxu0
      %4600 = vmatprep.mubr.bf16.mxu0 0
      %4601 = vmatmul.mubr.bf16.gmra.mrb[0].mxu0 %v4487
      %v4602 = vpop.f32.mrb[0].mxu0
      %v4603 = vadd.f32 0.0, %v4602
      %v4604 = vpop.f32.mrb[0].mxu0
      %v4605 = vpop.f32.mrb[0].mxu0
      %v4606 = vadd.f32 0.0, %v4605
      %v4607 = vpop.f32.mrb[0].mxu0
      %4608 = vmatprep.mubr.bf16.mxu0 0
      %4609 = vmatmul.mubr.bf16.gmra.mrb[0].mxu0 %v4488
      %v4610 = vpop.f32.mrb[0].mxu0
      %v4611 = vadd.f32 0.0, %v4610
      %v4612 = vpop.f32.mrb[0].mxu0
      %v4613 = vpop.f32.mrb[0].mxu0
      %v4614 = vadd.f32 0.0, %v4613
      %v4615 = vpop.f32.mrb[0].mxu0
      %4616 = vmatprep.mubr.bf16.mxu0 0
      %4617 = vmatmul.mubr.bf16.gmra.mrb[0].mxu0 %v4489
      %v4618 = vpop.f32.mrb[0].mxu0
      %v4619 = vadd.f32 0.0, %v4618
      %v4620 = vpop.f32.mrb[0].mxu0
      %v4621 = vpop.f32.mrb[0].mxu0
      %v4622 = vadd.f32 0.0, %v4621
      %v4623 = vpop.f32.mrb[0].mxu0
      %4624 = vdwg.mxu0
      %v4625 = vadd.f32 %v4365, %v4579
      %v4626 = vadd.f32 %v4366, %v4582
      %v4627 = vadd.f32 %v4367, %v4587
      %v4628 = vadd.f32 %v4368, %v4590
      %v4629 = vadd.f32 %v4369, %v4595
      %v4630 = vadd.f32 %v4370, %v4598
      %v4631 = vadd.f32 %v4371, %v4603
      %v4632 = vadd.f32 %v4372, %v4606
      %v4633 = vadd.f32 %v4373, %v4611
      %v4634 = vadd.f32 %v4374, %v4614
      %v4635 = vadd.f32 %v4375, %v4619
      %v4636 = vadd.f32 %v4376, %v4622
      %v4637 = vld [vmem:[%s966 + $0xc] sm:$0x8]
      %v4638 = vld [vmem:[%s966 + $0x10] sm:$0xf]
      %v4639 = vld [vmem:[%s966 + $0x14] sm:$0x7]
      %v4640 = vld [vmem:[%s966 + $0x28] sm:$0x8]
      %v4641 = vld [vmem:[%s966 + $0x2c] sm:$0xf]
      %v4642 = vld [vmem:[%s966 + $0x30] sm:$0x7]
      %v4643 = vld [vmem:[%s966 + $0x44] sm:$0x8]
      %v4644 = vld [vmem:[%s966 + $0x48] sm:$0xf]
      %v4645 = vld [vmem:[%s966 + $0x4c] sm:$0x7]
      %v4646 = vld [vmem:[%s966 + $0x60] sm:$0x8]
      %v4647 = vld [vmem:[%s966 + $0x64] sm:$0xf]
      %v4648 = vld [vmem:[%s966 + $0x68] sm:$0x7]
      %v4649 = vld [vmem:[%s966 + $0x7c] sm:$0x8]
      %v4650 = vld [vmem:[%s966 + $0x80] sm:$0xf]
      %v4651 = vld [vmem:[%s966 + $0x84] sm:$0x7]
      %v4652 = vld [vmem:[%s966 + $0x98] sm:$0x8]
      %v4653 = vld [vmem:[%s966 + $0x9c] sm:$0xf]
      %v4654 = vld [vmem:[%s966 + $0xa0] sm:$0x7]
      %v4673 = vrot.slane %v4637, 7
      %v4674 = vrot.slane %v4673, 4
      %v4675 = vrot.slane %v4638, 7
      %v4676 = vsel %vm3516, %v4674, %v4675
      %v4677 = vrot.slane %v4675, 4
      %v4678 = vrot.slane %v4639, 7
      %v4679 = vsel %vm3516, %v4677, %v4678
      %v4680 = vrot.slane %v4640, 7
      %v4681 = vrot.slane %v4680, 4
      %v4682 = vrot.slane %v4641, 7
      %v4683 = vsel %vm3516, %v4681, %v4682
      %v4684 = vrot.slane %v4682, 4
      %v4685 = vrot.slane %v4642, 7
      %v4686 = vsel %vm3516, %v4684, %v4685
      %v4687 = vrot.slane %v4643, 7
      %v4688 = vrot.slane %v4687, 4
      %v4689 = vrot.slane %v4644, 7
      %v4690 = vsel %vm3516, %v4688, %v4689
      %v4691 = vrot.slane %v4689, 4
      %v4692 = vrot.slane %v4645, 7
      %v4693 = vsel %vm3516, %v4691, %v4692
      %v4694 = vrot.slane %v4646, 7
      %v4695 = vrot.slane %v4694, 4
      %v4696 = vrot.slane %v4647, 7
      %v4697 = vsel %vm3516, %v4695, %v4696
      %v4698 = vrot.slane %v4696, 4
      %v4699 = vrot.slane %v4648, 7
      %v4700 = vsel %vm3516, %v4698, %v4699
      %v4701 = vrot.slane %v4649, 7
      %v4702 = vrot.slane %v4701, 4
      %v4703 = vrot.slane %v4650, 7
      %v4704 = vsel %vm3516, %v4702, %v4703
      %v4705 = vrot.slane %v4703, 4
      %v4706 = vrot.slane %v4651, 7
      %v4707 = vsel %vm3516, %v4705, %v4706
      %v4708 = vrot.slane %v4652, 7
      %v4709 = vrot.slane %v4708, 4
      %v4710 = vrot.slane %v4653, 7
      %v4711 = vsel %vm3516, %v4709, %v4710
      %v4712 = vrot.slane %v4710, 4
      %v4713 = vrot.slane %v4654, 7
      %v4714 = vsel %vm3516, %v4712, %v4713
      %s4715 = scalar_lea.vmem %s1033, 320
      %v4716 = vld [vmem:[%s4715] sm:$0xf]
      %v4717 = vld [vmem:[%s4715 + $0x4] sm:$0xf]
      %v4718 = vld [vmem:[%s4715 + $0x8] sm:$0xf]
      %v4719 = vld [vmem:[%s4715 + $0xc] sm:$0xf]
      %v4720 = vld [vmem:[%s4715 + $0x10] sm:$0xf]
      %v4721 = vld [vmem:[%s4715 + $0x14] sm:$0xf]
      %v4722 = vld [vmem:[%s4715 + $0x18] sm:$0xf]
      %v4723 = vld [vmem:[%s4715 + $0x1c] sm:$0xf]
      %v4724 = vld [vmem:[%s4715 + $0x20] sm:$0xf]
      %v4725 = vld [vmem:[%s4715 + $0x24] sm:$0xf]
      %v4726 = vld [vmem:[%s4715 + $0x28] sm:$0xf]
      %v4727 = vld [vmem:[%s4715 + $0x2c] sm:$0xf]
      %v4728 = vld [vmem:[%s4715 + $0x30] sm:$0xf]
      %v4729 = vld [vmem:[%s4715 + $0x34] sm:$0xf]
      %v4730 = vld [vmem:[%s4715 + $0x38] sm:$0xf]
      %v4731 = vld [vmem:[%s4715 + $0x3c] sm:$0xf]
      %v4732 = vunpack.c.l.b16 %v4676
      %v4733 = vunpack.c.l.b16 %v4679
      %v4734 = vunpack.c.l.b16 %v4683
      %v4735 = vunpack.c.l.b16 %v4686
      %v4736 = vunpack.c.l.b16 %v4690
      %v4737 = vunpack.c.l.b16 %v4693
      %v4738 = vunpack.c.l.b16 %v4697
      %v4739 = vunpack.c.l.b16 %v4700
      %v4740 = vunpack.c.l.b16 %v4704
      %v4741 = vunpack.c.l.b16 %v4707
      %v4742 = vunpack.c.l.b16 %v4711
      %v4743 = vunpack.c.l.b16 %v4714
      %v4744 = vpack.c.b16 %v4733, %v4732
      %v4745 = vpack.c.b16 %v4735, %v4734
      %v4746 = vpack.c.b16 %v4737, %v4736
      %v4747 = vpack.c.b16 %v4739, %v4738
      %v4748 = vpack.c.b16 %v4741, %v4740
      %v4749 = vpack.c.b16 %v4743, %v4742
      %v4772 = vunpack.c.l.b16 %v4716
      %v4773 = vunpack.c.l.b16 %v4717
      %v4774 = vunpack.c.l.b16 %v4718
      %v4775 = vunpack.c.l.b16 %v4719
      %v4776 = vunpack.c.l.b16 %v4720
      %v4777 = vunpack.c.l.b16 %v4721
      %v4778 = vunpack.c.l.b16 %v4722
      %v4779 = vunpack.c.l.b16 %v4723
      %v4780 = vunpack.c.l.b16 %v4724
      %v4781 = vunpack.c.l.b16 %v4725
      %v4782 = vunpack.c.l.b16 %v4726
      %v4783 = vunpack.c.l.b16 %v4727
      %v4784 = vunpack.c.l.b16 %v4728
      %v4785 = vunpack.c.l.b16 %v4729
      %v4786 = vunpack.c.l.b16 %v4730
      %v4787 = vunpack.c.l.b16 %v4731
      %v4788 = vpack.c.b16 %v4773, %v4772
      %v4789 = vpack.c.b16 %v4775, %v4774
      %v4790 = vpack.c.b16 %v4777, %v4776
      %v4791 = vpack.c.b16 %v4779, %v4778
      %v4792 = vpack.c.b16 %v4781, %v4780
      %v4793 = vpack.c.b16 %v4783, %v4782
      %v4794 = vpack.c.b16 %v4785, %v4784
      %v4795 = vpack.c.b16 %v4787, %v4786
      %4804 = vmatprep.subr.bf16.mxu0 0
      %4805 = vmatpush1.bf16.msra.mxu0 %v4788
      %4806 = vmatprep.subr.bf16.mxu0 0
      %4807 = vmatpush1.bf16.msra.mxu0 %v4789
      %4808 = vmatprep.subr.bf16.mxu0 0
      %4809 = vmatpush1.bf16.msra.mxu0 %v4790
      %4810 = vmatprep.subr.bf16.mxu0 0
      %4811 = vmatpush1.bf16.msra.mxu0 %v4791
      %4812 = vmatprep.subr.bf16.mxu0 0
      %4813 = vmatpush1.bf16.msra.mxu0 %v4792
      %4814 = vmatprep.subr.bf16.mxu0 0
      %4815 = vmatpush1.bf16.msra.mxu0 %v4793
      %4816 = vmatprep.subr.bf16.mxu0 0
      %4817 = vmatpush1.bf16.msra.mxu0 %v4794
      %4818 = vmatprep.subr.bf16.mxu0 0
      %4819 = vmatpush1.bf16.msra.mxu0 %v4795
      %4820 = vmatprep.subr.bf16.mxu0 0
      %4821 = vmatpush1.bf16.msra.mxu0 0
      %4822 = vmatprep.subr.bf16.mxu0 0
      %4823 = vmatpush1.bf16.msra.mxu0 0
      %4824 = vmatprep.subr.bf16.mxu0 0
      %4825 = vmatpush1.bf16.msra.mxu0 0
      %4826 = vmatprep.subr.bf16.mxu0 0
      %4827 = vmatpush1.bf16.msra.mxu0 0
      %4828 = vmatprep.subr.bf16.mxu0 0
      %4829 = vmatpush1.bf16.msra.mxu0 0
      %4830 = vmatprep.subr.bf16.mxu0 0
      %4831 = vmatpush1.bf16.msra.mxu0 0
      %4832 = vmatprep.subr.bf16.mxu0 0
      %4833 = vmatpush1.bf16.msra.mxu0 0
      %4834 = vmatprep.subr.bf16.mxu0 0
      %4835 = vmatpush1.bf16.msra.mxu0 0
      %4836 = vmatprep.mubr.bf16.mxu0 0
      %4837 = vmatmul.mubr.bf16.gmra.mrb[0].mxu0 %v4744
      %v4838 = vpop.f32.mrb[0].mxu0
      %v4839 = vadd.f32 0.0, %v4838
      %v4840 = vpop.f32.mrb[0].mxu0
      %v4841 = vpop.f32.mrb[0].mxu0
      %v4842 = vadd.f32 0.0, %v4841
      %v4843 = vpop.f32.mrb[0].mxu0
      %4844 = vmatprep.mubr.bf16.mxu0 0
      %4845 = vmatmul.mubr.bf16.gmra.mrb[0].mxu0 %v4745
      %v4846 = vpop.f32.mrb[0].mxu0
      %v4847 = vadd.f32 0.0, %v4846
      %v4848 = vpop.f32.mrb[0].mxu0
      %v4849 = vpop.f32.mrb[0].mxu0
      %v4850 = vadd.f32 0.0, %v4849
      %v4851 = vpop.f32.mrb[0].mxu0
      %4852 = vmatprep.mubr.bf16.mxu0 0
      %4853 = vmatmul.mubr.bf16.gmra.mrb[0].mxu0 %v4746
      %v4854 = vpop.f32.mrb[0].mxu0
      %v4855 = vadd.f32 0.0, %v4854
      %v4856 = vpop.f32.mrb[0].mxu0
      %v4857 = vpop.f32.mrb[0].mxu0
      %v4858 = vadd.f32 0.0, %v4857
      %v4859 = vpop.f32.mrb[0].mxu0
      %4860 = vmatprep.mubr.bf16.mxu0 0
      %4861 = vmatmul.mubr.bf16.gmra.mrb[0].mxu0 %v4747
      %v4862 = vpop.f32.mrb[0].mxu0
      %v4863 = vadd.f32 0.0, %v4862
      %v4864 = vpop.f32.mrb[0].mxu0
      %v4865 = vpop.f32.mrb[0].mxu0
      %v4866 = vadd.f32 0.0, %v4865
      %v4867 = vpop.f32.mrb[0].mxu0
      %4868 = vmatprep.mubr.bf16.mxu0 0
      %4869 = vmatmul.mubr.bf16.gmra.mrb[0].mxu0 %v4748
      %v4870 = vpop.f32.mrb[0].mxu0
      %v4871 = vadd.f32 0.0, %v4870
      %v4872 = vpop.f32.mrb[0].mxu0
      %v4873 = vpop.f32.mrb[0].mxu0
      %v4874 = vadd.f32 0.0, %v4873
      %v4875 = vpop.f32.mrb[0].mxu0
      %4876 = vmatprep.mubr.bf16.mxu0 0
      %4877 = vmatmul.mubr.bf16.gmra.mrb[0].mxu0 %v4749
      %v4878 = vpop.f32.mrb[0].mxu0
      %v4879 = vadd.f32 0.0, %v4878
      %v4880 = vpop.f32.mrb[0].mxu0
      %v4881 = vpop.f32.mrb[0].mxu0
      %v4882 = vadd.f32 0.0, %v4881
      %v4883 = vpop.f32.mrb[0].mxu0
      %4884 = vdwg.mxu0
      %v4885 = vadd.f32 %v4625, %v4839
      %v4886 = vadd.f32 %v4626, %v4842
      %v4887 = vadd.f32 %v4627, %v4847
      %v4888 = vadd.f32 %v4628, %v4850
      %v4889 = vadd.f32 %v4629, %v4855
      %v4890 = vadd.f32 %v4630, %v4858
      %v4891 = vadd.f32 %v4631, %v4863
      %v4892 = vadd.f32 %v4632, %v4866
      %v4893 = vadd.f32 %v4633, %v4871
      %v4894 = vadd.f32 %v4634, %v4874
      %v4895 = vadd.f32 %v4635, %v4879
      %v4896 = vadd.f32 %v4636, %v4882
      %v4897 = vld [vmem:[%s998] sm:$0x8]
      %v4898 = vld [vmem:[%s998 + $0x4] sm:$0xf]
      %v4899 = vld [vmem:[%s998 + $0x8] sm:$0x7]
      %v4900 = vld [vmem:[%s998 + $0x1c] sm:$0x8]
      %v4901 = vld [vmem:[%s998 + $0x20] sm:$0xf]
      %v4902 = vld [vmem:[%s998 + $0x24] sm:$0x7]
      %v4903 = vld [vmem:[%s998 + $0x38] sm:$0x8]
      %v4904 = vld [vmem:[%s998 + $0x3c] sm:$0xf]
      %v4905 = vld [vmem:[%s998 + $0x40] sm:$0x7]
      %v4906 = vld [vmem:[%s998 + $0x54] sm:$0x8]
      %v4907 = vld [vmem:[%s998 + $0x58] sm:$0xf]
      %v4908 = vld [vmem:[%s998 + $0x5c] sm:$0x7]
      %v4909 = vld [vmem:[%s998 + $0x70] sm:$0x8]
      %v4910 = vld [vmem:[%s998 + $0x74] sm:$0xf]
      %v4911 = vld [vmem:[%s998 + $0x78] sm:$0x7]
      %v4912 = vld [vmem:[%s998 + $0x8c] sm:$0x8]
      %v4913 = vld [vmem:[%s998 + $0x90] sm:$0xf]
      %v4914 = vld [vmem:[%s998 + $0x94] sm:$0x7]
      %v4933 = vrot.slane %v4897, 7
      %v4934 = vrot.slane %v4933, 4
      %v4935 = vrot.slane %v4898, 7
      %v4936 = vsel %vm3516, %v4934, %v4935
      %v4937 = vrot.slane %v4935, 4
      %v4938 = vrot.slane %v4899, 7
      %v4939 = vsel %vm3516, %v4937, %v4938
      %v4940 = vrot.slane %v4900, 7
      %v4941 = vrot.slane %v4940, 4
      %v4942 = vrot.slane %v4901, 7
      %v4943 = vsel %vm3516, %v4941, %v4942
      %v4944 = vrot.slane %v4942, 4
      %v4945 = vrot.slane %v4902, 7
      %v4946 = vsel %vm3516, %v4944, %v4945
      %v4947 = vrot.slane %v4903, 7
      %v4948 = vrot.slane %v4947, 4
      %v4949 = vrot.slane %v4904, 7
      %v4950 = vsel %vm3516, %v4948, %v4949
      %v4951 = vrot.slane %v4949, 4
      %v4952 = vrot.slane %v4905, 7
      %v4953 = vsel %vm3516, %v4951, %v4952
      %v4954 = vrot.slane %v4906, 7
      %v4955 = vrot.slane %v4954, 4
      %v4956 = vrot.slane %v4907, 7
      %v4957 = vsel %vm3516, %v4955, %v4956
      %v4958 = vrot.slane %v4956, 4
      %v4959 = vrot.slane %v4908, 7
      %v4960 = vsel %vm3516, %v4958, %v4959
      %v4961 = vrot.slane %v4909, 7
      %v4962 = vrot.slane %v4961, 4
      %v4963 = vrot.slane %v4910, 7
      %v4964 = vsel %vm3516, %v4962, %v4963
      %v4965 = vrot.slane %v4963, 4
      %v4966 = vrot.slane %v4911, 7
      %v4967 = vsel %vm3516, %v4965, %v4966
      %v4968 = vrot.slane %v4912, 7
      %v4969 = vrot.slane %v4968, 4
      %v4970 = vrot.slane %v4913, 7
      %v4971 = vsel %vm3516, %v4969, %v4970
      %v4972 = vrot.slane %v4970, 4
      %v4973 = vrot.slane %v4914, 7
      %v4974 = vsel %vm3516, %v4972, %v4973
      %s4975 = scalar_lea.vmem %s1033, 384
      %v4976 = vld [vmem:[%s4975] sm:$0xf]
      %v4977 = vld [vmem:[%s4975 + $0x4] sm:$0xf]
      %v4978 = vld [vmem:[%s4975 + $0x8] sm:$0xf]
      %v4979 = vld [vmem:[%s4975 + $0xc] sm:$0xf]
      %v4980 = vld [vmem:[%s4975 + $0x10] sm:$0xf]
      %v4981 = vld [vmem:[%s4975 + $0x14] sm:$0xf]
      %v4982 = vld [vmem:[%s4975 + $0x18] sm:$0xf]
      %v4983 = vld [vmem:[%s4975 + $0x1c] sm:$0xf]
      %v4984 = vld [vmem:[%s4975 + $0x20] sm:$0xf]
      %v4985 = vld [vmem:[%s4975 + $0x24] sm:$0xf]
      %v4986 = vld [vmem:[%s4975 + $0x28] sm:$0xf]
      %v4987 = vld [vmem:[%s4975 + $0x2c] sm:$0xf]
      %v4988 = vld [vmem:[%s4975 + $0x30] sm:$0xf]
      %v4989 = vld [vmem:[%s4975 + $0x34] sm:$0xf]
      %v4990 = vld [vmem:[%s4975 + $0x38] sm:$0xf]
      %v4991 = vld [vmem:[%s4975 + $0x3c] sm:$0xf]
      %v4992 = vunpack.c.l.b16 %v4936
      %v4993 = vunpack.c.l.b16 %v4939
      %v4994 = vunpack.c.l.b16 %v4943
      %v4995 = vunpack.c.l.b16 %v4946
      %v4996 = vunpack.c.l.b16 %v4950
      %v4997 = vunpack.c.l.b16 %v4953
      %v4998 = vunpack.c.l.b16 %v4957
      %v4999 = vunpack.c.l.b16 %v4960
      %v5000 = vunpack.c.l.b16 %v4964
      %v5001 = vunpack.c.l.b16 %v4967
      %v5002 = vunpack.c.l.b16 %v4971
      %v5003 = vunpack.c.l.b16 %v4974
      %v5004 = vpack.c.b16 %v4993, %v4992
      %v5005 = vpack.c.b16 %v4995, %v4994
      %v5006 = vpack.c.b16 %v4997, %v4996
      %v5007 = vpack.c.b16 %v4999, %v4998
      %v5008 = vpack.c.b16 %v5001, %v5000
      %v5009 = vpack.c.b16 %v5003, %v5002
      %v5032 = vunpack.c.l.b16 %v4976
      %v5033 = vunpack.c.l.b16 %v4977
      %v5034 = vunpack.c.l.b16 %v4978
      %v5035 = vunpack.c.l.b16 %v4979
      %v5036 = vunpack.c.l.b16 %v4980
      %v5037 = vunpack.c.l.b16 %v4981
      %v5038 = vunpack.c.l.b16 %v4982
      %v5039 = vunpack.c.l.b16 %v4983
      %v5040 = vunpack.c.l.b16 %v4984
      %v5041 = vunpack.c.l.b16 %v4985
      %v5042 = vunpack.c.l.b16 %v4986
      %v5043 = vunpack.c.l.b16 %v4987
      %v5044 = vunpack.c.l.b16 %v4988
      %v5045 = vunpack.c.l.b16 %v4989
      %v5046 = vunpack.c.l.b16 %v4990
      %v5047 = vunpack.c.l.b16 %v4991
      %v5048 = vpack.c.b16 %v5033, %v5032
      %v5049 = vpack.c.b16 %v5035, %v5034
      %v5050 = vpack.c.b16 %v5037, %v5036
      %v5051 = vpack.c.b16 %v5039, %v5038
      %v5052 = vpack.c.b16 %v5041, %v5040
      %v5053 = vpack.c.b16 %v5043, %v5042
      %v5054 = vpack.c.b16 %v5045, %v5044
      %v5055 = vpack.c.b16 %v5047, %v5046
      %5064 = vmatprep.subr.bf16.mxu0 0
      %5065 = vmatpush1.bf16.msra.mxu0 %v5048
      %5066 = vmatprep.subr.bf16.mxu0 0
      %5067 = vmatpush1.bf16.msra.mxu0 %v5049
      %5068 = vmatprep.subr.bf16.mxu0 0
      %5069 = vmatpush1.bf16.msra.mxu0 %v5050
      %5070 = vmatprep.subr.bf16.mxu0 0
      %5071 = vmatpush1.bf16.msra.mxu0 %v5051
      %5072 = vmatprep.subr.bf16.mxu0 0
      %5073 = vmatpush1.bf16.msra.mxu0 %v5052
      %5074 = vmatprep.subr.bf16.mxu0 0
      %5075 = vmatpush1.bf16.msra.mxu0 %v5053
      %5076 = vmatprep.subr.bf16.mxu0 0
      %5077 = vmatpush1.bf16.msra.mxu0 %v5054
      %5078 = vmatprep.subr.bf16.mxu0 0
      %5079 = vmatpush1.bf16.msra.mxu0 %v5055
      %5080 = vmatprep.subr.bf16.mxu0 0
      %5081 = vmatpush1.bf16.msra.mxu0 0
      %5082 = vmatprep.subr.bf16.mxu0 0
      %5083 = vmatpush1.bf16.msra.mxu0 0
      %5084 = vmatprep.subr.bf16.mxu0 0
      %5085 = vmatpush1.bf16.msra.mxu0 0
      %5086 = vmatprep.subr.bf16.mxu0 0
      %5087 = vmatpush1.bf16.msra.mxu0 0
      %5088 = vmatprep.subr.bf16.mxu0 0
      %5089 = vmatpush1.bf16.msra.mxu0 0
      %5090 = vmatprep.subr.bf16.mxu0 0
      %5091 = vmatpush1.bf16.msra.mxu0 0
      %5092 = vmatprep.subr.bf16.mxu0 0
      %5093 = vmatpush1.bf16.msra.mxu0 0
      %5094 = vmatprep.subr.bf16.mxu0 0
      %5095 = vmatpush1.bf16.msra.mxu0 0
      %5096 = vmatprep.mubr.bf16.mxu0 0
      %5097 = vmatmul.mubr.bf16.gmra.mrb[0].mxu0 %v5004
      %v5098 = vpop.f32.mrb[0].mxu0
      %v5099 = vadd.f32 0.0, %v5098
      %v5100 = vpop.f32.mrb[0].mxu0
      %v5101 = vpop.f32.mrb[0].mxu0
      %v5102 = vadd.f32 0.0, %v5101
      %v5103 = vpop.f32.mrb[0].mxu0
      %5104 = vmatprep.mubr.bf16.mxu0 0
      %5105 = vmatmul.mubr.bf16.gmra.mrb[0].mxu0 %v5005
      %v5106 = vpop.f32.mrb[0].mxu0
      %v5107 = vadd.f32 0.0, %v5106
      %v5108 = vpop.f32.mrb[0].mxu0
      %v5109 = vpop.f32.mrb[0].mxu0
      %v5110 = vadd.f32 0.0, %v5109
      %v5111 = vpop.f32.mrb[0].mxu0
      %5112 = vmatprep.mubr.bf16.mxu0 0
      %5113 = vmatmul.mubr.bf16.gmra.mrb[0].mxu0 %v5006
      %v5114 = vpop.f32.mrb[0].mxu0
      %v5115 = vadd.f32 0.0, %v5114
      %v5116 = vpop.f32.mrb[0].mxu0
      %v5117 = vpop.f32.mrb[0].mxu0
      %v5118 = vadd.f32 0.0, %v5117
      %v5119 = vpop.f32.mrb[0].mxu0
      %5120 = vmatprep.mubr.bf16.mxu0 0
      %5121 = vmatmul.mubr.bf16.gmra.mrb[0].mxu0 %v5007
      %v5122 = vpop.f32.mrb[0].mxu0
      %v5123 = vadd.f32 0.0, %v5122
      %v5124 = vpop.f32.mrb[0].mxu0
      %v5125 = vpop.f32.mrb[0].mxu0
      %v5126 = vadd.f32 0.0, %v5125
      %v5127 = vpop.f32.mrb[0].mxu0
      %5128 = vmatprep.mubr.bf16.mxu0 0
      %5129 = vmatmul.mubr.bf16.gmra.mrb[0].mxu0 %v5008
      %v5130 = vpop.f32.mrb[0].mxu0
      %v5131 = vadd.f32 0.0, %v5130
      %v5132 = vpop.f32.mrb[0].mxu0
      %v5133 = vpop.f32.mrb[0].mxu0
      %v5134 = vadd.f32 0.0, %v5133
      %v5135 = vpop.f32.mrb[0].mxu0
      %5136 = vmatprep.mubr.bf16.mxu0 0
      %5137 = vmatmul.mubr.bf16.gmra.mrb[0].mxu0 %v5009
      %v5138 = vpop.f32.mrb[0].mxu0
      %v5139 = vadd.f32 0.0, %v5138
      %v5140 = vpop.f32.mrb[0].mxu0
      %v5141 = vpop.f32.mrb[0].mxu0
      %v5142 = vadd.f32 0.0, %v5141
      %v5143 = vpop.f32.mrb[0].mxu0
      %5144 = vdwg.mxu0
      %v5145 = vadd.f32 %v4885, %v5099
      %v5146 = vadd.f32 %v4886, %v5102
      %v5147 = vadd.f32 %v4887, %v5107
      %v5148 = vadd.f32 %v4888, %v5110
      %v5149 = vadd.f32 %v4889, %v5115
      %v5150 = vadd.f32 %v4890, %v5118
      %v5151 = vadd.f32 %v4891, %v5123
      %v5152 = vadd.f32 %v4892, %v5126
      %v5153 = vadd.f32 %v4893, %v5131
      %v5154 = vadd.f32 %v4894, %v5134
      %v5155 = vadd.f32 %v4895, %v5139
      %v5156 = vadd.f32 %v4896, %v5142
      %v5157 = vld [vmem:[%s998 + $0x8] sm:$0xe]
      %v5158 = vld [vmem:[%s998 + $0xc] sm:$0xf]
      %v5159 = vld [vmem:[%s998 + $0x10] sm:$0x1]
      %v5160 = vld [vmem:[%s998 + $0x24] sm:$0xe]
      %v5161 = vld [vmem:[%s998 + $0x28] sm:$0xf]
      %v5162 = vld [vmem:[%s998 + $0x2c] sm:$0x1]
      %v5163 = vld [vmem:[%s998 + $0x40] sm:$0xe]
      %v5164 = vld [vmem:[%s998 + $0x44] sm:$0xf]
      %v5165 = vld [vmem:[%s998 + $0x48] sm:$0x1]
      %v5166 = vld [vmem:[%s998 + $0x5c] sm:$0xe]
      %v5167 = vld [vmem:[%s998 + $0x60] sm:$0xf]
      %v5168 = vld [vmem:[%s998 + $0x64] sm:$0x1]
      %v5169 = vld [vmem:[%s998 + $0x78] sm:$0xe]
      %v5170 = vld [vmem:[%s998 + $0x7c] sm:$0xf]
      %v5171 = vld [vmem:[%s998 + $0x80] sm:$0x1]
      %v5172 = vld [vmem:[%s998 + $0x94] sm:$0xe]
      %v5173 = vld [vmem:[%s998 + $0x98] sm:$0xf]
      %v5174 = vld [vmem:[%s998 + $0x9c] sm:$0x1]
      %v5193 = vrot.slane %v5157, 5
      %v5194 = vrot.slane %v5193, 4
      %v5195 = vrot.slane %v5158, 5
      %v5196 = vsel %vm1146, %v5194, %v5195
      %v5197 = vrot.slane %v5195, 4
      %v5198 = vrot.slane %v5159, 5
      %v5199 = vsel %vm1146, %v5197, %v5198
      %v5200 = vrot.slane %v5160, 5
      %v5201 = vrot.slane %v5200, 4
      %v5202 = vrot.slane %v5161, 5
      %v5203 = vsel %vm1146, %v5201, %v5202
      %v5204 = vrot.slane %v5202, 4
      %v5205 = vrot.slane %v5162, 5
      %v5206 = vsel %vm1146, %v5204, %v5205
      %v5207 = vrot.slane %v5163, 5
      %v5208 = vrot.slane %v5207, 4
      %v5209 = vrot.slane %v5164, 5
      %v5210 = vsel %vm1146, %v5208, %v5209
      %v5211 = vrot.slane %v5209, 4
      %v5212 = vrot.slane %v5165, 5
      %v5213 = vsel %vm1146, %v5211, %v5212
      %v5214 = vrot.slane %v5166, 5
      %v5215 = vrot.slane %v5214, 4
      %v5216 = vrot.slane %v5167, 5
      %v5217 = vsel %vm1146, %v5215, %v5216
      %v5218 = vrot.slane %v5216, 4
      %v5219 = vrot.slane %v5168, 5
      %v5220 = vsel %vm1146, %v5218, %v5219
      %v5221 = vrot.slane %v5169, 5
      %v5222 = vrot.slane %v5221, 4
      %v5223 = vrot.slane %v5170, 5
      %v5224 = vsel %vm1146, %v5222, %v5223
      %v5225 = vrot.slane %v5223, 4
      %v5226 = vrot.slane %v5171, 5
      %v5227 = vsel %vm1146, %v5225, %v5226
      %v5228 = vrot.slane %v5172, 5
      %v5229 = vrot.slane %v5228, 4
      %v5230 = vrot.slane %v5173, 5
      %v5231 = vsel %vm1146, %v5229, %v5230
      %v5232 = vrot.slane %v5230, 4
      %v5233 = vrot.slane %v5174, 5
      %v5234 = vsel %vm1146, %v5232, %v5233
      %s5235 = scalar_lea.vmem %s1033, 448
      %v5236 = vld [vmem:[%s5235] sm:$0xf]
      %v5237 = vld [vmem:[%s5235 + $0x4] sm:$0xf]
      %v5238 = vld [vmem:[%s5235 + $0x8] sm:$0xf]
      %v5239 = vld [vmem:[%s5235 + $0xc] sm:$0xf]
      %v5240 = vld [vmem:[%s5235 + $0x10] sm:$0xf]
      %v5241 = vld [vmem:[%s5235 + $0x14] sm:$0xf]
      %v5242 = vld [vmem:[%s5235 + $0x18] sm:$0xf]
      %v5243 = vld [vmem:[%s5235 + $0x1c] sm:$0xf]
      %v5244 = vld [vmem:[%s5235 + $0x20] sm:$0xf]
      %v5245 = vld [vmem:[%s5235 + $0x24] sm:$0xf]
      %v5246 = vld [vmem:[%s5235 + $0x28] sm:$0xf]
      %v5247 = vld [vmem:[%s5235 + $0x2c] sm:$0xf]
      %v5248 = vld [vmem:[%s5235 + $0x30] sm:$0xf]
      %v5249 = vld [vmem:[%s5235 + $0x34] sm:$0xf]
      %v5250 = vld [vmem:[%s5235 + $0x38] sm:$0xf]
      %v5251 = vld [vmem:[%s5235 + $0x3c] sm:$0xf]
      %v5252 = vunpack.c.l.b16 %v5196
      %v5253 = vunpack.c.l.b16 %v5199
      %v5254 = vunpack.c.l.b16 %v5203
      %v5255 = vunpack.c.l.b16 %v5206
      %v5256 = vunpack.c.l.b16 %v5210
      %v5257 = vunpack.c.l.b16 %v5213
      %v5258 = vunpack.c.l.b16 %v5217
      %v5259 = vunpack.c.l.b16 %v5220
      %v5260 = vunpack.c.l.b16 %v5224
      %v5261 = vunpack.c.l.b16 %v5227
      %v5262 = vunpack.c.l.b16 %v5231
      %v5263 = vunpack.c.l.b16 %v5234
      %v5264 = vpack.c.b16 %v5253, %v5252
      %v5265 = vpack.c.b16 %v5255, %v5254
      %v5266 = vpack.c.b16 %v5257, %v5256
      %v5267 = vpack.c.b16 %v5259, %v5258
      %v5268 = vpack.c.b16 %v5261, %v5260
      %v5269 = vpack.c.b16 %v5263, %v5262
      %v5292 = vunpack.c.l.b16 %v5236
      %v5293 = vunpack.c.l.b16 %v5237
      %v5294 = vunpack.c.l.b16 %v5238
      %v5295 = vunpack.c.l.b16 %v5239
      %v5296 = vunpack.c.l.b16 %v5240
      %v5297 = vunpack.c.l.b16 %v5241
      %v5298 = vunpack.c.l.b16 %v5242
      %v5299 = vunpack.c.l.b16 %v5243
      %v5300 = vunpack.c.l.b16 %v5244
      %v5301 = vunpack.c.l.b16 %v5245
      %v5302 = vunpack.c.l.b16 %v5246
      %v5303 = vunpack.c.l.b16 %v5247
      %v5304 = vunpack.c.l.b16 %v5248
      %v5305 = vunpack.c.l.b16 %v5249
      %v5306 = vunpack.c.l.b16 %v5250
      %v5307 = vunpack.c.l.b16 %v5251
      %v5308 = vpack.c.b16 %v5293, %v5292
      %v5309 = vpack.c.b16 %v5295, %v5294
      %v5310 = vpack.c.b16 %v5297, %v5296
      %v5311 = vpack.c.b16 %v5299, %v5298
      %v5312 = vpack.c.b16 %v5301, %v5300
      %v5313 = vpack.c.b16 %v5303, %v5302
      %v5314 = vpack.c.b16 %v5305, %v5304
      %v5315 = vpack.c.b16 %v5307, %v5306
      %5324 = vmatprep.subr.bf16.mxu0 0
      %5325 = vmatpush1.bf16.msra.mxu0 %v5308
      %5326 = vmatprep.subr.bf16.mxu0 0
      %5327 = vmatpush1.bf16.msra.mxu0 %v5309
      %5328 = vmatprep.subr.bf16.mxu0 0
      %5329 = vmatpush1.bf16.msra.mxu0 %v5310
      %5330 = vmatprep.subr.bf16.mxu0 0
      %5331 = vmatpush1.bf16.msra.mxu0 %v5311
      %5332 = vmatprep.subr.bf16.mxu0 0
      %5333 = vmatpush1.bf16.msra.mxu0 %v5312
      %5334 = vmatprep.subr.bf16.mxu0 0
      %5335 = vmatpush1.bf16.msra.mxu0 %v5313
      %5336 = vmatprep.subr.bf16.mxu0 0
      %5337 = vmatpush1.bf16.msra.mxu0 %v5314
      %5338 = vmatprep.subr.bf16.mxu0 0
      %5339 = vmatpush1.bf16.msra.mxu0 %v5315
      %5340 = vmatprep.subr.bf16.mxu0 0
      %5341 = vmatpush1.bf16.msra.mxu0 0
      %5342 = vmatprep.subr.bf16.mxu0 0
      %5343 = vmatpush1.bf16.msra.mxu0 0
      %5344 = vmatprep.subr.bf16.mxu0 0
      %5345 = vmatpush1.bf16.msra.mxu0 0
      %5346 = vmatprep.subr.bf16.mxu0 0
      %5347 = vmatpush1.bf16.msra.mxu0 0
      %5348 = vmatprep.subr.bf16.mxu0 0
      %5349 = vmatpush1.bf16.msra.mxu0 0
      %5350 = vmatprep.subr.bf16.mxu0 0
      %5351 = vmatpush1.bf16.msra.mxu0 0
      %5352 = vmatprep.subr.bf16.mxu0 0
      %5353 = vmatpush1.bf16.msra.mxu0 0
      %5354 = vmatprep.subr.bf16.mxu0 0
      %5355 = vmatpush1.bf16.msra.mxu0 0
      %5356 = vmatprep.mubr.bf16.mxu0 0
      %5357 = vmatmul.mubr.bf16.gmra.mrb[0].mxu0 %v5264
      %v5358 = vpop.f32.mrb[0].mxu0
      %v5359 = vadd.f32 0.0, %v5358
      %v5360 = vpop.f32.mrb[0].mxu0
      %v5361 = vpop.f32.mrb[0].mxu0
      %v5362 = vadd.f32 0.0, %v5361
      %v5363 = vpop.f32.mrb[0].mxu0
      %5364 = vmatprep.mubr.bf16.mxu0 0
      %5365 = vmatmul.mubr.bf16.gmra.mrb[0].mxu0 %v5265
      %v5366 = vpop.f32.mrb[0].mxu0
      %v5367 = vadd.f32 0.0, %v5366
      %v5368 = vpop.f32.mrb[0].mxu0
      %v5369 = vpop.f32.mrb[0].mxu0
      %v5370 = vadd.f32 0.0, %v5369
      %v5371 = vpop.f32.mrb[0].mxu0
      %5372 = vmatprep.mubr.bf16.mxu0 0
      %5373 = vmatmul.mubr.bf16.gmra.mrb[0].mxu0 %v5266
      %v5374 = vpop.f32.mrb[0].mxu0
      %v5375 = vadd.f32 0.0, %v5374
      %v5376 = vpop.f32.mrb[0].mxu0
      %v5377 = vpop.f32.mrb[0].mxu0
      %v5378 = vadd.f32 0.0, %v5377
      %v5379 = vpop.f32.mrb[0].mxu0
      %5380 = vmatprep.mubr.bf16.mxu0 0
      %5381 = vmatmul.mubr.bf16.gmra.mrb[0].mxu0 %v5267
      %v5382 = vpop.f32.mrb[0].mxu0
      %v5383 = vadd.f32 0.0, %v5382
      %v5384 = vpop.f32.mrb[0].mxu0
      %v5385 = vpop.f32.mrb[0].mxu0
      %v5386 = vadd.f32 0.0, %v5385
      %v5387 = vpop.f32.mrb[0].mxu0
      %5388 = vmatprep.mubr.bf16.mxu0 0
      %5389 = vmatmul.mubr.bf16.gmra.mrb[0].mxu0 %v5268
      %v5390 = vpop.f32.mrb[0].mxu0
      %v5391 = vadd.f32 0.0, %v5390
      %v5392 = vpop.f32.mrb[0].mxu0
      %v5393 = vpop.f32.mrb[0].mxu0
      %v5394 = vadd.f32 0.0, %v5393
      %v5395 = vpop.f32.mrb[0].mxu0
      %5396 = vmatprep.mubr.bf16.mxu0 0
      %5397 = vmatmul.mubr.bf16.gmra.mrb[0].mxu0 %v5269
      %v5398 = vpop.f32.mrb[0].mxu0
      %v5399 = vadd.f32 0.0, %v5398
      %v5400 = vpop.f32.mrb[0].mxu0
      %v5401 = vpop.f32.mrb[0].mxu0
      %v5402 = vadd.f32 0.0, %v5401
      %v5403 = vpop.f32.mrb[0].mxu0
      %5404 = vdwg.mxu0
      %v5405 = vadd.f32 %v5145, %v5359
      %v5406 = vadd.f32 %v5146, %v5362
      %v5407 = vadd.f32 %v5147, %v5367
      %v5408 = vadd.f32 %v5148, %v5370
      %v5409 = vadd.f32 %v5149, %v5375
      %v5410 = vadd.f32 %v5150, %v5378
      %v5411 = vadd.f32 %v5151, %v5383
      %v5412 = vadd.f32 %v5152, %v5386
      %v5413 = vadd.f32 %v5153, %v5391
      %v5414 = vadd.f32 %v5154, %v5394
      %v5415 = vadd.f32 %v5155, %v5399
      %v5416 = vadd.f32 %v5156, %v5402
      %v5417 = vld [vmem:[%s998 + $0xc] sm:$0x8]
      %v5418 = vld [vmem:[%s998 + $0x10] sm:$0xf]
      %v5419 = vld [vmem:[%s998 + $0x14] sm:$0x7]
      %v5420 = vld [vmem:[%s998 + $0x28] sm:$0x8]
      %v5421 = vld [vmem:[%s998 + $0x2c] sm:$0xf]
      %v5422 = vld [vmem:[%s998 + $0x30] sm:$0x7]
      %v5423 = vld [vmem:[%s998 + $0x44] sm:$0x8]
      %v5424 = vld [vmem:[%s998 + $0x48] sm:$0xf]
      %v5425 = vld [vmem:[%s998 + $0x4c] sm:$0x7]
      %v5426 = vld [vmem:[%s998 + $0x60] sm:$0x8]
      %v5427 = vld [vmem:[%s998 + $0x64] sm:$0xf]
      %v5428 = vld [vmem:[%s998 + $0x68] sm:$0x7]
      %v5429 = vld [vmem:[%s998 + $0x7c] sm:$0x8]
      %v5430 = vld [vmem:[%s998 + $0x80] sm:$0xf]
      %v5431 = vld [vmem:[%s998 + $0x84] sm:$0x7]
      %v5432 = vld [vmem:[%s998 + $0x98] sm:$0x8]
      %v5433 = vld [vmem:[%s998 + $0x9c] sm:$0xf]
      %v5434 = vld [vmem:[%s998 + $0xa0] sm:$0x7]
      %v5453 = vrot.slane %v5417, 7
      %v5454 = vrot.slane %v5453, 4
      %v5455 = vrot.slane %v5418, 7
      %v5456 = vsel %vm3516, %v5454, %v5455
      %v5457 = vrot.slane %v5455, 4
      %v5458 = vrot.slane %v5419, 7
      %v5459 = vsel %vm3516, %v5457, %v5458
      %v5460 = vrot.slane %v5420, 7
      %v5461 = vrot.slane %v5460, 4
      %v5462 = vrot.slane %v5421, 7
      %v5463 = vsel %vm3516, %v5461, %v5462
      %v5464 = vrot.slane %v5462, 4
      %v5465 = vrot.slane %v5422, 7
      %v5466 = vsel %vm3516, %v5464, %v5465
      %v5467 = vrot.slane %v5423, 7
      %v5468 = vrot.slane %v5467, 4
      %v5469 = vrot.slane %v5424, 7
      %v5470 = vsel %vm3516, %v5468, %v5469
      %v5471 = vrot.slane %v5469, 4
      %v5472 = vrot.slane %v5425, 7
      %v5473 = vsel %vm3516, %v5471, %v5472
      %v5474 = vrot.slane %v5426, 7
      %v5475 = vrot.slane %v5474, 4
      %v5476 = vrot.slane %v5427, 7
      %v5477 = vsel %vm3516, %v5475, %v5476
      %v5478 = vrot.slane %v5476, 4
      %v5479 = vrot.slane %v5428, 7
      %v5480 = vsel %vm3516, %v5478, %v5479
      %v5481 = vrot.slane %v5429, 7
      %v5482 = vrot.slane %v5481, 4
      %v5483 = vrot.slane %v5430, 7
      %v5484 = vsel %vm3516, %v5482, %v5483
      %v5485 = vrot.slane %v5483, 4
      %v5486 = vrot.slane %v5431, 7
      %v5487 = vsel %vm3516, %v5485, %v5486
      %v5488 = vrot.slane %v5432, 7
      %v5489 = vrot.slane %v5488, 4
      %v5490 = vrot.slane %v5433, 7
      %v5491 = vsel %vm3516, %v5489, %v5490
      %v5492 = vrot.slane %v5490, 4
      %v5493 = vrot.slane %v5434, 7
      %v5494 = vsel %vm3516, %v5492, %v5493
      %s5495 = scalar_lea.vmem %s1033, 512
      %v5496 = vld [vmem:[%s5495] sm:$0xf]
      %v5497 = vld [vmem:[%s5495 + $0x4] sm:$0xf]
      %v5498 = vld [vmem:[%s5495 + $0x8] sm:$0xf]
      %v5499 = vld [vmem:[%s5495 + $0xc] sm:$0xf]
      %v5500 = vld [vmem:[%s5495 + $0x10] sm:$0xf]
      %v5501 = vld [vmem:[%s5495 + $0x14] sm:$0xf]
      %v5502 = vld [vmem:[%s5495 + $0x18] sm:$0xf]
      %v5503 = vld [vmem:[%s5495 + $0x1c] sm:$0xf]
      %v5504 = vld [vmem:[%s5495 + $0x20] sm:$0xf]
      %v5505 = vld [vmem:[%s5495 + $0x24] sm:$0xf]
      %v5506 = vld [vmem:[%s5495 + $0x28] sm:$0xf]
      %v5507 = vld [vmem:[%s5495 + $0x2c] sm:$0xf]
      %v5508 = vld [vmem:[%s5495 + $0x30] sm:$0xf]
      %v5509 = vld [vmem:[%s5495 + $0x34] sm:$0xf]
      %v5510 = vld [vmem:[%s5495 + $0x38] sm:$0xf]
      %v5511 = vld [vmem:[%s5495 + $0x3c] sm:$0xf]
      %v5512 = vunpack.c.l.b16 %v5456
      %v5513 = vunpack.c.l.b16 %v5459
      %v5514 = vunpack.c.l.b16 %v5463
      %v5515 = vunpack.c.l.b16 %v5466
      %v5516 = vunpack.c.l.b16 %v5470
      %v5517 = vunpack.c.l.b16 %v5473
      %v5518 = vunpack.c.l.b16 %v5477
      %v5519 = vunpack.c.l.b16 %v5480
      %v5520 = vunpack.c.l.b16 %v5484
      %v5521 = vunpack.c.l.b16 %v5487
      %v5522 = vunpack.c.l.b16 %v5491
      %v5523 = vunpack.c.l.b16 %v5494
      %v5524 = vpack.c.b16 %v5513, %v5512
      %v5525 = vpack.c.b16 %v5515, %v5514
      %v5526 = vpack.c.b16 %v5517, %v5516
      %v5527 = vpack.c.b16 %v5519, %v5518
      %v5528 = vpack.c.b16 %v5521, %v5520
      %v5529 = vpack.c.b16 %v5523, %v5522
      %v5552 = vunpack.c.l.b16 %v5496
      %v5553 = vunpack.c.l.b16 %v5497
      %v5554 = vunpack.c.l.b16 %v5498
      %v5555 = vunpack.c.l.b16 %v5499
      %v5556 = vunpack.c.l.b16 %v5500
      %v5557 = vunpack.c.l.b16 %v5501
      %v5558 = vunpack.c.l.b16 %v5502
      %v5559 = vunpack.c.l.b16 %v5503
      %v5560 = vunpack.c.l.b16 %v5504
      %v5561 = vunpack.c.l.b16 %v5505
      %v5562 = vunpack.c.l.b16 %v5506
      %v5563 = vunpack.c.l.b16 %v5507
      %v5564 = vunpack.c.l.b16 %v5508
      %v5565 = vunpack.c.l.b16 %v5509
      %v5566 = vunpack.c.l.b16 %v5510
      %v5567 = vunpack.c.l.b16 %v5511
      %v5568 = vpack.c.b16 %v5553, %v5552
      %v5569 = vpack.c.b16 %v5555, %v5554
      %v5570 = vpack.c.b16 %v5557, %v5556
      %v5571 = vpack.c.b16 %v5559, %v5558
      %v5572 = vpack.c.b16 %v5561, %v5560
      %v5573 = vpack.c.b16 %v5563, %v5562
      %v5574 = vpack.c.b16 %v5565, %v5564
      %v5575 = vpack.c.b16 %v5567, %v5566
      %5584 = vmatprep.subr.bf16.mxu0 0
      %5585 = vmatpush1.bf16.msra.mxu0 %v5568
      %5586 = vmatprep.subr.bf16.mxu0 0
      %5587 = vmatpush1.bf16.msra.mxu0 %v5569
      %5588 = vmatprep.subr.bf16.mxu0 0
      %5589 = vmatpush1.bf16.msra.mxu0 %v5570
      %5590 = vmatprep.subr.bf16.mxu0 0
      %5591 = vmatpush1.bf16.msra.mxu0 %v5571
      %5592 = vmatprep.subr.bf16.mxu0 0
      %5593 = vmatpush1.bf16.msra.mxu0 %v5572
      %5594 = vmatprep.subr.bf16.mxu0 0
      %5595 = vmatpush1.bf16.msra.mxu0 %v5573
      %5596 = vmatprep.subr.bf16.mxu0 0
      %5597 = vmatpush1.bf16.msra.mxu0 %v5574
      %5598 = vmatprep.subr.bf16.mxu0 0
      %5599 = vmatpush1.bf16.msra.mxu0 %v5575
      %5600 = vmatprep.subr.bf16.mxu0 0
      %5601 = vmatpush1.bf16.msra.mxu0 0
      %5602 = vmatprep.subr.bf16.mxu0 0
      %5603 = vmatpush1.bf16.msra.mxu0 0
      %5604 = vmatprep.subr.bf16.mxu0 0
      %5605 = vmatpush1.bf16.msra.mxu0 0
      %5606 = vmatprep.subr.bf16.mxu0 0
      %5607 = vmatpush1.bf16.msra.mxu0 0
      %5608 = vmatprep.subr.bf16.mxu0 0
      %5609 = vmatpush1.bf16.msra.mxu0 0
      %5610 = vmatprep.subr.bf16.mxu0 0
      %5611 = vmatpush1.bf16.msra.mxu0 0
      %5612 = vmatprep.subr.bf16.mxu0 0
      %5613 = vmatpush1.bf16.msra.mxu0 0
      %5614 = vmatprep.subr.bf16.mxu0 0
      %5615 = vmatpush1.bf16.msra.mxu0 0
      %5616 = vmatprep.mubr.bf16.mxu0 0
      %5617 = vmatmul.mubr.bf16.gmra.mrb[0].mxu0 %v5524
      %v5618 = vpop.f32.mrb[0].mxu0
      %v5619 = vadd.f32 0.0, %v5618
      %v5620 = vpop.f32.mrb[0].mxu0
      %v5621 = vpop.f32.mrb[0].mxu0
      %v5622 = vadd.f32 0.0, %v5621
      %v5623 = vpop.f32.mrb[0].mxu0
      %5624 = vmatprep.mubr.bf16.mxu0 0
      %5625 = vmatmul.mubr.bf16.gmra.mrb[0].mxu0 %v5525
      %v5626 = vpop.f32.mrb[0].mxu0
      %v5627 = vadd.f32 0.0, %v5626
      %v5628 = vpop.f32.mrb[0].mxu0
      %v5629 = vpop.f32.mrb[0].mxu0
      %v5630 = vadd.f32 0.0, %v5629
      %v5631 = vpop.f32.mrb[0].mxu0
      %5632 = vmatprep.mubr.bf16.mxu0 0
      %5633 = vmatmul.mubr.bf16.gmra.mrb[0].mxu0 %v5526
      %v5634 = vpop.f32.mrb[0].mxu0
      %v5635 = vadd.f32 0.0, %v5634
      %v5636 = vpop.f32.mrb[0].mxu0
      %v5637 = vpop.f32.mrb[0].mxu0
      %v5638 = vadd.f32 0.0, %v5637
      %v5639 = vpop.f32.mrb[0].mxu0
      %5640 = vmatprep.mubr.bf16.mxu0 0
      %5641 = vmatmul.mubr.bf16.gmra.mrb[0].mxu0 %v5527
      %v5642 = vpop.f32.mrb[0].mxu0
      %v5643 = vadd.f32 0.0, %v5642
      %v5644 = vpop.f32.mrb[0].mxu0
      %v5645 = vpop.f32.mrb[0].mxu0
      %v5646 = vadd.f32 0.0, %v5645
      %v5647 = vpop.f32.mrb[0].mxu0
      %5648 = vmatprep.mubr.bf16.mxu0 0
      %5649 = vmatmul.mubr.bf16.gmra.mrb[0].mxu0 %v5528
      %v5650 = vpop.f32.mrb[0].mxu0
      %v5651 = vadd.f32 0.0, %v5650
      %v5652 = vpop.f32.mrb[0].mxu0
      %v5653 = vpop.f32.mrb[0].mxu0
      %v5654 = vadd.f32 0.0, %v5653
      %v5655 = vpop.f32.mrb[0].mxu0
      %5656 = vmatprep.mubr.bf16.mxu0 0
      %5657 = vmatmul.mubr.bf16.gmra.mrb[0].mxu0 %v5529
      %v5658 = vpop.f32.mrb[0].mxu0
      %v5659 = vadd.f32 0.0, %v5658
      %v5660 = vpop.f32.mrb[0].mxu0
      %v5661 = vpop.f32.mrb[0].mxu0
      %v5662 = vadd.f32 0.0, %v5661
      %v5663 = vpop.f32.mrb[0].mxu0
      %5664 = vdwg.mxu0
      %v5665 = vadd.f32 %v5405, %v5619
      %v5666 = vadd.f32 %v5406, %v5622
      %v5667 = vadd.f32 %v5407, %v5627
      %v5668 = vadd.f32 %v5408, %v5630
      %v5669 = vadd.f32 %v5409, %v5635
      %v5670 = vadd.f32 %v5410, %v5638
      %v5671 = vadd.f32 %v5411, %v5643
      %v5672 = vadd.f32 %v5412, %v5646
      %v5673 = vadd.f32 %v5413, %v5651
      %v5674 = vadd.f32 %v5414, %v5654
      %v5675 = vadd.f32 %v5415, %v5659
      %v5676 = vadd.f32 %v5416, %v5662
      %s5677 = scalar_lea.vmem [#allocation2], 192
      %v5678 = vld [vmem:[%s5677] sm:$0xff]
      %v5679 = vld [vmem:[%s5677 + $0x8] sm:$0xff]
      %v5680 = vld [vmem:[%s5677 + $0x10] sm:$0xff]
      %v5681 = vld [vmem:[%s5677 + $0x18] sm:$0xff]
      %v5682 = vld [vmem:[%s5677 + $0x20] sm:$0xff]
      %v5683 = vld [vmem:[%s5677 + $0x28] sm:$0xff]
      %v5684 = vld [vmem:[%s5677 + $0x30] sm:$0xff]
      %v5685 = vld [vmem:[%s5677 + $0x38] sm:$0xff]
      %v5686 = vld [vmem:[%s5677 + $0x40] sm:$0xff]
      %v5687 = vld [vmem:[%s5677 + $0x48] sm:$0xff]
      %v5688 = vld [vmem:[%s5677 + $0x50] sm:$0xff]
      %v5689 = vld [vmem:[%s5677 + $0x58] sm:$0xff]
      %v5690 = vadd.f32 %v5678, %v5665
      %v5691 = vadd.f32 %v5679, %v5666
      %v5692 = vadd.f32 %v5680, %v5667
      %v5693 = vadd.f32 %v5681, %v5668
      %v5694 = vadd.f32 %v5682, %v5669
      %v5695 = vadd.f32 %v5683, %v5670
      %v5696 = vadd.f32 %v5684, %v5671
      %v5697 = vadd.f32 %v5685, %v5672
      %v5698 = vadd.f32 %v5686, %v5673
      %v5699 = vadd.f32 %v5687, %v5674
      %v5700 = vadd.f32 %v5688, %v5675
      %v5701 = vadd.f32 %v5689, %v5676
      %5702 = vst [vmem:[%s5677] sm:$0xff] %v5690
      %5703 = vst [vmem:[%s5677 + $0x8] sm:$0xff] %v5691
      %5704 = vst [vmem:[%s5677 + $0x10] sm:$0xff] %v5692
      %5705 = vst [vmem:[%s5677 + $0x18] sm:$0xff] %v5693
      %5706 = vst [vmem:[%s5677 + $0x20] sm:$0xff] %v5694
      %5707 = vst [vmem:[%s5677 + $0x28] sm:$0xff] %v5695
      %5708 = vst [vmem:[%s5677 + $0x30] sm:$0xff] %v5696
      %5709 = vst [vmem:[%s5677 + $0x38] sm:$0xff] %v5697
      %5710 = vst [vmem:[%s5677 + $0x40] sm:$0xff] %v5698
      %5711 = vst [vmem:[%s5677 + $0x48] sm:$0xff] %v5699
      %5712 = vst [vmem:[%s5677 + $0x50] sm:$0xff] %v5700
      %5713 = vst [vmem:[%s5677 + $0x58] sm:$0xff] %v5701
      %s5714 = scalar_lea.vmem %s1039, 256
      %v5715 = vld [vmem:[%s5714] sm:$0xf]
      %v5716 = vld [vmem:[%s5714 + $0x4] sm:$0xf]
      %v5717 = vld [vmem:[%s5714 + $0x8] sm:$0xf]
      %v5718 = vld [vmem:[%s5714 + $0xc] sm:$0xf]
      %v5719 = vld [vmem:[%s5714 + $0x10] sm:$0xf]
      %v5720 = vld [vmem:[%s5714 + $0x14] sm:$0xf]
      %v5721 = vld [vmem:[%s5714 + $0x18] sm:$0xf]
      %v5722 = vld [vmem:[%s5714 + $0x1c] sm:$0xf]
      %v5723 = vld [vmem:[%s5714 + $0x20] sm:$0xf]
      %v5724 = vld [vmem:[%s5714 + $0x24] sm:$0xf]
      %v5725 = vld [vmem:[%s5714 + $0x28] sm:$0xf]
      %v5726 = vld [vmem:[%s5714 + $0x2c] sm:$0xf]
      %v5727 = vld [vmem:[%s5714 + $0x30] sm:$0xf]
      %v5728 = vld [vmem:[%s5714 + $0x34] sm:$0xf]
      %v5729 = vld [vmem:[%s5714 + $0x38] sm:$0xf]
      %v5730 = vld [vmem:[%s5714 + $0x3c] sm:$0xf]
      %v5731 = vld [vmem:[%s919] sm:$0xf]
      %v5732 = vld [vmem:[%s919 + $0x4] sm:$0xf]
      %v5733 = vld [vmem:[%s919 + $0x1c] sm:$0xf]
      %v5734 = vld [vmem:[%s919 + $0x20] sm:$0xf]
      %v5735 = vld [vmem:[%s919 + $0x38] sm:$0xf]
      %v5736 = vld [vmem:[%s919 + $0x3c] sm:$0xf]
      %v5737 = vld [vmem:[%s919 + $0x54] sm:$0xf]
      %v5738 = vld [vmem:[%s919 + $0x58] sm:$0xf]
      %v5739 = vld [vmem:[%s919 + $0x70] sm:$0xf]
      %v5740 = vld [vmem:[%s919 + $0x74] sm:$0xf]
      %v5741 = vld [vmem:[%s919 + $0x8c] sm:$0xf]
      %v5742 = vld [vmem:[%s919 + $0x90] sm:$0xf]
      %v5743 = vld [vmem:[%s1039] sm:$0xf]
      %v5744 = vld [vmem:[%s1039 + $0x4] sm:$0xf]
      %v5745 = vld [vmem:[%s1039 + $0x8] sm:$0xf]
      %v5746 = vld [vmem:[%s1039 + $0xc] sm:$0xf]
      %v5747 = vld [vmem:[%s1039 + $0x10] sm:$0xf]
      %v5748 = vld [vmem:[%s1039 + $0x14] sm:$0xf]
      %v5749 = vld [vmem:[%s1039 + $0x18] sm:$0xf]
      %v5750 = vld [vmem:[%s1039 + $0x1c] sm:$0xf]
      %v5751 = vld [vmem:[%s1039 + $0x20] sm:$0xf]
      %v5752 = vld [vmem:[%s1039 + $0x24] sm:$0xf]
      %v5753 = vld [vmem:[%s1039 + $0x28] sm:$0xf]
      %v5754 = vld [vmem:[%s1039 + $0x2c] sm:$0xf]
      %v5755 = vld [vmem:[%s1039 + $0x30] sm:$0xf]
      %v5756 = vld [vmem:[%s1039 + $0x34] sm:$0xf]
      %v5757 = vld [vmem:[%s1039 + $0x38] sm:$0xf]
      %v5758 = vld [vmem:[%s1039 + $0x3c] sm:$0xf]
      %v5771 = vunpack.c.l.b16 %v5731
      %v5772 = vunpack.c.l.b16 %v5732
      %v5773 = vunpack.c.l.b16 %v5733
      %v5774 = vunpack.c.l.b16 %v5734
      %v5775 = vunpack.c.l.b16 %v5735
      %v5776 = vunpack.c.l.b16 %v5736
      %v5777 = vunpack.c.l.b16 %v5737
      %v5778 = vunpack.c.l.b16 %v5738
      %v5779 = vunpack.c.l.b16 %v5739
      %v5780 = vunpack.c.l.b16 %v5740
      %v5781 = vunpack.c.l.b16 %v5741
      %v5782 = vunpack.c.l.b16 %v5742
      %v5783 = vpack.c.b16 %v5772, %v5771
      %v5784 = vpack.c.b16 %v5774, %v5773
      %v5785 = vpack.c.b16 %v5776, %v5775
      %v5786 = vpack.c.b16 %v5778, %v5777
      %v5787 = vpack.c.b16 %v5780, %v5779
      %v5788 = vpack.c.b16 %v5782, %v5781
      %v5811 = vunpack.c.l.b16 %v5743
      %v5812 = vunpack.c.l.b16 %v5744
      %v5813 = vunpack.c.l.b16 %v5745
      %v5814 = vunpack.c.l.b16 %v5746
      %v5815 = vunpack.c.l.b16 %v5747
      %v5816 = vunpack.c.l.b16 %v5748
      %v5817 = vunpack.c.l.b16 %v5749
      %v5818 = vunpack.c.l.b16 %v5750
      %v5819 = vunpack.c.l.b16 %v5751
      %v5820 = vunpack.c.l.b16 %v5752
      %v5821 = vunpack.c.l.b16 %v5753
      %v5822 = vunpack.c.l.b16 %v5754
      %v5823 = vunpack.c.l.b16 %v5755
      %v5824 = vunpack.c.l.b16 %v5756
      %v5825 = vunpack.c.l.b16 %v5757
      %v5826 = vunpack.c.l.b16 %v5758
      %v5827 = vpack.c.b16 %v5812, %v5811
      %v5828 = vpack.c.b16 %v5814, %v5813
      %v5829 = vpack.c.b16 %v5816, %v5815
      %v5830 = vpack.c.b16 %v5818, %v5817
      %v5831 = vpack.c.b16 %v5820, %v5819
      %v5832 = vpack.c.b16 %v5822, %v5821
      %v5833 = vpack.c.b16 %v5824, %v5823
      %v5834 = vpack.c.b16 %v5826, %v5825
      %5843 = vmatprep.subr.bf16.mxu0 0
      %5844 = vmatpush1.bf16.msra.mxu0 %v5827
      %5845 = vmatprep.subr.bf16.mxu0 0
      %5846 = vmatpush1.bf16.msra.mxu0 %v5828
      %5847 = vmatprep.subr.bf16.mxu0 0
      %5848 = vmatpush1.bf16.msra.mxu0 %v5829
      %5849 = vmatprep.subr.bf16.mxu0 0
      %5850 = vmatpush1.bf16.msra.mxu0 %v5830
      %5851 = vmatprep.subr.bf16.mxu0 0
      %5852 = vmatpush1.bf16.msra.mxu0 %v5831
      %5853 = vmatprep.subr.bf16.mxu0 0
      %5854 = vmatpush1.bf16.msra.mxu0 %v5832
      %5855 = vmatprep.subr.bf16.mxu0 0
      %5856 = vmatpush1.bf16.msra.mxu0 %v5833
      %5857 = vmatprep.subr.bf16.mxu0 0
      %5858 = vmatpush1.bf16.msra.mxu0 %v5834
      %5859 = vmatprep.subr.bf16.mxu0 0
      %5860 = vmatpush1.bf16.msra.mxu0 0
      %5861 = vmatprep.subr.bf16.mxu0 0
      %5862 = vmatpush1.bf16.msra.mxu0 0
      %5863 = vmatprep.subr.bf16.mxu0 0
      %5864 = vmatpush1.bf16.msra.mxu0 0
      %5865 = vmatprep.subr.bf16.mxu0 0
      %5866 = vmatpush1.bf16.msra.mxu0 0
      %5867 = vmatprep.subr.bf16.mxu0 0
      %5868 = vmatpush1.bf16.msra.mxu0 0
      %5869 = vmatprep.subr.bf16.mxu0 0
      %5870 = vmatpush1.bf16.msra.mxu0 0
      %5871 = vmatprep.subr.bf16.mxu0 0
      %5872 = vmatpush1.bf16.msra.mxu0 0
      %5873 = vmatprep.subr.bf16.mxu0 0
      %5874 = vmatpush1.bf16.msra.mxu0 0
      %5875 = vmatprep.mubr.bf16.mxu0 0
      %5876 = vmatmul.mubr.bf16.gmra.mrb[0].mxu0 %v5783
      %v5877 = vpop.f32.mrb[0].mxu0
      %v5878 = vadd.f32 0.0, %v5877
      %v5879 = vpop.f32.mrb[0].mxu0
      %v5880 = vpop.f32.mrb[0].mxu0
      %v5881 = vadd.f32 0.0, %v5880
      %v5882 = vpop.f32.mrb[0].mxu0
      %5883 = vmatprep.mubr.bf16.mxu0 0
      %5884 = vmatmul.mubr.bf16.gmra.mrb[0].mxu0 %v5784
      %v5885 = vpop.f32.mrb[0].mxu0
      %v5886 = vadd.f32 0.0, %v5885
      %v5887 = vpop.f32.mrb[0].mxu0
      %v5888 = vpop.f32.mrb[0].mxu0
      %v5889 = vadd.f32 0.0, %v5888
      %v5890 = vpop.f32.mrb[0].mxu0
      %5891 = vmatprep.mubr.bf16.mxu0 0
      %5892 = vmatmul.mubr.bf16.gmra.mrb[0].mxu0 %v5785
      %v5893 = vpop.f32.mrb[0].mxu0
      %v5894 = vadd.f32 0.0, %v5893
      %v5895 = vpop.f32.mrb[0].mxu0
      %v5896 = vpop.f32.mrb[0].mxu0
      %v5897 = vadd.f32 0.0, %v5896
      %v5898 = vpop.f32.mrb[0].mxu0
      %5899 = vmatprep.mubr.bf16.mxu0 0
      %5900 = vmatmul.mubr.bf16.gmra.mrb[0].mxu0 %v5786
      %v5901 = vpop.f32.mrb[0].mxu0
      %v5902 = vadd.f32 0.0, %v5901
      %v5903 = vpop.f32.mrb[0].mxu0
      %v5904 = vpop.f32.mrb[0].mxu0
      %v5905 = vadd.f32 0.0, %v5904
      %v5906 = vpop.f32.mrb[0].mxu0
      %5907 = vmatprep.mubr.bf16.mxu0 0
      %5908 = vmatmul.mubr.bf16.gmra.mrb[0].mxu0 %v5787
      %v5909 = vpop.f32.mrb[0].mxu0
      %v5910 = vadd.f32 0.0, %v5909
      %v5911 = vpop.f32.mrb[0].mxu0
      %v5912 = vpop.f32.mrb[0].mxu0
      %v5913 = vadd.f32 0.0, %v5912
      %v5914 = vpop.f32.mrb[0].mxu0
      %5915 = vmatprep.mubr.bf16.mxu0 0
      %5916 = vmatmul.mubr.bf16.gmra.mrb[0].mxu0 %v5788
      %v5917 = vpop.f32.mrb[0].mxu0
      %v5918 = vadd.f32 0.0, %v5917
      %v5919 = vpop.f32.mrb[0].mxu0
      %v5920 = vpop.f32.mrb[0].mxu0
      %v5921 = vadd.f32 0.0, %v5920
      %v5922 = vpop.f32.mrb[0].mxu0
      %5923 = vdwg.mxu0
      %v5940 = vunpack.c.l.b16 %v5715
      %v5941 = vunpack.c.l.b16 %v5716
      %v5942 = vunpack.c.l.b16 %v5717
      %v5943 = vunpack.c.l.b16 %v5718
      %v5944 = vunpack.c.l.b16 %v5719
      %v5945 = vunpack.c.l.b16 %v5720
      %v5946 = vunpack.c.l.b16 %v5721
      %v5947 = vunpack.c.l.b16 %v5722
      %v5948 = vunpack.c.l.b16 %v5723
      %v5949 = vunpack.c.l.b16 %v5724
      %v5950 = vunpack.c.l.b16 %v5725
      %v5951 = vunpack.c.l.b16 %v5726
      %v5952 = vunpack.c.l.b16 %v5727
      %v5953 = vunpack.c.l.b16 %v5728
      %v5954 = vunpack.c.l.b16 %v5729
      %v5955 = vunpack.c.l.b16 %v5730
      %v5956 = vpack.c.b16 %v5941, %v5940
      %v5957 = vpack.c.b16 %v5943, %v5942
      %v5958 = vpack.c.b16 %v5945, %v5944
      %v5959 = vpack.c.b16 %v5947, %v5946
      %v5960 = vpack.c.b16 %v5949, %v5948
      %v5961 = vpack.c.b16 %v5951, %v5950
      %v5962 = vpack.c.b16 %v5953, %v5952
      %v5963 = vpack.c.b16 %v5955, %v5954
      %5972 = vmatprep.subr.bf16.mxu0 0
      %5973 = vmatpush1.bf16.msra.mxu0 %v5956
      %5974 = vmatprep.subr.bf16.mxu0 0
      %5975 = vmatpush1.bf16.msra.mxu0 %v5957
      %5976 = vmatprep.subr.bf16.mxu0 0
      %5977 = vmatpush1.bf16.msra.mxu0 %v5958
      %5978 = vmatprep.subr.bf16.mxu0 0
      %5979 = vmatpush1.bf16.msra.mxu0 %v5959
      %5980 = vmatprep.subr.bf16.mxu0 0
      %5981 = vmatpush1.bf16.msra.mxu0 %v5960
      %5982 = vmatprep.subr.bf16.mxu0 0
      %5983 = vmatpush1.bf16.msra.mxu0 %v5961
      %5984 = vmatprep.subr.bf16.mxu0 0
      %5985 = vmatpush1.bf16.msra.mxu0 %v5962
      %5986 = vmatprep.subr.bf16.mxu0 0
      %5987 = vmatpush1.bf16.msra.mxu0 %v5963
      %5988 = vmatprep.subr.bf16.mxu0 0
      %5989 = vmatpush1.bf16.msra.mxu0 0
      %5990 = vmatprep.subr.bf16.mxu0 0
      %5991 = vmatpush1.bf16.msra.mxu0 0
      %5992 = vmatprep.subr.bf16.mxu0 0
      %5993 = vmatpush1.bf16.msra.mxu0 0
      %5994 = vmatprep.subr.bf16.mxu0 0
      %5995 = vmatpush1.bf16.msra.mxu0 0
      %5996 = vmatprep.subr.bf16.mxu0 0
      %5997 = vmatpush1.bf16.msra.mxu0 0
      %5998 = vmatprep.subr.bf16.mxu0 0
      %5999 = vmatpush1.bf16.msra.mxu0 0
      %6000 = vmatprep.subr.bf16.mxu0 0
      %6001 = vmatpush1.bf16.msra.mxu0 0
      %6002 = vmatprep.subr.bf16.mxu0 0
      %6003 = vmatpush1.bf16.msra.mxu0 0
      %6004 = vmatprep.mubr.bf16.mxu0 0
      %6005 = vmatmul.mubr.bf16.gmra.mrb[0].mxu0 %v1229
      %v6006 = vpop.f32.mrb[0].mxu0
      %v6007 = vadd.f32 %v5878, %v6006
      %v6008 = vpop.f32.mrb[0].mxu0
      %v6009 = vpop.f32.mrb[0].mxu0
      %v6010 = vadd.f32 %v5881, %v6009
      %v6011 = vpop.f32.mrb[0].mxu0
      %6012 = vmatprep.mubr.bf16.mxu0 0
      %6013 = vmatmul.mubr.bf16.gmra.mrb[0].mxu0 %v1230
      %v6014 = vpop.f32.mrb[0].mxu0
      %v6015 = vadd.f32 %v5886, %v6014
      %v6016 = vpop.f32.mrb[0].mxu0
      %v6017 = vpop.f32.mrb[0].mxu0
      %v6018 = vadd.f32 %v5889, %v6017
      %v6019 = vpop.f32.mrb[0].mxu0
      %6020 = vmatprep.mubr.bf16.mxu0 0
      %6021 = vmatmul.mubr.bf16.gmra.mrb[0].mxu0 %v1231
      %v6022 = vpop.f32.mrb[0].mxu0
      %v6023 = vadd.f32 %v5894, %v6022
      %v6024 = vpop.f32.mrb[0].mxu0
      %v6025 = vpop.f32.mrb[0].mxu0
      %v6026 = vadd.f32 %v5897, %v6025
      %v6027 = vpop.f32.mrb[0].mxu0
      %6028 = vmatprep.mubr.bf16.mxu0 0
      %6029 = vmatmul.mubr.bf16.gmra.mrb[0].mxu0 %v1232
      %v6030 = vpop.f32.mrb[0].mxu0
      %v6031 = vadd.f32 %v5902, %v6030
      %v6032 = vpop.f32.mrb[0].mxu0
      %v6033 = vpop.f32.mrb[0].mxu0
      %v6034 = vadd.f32 %v5905, %v6033
      %v6035 = vpop.f32.mrb[0].mxu0
      %6036 = vmatprep.mubr.bf16.mxu0 0
      %6037 = vmatmul.mubr.bf16.gmra.mrb[0].mxu0 %v1233
      %v6038 = vpop.f32.mrb[0].mxu0
      %v6039 = vadd.f32 %v5910, %v6038
      %v6040 = vpop.f32.mrb[0].mxu0
      %v6041 = vpop.f32.mrb[0].mxu0
      %v6042 = vadd.f32 %v5913, %v6041
      %v6043 = vpop.f32.mrb[0].mxu0
      %6044 = vmatprep.mubr.bf16.mxu0 0
      %6045 = vmatmul.mubr.bf16.gmra.mrb[0].mxu0 %v1234
      %v6046 = vpop.f32.mrb[0].mxu0
      %v6047 = vadd.f32 %v5918, %v6046
      %v6048 = vpop.f32.mrb[0].mxu0
      %v6049 = vpop.f32.mrb[0].mxu0
      %v6050 = vadd.f32 %v5921, %v6049
      %v6051 = vpop.f32.mrb[0].mxu0
      %6052 = vdwg.mxu0
      %v6053 = vld [vmem:[%s919 + $0x8] sm:$0xe]
      %v6054 = vld [vmem:[%s919 + $0xc] sm:$0xf]
      %v6055 = vld [vmem:[%s919 + $0x10] sm:$0x1]
      %v6056 = vld [vmem:[%s919 + $0x24] sm:$0xe]
      %v6057 = vld [vmem:[%s919 + $0x28] sm:$0xf]
      %v6058 = vld [vmem:[%s919 + $0x2c] sm:$0x1]
      %v6059 = vld [vmem:[%s919 + $0x40] sm:$0xe]
      %v6060 = vld [vmem:[%s919 + $0x44] sm:$0xf]
      %v6061 = vld [vmem:[%s919 + $0x48] sm:$0x1]
      %v6062 = vld [vmem:[%s919 + $0x5c] sm:$0xe]
      %v6063 = vld [vmem:[%s919 + $0x60] sm:$0xf]
      %v6064 = vld [vmem:[%s919 + $0x64] sm:$0x1]
      %v6065 = vld [vmem:[%s919 + $0x78] sm:$0xe]
      %v6066 = vld [vmem:[%s919 + $0x7c] sm:$0xf]
      %v6067 = vld [vmem:[%s919 + $0x80] sm:$0x1]
      %v6068 = vld [vmem:[%s919 + $0x94] sm:$0xe]
      %v6069 = vld [vmem:[%s919 + $0x98] sm:$0xf]
      %v6070 = vld [vmem:[%s919 + $0x9c] sm:$0x1]
      %v6089 = vrot.slane %v6053, 5
      %v6090 = vrot.slane %v6089, 4
      %v6091 = vrot.slane %v6054, 5
      %v6092 = vsel %vm1146, %v6090, %v6091
      %v6093 = vrot.slane %v6091, 4
      %v6094 = vrot.slane %v6055, 5
      %v6095 = vsel %vm1146, %v6093, %v6094
      %v6096 = vrot.slane %v6056, 5
      %v6097 = vrot.slane %v6096, 4
      %v6098 = vrot.slane %v6057, 5
      %v6099 = vsel %vm1146, %v6097, %v6098
      %v6100 = vrot.slane %v6098, 4
      %v6101 = vrot.slane %v6058, 5
      %v6102 = vsel %vm1146, %v6100, %v6101
      %v6103 = vrot.slane %v6059, 5
      %v6104 = vrot.slane %v6103, 4
      %v6105 = vrot.slane %v6060, 5
      %v6106 = vsel %vm1146, %v6104, %v6105
      %v6107 = vrot.slane %v6105, 4
      %v6108 = vrot.slane %v6061, 5
      %v6109 = vsel %vm1146, %v6107, %v6108
      %v6110 = vrot.slane %v6062, 5
      %v6111 = vrot.slane %v6110, 4
      %v6112 = vrot.slane %v6063, 5
      %v6113 = vsel %vm1146, %v6111, %v6112
      %v6114 = vrot.slane %v6112, 4
      %v6115 = vrot.slane %v6064, 5
      %v6116 = vsel %vm1146, %v6114, %v6115
      %v6117 = vrot.slane %v6065, 5
      %v6118 = vrot.slane %v6117, 4
      %v6119 = vrot.slane %v6066, 5
      %v6120 = vsel %vm1146, %v6118, %v6119
      %v6121 = vrot.slane %v6119, 4
      %v6122 = vrot.slane %v6067, 5
      %v6123 = vsel %vm1146, %v6121, %v6122
      %v6124 = vrot.slane %v6068, 5
      %v6125 = vrot.slane %v6124, 4
      %v6126 = vrot.slane %v6069, 5
      %v6127 = vsel %vm1146, %v6125, %v6126
      %v6128 = vrot.slane %v6126, 4
      %v6129 = vrot.slane %v6070, 5
      %v6130 = vsel %vm1146, %v6128, %v6129
      %s6131 = scalar_lea.vmem %s1039, 64
      %v6132 = vld [vmem:[%s6131] sm:$0xf]
      %v6133 = vld [vmem:[%s6131 + $0x4] sm:$0xf]
      %v6134 = vld [vmem:[%s6131 + $0x8] sm:$0xf]
      %v6135 = vld [vmem:[%s6131 + $0xc] sm:$0xf]
      %v6136 = vld [vmem:[%s6131 + $0x10] sm:$0xf]
      %v6137 = vld [vmem:[%s6131 + $0x14] sm:$0xf]
      %v6138 = vld [vmem:[%s6131 + $0x18] sm:$0xf]
      %v6139 = vld [vmem:[%s6131 + $0x1c] sm:$0xf]
      %v6140 = vld [vmem:[%s6131 + $0x20] sm:$0xf]
      %v6141 = vld [vmem:[%s6131 + $0x24] sm:$0xf]
      %v6142 = vld [vmem:[%s6131 + $0x28] sm:$0xf]
      %v6143 = vld [vmem:[%s6131 + $0x2c] sm:$0xf]
      %v6144 = vld [vmem:[%s6131 + $0x30] sm:$0xf]
      %v6145 = vld [vmem:[%s6131 + $0x34] sm:$0xf]
      %v6146 = vld [vmem:[%s6131 + $0x38] sm:$0xf]
      %v6147 = vld [vmem:[%s6131 + $0x3c] sm:$0xf]
      %v6148 = vunpack.c.l.b16 %v6092
      %v6149 = vunpack.c.l.b16 %v6095
      %v6150 = vunpack.c.l.b16 %v6099
      %v6151 = vunpack.c.l.b16 %v6102
      %v6152 = vunpack.c.l.b16 %v6106
      %v6153 = vunpack.c.l.b16 %v6109
      %v6154 = vunpack.c.l.b16 %v6113
      %v6155 = vunpack.c.l.b16 %v6116
      %v6156 = vunpack.c.l.b16 %v6120
      %v6157 = vunpack.c.l.b16 %v6123
      %v6158 = vunpack.c.l.b16 %v6127
      %v6159 = vunpack.c.l.b16 %v6130
      %v6160 = vpack.c.b16 %v6149, %v6148
      %v6161 = vpack.c.b16 %v6151, %v6150
      %v6162 = vpack.c.b16 %v6153, %v6152
      %v6163 = vpack.c.b16 %v6155, %v6154
      %v6164 = vpack.c.b16 %v6157, %v6156
      %v6165 = vpack.c.b16 %v6159, %v6158
      %v6188 = vunpack.c.l.b16 %v6132
      %v6189 = vunpack.c.l.b16 %v6133
      %v6190 = vunpack.c.l.b16 %v6134
      %v6191 = vunpack.c.l.b16 %v6135
      %v6192 = vunpack.c.l.b16 %v6136
      %v6193 = vunpack.c.l.b16 %v6137
      %v6194 = vunpack.c.l.b16 %v6138
      %v6195 = vunpack.c.l.b16 %v6139
      %v6196 = vunpack.c.l.b16 %v6140
      %v6197 = vunpack.c.l.b16 %v6141
      %v6198 = vunpack.c.l.b16 %v6142
      %v6199 = vunpack.c.l.b16 %v6143
      %v6200 = vunpack.c.l.b16 %v6144
      %v6201 = vunpack.c.l.b16 %v6145
      %v6202 = vunpack.c.l.b16 %v6146
      %v6203 = vunpack.c.l.b16 %v6147
      %v6204 = vpack.c.b16 %v6189, %v6188
      %v6205 = vpack.c.b16 %v6191, %v6190
      %v6206 = vpack.c.b16 %v6193, %v6192
      %v6207 = vpack.c.b16 %v6195, %v6194
      %v6208 = vpack.c.b16 %v6197, %v6196
      %v6209 = vpack.c.b16 %v6199, %v6198
      %v6210 = vpack.c.b16 %v6201, %v6200
      %v6211 = vpack.c.b16 %v6203, %v6202
      %6220 = vmatprep.subr.bf16.mxu0 0
      %6221 = vmatpush1.bf16.msra.mxu0 %v6204
      %6222 = vmatprep.subr.bf16.mxu0 0
      %6223 = vmatpush1.bf16.msra.mxu0 %v6205
      %6224 = vmatprep.subr.bf16.mxu0 0
      %6225 = vmatpush1.bf16.msra.mxu0 %v6206
      %6226 = vmatprep.subr.bf16.mxu0 0
      %6227 = vmatpush1.bf16.msra.mxu0 %v6207
      %6228 = vmatprep.subr.bf16.mxu0 0
      %6229 = vmatpush1.bf16.msra.mxu0 %v6208
      %6230 = vmatprep.subr.bf16.mxu0 0
      %6231 = vmatpush1.bf16.msra.mxu0 %v6209
      %6232 = vmatprep.subr.bf16.mxu0 0
      %6233 = vmatpush1.bf16.msra.mxu0 %v6210
      %6234 = vmatprep.subr.bf16.mxu0 0
      %6235 = vmatpush1.bf16.msra.mxu0 %v6211
      %6236 = vmatprep.subr.bf16.mxu0 0
      %6237 = vmatpush1.bf16.msra.mxu0 0
      %6238 = vmatprep.subr.bf16.mxu0 0
      %6239 = vmatpush1.bf16.msra.mxu0 0
      %6240 = vmatprep.subr.bf16.mxu0 0
      %6241 = vmatpush1.bf16.msra.mxu0 0
      %6242 = vmatprep.subr.bf16.mxu0 0
      %6243 = vmatpush1.bf16.msra.mxu0 0
      %6244 = vmatprep.subr.bf16.mxu0 0
      %6245 = vmatpush1.bf16.msra.mxu0 0
      %6246 = vmatprep.subr.bf16.mxu0 0
      %6247 = vmatpush1.bf16.msra.mxu0 0
      %6248 = vmatprep.subr.bf16.mxu0 0
      %6249 = vmatpush1.bf16.msra.mxu0 0
      %6250 = vmatprep.subr.bf16.mxu0 0
      %6251 = vmatpush1.bf16.msra.mxu0 0
      %6252 = vmatprep.mubr.bf16.mxu0 0
      %6253 = vmatmul.mubr.bf16.gmra.mrb[0].mxu0 %v6160
      %v6254 = vpop.f32.mrb[0].mxu0
      %v6255 = vadd.f32 0.0, %v6254
      %v6256 = vpop.f32.mrb[0].mxu0
      %v6257 = vpop.f32.mrb[0].mxu0
      %v6258 = vadd.f32 0.0, %v6257
      %v6259 = vpop.f32.mrb[0].mxu0
      %6260 = vmatprep.mubr.bf16.mxu0 0
      %6261 = vmatmul.mubr.bf16.gmra.mrb[0].mxu0 %v6161
      %v6262 = vpop.f32.mrb[0].mxu0
      %v6263 = vadd.f32 0.0, %v6262
      %v6264 = vpop.f32.mrb[0].mxu0
      %v6265 = vpop.f32.mrb[0].mxu0
      %v6266 = vadd.f32 0.0, %v6265
      %v6267 = vpop.f32.mrb[0].mxu0
      %6268 = vmatprep.mubr.bf16.mxu0 0
      %6269 = vmatmul.mubr.bf16.gmra.mrb[0].mxu0 %v6162
      %v6270 = vpop.f32.mrb[0].mxu0
      %v6271 = vadd.f32 0.0, %v6270
      %v6272 = vpop.f32.mrb[0].mxu0
      %v6273 = vpop.f32.mrb[0].mxu0
      %v6274 = vadd.f32 0.0, %v6273
      %v6275 = vpop.f32.mrb[0].mxu0
      %6276 = vmatprep.mubr.bf16.mxu0 0
      %6277 = vmatmul.mubr.bf16.gmra.mrb[0].mxu0 %v6163
      %v6278 = vpop.f32.mrb[0].mxu0
      %v6279 = vadd.f32 0.0, %v6278
      %v6280 = vpop.f32.mrb[0].mxu0
      %v6281 = vpop.f32.mrb[0].mxu0
      %v6282 = vadd.f32 0.0, %v6281
      %v6283 = vpop.f32.mrb[0].mxu0
      %6284 = vmatprep.mubr.bf16.mxu0 0
      %6285 = vmatmul.mubr.bf16.gmra.mrb[0].mxu0 %v6164
      %v6286 = vpop.f32.mrb[0].mxu0
      %v6287 = vadd.f32 0.0, %v6286
      %v6288 = vpop.f32.mrb[0].mxu0
      %v6289 = vpop.f32.mrb[0].mxu0
      %v6290 = vadd.f32 0.0, %v6289
      %v6291 = vpop.f32.mrb[0].mxu0
      %6292 = vmatprep.mubr.bf16.mxu0 0
      %6293 = vmatmul.mubr.bf16.gmra.mrb[0].mxu0 %v6165
      %v6294 = vpop.f32.mrb[0].mxu0
      %v6295 = vadd.f32 0.0, %v6294
      %v6296 = vpop.f32.mrb[0].mxu0
      %v6297 = vpop.f32.mrb[0].mxu0
      %v6298 = vadd.f32 0.0, %v6297
      %v6299 = vpop.f32.mrb[0].mxu0
      %6300 = vdwg.mxu0
      %v6301 = vadd.f32 %v6007, %v6255
      %v6302 = vadd.f32 %v6010, %v6258
      %v6303 = vadd.f32 %v6015, %v6263
      %v6304 = vadd.f32 %v6018, %v6266
      %v6305 = vadd.f32 %v6023, %v6271
      %v6306 = vadd.f32 %v6026, %v6274
      %v6307 = vadd.f32 %v6031, %v6279
      %v6308 = vadd.f32 %v6034, %v6282
      %v6309 = vadd.f32 %v6039, %v6287
      %v6310 = vadd.f32 %v6042, %v6290
      %v6311 = vadd.f32 %v6047, %v6295
      %v6312 = vadd.f32 %v6050, %v6298
      %v6313 = vld [vmem:[%s919 + $0x10] sm:$0xc]
      %v6314 = vld [vmem:[%s919 + $0x14] sm:$0xf]
      %v6315 = vld [vmem:[%s919 + $0x18] sm:$0x3]
      %v6316 = vld [vmem:[%s919 + $0x2c] sm:$0xc]
      %v6317 = vld [vmem:[%s919 + $0x30] sm:$0xf]
      %v6318 = vld [vmem:[%s919 + $0x34] sm:$0x3]
      %v6319 = vld [vmem:[%s919 + $0x48] sm:$0xc]
      %v6320 = vld [vmem:[%s919 + $0x4c] sm:$0xf]
      %v6321 = vld [vmem:[%s919 + $0x50] sm:$0x3]
      %v6322 = vld [vmem:[%s919 + $0x64] sm:$0xc]
      %v6323 = vld [vmem:[%s919 + $0x68] sm:$0xf]
      %v6324 = vld [vmem:[%s919 + $0x6c] sm:$0x3]
      %v6325 = vld [vmem:[%s919 + $0x80] sm:$0xc]
      %v6326 = vld [vmem:[%s919 + $0x84] sm:$0xf]
      %v6327 = vld [vmem:[%s919 + $0x88] sm:$0x3]
      %v6328 = vld [vmem:[%s919 + $0x9c] sm:$0xc]
      %v6329 = vld [vmem:[%s919 + $0xa0] sm:$0xf]
      %v6330 = vld [vmem:[%s919 + $0xa4] sm:$0x3]
      %v6349 = vrot.slane %v6313, 6
      %v6350 = vrot.slane %v6349, 4
      %v6351 = vrot.slane %v6314, 6
      %v6352 = vsel %vm1449, %v6350, %v6351
      %v6353 = vrot.slane %v6351, 4
      %v6354 = vrot.slane %v6315, 6
      %v6355 = vsel %vm1449, %v6353, %v6354
      %v6356 = vrot.slane %v6316, 6
      %v6357 = vrot.slane %v6356, 4
      %v6358 = vrot.slane %v6317, 6
      %v6359 = vsel %vm1449, %v6357, %v6358
      %v6360 = vrot.slane %v6358, 4
      %v6361 = vrot.slane %v6318, 6
      %v6362 = vsel %vm1449, %v6360, %v6361
      %v6363 = vrot.slane %v6319, 6
      %v6364 = vrot.slane %v6363, 4
      %v6365 = vrot.slane %v6320, 6
      %v6366 = vsel %vm1449, %v6364, %v6365
      %v6367 = vrot.slane %v6365, 4
      %v6368 = vrot.slane %v6321, 6
      %v6369 = vsel %vm1449, %v6367, %v6368
      %v6370 = vrot.slane %v6322, 6
      %v6371 = vrot.slane %v6370, 4
      %v6372 = vrot.slane %v6323, 6
      %v6373 = vsel %vm1449, %v6371, %v6372
      %v6374 = vrot.slane %v6372, 4
      %v6375 = vrot.slane %v6324, 6
      %v6376 = vsel %vm1449, %v6374, %v6375
      %v6377 = vrot.slane %v6325, 6
      %v6378 = vrot.slane %v6377, 4
      %v6379 = vrot.slane %v6326, 6
      %v6380 = vsel %vm1449, %v6378, %v6379
      %v6381 = vrot.slane %v6379, 4
      %v6382 = vrot.slane %v6327, 6
      %v6383 = vsel %vm1449, %v6381, %v6382
      %v6384 = vrot.slane %v6328, 6
      %v6385 = vrot.slane %v6384, 4
      %v6386 = vrot.slane %v6329, 6
      %v6387 = vsel %vm1449, %v6385, %v6386
      %v6388 = vrot.slane %v6386, 4
      %v6389 = vrot.slane %v6330, 6
      %v6390 = vsel %vm1449, %v6388, %v6389
      %s6391 = scalar_lea.vmem %s1039, 128
      %v6392 = vld [vmem:[%s6391] sm:$0xf]
      %v6393 = vld [vmem:[%s6391 + $0x4] sm:$0xf]
      %v6394 = vld [vmem:[%s6391 + $0x8] sm:$0xf]
      %v6395 = vld [vmem:[%s6391 + $0xc] sm:$0xf]
      %v6396 = vld [vmem:[%s6391 + $0x10] sm:$0xf]
      %v6397 = vld [vmem:[%s6391 + $0x14] sm:$0xf]
      %v6398 = vld [vmem:[%s6391 + $0x18] sm:$0xf]
      %v6399 = vld [vmem:[%s6391 + $0x1c] sm:$0xf]
      %v6400 = vld [vmem:[%s6391 + $0x20] sm:$0xf]
      %v6401 = vld [vmem:[%s6391 + $0x24] sm:$0xf]
      %v6402 = vld [vmem:[%s6391 + $0x28] sm:$0xf]
      %v6403 = vld [vmem:[%s6391 + $0x2c] sm:$0xf]
      %v6404 = vld [vmem:[%s6391 + $0x30] sm:$0xf]
      %v6405 = vld [vmem:[%s6391 + $0x34] sm:$0xf]
      %v6406 = vld [vmem:[%s6391 + $0x38] sm:$0xf]
      %v6407 = vld [vmem:[%s6391 + $0x3c] sm:$0xf]
      %v6408 = vunpack.c.l.b16 %v6352
      %v6409 = vunpack.c.l.b16 %v6355
      %v6410 = vunpack.c.l.b16 %v6359
      %v6411 = vunpack.c.l.b16 %v6362
      %v6412 = vunpack.c.l.b16 %v6366
      %v6413 = vunpack.c.l.b16 %v6369
      %v6414 = vunpack.c.l.b16 %v6373
      %v6415 = vunpack.c.l.b16 %v6376
      %v6416 = vunpack.c.l.b16 %v6380
      %v6417 = vunpack.c.l.b16 %v6383
      %v6418 = vunpack.c.l.b16 %v6387
      %v6419 = vunpack.c.l.b16 %v6390
      %v6420 = vpack.c.b16 %v6409, %v6408
      %v6421 = vpack.c.b16 %v6411, %v6410
      %v6422 = vpack.c.b16 %v6413, %v6412
      %v6423 = vpack.c.b16 %v6415, %v6414
      %v6424 = vpack.c.b16 %v6417, %v6416
      %v6425 = vpack.c.b16 %v6419, %v6418
      %v6448 = vunpack.c.l.b16 %v6392
      %v6449 = vunpack.c.l.b16 %v6393
      %v6450 = vunpack.c.l.b16 %v6394
      %v6451 = vunpack.c.l.b16 %v6395
      %v6452 = vunpack.c.l.b16 %v6396
      %v6453 = vunpack.c.l.b16 %v6397
      %v6454 = vunpack.c.l.b16 %v6398
      %v6455 = vunpack.c.l.b16 %v6399
      %v6456 = vunpack.c.l.b16 %v6400
      %v6457 = vunpack.c.l.b16 %v6401
      %v6458 = vunpack.c.l.b16 %v6402
      %v6459 = vunpack.c.l.b16 %v6403
      %v6460 = vunpack.c.l.b16 %v6404
      %v6461 = vunpack.c.l.b16 %v6405
      %v6462 = vunpack.c.l.b16 %v6406
      %v6463 = vunpack.c.l.b16 %v6407
      %v6464 = vpack.c.b16 %v6449, %v6448
      %v6465 = vpack.c.b16 %v6451, %v6450
      %v6466 = vpack.c.b16 %v6453, %v6452
      %v6467 = vpack.c.b16 %v6455, %v6454
      %v6468 = vpack.c.b16 %v6457, %v6456
      %v6469 = vpack.c.b16 %v6459, %v6458
      %v6470 = vpack.c.b16 %v6461, %v6460
      %v6471 = vpack.c.b16 %v6463, %v6462
      %6480 = vmatprep.subr.bf16.mxu0 0
      %6481 = vmatpush1.bf16.msra.mxu0 %v6464
      %6482 = vmatprep.subr.bf16.mxu0 0
      %6483 = vmatpush1.bf16.msra.mxu0 %v6465
      %6484 = vmatprep.subr.bf16.mxu0 0
      %6485 = vmatpush1.bf16.msra.mxu0 %v6466
      %6486 = vmatprep.subr.bf16.mxu0 0
      %6487 = vmatpush1.bf16.msra.mxu0 %v6467
      %6488 = vmatprep.subr.bf16.mxu0 0
      %6489 = vmatpush1.bf16.msra.mxu0 %v6468
      %6490 = vmatprep.subr.bf16.mxu0 0
      %6491 = vmatpush1.bf16.msra.mxu0 %v6469
      %6492 = vmatprep.subr.bf16.mxu0 0
      %6493 = vmatpush1.bf16.msra.mxu0 %v6470
      %6494 = vmatprep.subr.bf16.mxu0 0
      %6495 = vmatpush1.bf16.msra.mxu0 %v6471
      %6496 = vmatprep.subr.bf16.mxu0 0
      %6497 = vmatpush1.bf16.msra.mxu0 0
      %6498 = vmatprep.subr.bf16.mxu0 0
      %6499 = vmatpush1.bf16.msra.mxu0 0
      %6500 = vmatprep.subr.bf16.mxu0 0
      %6501 = vmatpush1.bf16.msra.mxu0 0
      %6502 = vmatprep.subr.bf16.mxu0 0
      %6503 = vmatpush1.bf16.msra.mxu0 0
      %6504 = vmatprep.subr.bf16.mxu0 0
      %6505 = vmatpush1.bf16.msra.mxu0 0
      %6506 = vmatprep.subr.bf16.mxu0 0
      %6507 = vmatpush1.bf16.msra.mxu0 0
      %6508 = vmatprep.subr.bf16.mxu0 0
      %6509 = vmatpush1.bf16.msra.mxu0 0
      %6510 = vmatprep.subr.bf16.mxu0 0
      %6511 = vmatpush1.bf16.msra.mxu0 0
      %6512 = vmatprep.mubr.bf16.mxu0 0
      %6513 = vmatmul.mubr.bf16.gmra.mrb[0].mxu0 %v6420
      %v6514 = vpop.f32.mrb[0].mxu0
      %v6515 = vadd.f32 0.0, %v6514
      %v6516 = vpop.f32.mrb[0].mxu0
      %v6517 = vpop.f32.mrb[0].mxu0
      %v6518 = vadd.f32 0.0, %v6517
      %v6519 = vpop.f32.mrb[0].mxu0
      %6520 = vmatprep.mubr.bf16.mxu0 0
      %6521 = vmatmul.mubr.bf16.gmra.mrb[0].mxu0 %v6421
      %v6522 = vpop.f32.mrb[0].mxu0
      %v6523 = vadd.f32 0.0, %v6522
      %v6524 = vpop.f32.mrb[0].mxu0
      %v6525 = vpop.f32.mrb[0].mxu0
      %v6526 = vadd.f32 0.0, %v6525
      %v6527 = vpop.f32.mrb[0].mxu0
      %6528 = vmatprep.mubr.bf16.mxu0 0
      %6529 = vmatmul.mubr.bf16.gmra.mrb[0].mxu0 %v6422
      %v6530 = vpop.f32.mrb[0].mxu0
      %v6531 = vadd.f32 0.0, %v6530
      %v6532 = vpop.f32.mrb[0].mxu0
      %v6533 = vpop.f32.mrb[0].mxu0
      %v6534 = vadd.f32 0.0, %v6533
      %v6535 = vpop.f32.mrb[0].mxu0
      %6536 = vmatprep.mubr.bf16.mxu0 0
      %6537 = vmatmul.mubr.bf16.gmra.mrb[0].mxu0 %v6423
      %v6538 = vpop.f32.mrb[0].mxu0
      %v6539 = vadd.f32 0.0, %v6538
      %v6540 = vpop.f32.mrb[0].mxu0
      %v6541 = vpop.f32.mrb[0].mxu0
      %v6542 = vadd.f32 0.0, %v6541
      %v6543 = vpop.f32.mrb[0].mxu0
      %6544 = vmatprep.mubr.bf16.mxu0 0
      %6545 = vmatmul.mubr.bf16.gmra.mrb[0].mxu0 %v6424
      %v6546 = vpop.f32.mrb[0].mxu0
      %v6547 = vadd.f32 0.0, %v6546
      %v6548 = vpop.f32.mrb[0].mxu0
      %v6549 = vpop.f32.mrb[0].mxu0
      %v6550 = vadd.f32 0.0, %v6549
      %v6551 = vpop.f32.mrb[0].mxu0
      %6552 = vmatprep.mubr.bf16.mxu0 0
      %6553 = vmatmul.mubr.bf16.gmra.mrb[0].mxu0 %v6425
      %v6554 = vpop.f32.mrb[0].mxu0
      %v6555 = vadd.f32 0.0, %v6554
      %v6556 = vpop.f32.mrb[0].mxu0
      %v6557 = vpop.f32.mrb[0].mxu0
      %v6558 = vadd.f32 0.0, %v6557
      %v6559 = vpop.f32.mrb[0].mxu0
      %6560 = vdwg.mxu0
      %v6561 = vadd.f32 %v6301, %v6515
      %v6562 = vadd.f32 %v6302, %v6518
      %v6563 = vadd.f32 %v6303, %v6523
      %v6564 = vadd.f32 %v6304, %v6526
      %v6565 = vadd.f32 %v6305, %v6531
      %v6566 = vadd.f32 %v6306, %v6534
      %v6567 = vadd.f32 %v6307, %v6539
      %v6568 = vadd.f32 %v6308, %v6542
      %v6569 = vadd.f32 %v6309, %v6547
      %v6570 = vadd.f32 %v6310, %v6550
      %v6571 = vadd.f32 %v6311, %v6555
      %v6572 = vadd.f32 %v6312, %v6558
      %v6573 = vld [vmem:[%s966] sm:$0xf]
      %v6574 = vld [vmem:[%s966 + $0x4] sm:$0xf]
      %v6575 = vld [vmem:[%s966 + $0x1c] sm:$0xf]
      %v6576 = vld [vmem:[%s966 + $0x20] sm:$0xf]
      %v6577 = vld [vmem:[%s966 + $0x38] sm:$0xf]
      %v6578 = vld [vmem:[%s966 + $0x3c] sm:$0xf]
      %v6579 = vld [vmem:[%s966 + $0x54] sm:$0xf]
      %v6580 = vld [vmem:[%s966 + $0x58] sm:$0xf]
      %v6581 = vld [vmem:[%s966 + $0x70] sm:$0xf]
      %v6582 = vld [vmem:[%s966 + $0x74] sm:$0xf]
      %v6583 = vld [vmem:[%s966 + $0x8c] sm:$0xf]
      %v6584 = vld [vmem:[%s966 + $0x90] sm:$0xf]
      %s6585 = scalar_lea.vmem %s1039, 192
      %v6586 = vld [vmem:[%s6585] sm:$0xf]
      %v6587 = vld [vmem:[%s6585 + $0x4] sm:$0xf]
      %v6588 = vld [vmem:[%s6585 + $0x8] sm:$0xf]
      %v6589 = vld [vmem:[%s6585 + $0xc] sm:$0xf]
      %v6590 = vld [vmem:[%s6585 + $0x10] sm:$0xf]
      %v6591 = vld [vmem:[%s6585 + $0x14] sm:$0xf]
      %v6592 = vld [vmem:[%s6585 + $0x18] sm:$0xf]
      %v6593 = vld [vmem:[%s6585 + $0x1c] sm:$0xf]
      %v6594 = vld [vmem:[%s6585 + $0x20] sm:$0xf]
      %v6595 = vld [vmem:[%s6585 + $0x24] sm:$0xf]
      %v6596 = vld [vmem:[%s6585 + $0x28] sm:$0xf]
      %v6597 = vld [vmem:[%s6585 + $0x2c] sm:$0xf]
      %v6598 = vld [vmem:[%s6585 + $0x30] sm:$0xf]
      %v6599 = vld [vmem:[%s6585 + $0x34] sm:$0xf]
      %v6600 = vld [vmem:[%s6585 + $0x38] sm:$0xf]
      %v6601 = vld [vmem:[%s6585 + $0x3c] sm:$0xf]
      %v6614 = vunpack.c.l.b16 %v6573
      %v6615 = vunpack.c.l.b16 %v6574
      %v6616 = vunpack.c.l.b16 %v6575
      %v6617 = vunpack.c.l.b16 %v6576
      %v6618 = vunpack.c.l.b16 %v6577
      %v6619 = vunpack.c.l.b16 %v6578
      %v6620 = vunpack.c.l.b16 %v6579
      %v6621 = vunpack.c.l.b16 %v6580
      %v6622 = vunpack.c.l.b16 %v6581
      %v6623 = vunpack.c.l.b16 %v6582
      %v6624 = vunpack.c.l.b16 %v6583
      %v6625 = vunpack.c.l.b16 %v6584
      %v6626 = vpack.c.b16 %v6615, %v6614
      %v6627 = vpack.c.b16 %v6617, %v6616
      %v6628 = vpack.c.b16 %v6619, %v6618
      %v6629 = vpack.c.b16 %v6621, %v6620
      %v6630 = vpack.c.b16 %v6623, %v6622
      %v6631 = vpack.c.b16 %v6625, %v6624
      %v6654 = vunpack.c.l.b16 %v6586
      %v6655 = vunpack.c.l.b16 %v6587
      %v6656 = vunpack.c.l.b16 %v6588
      %v6657 = vunpack.c.l.b16 %v6589
      %v6658 = vunpack.c.l.b16 %v6590
      %v6659 = vunpack.c.l.b16 %v6591
      %v6660 = vunpack.c.l.b16 %v6592
      %v6661 = vunpack.c.l.b16 %v6593
      %v6662 = vunpack.c.l.b16 %v6594
      %v6663 = vunpack.c.l.b16 %v6595
      %v6664 = vunpack.c.l.b16 %v6596
      %v6665 = vunpack.c.l.b16 %v6597
      %v6666 = vunpack.c.l.b16 %v6598
      %v6667 = vunpack.c.l.b16 %v6599
      %v6668 = vunpack.c.l.b16 %v6600
      %v6669 = vunpack.c.l.b16 %v6601
      %v6670 = vpack.c.b16 %v6655, %v6654
      %v6671 = vpack.c.b16 %v6657, %v6656
      %v6672 = vpack.c.b16 %v6659, %v6658
      %v6673 = vpack.c.b16 %v6661, %v6660
      %v6674 = vpack.c.b16 %v6663, %v6662
      %v6675 = vpack.c.b16 %v6665, %v6664
      %v6676 = vpack.c.b16 %v6667, %v6666
      %v6677 = vpack.c.b16 %v6669, %v6668
      %6686 = vmatprep.subr.bf16.mxu0 0
      %6687 = vmatpush1.bf16.msra.mxu0 %v6670
      %6688 = vmatprep.subr.bf16.mxu0 0
      %6689 = vmatpush1.bf16.msra.mxu0 %v6671
      %6690 = vmatprep.subr.bf16.mxu0 0
      %6691 = vmatpush1.bf16.msra.mxu0 %v6672
      %6692 = vmatprep.subr.bf16.mxu0 0
      %6693 = vmatpush1.bf16.msra.mxu0 %v6673
      %6694 = vmatprep.subr.bf16.mxu0 0
      %6695 = vmatpush1.bf16.msra.mxu0 %v6674
      %6696 = vmatprep.subr.bf16.mxu0 0
      %6697 = vmatpush1.bf16.msra.mxu0 %v6675
      %6698 = vmatprep.subr.bf16.mxu0 0
      %6699 = vmatpush1.bf16.msra.mxu0 %v6676
      %6700 = vmatprep.subr.bf16.mxu0 0
      %6701 = vmatpush1.bf16.msra.mxu0 %v6677
      %6702 = vmatprep.subr.bf16.mxu0 0
      %6703 = vmatpush1.bf16.msra.mxu0 0
      %6704 = vmatprep.subr.bf16.mxu0 0
      %6705 = vmatpush1.bf16.msra.mxu0 0
      %6706 = vmatprep.subr.bf16.mxu0 0
      %6707 = vmatpush1.bf16.msra.mxu0 0
      %6708 = vmatprep.subr.bf16.mxu0 0
      %6709 = vmatpush1.bf16.msra.mxu0 0
      %6710 = vmatprep.subr.bf16.mxu0 0
      %6711 = vmatpush1.bf16.msra.mxu0 0
      %6712 = vmatprep.subr.bf16.mxu0 0
      %6713 = vmatpush1.bf16.msra.mxu0 0
      %6714 = vmatprep.subr.bf16.mxu0 0
      %6715 = vmatpush1.bf16.msra.mxu0 0
      %6716 = vmatprep.subr.bf16.mxu0 0
      %6717 = vmatpush1.bf16.msra.mxu0 0
      %6718 = vmatprep.mubr.bf16.mxu0 0
      %6719 = vmatmul.mubr.bf16.gmra.mrb[0].mxu0 %v6626
      %v6720 = vpop.f32.mrb[0].mxu0
      %v6721 = vadd.f32 0.0, %v6720
      %v6722 = vpop.f32.mrb[0].mxu0
      %v6723 = vpop.f32.mrb[0].mxu0
      %v6724 = vadd.f32 0.0, %v6723
      %v6725 = vpop.f32.mrb[0].mxu0
      %6726 = vmatprep.mubr.bf16.mxu0 0
      %6727 = vmatmul.mubr.bf16.gmra.mrb[0].mxu0 %v6627
      %v6728 = vpop.f32.mrb[0].mxu0
      %v6729 = vadd.f32 0.0, %v6728
      %v6730 = vpop.f32.mrb[0].mxu0
      %v6731 = vpop.f32.mrb[0].mxu0
      %v6732 = vadd.f32 0.0, %v6731
      %v6733 = vpop.f32.mrb[0].mxu0
      %6734 = vmatprep.mubr.bf16.mxu0 0
      %6735 = vmatmul.mubr.bf16.gmra.mrb[0].mxu0 %v6628
      %v6736 = vpop.f32.mrb[0].mxu0
      %v6737 = vadd.f32 0.0, %v6736
      %v6738 = vpop.f32.mrb[0].mxu0
      %v6739 = vpop.f32.mrb[0].mxu0
      %v6740 = vadd.f32 0.0, %v6739
      %v6741 = vpop.f32.mrb[0].mxu0
      %6742 = vmatprep.mubr.bf16.mxu0 0
      %6743 = vmatmul.mubr.bf16.gmra.mrb[0].mxu0 %v6629
      %v6744 = vpop.f32.mrb[0].mxu0
      %v6745 = vadd.f32 0.0, %v6744
      %v6746 = vpop.f32.mrb[0].mxu0
      %v6747 = vpop.f32.mrb[0].mxu0
      %v6748 = vadd.f32 0.0, %v6747
      %v6749 = vpop.f32.mrb[0].mxu0
      %6750 = vmatprep.mubr.bf16.mxu0 0
      %6751 = vmatmul.mubr.bf16.gmra.mrb[0].mxu0 %v6630
      %v6752 = vpop.f32.mrb[0].mxu0
      %v6753 = vadd.f32 0.0, %v6752
      %v6754 = vpop.f32.mrb[0].mxu0
      %v6755 = vpop.f32.mrb[0].mxu0
      %v6756 = vadd.f32 0.0, %v6755
      %v6757 = vpop.f32.mrb[0].mxu0
      %6758 = vmatprep.mubr.bf16.mxu0 0
      %6759 = vmatmul.mubr.bf16.gmra.mrb[0].mxu0 %v6631
      %v6760 = vpop.f32.mrb[0].mxu0
      %v6761 = vadd.f32 0.0, %v6760
      %v6762 = vpop.f32.mrb[0].mxu0
      %v6763 = vpop.f32.mrb[0].mxu0
      %v6764 = vadd.f32 0.0, %v6763
      %v6765 = vpop.f32.mrb[0].mxu0
      %6766 = vdwg.mxu0
      %v6767 = vadd.f32 %v6561, %v6721
      %v6768 = vadd.f32 %v6562, %v6724
      %v6769 = vadd.f32 %v6563, %v6729
      %v6770 = vadd.f32 %v6564, %v6732
      %v6771 = vadd.f32 %v6565, %v6737
      %v6772 = vadd.f32 %v6566, %v6740
      %v6773 = vadd.f32 %v6567, %v6745
      %v6774 = vadd.f32 %v6568, %v6748
      %v6775 = vadd.f32 %v6569, %v6753
      %v6776 = vadd.f32 %v6570, %v6756
      %v6777 = vadd.f32 %v6571, %v6761
      %v6778 = vadd.f32 %v6572, %v6764
      %v6779 = vld [vmem:[%s966 + $0x10] sm:$0xc]
      %v6780 = vld [vmem:[%s966 + $0x14] sm:$0xf]
      %v6781 = vld [vmem:[%s966 + $0x18] sm:$0x3]
      %v6782 = vld [vmem:[%s966 + $0x2c] sm:$0xc]
      %v6783 = vld [vmem:[%s966 + $0x30] sm:$0xf]
      %v6784 = vld [vmem:[%s966 + $0x34] sm:$0x3]
      %v6785 = vld [vmem:[%s966 + $0x48] sm:$0xc]
      %v6786 = vld [vmem:[%s966 + $0x4c] sm:$0xf]
      %v6787 = vld [vmem:[%s966 + $0x50] sm:$0x3]
      %v6788 = vld [vmem:[%s966 + $0x64] sm:$0xc]
      %v6789 = vld [vmem:[%s966 + $0x68] sm:$0xf]
      %v6790 = vld [vmem:[%s966 + $0x6c] sm:$0x3]
      %v6791 = vld [vmem:[%s966 + $0x80] sm:$0xc]
      %v6792 = vld [vmem:[%s966 + $0x84] sm:$0xf]
      %v6793 = vld [vmem:[%s966 + $0x88] sm:$0x3]
      %v6794 = vld [vmem:[%s966 + $0x9c] sm:$0xc]
      %v6795 = vld [vmem:[%s966 + $0xa0] sm:$0xf]
      %v6796 = vld [vmem:[%s966 + $0xa4] sm:$0x3]
      %v6815 = vrot.slane %v6779, 6
      %v6816 = vrot.slane %v6815, 4
      %v6817 = vrot.slane %v6780, 6
      %v6818 = vsel %vm1449, %v6816, %v6817
      %v6819 = vrot.slane %v6817, 4
      %v6820 = vrot.slane %v6781, 6
      %v6821 = vsel %vm1449, %v6819, %v6820
      %v6822 = vrot.slane %v6782, 6
      %v6823 = vrot.slane %v6822, 4
      %v6824 = vrot.slane %v6783, 6
      %v6825 = vsel %vm1449, %v6823, %v6824
      %v6826 = vrot.slane %v6824, 4
      %v6827 = vrot.slane %v6784, 6
      %v6828 = vsel %vm1449, %v6826, %v6827
      %v6829 = vrot.slane %v6785, 6
      %v6830 = vrot.slane %v6829, 4
      %v6831 = vrot.slane %v6786, 6
      %v6832 = vsel %vm1449, %v6830, %v6831
      %v6833 = vrot.slane %v6831, 4
      %v6834 = vrot.slane %v6787, 6
      %v6835 = vsel %vm1449, %v6833, %v6834
      %v6836 = vrot.slane %v6788, 6
      %v6837 = vrot.slane %v6836, 4
      %v6838 = vrot.slane %v6789, 6
      %v6839 = vsel %vm1449, %v6837, %v6838
      %v6840 = vrot.slane %v6838, 4
      %v6841 = vrot.slane %v6790, 6
      %v6842 = vsel %vm1449, %v6840, %v6841
      %v6843 = vrot.slane %v6791, 6
      %v6844 = vrot.slane %v6843, 4
      %v6845 = vrot.slane %v6792, 6
      %v6846 = vsel %vm1449, %v6844, %v6845
      %v6847 = vrot.slane %v6845, 4
      %v6848 = vrot.slane %v6793, 6
      %v6849 = vsel %vm1449, %v6847, %v6848
      %v6850 = vrot.slane %v6794, 6
      %v6851 = vrot.slane %v6850, 4
      %v6852 = vrot.slane %v6795, 6
      %v6853 = vsel %vm1449, %v6851, %v6852
      %v6854 = vrot.slane %v6852, 4
      %v6855 = vrot.slane %v6796, 6
      %v6856 = vsel %vm1449, %v6854, %v6855
      %s6857 = scalar_lea.vmem %s1039, 320
      %v6858 = vld [vmem:[%s6857] sm:$0xf]
      %v6859 = vld [vmem:[%s6857 + $0x4] sm:$0xf]
      %v6860 = vld [vmem:[%s6857 + $0x8] sm:$0xf]
      %v6861 = vld [vmem:[%s6857 + $0xc] sm:$0xf]
      %v6862 = vld [vmem:[%s6857 + $0x10] sm:$0xf]
      %v6863 = vld [vmem:[%s6857 + $0x14] sm:$0xf]
      %v6864 = vld [vmem:[%s6857 + $0x18] sm:$0xf]
      %v6865 = vld [vmem:[%s6857 + $0x1c] sm:$0xf]
      %v6866 = vld [vmem:[%s6857 + $0x20] sm:$0xf]
      %v6867 = vld [vmem:[%s6857 + $0x24] sm:$0xf]
      %v6868 = vld [vmem:[%s6857 + $0x28] sm:$0xf]
      %v6869 = vld [vmem:[%s6857 + $0x2c] sm:$0xf]
      %v6870 = vld [vmem:[%s6857 + $0x30] sm:$0xf]
      %v6871 = vld [vmem:[%s6857 + $0x34] sm:$0xf]
      %v6872 = vld [vmem:[%s6857 + $0x38] sm:$0xf]
      %v6873 = vld [vmem:[%s6857 + $0x3c] sm:$0xf]
      %v6874 = vunpack.c.l.b16 %v6818
      %v6875 = vunpack.c.l.b16 %v6821
      %v6876 = vunpack.c.l.b16 %v6825
      %v6877 = vunpack.c.l.b16 %v6828
      %v6878 = vunpack.c.l.b16 %v6832
      %v6879 = vunpack.c.l.b16 %v6835
      %v6880 = vunpack.c.l.b16 %v6839
      %v6881 = vunpack.c.l.b16 %v6842
      %v6882 = vunpack.c.l.b16 %v6846
      %v6883 = vunpack.c.l.b16 %v6849
      %v6884 = vunpack.c.l.b16 %v6853
      %v6885 = vunpack.c.l.b16 %v6856
      %v6886 = vpack.c.b16 %v6875, %v6874
      %v6887 = vpack.c.b16 %v6877, %v6876
      %v6888 = vpack.c.b16 %v6879, %v6878
      %v6889 = vpack.c.b16 %v6881, %v6880
      %v6890 = vpack.c.b16 %v6883, %v6882
      %v6891 = vpack.c.b16 %v6885, %v6884
      %v6914 = vunpack.c.l.b16 %v6858
      %v6915 = vunpack.c.l.b16 %v6859
      %v6916 = vunpack.c.l.b16 %v6860
      %v6917 = vunpack.c.l.b16 %v6861
      %v6918 = vunpack.c.l.b16 %v6862
      %v6919 = vunpack.c.l.b16 %v6863
      %v6920 = vunpack.c.l.b16 %v6864
      %v6921 = vunpack.c.l.b16 %v6865
      %v6922 = vunpack.c.l.b16 %v6866
      %v6923 = vunpack.c.l.b16 %v6867
      %v6924 = vunpack.c.l.b16 %v6868
      %v6925 = vunpack.c.l.b16 %v6869
      %v6926 = vunpack.c.l.b16 %v6870
      %v6927 = vunpack.c.l.b16 %v6871
      %v6928 = vunpack.c.l.b16 %v6872
      %v6929 = vunpack.c.l.b16 %v6873
      %v6930 = vpack.c.b16 %v6915, %v6914
      %v6931 = vpack.c.b16 %v6917, %v6916
      %v6932 = vpack.c.b16 %v6919, %v6918
      %v6933 = vpack.c.b16 %v6921, %v6920
      %v6934 = vpack.c.b16 %v6923, %v6922
      %v6935 = vpack.c.b16 %v6925, %v6924
      %v6936 = vpack.c.b16 %v6927, %v6926
      %v6937 = vpack.c.b16 %v6929, %v6928
      %6946 = vmatprep.subr.bf16.mxu0 0
      %6947 = vmatpush1.bf16.msra.mxu0 %v6930
      %6948 = vmatprep.subr.bf16.mxu0 0
      %6949 = vmatpush1.bf16.msra.mxu0 %v6931
      %6950 = vmatprep.subr.bf16.mxu0 0
      %6951 = vmatpush1.bf16.msra.mxu0 %v6932
      %6952 = vmatprep.subr.bf16.mxu0 0
      %6953 = vmatpush1.bf16.msra.mxu0 %v6933
      %6954 = vmatprep.subr.bf16.mxu0 0
      %6955 = vmatpush1.bf16.msra.mxu0 %v6934
      %6956 = vmatprep.subr.bf16.mxu0 0
      %6957 = vmatpush1.bf16.msra.mxu0 %v6935
      %6958 = vmatprep.subr.bf16.mxu0 0
      %6959 = vmatpush1.bf16.msra.mxu0 %v6936
      %6960 = vmatprep.subr.bf16.mxu0 0
      %6961 = vmatpush1.bf16.msra.mxu0 %v6937
      %6962 = vmatprep.subr.bf16.mxu0 0
      %6963 = vmatpush1.bf16.msra.mxu0 0
      %6964 = vmatprep.subr.bf16.mxu0 0
      %6965 = vmatpush1.bf16.msra.mxu0 0
      %6966 = vmatprep.subr.bf16.mxu0 0
      %6967 = vmatpush1.bf16.msra.mxu0 0
      %6968 = vmatprep.subr.bf16.mxu0 0
      %6969 = vmatpush1.bf16.msra.mxu0 0
      %6970 = vmatprep.subr.bf16.mxu0 0
      %6971 = vmatpush1.bf16.msra.mxu0 0
      %6972 = vmatprep.subr.bf16.mxu0 0
      %6973 = vmatpush1.bf16.msra.mxu0 0
      %6974 = vmatprep.subr.bf16.mxu0 0
      %6975 = vmatpush1.bf16.msra.mxu0 0
      %6976 = vmatprep.subr.bf16.mxu0 0
      %6977 = vmatpush1.bf16.msra.mxu0 0
      %6978 = vmatprep.mubr.bf16.mxu0 0
      %6979 = vmatmul.mubr.bf16.gmra.mrb[0].mxu0 %v6886
      %v6980 = vpop.f32.mrb[0].mxu0
      %v6981 = vadd.f32 0.0, %v6980
      %v6982 = vpop.f32.mrb[0].mxu0
      %v6983 = vpop.f32.mrb[0].mxu0
      %v6984 = vadd.f32 0.0, %v6983
      %v6985 = vpop.f32.mrb[0].mxu0
      %6986 = vmatprep.mubr.bf16.mxu0 0
      %6987 = vmatmul.mubr.bf16.gmra.mrb[0].mxu0 %v6887
      %v6988 = vpop.f32.mrb[0].mxu0
      %v6989 = vadd.f32 0.0, %v6988
      %v6990 = vpop.f32.mrb[0].mxu0
      %v6991 = vpop.f32.mrb[0].mxu0
      %v6992 = vadd.f32 0.0, %v6991
      %v6993 = vpop.f32.mrb[0].mxu0
      %6994 = vmatprep.mubr.bf16.mxu0 0
      %6995 = vmatmul.mubr.bf16.gmra.mrb[0].mxu0 %v6888
      %v6996 = vpop.f32.mrb[0].mxu0
      %v6997 = vadd.f32 0.0, %v6996
      %v6998 = vpop.f32.mrb[0].mxu0
      %v6999 = vpop.f32.mrb[0].mxu0
      %v7000 = vadd.f32 0.0, %v6999
      %v7001 = vpop.f32.mrb[0].mxu0
      %7002 = vmatprep.mubr.bf16.mxu0 0
      %7003 = vmatmul.mubr.bf16.gmra.mrb[0].mxu0 %v6889
      %v7004 = vpop.f32.mrb[0].mxu0
      %v7005 = vadd.f32 0.0, %v7004
      %v7006 = vpop.f32.mrb[0].mxu0
      %v7007 = vpop.f32.mrb[0].mxu0
      %v7008 = vadd.f32 0.0, %v7007
      %v7009 = vpop.f32.mrb[0].mxu0
      %7010 = vmatprep.mubr.bf16.mxu0 0
      %7011 = vmatmul.mubr.bf16.gmra.mrb[0].mxu0 %v6890
      %v7012 = vpop.f32.mrb[0].mxu0
      %v7013 = vadd.f32 0.0, %v7012
      %v7014 = vpop.f32.mrb[0].mxu0
      %v7015 = vpop.f32.mrb[0].mxu0
      %v7016 = vadd.f32 0.0, %v7015
      %v7017 = vpop.f32.mrb[0].mxu0
      %7018 = vmatprep.mubr.bf16.mxu0 0
      %7019 = vmatmul.mubr.bf16.gmra.mrb[0].mxu0 %v6891
      %v7020 = vpop.f32.mrb[0].mxu0
      %v7021 = vadd.f32 0.0, %v7020
      %v7022 = vpop.f32.mrb[0].mxu0
      %v7023 = vpop.f32.mrb[0].mxu0
      %v7024 = vadd.f32 0.0, %v7023
      %v7025 = vpop.f32.mrb[0].mxu0
      %7026 = vdwg.mxu0
      %v7027 = vadd.f32 %v6767, %v6981
      %v7028 = vadd.f32 %v6768, %v6984
      %v7029 = vadd.f32 %v6769, %v6989
      %v7030 = vadd.f32 %v6770, %v6992
      %v7031 = vadd.f32 %v6771, %v6997
      %v7032 = vadd.f32 %v6772, %v7000
      %v7033 = vadd.f32 %v6773, %v7005
      %v7034 = vadd.f32 %v6774, %v7008
      %v7035 = vadd.f32 %v6775, %v7013
      %v7036 = vadd.f32 %v6776, %v7016
      %v7037 = vadd.f32 %v6777, %v7021
      %v7038 = vadd.f32 %v6778, %v7024
      %v7039 = vld [vmem:[%s1014] sm:$0xf]
      %v7040 = vld [vmem:[%s1014 + $0x4] sm:$0xf]
      %v7041 = vld [vmem:[%s1014 + $0x1c] sm:$0xf]
      %v7042 = vld [vmem:[%s1014 + $0x20] sm:$0xf]
      %v7043 = vld [vmem:[%s1014 + $0x38] sm:$0xf]
      %v7044 = vld [vmem:[%s1014 + $0x3c] sm:$0xf]
      %v7045 = vld [vmem:[%s1014 + $0x54] sm:$0xf]
      %v7046 = vld [vmem:[%s1014 + $0x58] sm:$0xf]
      %v7047 = vld [vmem:[%s1014 + $0x70] sm:$0xf]
      %v7048 = vld [vmem:[%s1014 + $0x74] sm:$0xf]
      %v7049 = vld [vmem:[%s1014 + $0x8c] sm:$0xf]
      %v7050 = vld [vmem:[%s1014 + $0x90] sm:$0xf]
      %s7051 = scalar_lea.vmem %s1039, 384
      %v7052 = vld [vmem:[%s7051] sm:$0xf]
      %v7053 = vld [vmem:[%s7051 + $0x4] sm:$0xf]
      %v7054 = vld [vmem:[%s7051 + $0x8] sm:$0xf]
      %v7055 = vld [vmem:[%s7051 + $0xc] sm:$0xf]
      %v7056 = vld [vmem:[%s7051 + $0x10] sm:$0xf]
      %v7057 = vld [vmem:[%s7051 + $0x14] sm:$0xf]
      %v7058 = vld [vmem:[%s7051 + $0x18] sm:$0xf]
      %v7059 = vld [vmem:[%s7051 + $0x1c] sm:$0xf]
      %v7060 = vld [vmem:[%s7051 + $0x20] sm:$0xf]
      %v7061 = vld [vmem:[%s7051 + $0x24] sm:$0xf]
      %v7062 = vld [vmem:[%s7051 + $0x28] sm:$0xf]
      %v7063 = vld [vmem:[%s7051 + $0x2c] sm:$0xf]
      %v7064 = vld [vmem:[%s7051 + $0x30] sm:$0xf]
      %v7065 = vld [vmem:[%s7051 + $0x34] sm:$0xf]
      %v7066 = vld [vmem:[%s7051 + $0x38] sm:$0xf]
      %v7067 = vld [vmem:[%s7051 + $0x3c] sm:$0xf]
      %v7080 = vunpack.c.l.b16 %v7039
      %v7081 = vunpack.c.l.b16 %v7040
      %v7082 = vunpack.c.l.b16 %v7041
      %v7083 = vunpack.c.l.b16 %v7042
      %v7084 = vunpack.c.l.b16 %v7043
      %v7085 = vunpack.c.l.b16 %v7044
      %v7086 = vunpack.c.l.b16 %v7045
      %v7087 = vunpack.c.l.b16 %v7046
      %v7088 = vunpack.c.l.b16 %v7047
      %v7089 = vunpack.c.l.b16 %v7048
      %v7090 = vunpack.c.l.b16 %v7049
      %v7091 = vunpack.c.l.b16 %v7050
      %v7092 = vpack.c.b16 %v7081, %v7080
      %v7093 = vpack.c.b16 %v7083, %v7082
      %v7094 = vpack.c.b16 %v7085, %v7084
      %v7095 = vpack.c.b16 %v7087, %v7086
      %v7096 = vpack.c.b16 %v7089, %v7088
      %v7097 = vpack.c.b16 %v7091, %v7090
      %v7120 = vunpack.c.l.b16 %v7052
      %v7121 = vunpack.c.l.b16 %v7053
      %v7122 = vunpack.c.l.b16 %v7054
      %v7123 = vunpack.c.l.b16 %v7055
      %v7124 = vunpack.c.l.b16 %v7056
      %v7125 = vunpack.c.l.b16 %v7057
      %v7126 = vunpack.c.l.b16 %v7058
      %v7127 = vunpack.c.l.b16 %v7059
      %v7128 = vunpack.c.l.b16 %v7060
      %v7129 = vunpack.c.l.b16 %v7061
      %v7130 = vunpack.c.l.b16 %v7062
      %v7131 = vunpack.c.l.b16 %v7063
      %v7132 = vunpack.c.l.b16 %v7064
      %v7133 = vunpack.c.l.b16 %v7065
      %v7134 = vunpack.c.l.b16 %v7066
      %v7135 = vunpack.c.l.b16 %v7067
      %v7136 = vpack.c.b16 %v7121, %v7120
      %v7137 = vpack.c.b16 %v7123, %v7122
      %v7138 = vpack.c.b16 %v7125, %v7124
      %v7139 = vpack.c.b16 %v7127, %v7126
      %v7140 = vpack.c.b16 %v7129, %v7128
      %v7141 = vpack.c.b16 %v7131, %v7130
      %v7142 = vpack.c.b16 %v7133, %v7132
      %v7143 = vpack.c.b16 %v7135, %v7134
      %7152 = vmatprep.subr.bf16.mxu0 0
      %7153 = vmatpush1.bf16.msra.mxu0 %v7136
      %7154 = vmatprep.subr.bf16.mxu0 0
      %7155 = vmatpush1.bf16.msra.mxu0 %v7137
      %7156 = vmatprep.subr.bf16.mxu0 0
      %7157 = vmatpush1.bf16.msra.mxu0 %v7138
      %7158 = vmatprep.subr.bf16.mxu0 0
      %7159 = vmatpush1.bf16.msra.mxu0 %v7139
      %7160 = vmatprep.subr.bf16.mxu0 0
      %7161 = vmatpush1.bf16.msra.mxu0 %v7140
      %7162 = vmatprep.subr.bf16.mxu0 0
      %7163 = vmatpush1.bf16.msra.mxu0 %v7141
      %7164 = vmatprep.subr.bf16.mxu0 0
      %7165 = vmatpush1.bf16.msra.mxu0 %v7142
      %7166 = vmatprep.subr.bf16.mxu0 0
      %7167 = vmatpush1.bf16.msra.mxu0 %v7143
      %7168 = vmatprep.subr.bf16.mxu0 0
      %7169 = vmatpush1.bf16.msra.mxu0 0
      %7170 = vmatprep.subr.bf16.mxu0 0
      %7171 = vmatpush1.bf16.msra.mxu0 0
      %7172 = vmatprep.subr.bf16.mxu0 0
      %7173 = vmatpush1.bf16.msra.mxu0 0
      %7174 = vmatprep.subr.bf16.mxu0 0
      %7175 = vmatpush1.bf16.msra.mxu0 0
      %7176 = vmatprep.subr.bf16.mxu0 0
      %7177 = vmatpush1.bf16.msra.mxu0 0
      %7178 = vmatprep.subr.bf16.mxu0 0
      %7179 = vmatpush1.bf16.msra.mxu0 0
      %7180 = vmatprep.subr.bf16.mxu0 0
      %7181 = vmatpush1.bf16.msra.mxu0 0
      %7182 = vmatprep.subr.bf16.mxu0 0
      %7183 = vmatpush1.bf16.msra.mxu0 0
      %7184 = vmatprep.mubr.bf16.mxu0 0
      %7185 = vmatmul.mubr.bf16.gmra.mrb[0].mxu0 %v7092
      %v7186 = vpop.f32.mrb[0].mxu0
      %v7187 = vadd.f32 0.0, %v7186
      %v7188 = vpop.f32.mrb[0].mxu0
      %v7189 = vpop.f32.mrb[0].mxu0
      %v7190 = vadd.f32 0.0, %v7189
      %v7191 = vpop.f32.mrb[0].mxu0
      %7192 = vmatprep.mubr.bf16.mxu0 0
      %7193 = vmatmul.mubr.bf16.gmra.mrb[0].mxu0 %v7093
      %v7194 = vpop.f32.mrb[0].mxu0
      %v7195 = vadd.f32 0.0, %v7194
      %v7196 = vpop.f32.mrb[0].mxu0
      %v7197 = vpop.f32.mrb[0].mxu0
      %v7198 = vadd.f32 0.0, %v7197
      %v7199 = vpop.f32.mrb[0].mxu0
      %7200 = vmatprep.mubr.bf16.mxu0 0
      %7201 = vmatmul.mubr.bf16.gmra.mrb[0].mxu0 %v7094
      %v7202 = vpop.f32.mrb[0].mxu0
      %v7203 = vadd.f32 0.0, %v7202
      %v7204 = vpop.f32.mrb[0].mxu0
      %v7205 = vpop.f32.mrb[0].mxu0
      %v7206 = vadd.f32 0.0, %v7205
      %v7207 = vpop.f32.mrb[0].mxu0
      %7208 = vmatprep.mubr.bf16.mxu0 0
      %7209 = vmatmul.mubr.bf16.gmra.mrb[0].mxu0 %v7095
      %v7210 = vpop.f32.mrb[0].mxu0
      %v7211 = vadd.f32 0.0, %v7210
      %v7212 = vpop.f32.mrb[0].mxu0
      %v7213 = vpop.f32.mrb[0].mxu0
      %v7214 = vadd.f32 0.0, %v7213
      %v7215 = vpop.f32.mrb[0].mxu0
      %7216 = vmatprep.mubr.bf16.mxu0 0
      %7217 = vmatmul.mubr.bf16.gmra.mrb[0].mxu0 %v7096
      %v7218 = vpop.f32.mrb[0].mxu0
      %v7219 = vadd.f32 0.0, %v7218
      %v7220 = vpop.f32.mrb[0].mxu0
      %v7221 = vpop.f32.mrb[0].mxu0
      %v7222 = vadd.f32 0.0, %v7221
      %v7223 = vpop.f32.mrb[0].mxu0
      %7224 = vmatprep.mubr.bf16.mxu0 0
      %7225 = vmatmul.mubr.bf16.gmra.mrb[0].mxu0 %v7097
      %v7226 = vpop.f32.mrb[0].mxu0
      %v7227 = vadd.f32 0.0, %v7226
      %v7228 = vpop.f32.mrb[0].mxu0
      %v7229 = vpop.f32.mrb[0].mxu0
      %v7230 = vadd.f32 0.0, %v7229
      %v7231 = vpop.f32.mrb[0].mxu0
      %7232 = vdwg.mxu0
      %v7233 = vadd.f32 %v7027, %v7187
      %v7234 = vadd.f32 %v7028, %v7190
      %v7235 = vadd.f32 %v7029, %v7195
      %v7236 = vadd.f32 %v7030, %v7198
      %v7237 = vadd.f32 %v7031, %v7203
      %v7238 = vadd.f32 %v7032, %v7206
      %v7239 = vadd.f32 %v7033, %v7211
      %v7240 = vadd.f32 %v7034, %v7214
      %v7241 = vadd.f32 %v7035, %v7219
      %v7242 = vadd.f32 %v7036, %v7222
      %v7243 = vadd.f32 %v7037, %v7227
      %v7244 = vadd.f32 %v7038, %v7230
      %v7245 = vld [vmem:[%s1014 + $0x8] sm:$0xe]
      %v7246 = vld [vmem:[%s1014 + $0xc] sm:$0xf]
      %v7247 = vld [vmem:[%s1014 + $0x10] sm:$0x1]
      %v7248 = vld [vmem:[%s1014 + $0x24] sm:$0xe]
      %v7249 = vld [vmem:[%s1014 + $0x28] sm:$0xf]
      %v7250 = vld [vmem:[%s1014 + $0x2c] sm:$0x1]
      %v7251 = vld [vmem:[%s1014 + $0x40] sm:$0xe]
      %v7252 = vld [vmem:[%s1014 + $0x44] sm:$0xf]
      %v7253 = vld [vmem:[%s1014 + $0x48] sm:$0x1]
      %v7254 = vld [vmem:[%s1014 + $0x5c] sm:$0xe]
      %v7255 = vld [vmem:[%s1014 + $0x60] sm:$0xf]
      %v7256 = vld [vmem:[%s1014 + $0x64] sm:$0x1]
      %v7257 = vld [vmem:[%s1014 + $0x78] sm:$0xe]
      %v7258 = vld [vmem:[%s1014 + $0x7c] sm:$0xf]
      %v7259 = vld [vmem:[%s1014 + $0x80] sm:$0x1]
      %v7260 = vld [vmem:[%s1014 + $0x94] sm:$0xe]
      %v7261 = vld [vmem:[%s1014 + $0x98] sm:$0xf]
      %v7262 = vld [vmem:[%s1014 + $0x9c] sm:$0x1]
      %v7281 = vrot.slane %v7245, 5
      %v7282 = vrot.slane %v7281, 4
      %v7283 = vrot.slane %v7246, 5
      %v7284 = vsel %vm1146, %v7282, %v7283
      %v7285 = vrot.slane %v7283, 4
      %v7286 = vrot.slane %v7247, 5
      %v7287 = vsel %vm1146, %v7285, %v7286
      %v7288 = vrot.slane %v7248, 5
      %v7289 = vrot.slane %v7288, 4
      %v7290 = vrot.slane %v7249, 5
      %v7291 = vsel %vm1146, %v7289, %v7290
      %v7292 = vrot.slane %v7290, 4
      %v7293 = vrot.slane %v7250, 5
      %v7294 = vsel %vm1146, %v7292, %v7293
      %v7295 = vrot.slane %v7251, 5
      %v7296 = vrot.slane %v7295, 4
      %v7297 = vrot.slane %v7252, 5
      %v7298 = vsel %vm1146, %v7296, %v7297
      %v7299 = vrot.slane %v7297, 4
      %v7300 = vrot.slane %v7253, 5
      %v7301 = vsel %vm1146, %v7299, %v7300
      %v7302 = vrot.slane %v7254, 5
      %v7303 = vrot.slane %v7302, 4
      %v7304 = vrot.slane %v7255, 5
      %v7305 = vsel %vm1146, %v7303, %v7304
      %v7306 = vrot.slane %v7304, 4
      %v7307 = vrot.slane %v7256, 5
      %v7308 = vsel %vm1146, %v7306, %v7307
      %v7309 = vrot.slane %v7257, 5
      %v7310 = vrot.slane %v7309, 4
      %v7311 = vrot.slane %v7258, 5
      %v7312 = vsel %vm1146, %v7310, %v7311
      %v7313 = vrot.slane %v7311, 4
      %v7314 = vrot.slane %v7259, 5
      %v7315 = vsel %vm1146, %v7313, %v7314
      %v7316 = vrot.slane %v7260, 5
      %v7317 = vrot.slane %v7316, 4
      %v7318 = vrot.slane %v7261, 5
      %v7319 = vsel %vm1146, %v7317, %v7318
      %v7320 = vrot.slane %v7318, 4
      %v7321 = vrot.slane %v7262, 5
      %v7322 = vsel %vm1146, %v7320, %v7321
      %s7323 = scalar_lea.vmem %s1039, 448
      %v7324 = vld [vmem:[%s7323] sm:$0xf]
      %v7325 = vld [vmem:[%s7323 + $0x4] sm:$0xf]
      %v7326 = vld [vmem:[%s7323 + $0x8] sm:$0xf]
      %v7327 = vld [vmem:[%s7323 + $0xc] sm:$0xf]
      %v7328 = vld [vmem:[%s7323 + $0x10] sm:$0xf]
      %v7329 = vld [vmem:[%s7323 + $0x14] sm:$0xf]
      %v7330 = vld [vmem:[%s7323 + $0x18] sm:$0xf]
      %v7331 = vld [vmem:[%s7323 + $0x1c] sm:$0xf]
      %v7332 = vld [vmem:[%s7323 + $0x20] sm:$0xf]
      %v7333 = vld [vmem:[%s7323 + $0x24] sm:$0xf]
      %v7334 = vld [vmem:[%s7323 + $0x28] sm:$0xf]
      %v7335 = vld [vmem:[%s7323 + $0x2c] sm:$0xf]
      %v7336 = vld [vmem:[%s7323 + $0x30] sm:$0xf]
      %v7337 = vld [vmem:[%s7323 + $0x34] sm:$0xf]
      %v7338 = vld [vmem:[%s7323 + $0x38] sm:$0xf]
      %v7339 = vld [vmem:[%s7323 + $0x3c] sm:$0xf]
      %v7340 = vunpack.c.l.b16 %v7284
      %v7341 = vunpack.c.l.b16 %v7287
      %v7342 = vunpack.c.l.b16 %v7291
      %v7343 = vunpack.c.l.b16 %v7294
      %v7344 = vunpack.c.l.b16 %v7298
      %v7345 = vunpack.c.l.b16 %v7301
      %v7346 = vunpack.c.l.b16 %v7305
      %v7347 = vunpack.c.l.b16 %v7308
      %v7348 = vunpack.c.l.b16 %v7312
      %v7349 = vunpack.c.l.b16 %v7315
      %v7350 = vunpack.c.l.b16 %v7319
      %v7351 = vunpack.c.l.b16 %v7322
      %v7352 = vpack.c.b16 %v7341, %v7340
      %v7353 = vpack.c.b16 %v7343, %v7342
      %v7354 = vpack.c.b16 %v7345, %v7344
      %v7355 = vpack.c.b16 %v7347, %v7346
      %v7356 = vpack.c.b16 %v7349, %v7348
      %v7357 = vpack.c.b16 %v7351, %v7350
      %v7380 = vunpack.c.l.b16 %v7324
      %v7381 = vunpack.c.l.b16 %v7325
      %v7382 = vunpack.c.l.b16 %v7326
      %v7383 = vunpack.c.l.b16 %v7327
      %v7384 = vunpack.c.l.b16 %v7328
      %v7385 = vunpack.c.l.b16 %v7329
      %v7386 = vunpack.c.l.b16 %v7330
      %v7387 = vunpack.c.l.b16 %v7331
      %v7388 = vunpack.c.l.b16 %v7332
      %v7389 = vunpack.c.l.b16 %v7333
      %v7390 = vunpack.c.l.b16 %v7334
      %v7391 = vunpack.c.l.b16 %v7335
      %v7392 = vunpack.c.l.b16 %v7336
      %v7393 = vunpack.c.l.b16 %v7337
      %v7394 = vunpack.c.l.b16 %v7338
      %v7395 = vunpack.c.l.b16 %v7339
      %v7396 = vpack.c.b16 %v7381, %v7380
      %v7397 = vpack.c.b16 %v7383, %v7382
      %v7398 = vpack.c.b16 %v7385, %v7384
      %v7399 = vpack.c.b16 %v7387, %v7386
      %v7400 = vpack.c.b16 %v7389, %v7388
      %v7401 = vpack.c.b16 %v7391, %v7390
      %v7402 = vpack.c.b16 %v7393, %v7392
      %v7403 = vpack.c.b16 %v7395, %v7394
      %7412 = vmatprep.subr.bf16.mxu0 0
      %7413 = vmatpush1.bf16.msra.mxu0 %v7396
      %7414 = vmatprep.subr.bf16.mxu0 0
      %7415 = vmatpush1.bf16.msra.mxu0 %v7397
      %7416 = vmatprep.subr.bf16.mxu0 0
      %7417 = vmatpush1.bf16.msra.mxu0 %v7398
      %7418 = vmatprep.subr.bf16.mxu0 0
      %7419 = vmatpush1.bf16.msra.mxu0 %v7399
      %7420 = vmatprep.subr.bf16.mxu0 0
      %7421 = vmatpush1.bf16.msra.mxu0 %v7400
      %7422 = vmatprep.subr.bf16.mxu0 0
      %7423 = vmatpush1.bf16.msra.mxu0 %v7401
      %7424 = vmatprep.subr.bf16.mxu0 0
      %7425 = vmatpush1.bf16.msra.mxu0 %v7402
      %7426 = vmatprep.subr.bf16.mxu0 0
      %7427 = vmatpush1.bf16.msra.mxu0 %v7403
      %7428 = vmatprep.subr.bf16.mxu0 0
      %7429 = vmatpush1.bf16.msra.mxu0 0
      %7430 = vmatprep.subr.bf16.mxu0 0
      %7431 = vmatpush1.bf16.msra.mxu0 0
      %7432 = vmatprep.subr.bf16.mxu0 0
      %7433 = vmatpush1.bf16.msra.mxu0 0
      %7434 = vmatprep.subr.bf16.mxu0 0
      %7435 = vmatpush1.bf16.msra.mxu0 0
      %7436 = vmatprep.subr.bf16.mxu0 0
      %7437 = vmatpush1.bf16.msra.mxu0 0
      %7438 = vmatprep.subr.bf16.mxu0 0
      %7439 = vmatpush1.bf16.msra.mxu0 0
      %7440 = vmatprep.subr.bf16.mxu0 0
      %7441 = vmatpush1.bf16.msra.mxu0 0
      %7442 = vmatprep.subr.bf16.mxu0 0
      %7443 = vmatpush1.bf16.msra.mxu0 0
      %7444 = vmatprep.mubr.bf16.mxu0 0
      %7445 = vmatmul.mubr.bf16.gmra.mrb[0].mxu0 %v7352
      %v7446 = vpop.f32.mrb[0].mxu0
      %v7447 = vadd.f32 0.0, %v7446
      %v7448 = vpop.f32.mrb[0].mxu0
      %v7449 = vpop.f32.mrb[0].mxu0
      %v7450 = vadd.f32 0.0, %v7449
      %v7451 = vpop.f32.mrb[0].mxu0
      %7452 = vmatprep.mubr.bf16.mxu0 0
      %7453 = vmatmul.mubr.bf16.gmra.mrb[0].mxu0 %v7353
      %v7454 = vpop.f32.mrb[0].mxu0
      %v7455 = vadd.f32 0.0, %v7454
      %v7456 = vpop.f32.mrb[0].mxu0
      %v7457 = vpop.f32.mrb[0].mxu0
      %v7458 = vadd.f32 0.0, %v7457
      %v7459 = vpop.f32.mrb[0].mxu0
      %7460 = vmatprep.mubr.bf16.mxu0 0
      %7461 = vmatmul.mubr.bf16.gmra.mrb[0].mxu0 %v7354
      %v7462 = vpop.f32.mrb[0].mxu0
      %v7463 = vadd.f32 0.0, %v7462
      %v7464 = vpop.f32.mrb[0].mxu0
      %v7465 = vpop.f32.mrb[0].mxu0
      %v7466 = vadd.f32 0.0, %v7465
      %v7467 = vpop.f32.mrb[0].mxu0
      %7468 = vmatprep.mubr.bf16.mxu0 0
      %7469 = vmatmul.mubr.bf16.gmra.mrb[0].mxu0 %v7355
      %v7470 = vpop.f32.mrb[0].mxu0
      %v7471 = vadd.f32 0.0, %v7470
      %v7472 = vpop.f32.mrb[0].mxu0
      %v7473 = vpop.f32.mrb[0].mxu0
      %v7474 = vadd.f32 0.0, %v7473
      %v7475 = vpop.f32.mrb[0].mxu0
      %7476 = vmatprep.mubr.bf16.mxu0 0
      %7477 = vmatmul.mubr.bf16.gmra.mrb[0].mxu0 %v7356
      %v7478 = vpop.f32.mrb[0].mxu0
      %v7479 = vadd.f32 0.0, %v7478
      %v7480 = vpop.f32.mrb[0].mxu0
      %v7481 = vpop.f32.mrb[0].mxu0
      %v7482 = vadd.f32 0.0, %v7481
      %v7483 = vpop.f32.mrb[0].mxu0
      %7484 = vmatprep.mubr.bf16.mxu0 0
      %7485 = vmatmul.mubr.bf16.gmra.mrb[0].mxu0 %v7357
      %v7486 = vpop.f32.mrb[0].mxu0
      %v7487 = vadd.f32 0.0, %v7486
      %v7488 = vpop.f32.mrb[0].mxu0
      %v7489 = vpop.f32.mrb[0].mxu0
      %v7490 = vadd.f32 0.0, %v7489
      %v7491 = vpop.f32.mrb[0].mxu0
      %7492 = vdwg.mxu0
      %v7493 = vadd.f32 %v7233, %v7447
      %v7494 = vadd.f32 %v7234, %v7450
      %v7495 = vadd.f32 %v7235, %v7455
      %v7496 = vadd.f32 %v7236, %v7458
      %v7497 = vadd.f32 %v7237, %v7463
      %v7498 = vadd.f32 %v7238, %v7466
      %v7499 = vadd.f32 %v7239, %v7471
      %v7500 = vadd.f32 %v7240, %v7474
      %v7501 = vadd.f32 %v7241, %v7479
      %v7502 = vadd.f32 %v7242, %v7482
      %v7503 = vadd.f32 %v7243, %v7487
      %v7504 = vadd.f32 %v7244, %v7490
      %v7505 = vld [vmem:[%s1014 + $0x10] sm:$0xc]
      %v7506 = vld [vmem:[%s1014 + $0x14] sm:$0xf]
      %v7507 = vld [vmem:[%s1014 + $0x18] sm:$0x3]
      %v7508 = vld [vmem:[%s1014 + $0x2c] sm:$0xc]
      %v7509 = vld [vmem:[%s1014 + $0x30] sm:$0xf]
      %v7510 = vld [vmem:[%s1014 + $0x34] sm:$0x3]
      %v7511 = vld [vmem:[%s1014 + $0x48] sm:$0xc]
      %v7512 = vld [vmem:[%s1014 + $0x4c] sm:$0xf]
      %v7513 = vld [vmem:[%s1014 + $0x50] sm:$0x3]
      %v7514 = vld [vmem:[%s1014 + $0x64] sm:$0xc]
      %v7515 = vld [vmem:[%s1014 + $0x68] sm:$0xf]
      %v7516 = vld [vmem:[%s1014 + $0x6c] sm:$0x3]
      %v7517 = vld [vmem:[%s1014 + $0x80] sm:$0xc]
      %v7518 = vld [vmem:[%s1014 + $0x84] sm:$0xf]
      %v7519 = vld [vmem:[%s1014 + $0x88] sm:$0x3]
      %v7520 = vld [vmem:[%s1014 + $0x9c] sm:$0xc]
      %v7521 = vld [vmem:[%s1014 + $0xa0] sm:$0xf]
      %v7522 = vld [vmem:[%s1014 + $0xa4] sm:$0x3]
      %v7541 = vrot.slane %v7505, 6
      %v7542 = vrot.slane %v7541, 4
      %v7543 = vrot.slane %v7506, 6
      %v7544 = vsel %vm1449, %v7542, %v7543
      %v7545 = vrot.slane %v7543, 4
      %v7546 = vrot.slane %v7507, 6
      %v7547 = vsel %vm1449, %v7545, %v7546
      %v7548 = vrot.slane %v7508, 6
      %v7549 = vrot.slane %v7548, 4
      %v7550 = vrot.slane %v7509, 6
      %v7551 = vsel %vm1449, %v7549, %v7550
      %v7552 = vrot.slane %v7550, 4
      %v7553 = vrot.slane %v7510, 6
      %v7554 = vsel %vm1449, %v7552, %v7553
      %v7555 = vrot.slane %v7511, 6
      %v7556 = vrot.slane %v7555, 4
      %v7557 = vrot.slane %v7512, 6
      %v7558 = vsel %vm1449, %v7556, %v7557
      %v7559 = vrot.slane %v7557, 4
      %v7560 = vrot.slane %v7513, 6
      %v7561 = vsel %vm1449, %v7559, %v7560
      %v7562 = vrot.slane %v7514, 6
      %v7563 = vrot.slane %v7562, 4
      %v7564 = vrot.slane %v7515, 6
      %v7565 = vsel %vm1449, %v7563, %v7564
      %v7566 = vrot.slane %v7564, 4
      %v7567 = vrot.slane %v7516, 6
      %v7568 = vsel %vm1449, %v7566, %v7567
      %v7569 = vrot.slane %v7517, 6
      %v7570 = vrot.slane %v7569, 4
      %v7571 = vrot.slane %v7518, 6
      %v7572 = vsel %vm1449, %v7570, %v7571
      %v7573 = vrot.slane %v7571, 4
      %v7574 = vrot.slane %v7519, 6
      %v7575 = vsel %vm1449, %v7573, %v7574
      %v7576 = vrot.slane %v7520, 6
      %v7577 = vrot.slane %v7576, 4
      %v7578 = vrot.slane %v7521, 6
      %v7579 = vsel %vm1449, %v7577, %v7578
      %v7580 = vrot.slane %v7578, 4
      %v7581 = vrot.slane %v7522, 6
      %v7582 = vsel %vm1449, %v7580, %v7581
      %s7583 = scalar_lea.vmem %s1039, 512
      %v7584 = vld [vmem:[%s7583] sm:$0xf]
      %v7585 = vld [vmem:[%s7583 + $0x4] sm:$0xf]
      %v7586 = vld [vmem:[%s7583 + $0x8] sm:$0xf]
      %v7587 = vld [vmem:[%s7583 + $0xc] sm:$0xf]
      %v7588 = vld [vmem:[%s7583 + $0x10] sm:$0xf]
      %v7589 = vld [vmem:[%s7583 + $0x14] sm:$0xf]
      %v7590 = vld [vmem:[%s7583 + $0x18] sm:$0xf]
      %v7591 = vld [vmem:[%s7583 + $0x1c] sm:$0xf]
      %v7592 = vld [vmem:[%s7583 + $0x20] sm:$0xf]
      %v7593 = vld [vmem:[%s7583 + $0x24] sm:$0xf]
      %v7594 = vld [vmem:[%s7583 + $0x28] sm:$0xf]
      %v7595 = vld [vmem:[%s7583 + $0x2c] sm:$0xf]
      %v7596 = vld [vmem:[%s7583 + $0x30] sm:$0xf]
      %v7597 = vld [vmem:[%s7583 + $0x34] sm:$0xf]
      %v7598 = vld [vmem:[%s7583 + $0x38] sm:$0xf]
      %v7599 = vld [vmem:[%s7583 + $0x3c] sm:$0xf]
      %v7600 = vunpack.c.l.b16 %v7544
      %v7601 = vunpack.c.l.b16 %v7547
      %v7602 = vunpack.c.l.b16 %v7551
      %v7603 = vunpack.c.l.b16 %v7554
      %v7604 = vunpack.c.l.b16 %v7558
      %v7605 = vunpack.c.l.b16 %v7561
      %v7606 = vunpack.c.l.b16 %v7565
      %v7607 = vunpack.c.l.b16 %v7568
      %v7608 = vunpack.c.l.b16 %v7572
      %v7609 = vunpack.c.l.b16 %v7575
      %v7610 = vunpack.c.l.b16 %v7579
      %v7611 = vunpack.c.l.b16 %v7582
      %v7612 = vpack.c.b16 %v7601, %v7600
      %v7613 = vpack.c.b16 %v7603, %v7602
      %v7614 = vpack.c.b16 %v7605, %v7604
      %v7615 = vpack.c.b16 %v7607, %v7606
      %v7616 = vpack.c.b16 %v7609, %v7608
      %v7617 = vpack.c.b16 %v7611, %v7610
      %v7640 = vunpack.c.l.b16 %v7584
      %v7641 = vunpack.c.l.b16 %v7585
      %v7642 = vunpack.c.l.b16 %v7586
      %v7643 = vunpack.c.l.b16 %v7587
      %v7644 = vunpack.c.l.b16 %v7588
      %v7645 = vunpack.c.l.b16 %v7589
      %v7646 = vunpack.c.l.b16 %v7590
      %v7647 = vunpack.c.l.b16 %v7591
      %v7648 = vunpack.c.l.b16 %v7592
      %v7649 = vunpack.c.l.b16 %v7593
      %v7650 = vunpack.c.l.b16 %v7594
      %v7651 = vunpack.c.l.b16 %v7595
      %v7652 = vunpack.c.l.b16 %v7596
      %v7653 = vunpack.c.l.b16 %v7597
      %v7654 = vunpack.c.l.b16 %v7598
      %v7655 = vunpack.c.l.b16 %v7599
      %v7656 = vpack.c.b16 %v7641, %v7640
      %v7657 = vpack.c.b16 %v7643, %v7642
      %v7658 = vpack.c.b16 %v7645, %v7644
      %v7659 = vpack.c.b16 %v7647, %v7646
      %v7660 = vpack.c.b16 %v7649, %v7648
      %v7661 = vpack.c.b16 %v7651, %v7650
      %v7662 = vpack.c.b16 %v7653, %v7652
      %v7663 = vpack.c.b16 %v7655, %v7654
      %7672 = vmatprep.subr.bf16.mxu0 0
      %7673 = vmatpush1.bf16.msra.mxu0 %v7656
      %7674 = vmatprep.subr.bf16.mxu0 0
      %7675 = vmatpush1.bf16.msra.mxu0 %v7657
      %7676 = vmatprep.subr.bf16.mxu0 0
      %7677 = vmatpush1.bf16.msra.mxu0 %v7658
      %7678 = vmatprep.subr.bf16.mxu0 0
      %7679 = vmatpush1.bf16.msra.mxu0 %v7659
      %7680 = vmatprep.subr.bf16.mxu0 0
      %7681 = vmatpush1.bf16.msra.mxu0 %v7660
      %7682 = vmatprep.subr.bf16.mxu0 0
      %7683 = vmatpush1.bf16.msra.mxu0 %v7661
      %7684 = vmatprep.subr.bf16.mxu0 0
      %7685 = vmatpush1.bf16.msra.mxu0 %v7662
      %7686 = vmatprep.subr.bf16.mxu0 0
      %7687 = vmatpush1.bf16.msra.mxu0 %v7663
      %7688 = vmatprep.subr.bf16.mxu0 0
      %7689 = vmatpush1.bf16.msra.mxu0 0
      %7690 = vmatprep.subr.bf16.mxu0 0
      %7691 = vmatpush1.bf16.msra.mxu0 0
      %7692 = vmatprep.subr.bf16.mxu0 0
      %7693 = vmatpush1.bf16.msra.mxu0 0
      %7694 = vmatprep.subr.bf16.mxu0 0
      %7695 = vmatpush1.bf16.msra.mxu0 0
      %7696 = vmatprep.subr.bf16.mxu0 0
      %7697 = vmatpush1.bf16.msra.mxu0 0
      %7698 = vmatprep.subr.bf16.mxu0 0
      %7699 = vmatpush1.bf16.msra.mxu0 0
      %7700 = vmatprep.subr.bf16.mxu0 0
      %7701 = vmatpush1.bf16.msra.mxu0 0
      %7702 = vmatprep.subr.bf16.mxu0 0
      %7703 = vmatpush1.bf16.msra.mxu0 0
      %7704 = vmatprep.mubr.bf16.mxu0 0
      %7705 = vmatmul.mubr.bf16.gmra.mrb[0].mxu0 %v7612
      %v7706 = vpop.f32.mrb[0].mxu0
      %v7707 = vadd.f32 0.0, %v7706
      %v7708 = vpop.f32.mrb[0].mxu0
      %v7709 = vpop.f32.mrb[0].mxu0
      %v7710 = vadd.f32 0.0, %v7709
      %v7711 = vpop.f32.mrb[0].mxu0
      %7712 = vmatprep.mubr.bf16.mxu0 0
      %7713 = vmatmul.mubr.bf16.gmra.mrb[0].mxu0 %v7613
      %v7714 = vpop.f32.mrb[0].mxu0
      %v7715 = vadd.f32 0.0, %v7714
      %v7716 = vpop.f32.mrb[0].mxu0
      %v7717 = vpop.f32.mrb[0].mxu0
      %v7718 = vadd.f32 0.0, %v7717
      %v7719 = vpop.f32.mrb[0].mxu0
      %7720 = vmatprep.mubr.bf16.mxu0 0
      %7721 = vmatmul.mubr.bf16.gmra.mrb[0].mxu0 %v7614
      %v7722 = vpop.f32.mrb[0].mxu0
      %v7723 = vadd.f32 0.0, %v7722
      %v7724 = vpop.f32.mrb[0].mxu0
      %v7725 = vpop.f32.mrb[0].mxu0
      %v7726 = vadd.f32 0.0, %v7725
      %v7727 = vpop.f32.mrb[0].mxu0
      %7728 = vmatprep.mubr.bf16.mxu0 0
      %7729 = vmatmul.mubr.bf16.gmra.mrb[0].mxu0 %v7615
      %v7730 = vpop.f32.mrb[0].mxu0
      %v7731 = vadd.f32 0.0, %v7730
      %v7732 = vpop.f32.mrb[0].mxu0
      %v7733 = vpop.f32.mrb[0].mxu0
      %v7734 = vadd.f32 0.0, %v7733
      %v7735 = vpop.f32.mrb[0].mxu0
      %7736 = vmatprep.mubr.bf16.mxu0 0
      %7737 = vmatmul.mubr.bf16.gmra.mrb[0].mxu0 %v7616
      %v7738 = vpop.f32.mrb[0].mxu0
      %v7739 = vadd.f32 0.0, %v7738
      %v7740 = vpop.f32.mrb[0].mxu0
      %v7741 = vpop.f32.mrb[0].mxu0
      %v7742 = vadd.f32 0.0, %v7741
      %v7743 = vpop.f32.mrb[0].mxu0
      %7744 = vmatprep.mubr.bf16.mxu0 0
      %7745 = vmatmul.mubr.bf16.gmra.mrb[0].mxu0 %v7617
      %v7746 = vpop.f32.mrb[0].mxu0
      %v7747 = vadd.f32 0.0, %v7746
      %v7748 = vpop.f32.mrb[0].mxu0
      %v7749 = vpop.f32.mrb[0].mxu0
      %v7750 = vadd.f32 0.0, %v7749
      %v7751 = vpop.f32.mrb[0].mxu0
      %7752 = vdwg.mxu0
      %v7753 = vadd.f32 %v7493, %v7707
      %v7754 = vadd.f32 %v7494, %v7710
      %v7755 = vadd.f32 %v7495, %v7715
      %v7756 = vadd.f32 %v7496, %v7718
      %v7757 = vadd.f32 %v7497, %v7723
      %v7758 = vadd.f32 %v7498, %v7726
      %v7759 = vadd.f32 %v7499, %v7731
      %v7760 = vadd.f32 %v7500, %v7734
      %v7761 = vadd.f32 %v7501, %v7739
      %v7762 = vadd.f32 %v7502, %v7742
      %v7763 = vadd.f32 %v7503, %v7747
      %v7764 = vadd.f32 %v7504, %v7750
      %s7765 = scalar_lea.vmem [#allocation2], 288
      %v7766 = vld [vmem:[%s7765] sm:$0xff]
      %v7767 = vld [vmem:[%s7765 + $0x8] sm:$0xff]
      %v7768 = vld [vmem:[%s7765 + $0x10] sm:$0xff]
      %v7769 = vld [vmem:[%s7765 + $0x18] sm:$0xff]
      %v7770 = vld [vmem:[%s7765 + $0x20] sm:$0xff]
      %v7771 = vld [vmem:[%s7765 + $0x28] sm:$0xff]
      %v7772 = vld [vmem:[%s7765 + $0x30] sm:$0xff]
      %v7773 = vld [vmem:[%s7765 + $0x38] sm:$0xff]
      %v7774 = vld [vmem:[%s7765 + $0x40] sm:$0xff]
      %v7775 = vld [vmem:[%s7765 + $0x48] sm:$0xff]
      %v7776 = vld [vmem:[%s7765 + $0x50] sm:$0xff]
      %v7777 = vld [vmem:[%s7765 + $0x58] sm:$0xff]
      %v7778 = vadd.f32 %v7766, %v7753
      %v7779 = vadd.f32 %v7767, %v7754
      %v7780 = vadd.f32 %v7768, %v7755
      %v7781 = vadd.f32 %v7769, %v7756
      %v7782 = vadd.f32 %v7770, %v7757
      %v7783 = vadd.f32 %v7771, %v7758
      %v7784 = vadd.f32 %v7772, %v7759
      %v7785 = vadd.f32 %v7773, %v7760
      %v7786 = vadd.f32 %v7774, %v7761
      %v7787 = vadd.f32 %v7775, %v7762
      %v7788 = vadd.f32 %v7776, %v7763
      %v7789 = vadd.f32 %v7777, %v7764
      %7790 = vst [vmem:[%s7765] sm:$0xff] %v7778
      %7791 = vst [vmem:[%s7765 + $0x8] sm:$0xff] %v7779
      %7792 = vst [vmem:[%s7765 + $0x10] sm:$0xff] %v7780
      %7793 = vst [vmem:[%s7765 + $0x18] sm:$0xff] %v7781
      %7794 = vst [vmem:[%s7765 + $0x20] sm:$0xff] %v7782
      %7795 = vst [vmem:[%s7765 + $0x28] sm:$0xff] %v7783
      %7796 = vst [vmem:[%s7765 + $0x30] sm:$0xff] %v7784
      %7797 = vst [vmem:[%s7765 + $0x38] sm:$0xff] %v7785
      %7798 = vst [vmem:[%s7765 + $0x40] sm:$0xff] %v7786
      %7799 = vst [vmem:[%s7765 + $0x48] sm:$0xff] %v7787
      %7800 = vst [vmem:[%s7765 + $0x50] sm:$0xff] %v7788
      %7801 = vst [vmem:[%s7765 + $0x58] sm:$0xff] %v7789
      // Predicated region
      $region93: #{aspp_forward.1} parent=87 // pred_check
        %p7802 = pneg %p1056
      $region94: #{aspp_forward.1} parent=87 // pred_check_branch
        %7804 = sbr.rel (%p7802) target = $region96
      $region95: #{aspp_forward.1} parent=87 // pred_region
        %v7805 = vld [vmem:[%s1043] sm:$0x1]
        %v7806 = vld [vmem:[#allocation2] sm:$0xff]
        %v7807 = vld [vmem:[#allocation2 + $0x8] sm:$0xff]
        %v7808 = vld [vmem:[#allocation2 + $0x10] sm:$0xff]
        %v7809 = vld [vmem:[#allocation2 + $0x18] sm:$0xff]
        %v7810 = vld [vmem:[#allocation2 + $0x20] sm:$0xff]
        %v7811 = vld [vmem:[#allocation2 + $0x28] sm:$0xff]
        %v7812 = vld [vmem:[#allocation2 + $0x30] sm:$0xff]
        %v7813 = vld [vmem:[#allocation2 + $0x38] sm:$0xff]
        %v7814 = vld [vmem:[#allocation2 + $0x40] sm:$0xff]
        %v7815 = vld [vmem:[#allocation2 + $0x48] sm:$0xff]
        %v7816 = vld [vmem:[#allocation2 + $0x50] sm:$0xff]
        %v7817 = vld [vmem:[#allocation2 + $0x58] sm:$0xff]
        %v7818 = vld [vmem:[%s8] sm:$0x1]
        %v7820 = vlaneseq
        %v7821 = vshrl.u32 %v7820, 7
        %v7822 = vsub.s32 0, %v7821
        %v7823 = vrot.slane %v7818, %v7822
        %v7825 = vadd.f32 %v7806, %v7823
        %v7826 = vadd.f32 %v7807, %v7823
        %v7827 = vadd.f32 %v7808, %v7823
        %v7828 = vadd.f32 %v7809, %v7823
        %v7829 = vadd.f32 %v7810, %v7823
        %v7830 = vadd.f32 %v7811, %v7823
        %v7831 = vadd.f32 %v7812, %v7823
        %v7832 = vadd.f32 %v7813, %v7823
        %v7833 = vadd.f32 %v7814, %v7823
        %v7834 = vadd.f32 %v7815, %v7823
        %v7835 = vadd.f32 %v7816, %v7823
        %v7836 = vadd.f32 %v7817, %v7823
        %v7837 = vmax.f32 %v7825, 0.0
        %v7838 = vmax.f32 %v7826, 0.0
        %v7839 = vmax.f32 %v7827, 0.0
        %v7840 = vmax.f32 %v7828, 0.0
        %v7841 = vmax.f32 %v7829, 0.0
        %v7842 = vmax.f32 %v7830, 0.0
        %v7843 = vmax.f32 %v7831, 0.0
        %v7844 = vmax.f32 %v7832, 0.0
        %v7845 = vmax.f32 %v7833, 0.0
        %v7846 = vmax.f32 %v7834, 0.0
        %v7847 = vmax.f32 %v7835, 0.0
        %v7848 = vmax.f32 %v7836, 0.0
        %v7849 = vpack.c.bf16 %v7838, %v7837
        %v7850 = vpack.c.bf16 %v7840, %v7839
        %v7851 = vpack.c.bf16 %v7842, %v7841
        %v7852 = vpack.c.bf16 %v7844, %v7843
        %v7853 = vpack.c.bf16 %v7846, %v7845
        %v7854 = vpack.c.bf16 %v7848, %v7847
        %v7855 = vld [vmem:[%s15] sm:$0xf]
        %v7856 = vld [vmem:[%s15 + $0x4] sm:$0xf]
        %v7857 = vld [vmem:[%s15 + $0x8] sm:$0xf]
        %v7858 = vld [vmem:[%s15 + $0xc] sm:$0xf]
        %v7859 = vld [vmem:[%s15 + $0x10] sm:$0xf]
        %v7860 = vld [vmem:[%s15 + $0x14] sm:$0xf]
        %v7861 = vld [vmem:[%s15 + $0x18] sm:$0xf]
        %v7862 = vld [vmem:[%s15 + $0x1c] sm:$0xf]
        %v7863 = vld [vmem:[%s15 + $0x20] sm:$0xf]
        %v7864 = vld [vmem:[%s15 + $0x24] sm:$0xf]
        %v7865 = vld [vmem:[%s15 + $0x28] sm:$0xf]
        %v7866 = vld [vmem:[%s15 + $0x2c] sm:$0xf]
        %v7867 = vld [vmem:[%s15 + $0x30] sm:$0xf]
        %v7868 = vld [vmem:[%s15 + $0x34] sm:$0xf]
        %v7869 = vld [vmem:[%s15 + $0x38] sm:$0xf]
        %v7870 = vld [vmem:[%s15 + $0x3c] sm:$0xf]
        %v7887 = vunpack.c.l.b16 %v7855
        %v7888 = vunpack.c.l.b16 %v7856
        %v7889 = vunpack.c.l.b16 %v7857
        %v7890 = vunpack.c.l.b16 %v7858
        %v7891 = vunpack.c.l.b16 %v7859
        %v7892 = vunpack.c.l.b16 %v7860
        %v7893 = vunpack.c.l.b16 %v7861
        %v7894 = vunpack.c.l.b16 %v7862
        %v7895 = vunpack.c.l.b16 %v7863
        %v7896 = vunpack.c.l.b16 %v7864
        %v7897 = vunpack.c.l.b16 %v7865
        %v7898 = vunpack.c.l.b16 %v7866
        %v7899 = vunpack.c.l.b16 %v7867
        %v7900 = vunpack.c.l.b16 %v7868
        %v7901 = vunpack.c.l.b16 %v7869
        %v7902 = vunpack.c.l.b16 %v7870
        %v7903 = vpack.c.b16 %v7888, %v7887
        %v7904 = vpack.c.b16 %v7890, %v7889
        %v7905 = vpack.c.b16 %v7892, %v7891
        %v7906 = vpack.c.b16 %v7894, %v7893
        %v7907 = vpack.c.b16 %v7896, %v7895
        %v7908 = vpack.c.b16 %v7898, %v7897
        %v7909 = vpack.c.b16 %v7900, %v7899
        %v7910 = vpack.c.b16 %v7902, %v7901
        %7919 = vmatprep.subr.bf16.mxu0 0
        %7920 = vmatpush1.bf16.msra.mxu0 %v7903
        %7921 = vmatprep.subr.bf16.mxu0 0
        %7922 = vmatpush1.bf16.msra.mxu0 %v7904
        %7923 = vmatprep.subr.bf16.mxu0 0
        %7924 = vmatpush1.bf16.msra.mxu0 %v7905
        %7925 = vmatprep.subr.bf16.mxu0 0
        %7926 = vmatpush1.bf16.msra.mxu0 %v7906
        %7927 = vmatprep.subr.bf16.mxu0 0
        %7928 = vmatpush1.bf16.msra.mxu0 %v7907
        %7929 = vmatprep.subr.bf16.mxu0 0
        %7930 = vmatpush1.bf16.msra.mxu0 %v7908
        %7931 = vmatprep.subr.bf16.mxu0 0
        %7932 = vmatpush1.bf16.msra.mxu0 %v7909
        %7933 = vmatprep.subr.bf16.mxu0 0
        %7934 = vmatpush1.bf16.msra.mxu0 %v7910
        %7935 = vmatprep.subr.bf16.mxu0 0
        %7936 = vmatpush1.bf16.msra.mxu0 0
        %7937 = vmatprep.subr.bf16.mxu0 0
        %7938 = vmatpush1.bf16.msra.mxu0 0
        %7939 = vmatprep.subr.bf16.mxu0 0
        %7940 = vmatpush1.bf16.msra.mxu0 0
        %7941 = vmatprep.subr.bf16.mxu0 0
        %7942 = vmatpush1.bf16.msra.mxu0 0
        %7943 = vmatprep.subr.bf16.mxu0 0
        %7944 = vmatpush1.bf16.msra.mxu0 0
        %7945 = vmatprep.subr.bf16.mxu0 0
        %7946 = vmatpush1.bf16.msra.mxu0 0
        %7947 = vmatprep.subr.bf16.mxu0 0
        %7948 = vmatpush1.bf16.msra.mxu0 0
        %7949 = vmatprep.subr.bf16.mxu0 0
        %7950 = vmatpush1.bf16.msra.mxu0 0
        %7951 = vmatprep.mubr.bf16.mxu0 0
        %7952 = vmatmul.mubr.bf16.gmra.mrb[0].mxu0 %v7849
        %v7953 = vpop.f32.mrb[0].mxu0
        %v7954 = vadd.f32 0.0, %v7953
        %v7955 = vpop.f32.mrb[0].mxu0
        %v7956 = vpop.f32.mrb[0].mxu0
        %v7957 = vadd.f32 0.0, %v7956
        %v7958 = vpop.f32.mrb[0].mxu0
        %7959 = vmatprep.mubr.bf16.mxu0 0
        %7960 = vmatmul.mubr.bf16.gmra.mrb[0].mxu0 %v7850
        %v7961 = vpop.f32.mrb[0].mxu0
        %v7962 = vadd.f32 0.0, %v7961
        %v7963 = vpop.f32.mrb[0].mxu0
        %v7964 = vpop.f32.mrb[0].mxu0
        %v7965 = vadd.f32 0.0, %v7964
        %v7966 = vpop.f32.mrb[0].mxu0
        %7967 = vmatprep.mubr.bf16.mxu0 0
        %7968 = vmatmul.mubr.bf16.gmra.mrb[0].mxu0 %v7851
        %v7969 = vpop.f32.mrb[0].mxu0
        %v7970 = vadd.f32 0.0, %v7969
        %v7971 = vpop.f32.mrb[0].mxu0
        %v7972 = vpop.f32.mrb[0].mxu0
        %v7973 = vadd.f32 0.0, %v7972
        %v7974 = vpop.f32.mrb[0].mxu0
        %7975 = vmatprep.mubr.bf16.mxu0 0
        %7976 = vmatmul.mubr.bf16.gmra.mrb[0].mxu0 %v7852
        %v7977 = vpop.f32.mrb[0].mxu0
        %v7978 = vadd.f32 0.0, %v7977
        %v7979 = vpop.f32.mrb[0].mxu0
        %v7980 = vpop.f32.mrb[0].mxu0
        %v7981 = vadd.f32 0.0, %v7980
        %v7982 = vpop.f32.mrb[0].mxu0
        %7983 = vmatprep.mubr.bf16.mxu0 0
        %7984 = vmatmul.mubr.bf16.gmra.mrb[0].mxu0 %v7853
        %v7985 = vpop.f32.mrb[0].mxu0
        %v7986 = vadd.f32 0.0, %v7985
        %v7987 = vpop.f32.mrb[0].mxu0
        %v7988 = vpop.f32.mrb[0].mxu0
        %v7989 = vadd.f32 0.0, %v7988
        %v7990 = vpop.f32.mrb[0].mxu0
        %7991 = vmatprep.mubr.bf16.mxu0 0
        %7992 = vmatmul.mubr.bf16.gmra.mrb[0].mxu0 %v7854
        %v7993 = vpop.f32.mrb[0].mxu0
        %v7994 = vadd.f32 0.0, %v7993
        %v7995 = vpop.f32.mrb[0].mxu0
        %v7996 = vpop.f32.mrb[0].mxu0
        %v7997 = vadd.f32 0.0, %v7996
        %v7998 = vpop.f32.mrb[0].mxu0
        %7999 = vdwg.mxu0
        %v8001 = vlaneseq
        %v8002 = vshrl.u32 %v8001, 7
        %v8003 = vsub.s32 0, %v8002
        %v8004 = vrot.slane %v7805, %v8003
        %v8006 = vadd.f32 %v8004, %v7954
        %v8007 = vadd.f32 %v8004, %v7957
        %v8008 = vadd.f32 %v8004, %v7962
        %v8009 = vadd.f32 %v8004, %v7965
        %v8010 = vadd.f32 %v8004, %v7970
        %v8011 = vadd.f32 %v8004, %v7973
        %v8012 = vadd.f32 %v8004, %v7978
        %v8013 = vadd.f32 %v8004, %v7981
        %v8014 = vadd.f32 %v8004, %v7986
        %v8015 = vadd.f32 %v8004, %v7989
        %v8016 = vadd.f32 %v8004, %v7994
        %v8017 = vadd.f32 %v8004, %v7997
        %v8018 = vld [vmem:[%s3424] sm:$0xff]
        %v8019 = vld [vmem:[%s3424 + $0x8] sm:$0xff]
        %v8020 = vld [vmem:[%s3424 + $0x10] sm:$0xff]
        %v8021 = vld [vmem:[%s3424 + $0x18] sm:$0xff]
        %v8022 = vld [vmem:[%s3424 + $0x20] sm:$0xff]
        %v8023 = vld [vmem:[%s3424 + $0x28] sm:$0xff]
        %v8024 = vld [vmem:[%s3424 + $0x30] sm:$0xff]
        %v8025 = vld [vmem:[%s3424 + $0x38] sm:$0xff]
        %v8026 = vld [vmem:[%s3424 + $0x40] sm:$0xff]
        %v8027 = vld [vmem:[%s3424 + $0x48] sm:$0xff]
        %v8028 = vld [vmem:[%s3424 + $0x50] sm:$0xff]
        %v8029 = vld [vmem:[%s3424 + $0x58] sm:$0xff]
        %v8030 = vld [vmem:[%s10] sm:$0x1]
        %v8032 = vlaneseq
        %v8033 = vshrl.u32 %v8032, 7
        %v8034 = vsub.s32 0, %v8033
        %v8035 = vrot.slane %v8030, %v8034
        %v8037 = vadd.f32 %v8018, %v8035
        %v8038 = vadd.f32 %v8019, %v8035
        %v8039 = vadd.f32 %v8020, %v8035
        %v8040 = vadd.f32 %v8021, %v8035
        %v8041 = vadd.f32 %v8022, %v8035
        %v8042 = vadd.f32 %v8023, %v8035
        %v8043 = vadd.f32 %v8024, %v8035
        %v8044 = vadd.f32 %v8025, %v8035
        %v8045 = vadd.f32 %v8026, %v8035
        %v8046 = vadd.f32 %v8027, %v8035
        %v8047 = vadd.f32 %v8028, %v8035
        %v8048 = vadd.f32 %v8029, %v8035
        %v8049 = vmax.f32 %v8037, 0.0
        %v8050 = vmax.f32 %v8038, 0.0
        %v8051 = vmax.f32 %v8039, 0.0
        %v8052 = vmax.f32 %v8040, 0.0
        %v8053 = vmax.f32 %v8041, 0.0
        %v8054 = vmax.f32 %v8042, 0.0
        %v8055 = vmax.f32 %v8043, 0.0
        %v8056 = vmax.f32 %v8044, 0.0
        %v8057 = vmax.f32 %v8045, 0.0
        %v8058 = vmax.f32 %v8046, 0.0
        %v8059 = vmax.f32 %v8047, 0.0
        %v8060 = vmax.f32 %v8048, 0.0
        %v8061 = vpack.c.bf16 %v8050, %v8049
        %v8062 = vpack.c.bf16 %v8052, %v8051
        %v8063 = vpack.c.bf16 %v8054, %v8053
        %v8064 = vpack.c.bf16 %v8056, %v8055
        %v8065 = vpack.c.bf16 %v8058, %v8057
        %v8066 = vpack.c.bf16 %v8060, %v8059
        %s8067 = scalar_lea.vmem %s15, 64
        %v8068 = vld [vmem:[%s8067] sm:$0xf]
        %v8069 = vld [vmem:[%s8067 + $0x4] sm:$0xf]
        %v8070 = vld [vmem:[%s8067 + $0x8] sm:$0xf]
        %v8071 = vld [vmem:[%s8067 + $0xc] sm:$0xf]
        %v8072 = vld [vmem:[%s8067 + $0x10] sm:$0xf]
        %v8073 = vld [vmem:[%s8067 + $0x14] sm:$0xf]
        %v8074 = vld [vmem:[%s8067 + $0x18] sm:$0xf]
        %v8075 = vld [vmem:[%s8067 + $0x1c] sm:$0xf]
        %v8076 = vld [vmem:[%s8067 + $0x20] sm:$0xf]
        %v8077 = vld [vmem:[%s8067 + $0x24] sm:$0xf]
        %v8078 = vld [vmem:[%s8067 + $0x28] sm:$0xf]
        %v8079 = vld [vmem:[%s8067 + $0x2c] sm:$0xf]
        %v8080 = vld [vmem:[%s8067 + $0x30] sm:$0xf]
        %v8081 = vld [vmem:[%s8067 + $0x34] sm:$0xf]
        %v8082 = vld [vmem:[%s8067 + $0x38] sm:$0xf]
        %v8083 = vld [vmem:[%s8067 + $0x3c] sm:$0xf]
        %v8100 = vunpack.c.l.b16 %v8068
        %v8101 = vunpack.c.l.b16 %v8069
        %v8102 = vunpack.c.l.b16 %v8070
        %v8103 = vunpack.c.l.b16 %v8071
        %v8104 = vunpack.c.l.b16 %v8072
        %v8105 = vunpack.c.l.b16 %v8073
        %v8106 = vunpack.c.l.b16 %v8074
        %v8107 = vunpack.c.l.b16 %v8075
        %v8108 = vunpack.c.l.b16 %v8076
        %v8109 = vunpack.c.l.b16 %v8077
        %v8110 = vunpack.c.l.b16 %v8078
        %v8111 = vunpack.c.l.b16 %v8079
        %v8112 = vunpack.c.l.b16 %v8080
        %v8113 = vunpack.c.l.b16 %v8081
        %v8114 = vunpack.c.l.b16 %v8082
        %v8115 = vunpack.c.l.b16 %v8083
        %v8116 = vpack.c.b16 %v8101, %v8100
        %v8117 = vpack.c.b16 %v8103, %v8102
        %v8118 = vpack.c.b16 %v8105, %v8104
        %v8119 = vpack.c.b16 %v8107, %v8106
        %v8120 = vpack.c.b16 %v8109, %v8108
        %v8121 = vpack.c.b16 %v8111, %v8110
        %v8122 = vpack.c.b16 %v8113, %v8112
        %v8123 = vpack.c.b16 %v8115, %v8114
        %8132 = vmatprep.subr.bf16.mxu0 0
        %8133 = vmatpush1.bf16.msra.mxu0 %v8116
        %8134 = vmatprep.subr.bf16.mxu0 0
        %8135 = vmatpush1.bf16.msra.mxu0 %v8117
        %8136 = vmatprep.subr.bf16.mxu0 0
        %8137 = vmatpush1.bf16.msra.mxu0 %v8118
        %8138 = vmatprep.subr.bf16.mxu0 0
        %8139 = vmatpush1.bf16.msra.mxu0 %v8119
        %8140 = vmatprep.subr.bf16.mxu0 0
        %8141 = vmatpush1.bf16.msra.mxu0 %v8120
        %8142 = vmatprep.subr.bf16.mxu0 0
        %8143 = vmatpush1.bf16.msra.mxu0 %v8121
        %8144 = vmatprep.subr.bf16.mxu0 0
        %8145 = vmatpush1.bf16.msra.mxu0 %v8122
        %8146 = vmatprep.subr.bf16.mxu0 0
        %8147 = vmatpush1.bf16.msra.mxu0 %v8123
        %8148 = vmatprep.subr.bf16.mxu0 0
        %8149 = vmatpush1.bf16.msra.mxu0 0
        %8150 = vmatprep.subr.bf16.mxu0 0
        %8151 = vmatpush1.bf16.msra.mxu0 0
        %8152 = vmatprep.subr.bf16.mxu0 0
        %8153 = vmatpush1.bf16.msra.mxu0 0
        %8154 = vmatprep.subr.bf16.mxu0 0
        %8155 = vmatpush1.bf16.msra.mxu0 0
        %8156 = vmatprep.subr.bf16.mxu0 0
        %8157 = vmatpush1.bf16.msra.mxu0 0
        %8158 = vmatprep.subr.bf16.mxu0 0
        %8159 = vmatpush1.bf16.msra.mxu0 0
        %8160 = vmatprep.subr.bf16.mxu0 0
        %8161 = vmatpush1.bf16.msra.mxu0 0
        %8162 = vmatprep.subr.bf16.mxu0 0
        %8163 = vmatpush1.bf16.msra.mxu0 0
        %8164 = vmatprep.mubr.bf16.mxu0 0
        %8165 = vmatmul.mubr.bf16.gmra.mrb[0].mxu0 %v8061
        %v8166 = vpop.f32.mrb[0].mxu0
        %v8167 = vadd.f32 0.0, %v8166
        %v8168 = vpop.f32.mrb[0].mxu0
        %v8169 = vpop.f32.mrb[0].mxu0
        %v8170 = vadd.f32 0.0, %v8169
        %v8171 = vpop.f32.mrb[0].mxu0
        %8172 = vmatprep.mubr.bf16.mxu0 0
        %8173 = vmatmul.mubr.bf16.gmra.mrb[0].mxu0 %v8062
        %v8174 = vpop.f32.mrb[0].mxu0
        %v8175 = vadd.f32 0.0, %v8174
        %v8176 = vpop.f32.mrb[0].mxu0
        %v8177 = vpop.f32.mrb[0].mxu0
        %v8178 = vadd.f32 0.0, %v8177
        %v8179 = vpop.f32.mrb[0].mxu0
        %8180 = vmatprep.mubr.bf16.mxu0 0
        %8181 = vmatmul.mubr.bf16.gmra.mrb[0].mxu0 %v8063
        %v8182 = vpop.f32.mrb[0].mxu0
        %v8183 = vadd.f32 0.0, %v8182
        %v8184 = vpop.f32.mrb[0].mxu0
        %v8185 = vpop.f32.mrb[0].mxu0
        %v8186 = vadd.f32 0.0, %v8185
        %v8187 = vpop.f32.mrb[0].mxu0
        %8188 = vmatprep.mubr.bf16.mxu0 0
        %8189 = vmatmul.mubr.bf16.gmra.mrb[0].mxu0 %v8064
        %v8190 = vpop.f32.mrb[0].mxu0
        %v8191 = vadd.f32 0.0, %v8190
        %v8192 = vpop.f32.mrb[0].mxu0
        %v8193 = vpop.f32.mrb[0].mxu0
        %v8194 = vadd.f32 0.0, %v8193
        %v8195 = vpop.f32.mrb[0].mxu0
        %8196 = vmatprep.mubr.bf16.mxu0 0
        %8197 = vmatmul.mubr.bf16.gmra.mrb[0].mxu0 %v8065
        %v8198 = vpop.f32.mrb[0].mxu0
        %v8199 = vadd.f32 0.0, %v8198
        %v8200 = vpop.f32.mrb[0].mxu0
        %v8201 = vpop.f32.mrb[0].mxu0
        %v8202 = vadd.f32 0.0, %v8201
        %v8203 = vpop.f32.mrb[0].mxu0
        %8204 = vmatprep.mubr.bf16.mxu0 0
        %8205 = vmatmul.mubr.bf16.gmra.mrb[0].mxu0 %v8066
        %v8206 = vpop.f32.mrb[0].mxu0
        %v8207 = vadd.f32 0.0, %v8206
        %v8208 = vpop.f32.mrb[0].mxu0
        %v8209 = vpop.f32.mrb[0].mxu0
        %v8210 = vadd.f32 0.0, %v8209
        %v8211 = vpop.f32.mrb[0].mxu0
        %8212 = vdwg.mxu0
        %v8213 = vadd.f32 %v8006, %v8167
        %v8214 = vadd.f32 %v8007, %v8170
        %v8215 = vadd.f32 %v8008, %v8175
        %v8216 = vadd.f32 %v8009, %v8178
        %v8217 = vadd.f32 %v8010, %v8183
        %v8218 = vadd.f32 %v8011, %v8186
        %v8219 = vadd.f32 %v8012, %v8191
        %v8220 = vadd.f32 %v8013, %v8194
        %v8221 = vadd.f32 %v8014, %v8199
        %v8222 = vadd.f32 %v8015, %v8202
        %v8223 = vadd.f32 %v8016, %v8207
        %v8224 = vadd.f32 %v8017, %v8210
        %v8225 = vld [vmem:[%s5677] sm:$0xff]
        %v8226 = vld [vmem:[%s5677 + $0x8] sm:$0xff]
        %v8227 = vld [vmem:[%s5677 + $0x10] sm:$0xff]
        %v8228 = vld [vmem:[%s5677 + $0x18] sm:$0xff]
        %v8229 = vld [vmem:[%s5677 + $0x20] sm:$0xff]
        %v8230 = vld [vmem:[%s5677 + $0x28] sm:$0xff]
        %v8231 = vld [vmem:[%s5677 + $0x30] sm:$0xff]
        %v8232 = vld [vmem:[%s5677 + $0x38] sm:$0xff]
        %v8233 = vld [vmem:[%s5677 + $0x40] sm:$0xff]
        %v8234 = vld [vmem:[%s5677 + $0x48] sm:$0xff]
        %v8235 = vld [vmem:[%s5677 + $0x50] sm:$0xff]
        %v8236 = vld [vmem:[%s5677 + $0x58] sm:$0xff]
        %v8237 = vld [vmem:[%s12] sm:$0x1]
        %v8239 = vlaneseq
        %v8240 = vshrl.u32 %v8239, 7
        %v8241 = vsub.s32 0, %v8240
        %v8242 = vrot.slane %v8237, %v8241
        %v8244 = vadd.f32 %v8225, %v8242
        %v8245 = vadd.f32 %v8226, %v8242
        %v8246 = vadd.f32 %v8227, %v8242
        %v8247 = vadd.f32 %v8228, %v8242
        %v8248 = vadd.f32 %v8229, %v8242
        %v8249 = vadd.f32 %v8230, %v8242
        %v8250 = vadd.f32 %v8231, %v8242
        %v8251 = vadd.f32 %v8232, %v8242
        %v8252 = vadd.f32 %v8233, %v8242
        %v8253 = vadd.f32 %v8234, %v8242
        %v8254 = vadd.f32 %v8235, %v8242
        %v8255 = vadd.f32 %v8236, %v8242
        %v8256 = vmax.f32 %v8244, 0.0
        %v8257 = vmax.f32 %v8245, 0.0
        %v8258 = vmax.f32 %v8246, 0.0
        %v8259 = vmax.f32 %v8247, 0.0
        %v8260 = vmax.f32 %v8248, 0.0
        %v8261 = vmax.f32 %v8249, 0.0
        %v8262 = vmax.f32 %v8250, 0.0
        %v8263 = vmax.f32 %v8251, 0.0
        %v8264 = vmax.f32 %v8252, 0.0
        %v8265 = vmax.f32 %v8253, 0.0
        %v8266 = vmax.f32 %v8254, 0.0
        %v8267 = vmax.f32 %v8255, 0.0
        %v8268 = vpack.c.bf16 %v8257, %v8256
        %v8269 = vpack.c.bf16 %v8259, %v8258
        %v8270 = vpack.c.bf16 %v8261, %v8260
        %v8271 = vpack.c.bf16 %v8263, %v8262
        %v8272 = vpack.c.bf16 %v8265, %v8264
        %v8273 = vpack.c.bf16 %v8267, %v8266
        %s8274 = scalar_lea.vmem %s15, 128
        %v8275 = vld [vmem:[%s8274] sm:$0xf]
        %v8276 = vld [vmem:[%s8274 + $0x4] sm:$0xf]
        %v8277 = vld [vmem:[%s8274 + $0x8] sm:$0xf]
        %v8278 = vld [vmem:[%s8274 + $0xc] sm:$0xf]
        %v8279 = vld [vmem:[%s8274 + $0x10] sm:$0xf]
        %v8280 = vld [vmem:[%s8274 + $0x14] sm:$0xf]
        %v8281 = vld [vmem:[%s8274 + $0x18] sm:$0xf]
        %v8282 = vld [vmem:[%s8274 + $0x1c] sm:$0xf]
        %v8283 = vld [vmem:[%s8274 + $0x20] sm:$0xf]
        %v8284 = vld [vmem:[%s8274 + $0x24] sm:$0xf]
        %v8285 = vld [vmem:[%s8274 + $0x28] sm:$0xf]
        %v8286 = vld [vmem:[%s8274 + $0x2c] sm:$0xf]
        %v8287 = vld [vmem:[%s8274 + $0x30] sm:$0xf]
        %v8288 = vld [vmem:[%s8274 + $0x34] sm:$0xf]
        %v8289 = vld [vmem:[%s8274 + $0x38] sm:$0xf]
        %v8290 = vld [vmem:[%s8274 + $0x3c] sm:$0xf]
        %v8307 = vunpack.c.l.b16 %v8275
        %v8308 = vunpack.c.l.b16 %v8276
        %v8309 = vunpack.c.l.b16 %v8277
        %v8310 = vunpack.c.l.b16 %v8278
        %v8311 = vunpack.c.l.b16 %v8279
        %v8312 = vunpack.c.l.b16 %v8280
        %v8313 = vunpack.c.l.b16 %v8281
        %v8314 = vunpack.c.l.b16 %v8282
        %v8315 = vunpack.c.l.b16 %v8283
        %v8316 = vunpack.c.l.b16 %v8284
        %v8317 = vunpack.c.l.b16 %v8285
        %v8318 = vunpack.c.l.b16 %v8286
        %v8319 = vunpack.c.l.b16 %v8287
        %v8320 = vunpack.c.l.b16 %v8288
        %v8321 = vunpack.c.l.b16 %v8289
        %v8322 = vunpack.c.l.b16 %v8290
        %v8323 = vpack.c.b16 %v8308, %v8307
        %v8324 = vpack.c.b16 %v8310, %v8309
        %v8325 = vpack.c.b16 %v8312, %v8311
        %v8326 = vpack.c.b16 %v8314, %v8313
        %v8327 = vpack.c.b16 %v8316, %v8315
        %v8328 = vpack.c.b16 %v8318, %v8317
        %v8329 = vpack.c.b16 %v8320, %v8319
        %v8330 = vpack.c.b16 %v8322, %v8321
        %8339 = vmatprep.subr.bf16.mxu0 0
        %8340 = vmatpush1.bf16.msra.mxu0 %v8323
        %8341 = vmatprep.subr.bf16.mxu0 0
        %8342 = vmatpush1.bf16.msra.mxu0 %v8324
        %8343 = vmatprep.subr.bf16.mxu0 0
        %8344 = vmatpush1.bf16.msra.mxu0 %v8325
        %8345 = vmatprep.subr.bf16.mxu0 0
        %8346 = vmatpush1.bf16.msra.mxu0 %v8326
        %8347 = vmatprep.subr.bf16.mxu0 0
        %8348 = vmatpush1.bf16.msra.mxu0 %v8327
        %8349 = vmatprep.subr.bf16.mxu0 0
        %8350 = vmatpush1.bf16.msra.mxu0 %v8328
        %8351 = vmatprep.subr.bf16.mxu0 0
        %8352 = vmatpush1.bf16.msra.mxu0 %v8329
        %8353 = vmatprep.subr.bf16.mxu0 0
        %8354 = vmatpush1.bf16.msra.mxu0 %v8330
        %8355 = vmatprep.subr.bf16.mxu0 0
        %8356 = vmatpush1.bf16.msra.mxu0 0
        %8357 = vmatprep.subr.bf16.mxu0 0
        %8358 = vmatpush1.bf16.msra.mxu0 0
        %8359 = vmatprep.subr.bf16.mxu0 0
        %8360 = vmatpush1.bf16.msra.mxu0 0
        %8361 = vmatprep.subr.bf16.mxu0 0
        %8362 = vmatpush1.bf16.msra.mxu0 0
        %8363 = vmatprep.subr.bf16.mxu0 0
        %8364 = vmatpush1.bf16.msra.mxu0 0
        %8365 = vmatprep.subr.bf16.mxu0 0
        %8366 = vmatpush1.bf16.msra.mxu0 0
        %8367 = vmatprep.subr.bf16.mxu0 0
        %8368 = vmatpush1.bf16.msra.mxu0 0
        %8369 = vmatprep.subr.bf16.mxu0 0
        %8370 = vmatpush1.bf16.msra.mxu0 0
        %8371 = vmatprep.mubr.bf16.mxu0 0
        %8372 = vmatmul.mubr.bf16.gmra.mrb[0].mxu0 %v8268
        %v8373 = vpop.f32.mrb[0].mxu0
        %v8374 = vadd.f32 0.0, %v8373
        %v8375 = vpop.f32.mrb[0].mxu0
        %v8376 = vpop.f32.mrb[0].mxu0
        %v8377 = vadd.f32 0.0, %v8376
        %v8378 = vpop.f32.mrb[0].mxu0
        %8379 = vmatprep.mubr.bf16.mxu0 0
        %8380 = vmatmul.mubr.bf16.gmra.mrb[0].mxu0 %v8269
        %v8381 = vpop.f32.mrb[0].mxu0
        %v8382 = vadd.f32 0.0, %v8381
        %v8383 = vpop.f32.mrb[0].mxu0
        %v8384 = vpop.f32.mrb[0].mxu0
        %v8385 = vadd.f32 0.0, %v8384
        %v8386 = vpop.f32.mrb[0].mxu0
        %8387 = vmatprep.mubr.bf16.mxu0 0
        %8388 = vmatmul.mubr.bf16.gmra.mrb[0].mxu0 %v8270
        %v8389 = vpop.f32.mrb[0].mxu0
        %v8390 = vadd.f32 0.0, %v8389
        %v8391 = vpop.f32.mrb[0].mxu0
        %v8392 = vpop.f32.mrb[0].mxu0
        %v8393 = vadd.f32 0.0, %v8392
        %v8394 = vpop.f32.mrb[0].mxu0
        %8395 = vmatprep.mubr.bf16.mxu0 0
        %8396 = vmatmul.mubr.bf16.gmra.mrb[0].mxu0 %v8271
        %v8397 = vpop.f32.mrb[0].mxu0
        %v8398 = vadd.f32 0.0, %v8397
        %v8399 = vpop.f32.mrb[0].mxu0
        %v8400 = vpop.f32.mrb[0].mxu0
        %v8401 = vadd.f32 0.0, %v8400
        %v8402 = vpop.f32.mrb[0].mxu0
        %8403 = vmatprep.mubr.bf16.mxu0 0
        %8404 = vmatmul.mubr.bf16.gmra.mrb[0].mxu0 %v8272
        %v8405 = vpop.f32.mrb[0].mxu0
        %v8406 = vadd.f32 0.0, %v8405
        %v8407 = vpop.f32.mrb[0].mxu0
        %v8408 = vpop.f32.mrb[0].mxu0
        %v8409 = vadd.f32 0.0, %v8408
        %v8410 = vpop.f32.mrb[0].mxu0
        %8411 = vmatprep.mubr.bf16.mxu0 0
        %8412 = vmatmul.mubr.bf16.gmra.mrb[0].mxu0 %v8273
        %v8413 = vpop.f32.mrb[0].mxu0
        %v8414 = vadd.f32 0.0, %v8413
        %v8415 = vpop.f32.mrb[0].mxu0
        %v8416 = vpop.f32.mrb[0].mxu0
        %v8417 = vadd.f32 0.0, %v8416
        %v8418 = vpop.f32.mrb[0].mxu0
        %8419 = vdwg.mxu0
        %v8420 = vadd.f32 %v8213, %v8374
        %v8421 = vadd.f32 %v8214, %v8377
        %v8422 = vadd.f32 %v8215, %v8382
        %v8423 = vadd.f32 %v8216, %v8385
        %v8424 = vadd.f32 %v8217, %v8390
        %v8425 = vadd.f32 %v8218, %v8393
        %v8426 = vadd.f32 %v8219, %v8398
        %v8427 = vadd.f32 %v8220, %v8401
        %v8428 = vadd.f32 %v8221, %v8406
        %v8429 = vadd.f32 %v8222, %v8409
        %v8430 = vadd.f32 %v8223, %v8414
        %v8431 = vadd.f32 %v8224, %v8417
        %v8432 = vld [vmem:[%s7765] sm:$0xff]
        %v8433 = vld [vmem:[%s7765 + $0x8] sm:$0xff]
        %v8434 = vld [vmem:[%s7765 + $0x10] sm:$0xff]
        %v8435 = vld [vmem:[%s7765 + $0x18] sm:$0xff]
        %v8436 = vld [vmem:[%s7765 + $0x20] sm:$0xff]
        %v8437 = vld [vmem:[%s7765 + $0x28] sm:$0xff]
        %v8438 = vld [vmem:[%s7765 + $0x30] sm:$0xff]
        %v8439 = vld [vmem:[%s7765 + $0x38] sm:$0xff]
        %v8440 = vld [vmem:[%s7765 + $0x40] sm:$0xff]
        %v8441 = vld [vmem:[%s7765 + $0x48] sm:$0xff]
        %v8442 = vld [vmem:[%s7765 + $0x50] sm:$0xff]
        %v8443 = vld [vmem:[%s7765 + $0x58] sm:$0xff]
        %v8444 = vld [vmem:[%s14] sm:$0x1]
        %v8446 = vlaneseq
        %v8447 = vshrl.u32 %v8446, 7
        %v8448 = vsub.s32 0, %v8447
        %v8449 = vrot.slane %v8444, %v8448
        %v8451 = vadd.f32 %v8432, %v8449
        %v8452 = vadd.f32 %v8433, %v8449
        %v8453 = vadd.f32 %v8434, %v8449
        %v8454 = vadd.f32 %v8435, %v8449
        %v8455 = vadd.f32 %v8436, %v8449
        %v8456 = vadd.f32 %v8437, %v8449
        %v8457 = vadd.f32 %v8438, %v8449
        %v8458 = vadd.f32 %v8439, %v8449
        %v8459 = vadd.f32 %v8440, %v8449
        %v8460 = vadd.f32 %v8441, %v8449
        %v8461 = vadd.f32 %v8442, %v8449
        %v8462 = vadd.f32 %v8443, %v8449
        %v8463 = vmax.f32 %v8451, 0.0
        %v8464 = vmax.f32 %v8452, 0.0
        %v8465 = vmax.f32 %v8453, 0.0
        %v8466 = vmax.f32 %v8454, 0.0
        %v8467 = vmax.f32 %v8455, 0.0
        %v8468 = vmax.f32 %v8456, 0.0
        %v8469 = vmax.f32 %v8457, 0.0
        %v8470 = vmax.f32 %v8458, 0.0
        %v8471 = vmax.f32 %v8459, 0.0
        %v8472 = vmax.f32 %v8460, 0.0
        %v8473 = vmax.f32 %v8461, 0.0
        %v8474 = vmax.f32 %v8462, 0.0
        %v8475 = vpack.c.bf16 %v8464, %v8463
        %v8476 = vpack.c.bf16 %v8466, %v8465
        %v8477 = vpack.c.bf16 %v8468, %v8467
        %v8478 = vpack.c.bf16 %v8470, %v8469
        %v8479 = vpack.c.bf16 %v8472, %v8471
        %v8480 = vpack.c.bf16 %v8474, %v8473
        %s8481 = scalar_lea.vmem %s15, 192
        %v8482 = vld [vmem:[%s8481] sm:$0xf]
        %v8483 = vld [vmem:[%s8481 + $0x4] sm:$0xf]
        %v8484 = vld [vmem:[%s8481 + $0x8] sm:$0xf]
        %v8485 = vld [vmem:[%s8481 + $0xc] sm:$0xf]
        %v8486 = vld [vmem:[%s8481 + $0x10] sm:$0xf]
        %v8487 = vld [vmem:[%s8481 + $0x14] sm:$0xf]
        %v8488 = vld [vmem:[%s8481 + $0x18] sm:$0xf]
        %v8489 = vld [vmem:[%s8481 + $0x1c] sm:$0xf]
        %v8490 = vld [vmem:[%s8481 + $0x20] sm:$0xf]
        %v8491 = vld [vmem:[%s8481 + $0x24] sm:$0xf]
        %v8492 = vld [vmem:[%s8481 + $0x28] sm:$0xf]
        %v8493 = vld [vmem:[%s8481 + $0x2c] sm:$0xf]
        %v8494 = vld [vmem:[%s8481 + $0x30] sm:$0xf]
        %v8495 = vld [vmem:[%s8481 + $0x34] sm:$0xf]
        %v8496 = vld [vmem:[%s8481 + $0x38] sm:$0xf]
        %v8497 = vld [vmem:[%s8481 + $0x3c] sm:$0xf]
        %v8514 = vunpack.c.l.b16 %v8482
        %v8515 = vunpack.c.l.b16 %v8483
        %v8516 = vunpack.c.l.b16 %v8484
        %v8517 = vunpack.c.l.b16 %v8485
        %v8518 = vunpack.c.l.b16 %v8486
        %v8519 = vunpack.c.l.b16 %v8487
        %v8520 = vunpack.c.l.b16 %v8488
        %v8521 = vunpack.c.l.b16 %v8489
        %v8522 = vunpack.c.l.b16 %v8490
        %v8523 = vunpack.c.l.b16 %v8491
        %v8524 = vunpack.c.l.b16 %v8492
        %v8525 = vunpack.c.l.b16 %v8493
        %v8526 = vunpack.c.l.b16 %v8494
        %v8527 = vunpack.c.l.b16 %v8495
        %v8528 = vunpack.c.l.b16 %v8496
        %v8529 = vunpack.c.l.b16 %v8497
        %v8530 = vpack.c.b16 %v8515, %v8514
        %v8531 = vpack.c.b16 %v8517, %v8516
        %v8532 = vpack.c.b16 %v8519, %v8518
        %v8533 = vpack.c.b16 %v8521, %v8520
        %v8534 = vpack.c.b16 %v8523, %v8522
        %v8535 = vpack.c.b16 %v8525, %v8524
        %v8536 = vpack.c.b16 %v8527, %v8526
        %v8537 = vpack.c.b16 %v8529, %v8528
        %8546 = vmatprep.subr.bf16.mxu0 0
        %8547 = vmatpush1.bf16.msra.mxu0 %v8530
        %8548 = vmatprep.subr.bf16.mxu0 0
        %8549 = vmatpush1.bf16.msra.mxu0 %v8531
        %8550 = vmatprep.subr.bf16.mxu0 0
        %8551 = vmatpush1.bf16.msra.mxu0 %v8532
        %8552 = vmatprep.subr.bf16.mxu0 0
        %8553 = vmatpush1.bf16.msra.mxu0 %v8533
        %8554 = vmatprep.subr.bf16.mxu0 0
        %8555 = vmatpush1.bf16.msra.mxu0 %v8534
        %8556 = vmatprep.subr.bf16.mxu0 0
        %8557 = vmatpush1.bf16.msra.mxu0 %v8535
        %8558 = vmatprep.subr.bf16.mxu0 0
        %8559 = vmatpush1.bf16.msra.mxu0 %v8536
        %8560 = vmatprep.subr.bf16.mxu0 0
        %8561 = vmatpush1.bf16.msra.mxu0 %v8537
        %8562 = vmatprep.subr.bf16.mxu0 0
        %8563 = vmatpush1.bf16.msra.mxu0 0
        %8564 = vmatprep.subr.bf16.mxu0 0
        %8565 = vmatpush1.bf16.msra.mxu0 0
        %8566 = vmatprep.subr.bf16.mxu0 0
        %8567 = vmatpush1.bf16.msra.mxu0 0
        %8568 = vmatprep.subr.bf16.mxu0 0
        %8569 = vmatpush1.bf16.msra.mxu0 0
        %8570 = vmatprep.subr.bf16.mxu0 0
        %8571 = vmatpush1.bf16.msra.mxu0 0
        %8572 = vmatprep.subr.bf16.mxu0 0
        %8573 = vmatpush1.bf16.msra.mxu0 0
        %8574 = vmatprep.subr.bf16.mxu0 0
        %8575 = vmatpush1.bf16.msra.mxu0 0
        %8576 = vmatprep.subr.bf16.mxu0 0
        %8577 = vmatpush1.bf16.msra.mxu0 0
        %8578 = vmatprep.mubr.bf16.mxu0 0
        %8579 = vmatmul.mubr.bf16.gmra.mrb[0].mxu0 %v8475
        %v8580 = vpop.f32.mrb[0].mxu0
        %v8581 = vadd.f32 0.0, %v8580
        %v8582 = vpop.f32.mrb[0].mxu0
        %v8583 = vpop.f32.mrb[0].mxu0
        %v8584 = vadd.f32 0.0, %v8583
        %v8585 = vpop.f32.mrb[0].mxu0
        %8586 = vmatprep.mubr.bf16.mxu0 0
        %8587 = vmatmul.mubr.bf16.gmra.mrb[0].mxu0 %v8476
        %v8588 = vpop.f32.mrb[0].mxu0
        %v8589 = vadd.f32 0.0, %v8588
        %v8590 = vpop.f32.mrb[0].mxu0
        %v8591 = vpop.f32.mrb[0].mxu0
        %v8592 = vadd.f32 0.0, %v8591
        %v8593 = vpop.f32.mrb[0].mxu0
        %8594 = vmatprep.mubr.bf16.mxu0 0
        %8595 = vmatmul.mubr.bf16.gmra.mrb[0].mxu0 %v8477
        %v8596 = vpop.f32.mrb[0].mxu0
        %v8597 = vadd.f32 0.0, %v8596
        %v8598 = vpop.f32.mrb[0].mxu0
        %v8599 = vpop.f32.mrb[0].mxu0
        %v8600 = vadd.f32 0.0, %v8599
        %v8601 = vpop.f32.mrb[0].mxu0
        %8602 = vmatprep.mubr.bf16.mxu0 0
        %8603 = vmatmul.mubr.bf16.gmra.mrb[0].mxu0 %v8478
        %v8604 = vpop.f32.mrb[0].mxu0
        %v8605 = vadd.f32 0.0, %v8604
        %v8606 = vpop.f32.mrb[0].mxu0
        %v8607 = vpop.f32.mrb[0].mxu0
        %v8608 = vadd.f32 0.0, %v8607
        %v8609 = vpop.f32.mrb[0].mxu0
        %8610 = vmatprep.mubr.bf16.mxu0 0
        %8611 = vmatmul.mubr.bf16.gmra.mrb[0].mxu0 %v8479
        %v8612 = vpop.f32.mrb[0].mxu0
        %v8613 = vadd.f32 0.0, %v8612
        %v8614 = vpop.f32.mrb[0].mxu0
        %v8615 = vpop.f32.mrb[0].mxu0
        %v8616 = vadd.f32 0.0, %v8615
        %v8617 = vpop.f32.mrb[0].mxu0
        %8618 = vmatprep.mubr.bf16.mxu0 0
        %8619 = vmatmul.mubr.bf16.gmra.mrb[0].mxu0 %v8480
        %v8620 = vpop.f32.mrb[0].mxu0
        %v8621 = vadd.f32 0.0, %v8620
        %v8622 = vpop.f32.mrb[0].mxu0
        %v8623 = vpop.f32.mrb[0].mxu0
        %v8624 = vadd.f32 0.0, %v8623
        %v8625 = vpop.f32.mrb[0].mxu0
        %8626 = vdwg.mxu0
        %v8627 = vadd.f32 %v8420, %v8581
        %v8628 = vadd.f32 %v8421, %v8584
        %v8629 = vadd.f32 %v8422, %v8589
        %v8630 = vadd.f32 %v8423, %v8592
        %v8631 = vadd.f32 %v8424, %v8597
        %v8632 = vadd.f32 %v8425, %v8600
        %v8633 = vadd.f32 %v8426, %v8605
        %v8634 = vadd.f32 %v8427, %v8608
        %v8635 = vadd.f32 %v8428, %v8613
        %v8636 = vadd.f32 %v8429, %v8616
        %v8637 = vadd.f32 %v8430, %v8621
        %v8638 = vadd.f32 %v8431, %v8624
        %v8639 = vmax.f32 %v8627, 0.0
        %v8640 = vmax.f32 %v8628, 0.0
        %v8641 = vmax.f32 %v8629, 0.0
        %v8642 = vmax.f32 %v8630, 0.0
        %v8643 = vmax.f32 %v8631, 0.0
        %v8644 = vmax.f32 %v8632, 0.0
        %v8645 = vmax.f32 %v8633, 0.0
        %v8646 = vmax.f32 %v8634, 0.0
        %v8647 = vmax.f32 %v8635, 0.0
        %v8648 = vmax.f32 %v8636, 0.0
        %v8649 = vmax.f32 %v8637, 0.0
        %v8650 = vmax.f32 %v8638, 0.0
        %8651 = vst [vmem:[%s1053] sm:$0xff] %v8639
        %8652 = vst [vmem:[%s1053 + $0x8] sm:$0xff] %v8640
        %8653 = vst [vmem:[%s1053 + $0x10] sm:$0xff] %v8641
        %8654 = vst [vmem:[%s1053 + $0x18] sm:$0xff] %v8642
        %8655 = vst [vmem:[%s1053 + $0x20] sm:$0xff] %v8643
        %8656 = vst [vmem:[%s1053 + $0x28] sm:$0xff] %v8644
        %8657 = vst [vmem:[%s1053 + $0x30] sm:$0xff] %v8645
        %8658 = vst [vmem:[%s1053 + $0x38] sm:$0xff] %v8646
        %8659 = vst [vmem:[%s1053 + $0x40] sm:$0xff] %v8647
        %8660 = vst [vmem:[%s1053 + $0x48] sm:$0xff] %v8648
        %8661 = vst [vmem:[%s1053 + $0x50] sm:$0xff] %v8649
        %8662 = vst [vmem:[%s1053 + $0x58] sm:$0xff] %v8650
      $region96: #{aspp_forward.1} parent=87 // pred_fallthru
        _
      %s8663 = smul.u32 6, %s34
      %p8664 = scmp.lt.s32.totalorder %s33, 1
      %s8665 = scalar_select %p8664, %s33, 1
      %p8666 = scmp.lt.s32.totalorder %s8663, 17
      %s8667 = scalar_select %p8666, %s8663, 17
      %s8668 = smul.addr %s8667, 2
      %s8669 = smul.addr %s8665, 36
      %s8670 = sadd.s32 %s8668, %s8669
      %s8671 = smul.addr %s8670, 8
      %s8672 = scalar_lea.vmem %s17, %s8671
      // Predicated region
      $region97: #{aspp_forward.1} parent=87 // pred_check
        %p8673 = pneg %p524
      $region98: #{aspp_forward.1} parent=87 // pred_check_branch
        %8675 = sbr.rel (%p8673) target = $region100
      $region99: #{aspp_forward.1} parent=87 // pred_region
        %s8676 = smul.u32 6, %s34
      $region100: #{aspp_forward.1} parent=87 // pred_fallthru
        _
    $region88: #{aspp_forward.1} parent=5 // pred_fallthru
      _
    %p8677 = scmp.le.s32.totalorder 2, %s23
    // Predicated region
    $region101: #{aspp_forward.1} parent=5 // pred_check
      %p8678 = pneg %p8677
    $region102: #{aspp_forward.1} parent=5 // pred_check_branch
      %8680 = sbr.rel (%p8678) target = $region104
    $region103: #{aspp_forward.1} parent=5 // pred_region
      %s8681 = ssub.s32 %s23, 2
      // Predicated region
      $region105: #{aspp_forward.1} parent=103 // pred_check
        %p8682 = pneg %p530
      $region106: #{aspp_forward.1} parent=103 // pred_check_branch
        %8684 = sbr.rel (%p8682) target = $region108
      $region107: #{aspp_forward.1} parent=103 // pred_region
        %s8685 = smul.u32 6, %s37
        %p8686 = scmp.lt.s32.totalorder %s36, 1
        %s8687 = scalar_select %p8686, %s36, 1
        %p8688 = scmp.lt.s32.totalorder %s8685, 17
        %s8689 = scalar_select %p8688, %s8685, 17
        %s8690 = smul.addr %s8689, 2
        %s8691 = smul.addr %s8687, 36
        %s8692 = sadd.s32 %s8690, %s8691
        %s8693 = smul.addr %s8692, 8
        %s8694 = scalar_lea.vmem %s17, %s8693
      $region108: #{aspp_forward.1} parent=103 // pred_fallthru
        _
    $region104: #{aspp_forward.1} parent=5 // pred_fallthru
      _
  $region6: #{aspp_forward.1} parent=0 // loop_footer
    %s27 = sadd.s32 1, %s23
  $region7: #{aspp_forward.1} parent=0 // loop_footer_branch
    %22 = sbr.rel target = $region3
  $region8: #{aspp_forward.1} parent=0 // loop_exit
    _

</llo_original>
